<compile_context>
chip_gen: v7x
topology: tpu7x:2x2x1
jax: 0.10.0
libtpu: 0.0.40
codegen_flags: <defaults>
</compile_context>

<pallas_src>
import jax
import jax.numpy as jnp
from jax.experimental import pallas as pl
from jax.experimental.pallas import tpu as pltpu

LANE = 128

# Set True to feed the MXU bf16 operands (f32 accumulation kept). ~2x MXU throughput on
# v6e/v7x, but loosens numerics; kept False so the self-test holds a tight 1e-4 tolerance.
_USE_BF16_MXU = False


def _rup(n, m=LANE):
    return ((n + m - 1) // m) * m


def _prep_weight(w_oihw, cin_p, cout_p):
    """(C_out, C_in, kh, kw) -> lane-padded im2col matrix (kh*kw*cin_p, cout_p)."""
    cout, cin, kh, kw = w_oihw.shape
    w = jnp.transpose(w_oihw.astype(jnp.float32), (2, 3, 1, 0))      # (kh, kw, cin, cout)
    w = jnp.pad(w, ((0, 0), (0, 0), (0, cin_p - cin), (0, cout_p - cout)))
    return w.reshape(kh * kw * cin_p, cout_p)


def _prep_bias(b, cout_p):
    return jnp.pad(b.astype(jnp.float32), (0, cout_p - b.shape[0])).reshape(1, cout_p)


def _make_kernel(B, H, W, conf1, conf2, conf3, eps, use_bf16):
    """conf = (k, p, cin_padded, cout_padded); all convs are stride-1 'same' convs."""

    def conv_same(x4, w_ref, b_ref, k, p, cin, cout):
        # value-level zero padding (no scratch, no re-zeroing): pad H (leading dim, cheap),
        # then W (sublane dim) with two concatenates.
        xp = x4
        if p > 0:
            zrow = jnp.zeros((B, p, W, cin), jnp.float32)
            xp = jnp.concatenate([zrow, xp, zrow], axis=1)           # (B, H+2p, W,   cin)
            zcol = jnp.zeros((B, H + 2 * p, p, cin), jnp.float32)
            xp = jnp.concatenate([zcol, xp, zcol], axis=2)           # (B, H+2p, W+2p, cin)

        # im2col: one lane-aligned (cin is a multiple of 128) concat of the k*k taps,
        # then a single MXU matmul with K = k*k*cin.
        taps = []
        for kh in range(k):
            for kw in range(k):
                taps.append(xp[:, kh:kh + H, kw:kw + W, :])          # dy slice is leading-axis
        patch = jnp.concatenate(taps, axis=-1) if len(taps) > 1 else taps[0]
        patch = patch.reshape(B * H * W, k * k * cin)

        w = w_ref[...]
        if use_bf16:
            patch = patch.astype(jnp.bfloat16)
            w = w.astype(jnp.bfloat16)
        y = jnp.dot(patch, w, preferred_element_type=jnp.float32)
        y = y + b_ref[...]                                           # (1, cout) broadcast, once
        return y.reshape(B, H, W, cout)

    def kernel(x_ref, w1_ref, b1_ref, w2_ref, b2_ref, w3_ref, b3_ref,
               g_ref, bt_ref, o_ref):
        x = x_ref[...]                                               # already f32, no copy-cast

        # conv_1: Conv -> ReLU -> Conv -> ReLU
        x = jnp.maximum(conv_same(x, w1_ref, b1_ref, *conf1), 0.0)
        x = jnp.maximum(conv_same(x, w2_ref, b2_ref, *conf2), 0.0)

        # BatchNorm2d (training-mode biased batch statistics over N,H,W), fused epilogue:
        # two-pass mean/var for numerics, then one y*scale + shift pass.
        cp2 = conf2[3]
        x2 = x.reshape(B * H * W, cp2)
        mean = jnp.mean(x2, axis=0, keepdims=True)                   # (1, cp2)
        var = jnp.mean(jnp.square(x2 - mean), axis=0, keepdims=True)
        scale = g_ref[...] * jax.lax.rsqrt(var + eps)
        shift = bt_ref[...] - mean * scale
        x = (x2 * scale + shift).reshape(B, H, W, cp2)

        # conv_2: Conv -> ReLU
        x = jnp.maximum(conv_same(x, w3_ref, b3_ref, *conf3), 0.0)

        o_ref[...] = x                                               # lane-dense (last dim = 128k)
    return kernel


def conv_block_3_forward(x_nchw, w1, b1, w2, b2, w3, b3, gamma, beta,
                         strides=(1, 1, 1), pads=(1, 1, 1)):
    """x_nchw: (B, C_in, H, W) like the PyTorch module. Returns NCHW."""
    B, c_in, H, W = x_nchw.shape
    c_mid, c_mid2, c_out = w1.shape[0], w2.shape[0], w3.shape[0]
    k1, k2, k3 = w1.shape[2], w2.shape[2], w3.shape[2]

    for kk, ss, pp in zip((k1, k2, k3), strides, pads):
        # TODO(synk): general strides (s>1) / non-'same' padding need per-stage spatial
        # resizing in the fused path; not implemented here.
        assert ss == 1 and 2 * pp == kk - 1, "fused kernel supports stride-1 'same' convs"

    cp_in, cp1, cp2, cp3 = _rup(c_in), _rup(c_mid), _rup(c_mid2), _rup(c_out)

    # NHWC, lane-padded channels (padded channels stay exactly zero through the whole block).
    x_nhwc = jnp.transpose(x_nchw, (0, 2, 3, 1)).astype(jnp.float32)
    x_nhwc = jnp.pad(x_nhwc, ((0, 0), (0, 0), (0, 0), (0, cp_in - c_in)))

    w1m, b1v = _prep_weight(w1, cp_in, cp1), _prep_bias(b1, cp1)
    w2m, b2v = _prep_weight(w2, cp1, cp2), _prep_bias(b2, cp2)
    w3m, b3v = _prep_weight(w3, cp2, cp3), _prep_bias(b3, cp3)
    g = jnp.pad(gamma.astype(jnp.float32), (0, cp2 - c_mid2)).reshape(1, cp2)
    bt = jnp.pad(beta.astype(jnp.float32), (0, cp2 - c_mid2)).reshape(1, cp2)

    kernel = _make_kernel(
        B, H, W,
        (k1, pads[0], cp_in, cp1),
        (k2, pads[1], cp1, cp2),
        (k3, pads[2], cp2, cp3),
        eps=1e-5, use_bf16=_USE_BF16_MXU)

    out_nhwc = pl.pallas_call(
        kernel,
        out_shape=jax.ShapeDtypeStruct((B, H, W, cp3), jnp.float32),
        in_specs=[pl.BlockSpec(memory_space=pltpu.MemorySpace.VMEM)] * 9,
        out_specs=pl.BlockSpec(memory_space=pltpu.MemorySpace.VMEM),
        # explicit VMEM budget (actual usage at these shapes is only a few MiB).
        compiler_params=pltpu.CompilerParams(vmem_limit_bytes=32 * 1024 * 1024),
    )(x_nhwc, w1m, b1v, w2m, b2v, w3m, b3v, g, bt)

    out_nhwc = out_nhwc[..., :c_out]
    return jnp.transpose(out_nhwc, (0, 3, 1, 2))


def reference_forward(x, w1, b1, w2, b2, w3, b3, gamma, beta,
                      strides=(1, 1, 1), pads=(1, 1, 1)):
    """Pure-JAX reference mirroring the PyTorch forward (training-mode BN)."""
    def conv(x, w, b, s, p):
        y = jax.lax.conv_general_dilated(
            x, w, window_strides=(s, s), padding=((p, p), (p, p)),
            dimension_numbers=("NCHW", "OIHW", "NCHW"))
        return y + b[None, :, None, None]

    x1 = jnp.maximum(conv(x, w1, b1, strides[0], pads[0]), 0.0)
    x1 = jnp.maximum(conv(x1, w2, b2, strides[1], pads[1]), 0.0)
    mean = jnp.mean(x1, axis=(0, 2, 3), keepdims=True)
    var = jnp.mean((x1 - mean) ** 2, axis=(0, 2, 3), keepdims=True)
    x2 = (x1 - mean) / jnp.sqrt(var + 1e-5)
    x2 = gamma[None, :, None, None] * x2 + beta[None, :, None, None]
    x3 = jnp.maximum(conv(x2, w3, b3, strides[2], pads[2]), 0.0)
    return x3


if __name__ == "__main__":
    B, H, W = 2, 16, 16
    ch_in, ch_mid, ch_mid_2, ch_out = 4, 8, 8, 4
    k1 = k2 = k3 = 3
    strides = (1, 1, 1)
    pads = (1, 1, 1)

    key = jax.random.PRNGKey(0)
    kx, kw1, kw2, kw3, kb1, kb2, kb3, kg, kb = jax.random.split(key, 9)

    def xavier(k, cout, cin, ksz):
        fan_in, fan_out = cin * ksz * ksz, cout * ksz * ksz
        bound = (6.0 / (fan_in + fan_out)) ** 0.5
        return jax.random.uniform(k, (cout, cin, ksz, ksz), jnp.float32, -bound, bound)

    x = jax.random.normal(kx, (B, ch_in, H, W), jnp.float32)
    w1 = xavier(kw1, ch_mid, ch_in, k1)
    w2 = xavier(kw2, ch_mid_2, ch_mid, k2)
    w3 = xavier(kw3, ch_out, ch_mid_2, k3)
    b1 = 0.05 * jax.random.normal(kb1, (ch_mid,), jnp.float32)
    b2 = 0.05 * jax.random.normal(kb2, (ch_mid_2,), jnp.float32)
    b3 = 0.05 * jax.random.normal(kb3, (ch_out,), jnp.float32)
    gamma = 1.0 + 0.1 * jax.random.normal(kg, (ch_mid_2,), jnp.float32)
    beta = 0.05 * jax.random.normal(kb, (ch_mid_2,), jnp.float32)

    out = conv_block_3_forward(x, w1, b1, w2, b2, w3, b3, gamma, beta, strides, pads)
    out = jax.block_until_ready(out)

    ref = reference_forward(x, w1, b1, w2, b2, w3, b3, gamma, beta, strides, pads)
    assert out.shape == ref.shape == (B, ch_out, H, W)
    max_err = float(jnp.max(jnp.abs(out - ref)))
    assert jnp.allclose(out, ref, atol=1e-4, rtol=1e-4), f"max abs err = {max_err}"

    print("KERNEL_OK")
</pallas_src>

<mosaic_0001>
module attributes {stable_mosaic.version = 11 : i64} {
  func.func @kernel(%arg0: memref<2x16x16x128xf32, #tpu.memory_space<vmem>>, %arg1: memref<1152x128xf32, #tpu.memory_space<vmem>>, %arg2: memref<1x128xf32, #tpu.memory_space<vmem>>, %arg3: memref<1152x128xf32, #tpu.memory_space<vmem>>, %arg4: memref<1x128xf32, #tpu.memory_space<vmem>>, %arg5: memref<1152x128xf32, #tpu.memory_space<vmem>>, %arg6: memref<1x128xf32, #tpu.memory_space<vmem>>, %arg7: memref<1x128xf32, #tpu.memory_space<vmem>>, %arg8: memref<1x128xf32, #tpu.memory_space<vmem>>, %arg9: memref<2x16x16x128xf32, #tpu.memory_space<vmem>>) attributes {dimension_semantics = [], scalar_prefetch = 0 : i64, scratch_operands = 0 : i64, tpu.core_type = #tpu.core_type<tc>} {
    %c0 = arith.constant 0 : index
    %c0_0 = arith.constant 0 : index
    %c0_1 = arith.constant 0 : index
    %c0_2 = arith.constant 0 : index
    %0 = vector.load %arg0[%c0, %c0_0, %c0_1, %c0_2] : memref<2x16x16x128xf32, #tpu.memory_space<vmem>>, vector<2x16x16x128xf32>
    %cst = arith.constant 0.000000e+00 : f32
    %1 = vector.broadcast %cst : f32 to vector<2x1x16x128xf32>
    %2 = tpu.concatenate %1, %0, %1 in 1 : vector<2x1x16x128xf32>, vector<2x16x16x128xf32>, vector<2x1x16x128xf32> -> vector<2x18x16x128xf32>
    %cst_3 = arith.constant 0.000000e+00 : f32
    %3 = vector.broadcast %cst_3 : f32 to vector<2x18x1x128xf32>
    %4 = tpu.concatenate %3, %2, %3 in 2 : vector<2x18x1x128xf32>, vector<2x18x16x128xf32>, vector<2x18x1x128xf32> -> vector<2x18x18x128xf32>
    %5 = vector.extract_strided_slice %4 {offsets = [0, 0, 0, 0], sizes = [2, 16, 16, 128], strides = [1, 1, 1, 1]} : vector<2x18x18x128xf32> to vector<2x16x16x128xf32>
    %6 = vector.extract_strided_slice %4 {offsets = [0, 0, 1, 0], sizes = [2, 16, 16, 128], strides = [1, 1, 1, 1]} : vector<2x18x18x128xf32> to vector<2x16x16x128xf32>
    %7 = vector.extract_strided_slice %4 {offsets = [0, 0, 2, 0], sizes = [2, 16, 16, 128], strides = [1, 1, 1, 1]} : vector<2x18x18x128xf32> to vector<2x16x16x128xf32>
    %8 = vector.extract_strided_slice %4 {offsets = [0, 1, 0, 0], sizes = [2, 16, 16, 128], strides = [1, 1, 1, 1]} : vector<2x18x18x128xf32> to vector<2x16x16x128xf32>
    %9 = vector.extract_strided_slice %4 {offsets = [0, 1, 1, 0], sizes = [2, 16, 16, 128], strides = [1, 1, 1, 1]} : vector<2x18x18x128xf32> to vector<2x16x16x128xf32>
    %10 = vector.extract_strided_slice %4 {offsets = [0, 1, 2, 0], sizes = [2, 16, 16, 128], strides = [1, 1, 1, 1]} : vector<2x18x18x128xf32> to vector<2x16x16x128xf32>
    %11 = vector.extract_strided_slice %4 {offsets = [0, 2, 0, 0], sizes = [2, 16, 16, 128], strides = [1, 1, 1, 1]} : vector<2x18x18x128xf32> to vector<2x16x16x128xf32>
    %12 = vector.extract_strided_slice %4 {offsets = [0, 2, 1, 0], sizes = [2, 16, 16, 128], strides = [1, 1, 1, 1]} : vector<2x18x18x128xf32> to vector<2x16x16x128xf32>
    %13 = vector.extract_strided_slice %4 {offsets = [0, 2, 2, 0], sizes = [2, 16, 16, 128], strides = [1, 1, 1, 1]} : vector<2x18x18x128xf32> to vector<2x16x16x128xf32>
    %14 = tpu.concatenate %5, %6, %7, %8, %9, %10, %11, %12, %13 in 3 : vector<2x16x16x128xf32>, vector<2x16x16x128xf32>, vector<2x16x16x128xf32>, vector<2x16x16x128xf32>, vector<2x16x16x128xf32>, vector<2x16x16x128xf32>, vector<2x16x16x128xf32>, vector<2x16x16x128xf32>, vector<2x16x16x128xf32> -> vector<2x16x16x1152xf32>
    %15 = vector.shape_cast %14 : vector<2x16x16x1152xf32> to vector<512x1152xf32>
    %c0_4 = arith.constant 0 : index
    %c0_5 = arith.constant 0 : index
    %16 = vector.load %arg1[%c0_4, %c0_5] : memref<1152x128xf32, #tpu.memory_space<vmem>>, vector<1152x128xf32>
    %cst_6 = arith.constant dense<0.000000e+00> : vector<512x128xf32>
    %17 = tpu.matmul %15, %16, %cst_6 {dimension_numbers = #tpu.dot_dimension_numbers<[1], [0], [0], [1], [0, 0, 1, 1], [], []>} : vector<512x1152xf32>, vector<1152x128xf32>, vector<512x128xf32> -> vector<512x128xf32>
    %c0_7 = arith.constant 0 : index
    %c0_8 = arith.constant 0 : index
    %18 = vector.load %arg2[%c0_7, %c0_8] : memref<1x128xf32, #tpu.memory_space<vmem>>, vector<1x128xf32>
    %19 = vector.broadcast %18 : vector<1x128xf32> to vector<512x128xf32>
    %20 = arith.addf %17, %19 : vector<512x128xf32>
    %21 = vector.shape_cast %20 : vector<512x128xf32> to vector<2x16x16x128xf32>
    %cst_9 = arith.constant 0.000000e+00 : f32
    %22 = vector.broadcast %cst_9 : f32 to vector<2x16x16x128xf32>
    %23 = arith.maximumf %21, %22 : vector<2x16x16x128xf32>
    %cst_10 = arith.constant 0.000000e+00 : f32
    %24 = vector.broadcast %cst_10 : f32 to vector<2x1x16x128xf32>
    %25 = tpu.concatenate %24, %23, %24 in 1 : vector<2x1x16x128xf32>, vector<2x16x16x128xf32>, vector<2x1x16x128xf32> -> vector<2x18x16x128xf32>
    %cst_11 = arith.constant 0.000000e+00 : f32
    %26 = vector.broadcast %cst_11 : f32 to vector<2x18x1x128xf32>
    %27 = tpu.concatenate %26, %25, %26 in 2 : vector<2x18x1x128xf32>, vector<2x18x16x128xf32>, vector<2x18x1x128xf32> -> vector<2x18x18x128xf32>
    %28 = vector.extract_strided_slice %27 {offsets = [0, 0, 0, 0], sizes = [2, 16, 16, 128], strides = [1, 1, 1, 1]} : vector<2x18x18x128xf32> to vector<2x16x16x128xf32>
    %29 = vector.extract_strided_slice %27 {offsets = [0, 0, 1, 0], sizes = [2, 16, 16, 128], strides = [1, 1, 1, 1]} : vector<2x18x18x128xf32> to vector<2x16x16x128xf32>
    %30 = vector.extract_strided_slice %27 {offsets = [0, 0, 2, 0], sizes = [2, 16, 16, 128], strides = [1, 1, 1, 1]} : vector<2x18x18x128xf32> to vector<2x16x16x128xf32>
    %31 = vector.extract_strided_slice %27 {offsets = [0, 1, 0, 0], sizes = [2, 16, 16, 128], strides = [1, 1, 1, 1]} : vector<2x18x18x128xf32> to vector<2x16x16x128xf32>
    %32 = vector.extract_strided_slice %27 {offsets = [0, 1, 1, 0], sizes = [2, 16, 16, 128], strides = [1, 1, 1, 1]} : vector<2x18x18x128xf32> to vector<2x16x16x128xf32>
    %33 = vector.extract_strided_slice %27 {offsets = [0, 1, 2, 0], sizes = [2, 16, 16, 128], strides = [1, 1, 1, 1]} : vector<2x18x18x128xf32> to vector<2x16x16x128xf32>
    %34 = vector.extract_strided_slice %27 {offsets = [0, 2, 0, 0], sizes = [2, 16, 16, 128], strides = [1, 1, 1, 1]} : vector<2x18x18x128xf32> to vector<2x16x16x128xf32>
    %35 = vector.extract_strided_slice %27 {offsets = [0, 2, 1, 0], sizes = [2, 16, 16, 128], strides = [1, 1, 1, 1]} : vector<2x18x18x128xf32> to vector<2x16x16x128xf32>
    %36 = vector.extract_strided_slice %27 {offsets = [0, 2, 2, 0], sizes = [2, 16, 16, 128], strides = [1, 1, 1, 1]} : vector<2x18x18x128xf32> to vector<2x16x16x128xf32>
    %37 = tpu.concatenate %28, %29, %30, %31, %32, %33, %34, %35, %36 in 3 : vector<2x16x16x128xf32>, vector<2x16x16x128xf32>, vector<2x16x16x128xf32>, vector<2x16x16x128xf32>, vector<2x16x16x128xf32>, vector<2x16x16x128xf32>, vector<2x16x16x128xf32>, vector<2x16x16x128xf32>, vector<2x16x16x128xf32> -> vector<2x16x16x1152xf32>
    %38 = vector.shape_cast %37 : vector<2x16x16x1152xf32> to vector<512x1152xf32>
    %c0_12 = arith.constant 0 : index
    %c0_13 = arith.constant 0 : index
    %39 = vector.load %arg3[%c0_12, %c0_13] : memref<1152x128xf32, #tpu.memory_space<vmem>>, vector<1152x128xf32>
    %cst_14 = arith.constant dense<0.000000e+00> : vector<512x128xf32>
    %40 = tpu.matmul %38, %39, %cst_14 {dimension_numbers = #tpu.dot_dimension_numbers<[1], [0], [0], [1], [0, 0, 1, 1], [], []>} : vector<512x1152xf32>, vector<1152x128xf32>, vector<512x128xf32> -> vector<512x128xf32>
    %c0_15 = arith.constant 0 : index
    %c0_16 = arith.constant 0 : index
    %41 = vector.load %arg4[%c0_15, %c0_16] : memref<1x128xf32, #tpu.memory_space<vmem>>, vector<1x128xf32>
    %42 = vector.broadcast %41 : vector<1x128xf32> to vector<512x128xf32>
    %43 = arith.addf %40, %42 : vector<512x128xf32>
    %44 = vector.shape_cast %43 : vector<512x128xf32> to vector<2x16x16x128xf32>
    %cst_17 = arith.constant 0.000000e+00 : f32
    %45 = vector.broadcast %cst_17 : f32 to vector<2x16x16x128xf32>
    %46 = arith.maximumf %44, %45 : vector<2x16x16x128xf32>
    %47 = vector.shape_cast %46 : vector<2x16x16x128xf32> to vector<512x128xf32>
    %cst_18 = arith.constant dense<0.000000e+00> : vector<128xf32>
    %48 = vector.multi_reduction <add>, %47, %cst_18 [0] : vector<512x128xf32> to vector<128xf32>
    %49 = vector.shape_cast %48 : vector<128xf32> to vector<1x128xf32>
    %cst_19 = arith.constant 5.120000e+02 : f32
    %50 = vector.broadcast %cst_19 : f32 to vector<1x128xf32>
    %51 = arith.divf %49, %50 : vector<1x128xf32>
    %52 = vector.broadcast %51 : vector<1x128xf32> to vector<512x128xf32>
    %53 = arith.subf %47, %52 : vector<512x128xf32>
    %54 = arith.mulf %53, %53 : vector<512x128xf32>
    %cst_20 = arith.constant dense<0.000000e+00> : vector<128xf32>
    %55 = vector.multi_reduction <add>, %54, %cst_20 [0] : vector<512x128xf32> to vector<128xf32>
    %56 = vector.shape_cast %55 : vector<128xf32> to vector<1x128xf32>
    %cst_21 = arith.constant 5.120000e+02 : f32
    %57 = vector.broadcast %cst_21 : f32 to vector<1x128xf32>
    %58 = arith.divf %56, %57 : vector<1x128xf32>
    %c0_22 = arith.constant 0 : index
    %c0_23 = arith.constant 0 : index
    %59 = vector.load %arg7[%c0_22, %c0_23] : memref<1x128xf32, #tpu.memory_space<vmem>>, vector<1x128xf32>
    %cst_24 = arith.constant 9.99999974E-6 : f32
    %60 = vector.broadcast %cst_24 : f32 to vector<1x128xf32>
    %61 = arith.addf %58, %60 : vector<1x128xf32>
    %62 = math.rsqrt %61 : vector<1x128xf32>
    %63 = arith.mulf %59, %62 : vector<1x128xf32>
    %c0_25 = arith.constant 0 : index
    %c0_26 = arith.constant 0 : index
    %64 = vector.load %arg8[%c0_25, %c0_26] : memref<1x128xf32, #tpu.memory_space<vmem>>, vector<1x128xf32>
    %65 = arith.mulf %51, %63 : vector<1x128xf32>
    %66 = arith.subf %64, %65 : vector<1x128xf32>
    %67 = vector.broadcast %63 : vector<1x128xf32> to vector<512x128xf32>
    %68 = arith.mulf %47, %67 : vector<512x128xf32>
    %69 = vector.broadcast %66 : vector<1x128xf32> to vector<512x128xf32>
    %70 = arith.addf %68, %69 : vector<512x128xf32>
    %71 = vector.shape_cast %70 : vector<512x128xf32> to vector<2x16x16x128xf32>
    %cst_27 = arith.constant 0.000000e+00 : f32
    %72 = vector.broadcast %cst_27 : f32 to vector<2x1x16x128xf32>
    %73 = tpu.concatenate %72, %71, %72 in 1 : vector<2x1x16x128xf32>, vector<2x16x16x128xf32>, vector<2x1x16x128xf32> -> vector<2x18x16x128xf32>
    %cst_28 = arith.constant 0.000000e+00 : f32
    %74 = vector.broadcast %cst_28 : f32 to vector<2x18x1x128xf32>
    %75 = tpu.concatenate %74, %73, %74 in 2 : vector<2x18x1x128xf32>, vector<2x18x16x128xf32>, vector<2x18x1x128xf32> -> vector<2x18x18x128xf32>
    %76 = vector.extract_strided_slice %75 {offsets = [0, 0, 0, 0], sizes = [2, 16, 16, 128], strides = [1, 1, 1, 1]} : vector<2x18x18x128xf32> to vector<2x16x16x128xf32>
    %77 = vector.extract_strided_slice %75 {offsets = [0, 0, 1, 0], sizes = [2, 16, 16, 128], strides = [1, 1, 1, 1]} : vector<2x18x18x128xf32> to vector<2x16x16x128xf32>
    %78 = vector.extract_strided_slice %75 {offsets = [0, 0, 2, 0], sizes = [2, 16, 16, 128], strides = [1, 1, 1, 1]} : vector<2x18x18x128xf32> to vector<2x16x16x128xf32>
    %79 = vector.extract_strided_slice %75 {offsets = [0, 1, 0, 0], sizes = [2, 16, 16, 128], strides = [1, 1, 1, 1]} : vector<2x18x18x128xf32> to vector<2x16x16x128xf32>
    %80 = vector.extract_strided_slice %75 {offsets = [0, 1, 1, 0], sizes = [2, 16, 16, 128], strides = [1, 1, 1, 1]} : vector<2x18x18x128xf32> to vector<2x16x16x128xf32>
    %81 = vector.extract_strided_slice %75 {offsets = [0, 1, 2, 0], sizes = [2, 16, 16, 128], strides = [1, 1, 1, 1]} : vector<2x18x18x128xf32> to vector<2x16x16x128xf32>
    %82 = vector.extract_strided_slice %75 {offsets = [0, 2, 0, 0], sizes = [2, 16, 16, 128], strides = [1, 1, 1, 1]} : vector<2x18x18x128xf32> to vector<2x16x16x128xf32>
    %83 = vector.extract_strided_slice %75 {offsets = [0, 2, 1, 0], sizes = [2, 16, 16, 128], strides = [1, 1, 1, 1]} : vector<2x18x18x128xf32> to vector<2x16x16x128xf32>
    %84 = vector.extract_strided_slice %75 {offsets = [0, 2, 2, 0], sizes = [2, 16, 16, 128], strides = [1, 1, 1, 1]} : vector<2x18x18x128xf32> to vector<2x16x16x128xf32>
    %85 = tpu.concatenate %76, %77, %78, %79, %80, %81, %82, %83, %84 in 3 : vector<2x16x16x128xf32>, vector<2x16x16x128xf32>, vector<2x16x16x128xf32>, vector<2x16x16x128xf32>, vector<2x16x16x128xf32>, vector<2x16x16x128xf32>, vector<2x16x16x128xf32>, vector<2x16x16x128xf32>, vector<2x16x16x128xf32> -> vector<2x16x16x1152xf32>
    %86 = vector.shape_cast %85 : vector<2x16x16x1152xf32> to vector<512x1152xf32>
    %c0_29 = arith.constant 0 : index
    %c0_30 = arith.constant 0 : index
    %87 = vector.load %arg5[%c0_29, %c0_30] : memref<1152x128xf32, #tpu.memory_space<vmem>>, vector<1152x128xf32>
    %cst_31 = arith.constant dense<0.000000e+00> : vector<512x128xf32>
    %88 = tpu.matmul %86, %87, %cst_31 {dimension_numbers = #tpu.dot_dimension_numbers<[1], [0], [0], [1], [0, 0, 1, 1], [], []>} : vector<512x1152xf32>, vector<1152x128xf32>, vector<512x128xf32> -> vector<512x128xf32>
    %c0_32 = arith.constant 0 : index
    %c0_33 = arith.constant 0 : index
    %89 = vector.load %arg6[%c0_32, %c0_33] : memref<1x128xf32, #tpu.memory_space<vmem>>, vector<1x128xf32>
    %90 = vector.broadcast %89 : vector<1x128xf32> to vector<512x128xf32>
    %91 = arith.addf %88, %90 : vector<512x128xf32>
    %92 = vector.shape_cast %91 : vector<512x128xf32> to vector<2x16x16x128xf32>
    %cst_34 = arith.constant 0.000000e+00 : f32
    %93 = vector.broadcast %cst_34 : f32 to vector<2x16x16x128xf32>
    %94 = arith.maximumf %92, %93 : vector<2x16x16x128xf32>
    %c0_35 = arith.constant 0 : index
    %c0_36 = arith.constant 0 : index
    %c0_37 = arith.constant 0 : index
    %c0_38 = arith.constant 0 : index
    %95 = vector.load %arg9[%c0_35, %c0_36, %c0_37, %c0_38] : memref<2x16x16x128xf32, #tpu.memory_space<vmem>>, vector<2x16x16x128xf32>
    tpu.vector_store %arg9[%c0_35, %c0_36, %c0_37, %c0_38], %94 {strides = array<i32>} : memref<2x16x16x128xf32, #tpu.memory_space<vmem>>, vector<2x16x16x128xf32>,
    return
  }
}

</mosaic_0001>

<llo_original>
// kernel: tpu_custom_call.1
$region0: #{tpu_custom_call.1}
  #allocation0 [shape = 'u32[]', space=smem, size = 0x4, offset = 0x4, fixed_abs, tag = 'smem constant byte address 0x4 - core index']
  #allocation1 [shape = 'u32[144,128]{1,0:T(1,128)}', space=vmem, size = 0x12000, scoped, tag = 'internal scratch']
  %s0 = inlined_call_operand.hbm [shape: f32[2,16,16,128], index: 0, kind: input, shape index: {}]
  %s1 = inlined_call_operand.hbm [shape: f32[1152,128], index: 1, kind: input, shape index: {}]
  %s2 = inlined_call_operand.vmem [shape: f32[1,128], index: 2, kind: input, shape index: {}]
  %s3 = inlined_call_operand.hbm [shape: f32[1152,128], index: 3, kind: input, shape index: {}]
  %s4 = inlined_call_operand.vmem [shape: f32[1,128], index: 4, kind: input, shape index: {}]
  %s5 = inlined_call_operand.hbm [shape: f32[1152,128], index: 5, kind: input, shape index: {}]
  %s6 = inlined_call_operand.vmem [shape: f32[1,128], index: 6, kind: input, shape index: {}]
  %s7 = inlined_call_operand.vmem [shape: f32[1,128], index: 7, kind: input, shape index: {}]
  %s8 = inlined_call_operand.vmem [shape: f32[1,128], index: 8, kind: input, shape index: {}]
  %s9 = inlined_call_operand.hbm [shape: f32[2,16,16,128], index: 9, kind: output, shape index: {}]
  %s10 = sld [smem:[#allocation0]]
  $region62: #{tpu_custom_call.1} parent=0
    _
  %s12 = ssub.s32 1, %s10
  %s13 = scalar_select 0, %s12, %s10
  $region1: #{tpu_custom_call.1} parent=0
    #allocation2 [shape = 'u8[262144]{0}', space=vmem, size = 0x40000, scoped, tag = 'input window, operand 0, single buffered']
    #allocation3 [shape = 's32[1]{0}', space=sflag, size = 0x4, scoped, tag = 'scoped memory for tpu_custom_call.1']
    #allocation4 [shape = 's32[1]{0}', space=sflag, size = 0x4, scoped, tag = 'scoped memory for tpu_custom_call.1']
    #allocation5 [shape = 'u8[589824]{0}', space=vmem, size = 0x90000, scoped, tag = 'input window, operand 1, single buffered']
    #allocation6 [shape = 's32[1]{0}', space=sflag, size = 0x4, scoped, tag = 'scoped memory for tpu_custom_call.1']
    #allocation7 [shape = 'u8[589824]{0}', space=vmem, size = 0x90000, scoped, tag = 'input window, operand 3, single buffered']
    #allocation8 [shape = 'u8[589824]{0}', space=vmem, size = 0x90000, scoped, tag = 'input window, operand 5, single buffered']
    #allocation9 [shape = 's32[1]{0}', space=sflag, size = 0x4, scoped, tag = 'scoped memory for tpu_custom_call.1']
    #allocation10 [shape = 'u8[262144]{0}', space=vmem, size = 0x40000, scoped, tag = 'output window, operand 0, single buffered']
    %14 = vsyncpa [#allocation3], 0
    %15 = vsyncpa [#allocation6], 0
    %16 = vsyncpa [#allocation9], 0
    %17 = vsyncpa [#allocation4], 0
    // Predicated region
    $region2: #{tpu_custom_call.1} parent=1 // pred_check
      _
    $region3: #{tpu_custom_call.1} parent=1 // pred_check_branch
      %19 = sbr.rel (0) target = $region5
    $region4: #{tpu_custom_call.1} parent=1 // pred_region
      %s21 = ssub.s32 8192, 8192
      %22 = vsyncadd [#allocation3], %s21
      %s23 = sshll.u32 [#allocation2], 4
      %s24 = int_to_ptr.vmem [resolvable:$true] %s23
      %29 = dma.hbm_to_vmem [thread:$0]  %s0, 8192, %s24, [#allocation3], 128, 128, 8
    $region5: #{tpu_custom_call.1} parent=1 // pred_fallthru
      _
    // Predicated region
    $region6: #{tpu_custom_call.1} parent=1 // pred_check
      _
    $region7: #{tpu_custom_call.1} parent=1 // pred_check_branch
      %31 = sbr.rel (0) target = $region9
    $region8: #{tpu_custom_call.1} parent=1 // pred_region
      %s33 = ssub.s32 18432, 18432
      %34 = vsyncadd [#allocation6], %s33
      %s35 = sshll.u32 [#allocation5], 4
      %s36 = int_to_ptr.vmem [resolvable:$true] %s35
      %41 = dma.hbm_to_vmem [thread:$0]  %s1, 18432, %s36, [#allocation6], 128, 128, 8
    $region9: #{tpu_custom_call.1} parent=1 // pred_fallthru
      _
    // Predicated region
    $region10: #{tpu_custom_call.1} parent=1 // pred_check
      _
    $region11: #{tpu_custom_call.1} parent=1 // pred_check_branch
      %43 = sbr.rel (0) target = $region13
    $region12: #{tpu_custom_call.1} parent=1 // pred_region
      _
    $region13: #{tpu_custom_call.1} parent=1 // pred_fallthru
      _
    // Predicated region
    $region14: #{tpu_custom_call.1} parent=1 // pred_check
      _
    $region15: #{tpu_custom_call.1} parent=1 // pred_check_branch
      %45 = sbr.rel (0) target = $region17
    $region16: #{tpu_custom_call.1} parent=1 // pred_region
      %s47 = ssub.s32 18432, 18432
      %48 = vsyncadd [#allocation6], %s47
      %s49 = sshll.u32 [#allocation7], 4
      %s50 = int_to_ptr.vmem [resolvable:$true] %s49
      %55 = dma.hbm_to_vmem [thread:$0]  %s3, 18432, %s50, [#allocation6], 128, 128, 8
    $region17: #{tpu_custom_call.1} parent=1 // pred_fallthru
      _
    // Predicated region
    $region18: #{tpu_custom_call.1} parent=1 // pred_check
      _
    $region19: #{tpu_custom_call.1} parent=1 // pred_check_branch
      %57 = sbr.rel (0) target = $region21
    $region20: #{tpu_custom_call.1} parent=1 // pred_region
      _
    $region21: #{tpu_custom_call.1} parent=1 // pred_fallthru
      _
    // Predicated region
    $region22: #{tpu_custom_call.1} parent=1 // pred_check
      _
    $region23: #{tpu_custom_call.1} parent=1 // pred_check_branch
      %59 = sbr.rel (0) target = $region25
    $region24: #{tpu_custom_call.1} parent=1 // pred_region
      %s61 = ssub.s32 18432, 18432
      %62 = vsyncadd [#allocation9], %s61
      %s63 = sshll.u32 [#allocation8], 4
      %s64 = int_to_ptr.vmem [resolvable:$true] %s63
      %69 = dma.hbm_to_vmem [thread:$0]  %s5, 18432, %s64, [#allocation9], 128, 128, 8
    $region25: #{tpu_custom_call.1} parent=1 // pred_fallthru
      _
    // Predicated region
    $region26: #{tpu_custom_call.1} parent=1 // pred_check
      _
    $region27: #{tpu_custom_call.1} parent=1 // pred_check_branch
      %71 = sbr.rel (0) target = $region29
    $region28: #{tpu_custom_call.1} parent=1 // pred_region
      _
    $region29: #{tpu_custom_call.1} parent=1 // pred_fallthru
      _
    // Predicated region
    $region30: #{tpu_custom_call.1} parent=1 // pred_check
      _
    $region31: #{tpu_custom_call.1} parent=1 // pred_check_branch
      %73 = sbr.rel (0) target = $region33
    $region32: #{tpu_custom_call.1} parent=1 // pred_region
      _
    $region33: #{tpu_custom_call.1} parent=1 // pred_fallthru
      _
    // Predicated region
    $region34: #{tpu_custom_call.1} parent=1 // pred_check
      _
    $region35: #{tpu_custom_call.1} parent=1 // pred_check_branch
      %75 = sbr.rel (0) target = $region37
    $region36: #{tpu_custom_call.1} parent=1 // pred_region
      _
    $region37: #{tpu_custom_call.1} parent=1 // pred_fallthru
      _
    // Predicated region
    $region38: #{tpu_custom_call.1} parent=1 // pred_check
      _
    $region39: #{tpu_custom_call.1} parent=1 // pred_check_branch
      %77 = sbr.rel (0) target = $region41
    $region40: #{tpu_custom_call.1} parent=1 // pred_region
      %78 = dma.done [#allocation3], 8192
    $region41: #{tpu_custom_call.1} parent=1 // pred_fallthru
      _
    // Predicated region
    $region42: #{tpu_custom_call.1} parent=1 // pred_check
      _
    $region43: #{tpu_custom_call.1} parent=1 // pred_check_branch
      %80 = sbr.rel (0) target = $region45
    $region44: #{tpu_custom_call.1} parent=1 // pred_region
      %81 = dma.done [#allocation6], 18432
    $region45: #{tpu_custom_call.1} parent=1 // pred_fallthru
      _
    // Predicated region
    $region46: #{tpu_custom_call.1} parent=1 // pred_check
      _
    $region47: #{tpu_custom_call.1} parent=1 // pred_check_branch
      %83 = sbr.rel (0) target = $region49
    $region48: #{tpu_custom_call.1} parent=1 // pred_region
      %84 = dma.done [#allocation6], 18432
    $region49: #{tpu_custom_call.1} parent=1 // pred_fallthru
      _
    // Predicated region
    $region50: #{tpu_custom_call.1} parent=1 // pred_check
      _
    $region51: #{tpu_custom_call.1} parent=1 // pred_check_branch
      %86 = sbr.rel (0) target = $region53
    $region52: #{tpu_custom_call.1} parent=1 // pred_region
      %87 = dma.done [#allocation9], 18432
    $region53: #{tpu_custom_call.1} parent=1 // pred_fallthru
      _
    %v88 = vld [vmem:[#allocation2] sm:$0xff]
    %v89 = vld [vmem:[#allocation2 + $0x8] sm:$0xff]
    %v90 = vld [vmem:[#allocation2 + $0x10] sm:$0xff]
    %v91 = vld [vmem:[#allocation2 + $0x18] sm:$0xff]
    %v92 = vld [vmem:[#allocation2 + $0x20] sm:$0xff]
    %v93 = vld [vmem:[#allocation2 + $0x28] sm:$0xff]
    %v94 = vld [vmem:[#allocation2 + $0x30] sm:$0xff]
    %v95 = vld [vmem:[#allocation2 + $0x38] sm:$0xff]
    %v96 = vld [vmem:[#allocation2 + $0x40] sm:$0xff]
    %v97 = vld [vmem:[#allocation2 + $0x48] sm:$0xff]
    %v98 = vld [vmem:[#allocation2 + $0x50] sm:$0xff]
    %v99 = vld [vmem:[#allocation2 + $0x58] sm:$0xff]
    %v100 = vld [vmem:[#allocation2 + $0x60] sm:$0xff]
    %v101 = vld [vmem:[#allocation2 + $0x68] sm:$0xff]
    %v102 = vld [vmem:[#allocation2 + $0x70] sm:$0xff]
    %v103 = vld [vmem:[#allocation2 + $0x78] sm:$0xff]
    %v104 = vld [vmem:[#allocation2 + $0x80] sm:$0xff]
    %v105 = vld [vmem:[#allocation2 + $0x88] sm:$0xff]
    %v106 = vld [vmem:[#allocation2 + $0x90] sm:$0xff]
    %v107 = vld [vmem:[#allocation2 + $0x98] sm:$0xff]
    %v108 = vld [vmem:[#allocation2 + $0xa0] sm:$0xff]
    %v109 = vld [vmem:[#allocation2 + $0xa8] sm:$0xff]
    %v110 = vld [vmem:[#allocation2 + $0xb0] sm:$0xff]
    %v111 = vld [vmem:[#allocation2 + $0xb8] sm:$0xff]
    %v112 = vld [vmem:[#allocation2 + $0xc0] sm:$0xff]
    %v113 = vld [vmem:[#allocation2 + $0xc8] sm:$0xff]
    %v114 = vld [vmem:[#allocation2 + $0xd0] sm:$0xff]
    %v115 = vld [vmem:[#allocation2 + $0xd8] sm:$0xff]
    %v116 = vld [vmem:[#allocation2 + $0xe0] sm:$0xff]
    %v117 = vld [vmem:[#allocation2 + $0xe8] sm:$0xff]
    %v118 = vld [vmem:[#allocation2 + $0xf0] sm:$0xff]
    %v119 = vld [vmem:[#allocation2 + $0xf8] sm:$0xff]
    %v120 = vld [vmem:[#allocation2 + $0x100] sm:$0xff]
    %v121 = vld [vmem:[#allocation2 + $0x108] sm:$0xff]
    %v122 = vld [vmem:[#allocation2 + $0x110] sm:$0xff]
    %v123 = vld [vmem:[#allocation2 + $0x118] sm:$0xff]
    %v124 = vld [vmem:[#allocation2 + $0x120] sm:$0xff]
    %v125 = vld [vmem:[#allocation2 + $0x128] sm:$0xff]
    %v126 = vld [vmem:[#allocation2 + $0x130] sm:$0xff]
    %v127 = vld [vmem:[#allocation2 + $0x138] sm:$0xff]
    %v128 = vld [vmem:[#allocation2 + $0x140] sm:$0xff]
    %v129 = vld [vmem:[#allocation2 + $0x148] sm:$0xff]
    %v130 = vld [vmem:[#allocation2 + $0x150] sm:$0xff]
    %v131 = vld [vmem:[#allocation2 + $0x158] sm:$0xff]
    %v132 = vld [vmem:[#allocation2 + $0x160] sm:$0xff]
    %v133 = vld [vmem:[#allocation2 + $0x168] sm:$0xff]
    %v134 = vld [vmem:[#allocation2 + $0x170] sm:$0xff]
    %v135 = vld [vmem:[#allocation2 + $0x178] sm:$0xff]
    %v136 = vld [vmem:[#allocation2 + $0x180] sm:$0xff]
    %v137 = vld [vmem:[#allocation2 + $0x188] sm:$0xff]
    %v138 = vld [vmem:[#allocation2 + $0x190] sm:$0xff]
    %v139 = vld [vmem:[#allocation2 + $0x198] sm:$0xff]
    %v140 = vld [vmem:[#allocation2 + $0x1a0] sm:$0xff]
    %v141 = vld [vmem:[#allocation2 + $0x1a8] sm:$0xff]
    %v142 = vld [vmem:[#allocation2 + $0x1b0] sm:$0xff]
    %v143 = vld [vmem:[#allocation2 + $0x1b8] sm:$0xff]
    %v144 = vld [vmem:[#allocation2 + $0x1c0] sm:$0xff]
    %v145 = vld [vmem:[#allocation2 + $0x1c8] sm:$0xff]
    %v146 = vld [vmem:[#allocation2 + $0x1d0] sm:$0xff]
    %v147 = vld [vmem:[#allocation2 + $0x1d8] sm:$0xff]
    %v148 = vld [vmem:[#allocation2 + $0x1e0] sm:$0xff]
    %v149 = vld [vmem:[#allocation2 + $0x1e8] sm:$0xff]
    %v150 = vld [vmem:[#allocation2 + $0x1f0] sm:$0xff]
    %v151 = vld [vmem:[#allocation2 + $0x1f8] sm:$0xff]
    %vm217 = vcmask 1040384
    %v218 = vrot.slane 0.0, 7
    %v219 = vsel %vm217, %v218, %v218
    %v220 = vrot.slane %v88, 7
    %v221 = vrot.slane %v89, 7
    %v222 = vsel %vm217, %v220, %v221
    %v223 = vrot.slane %v90, 7
    %v224 = vrot.slane %v91, 7
    %v225 = vsel %vm217, %v223, %v224
    %v226 = vrot.slane %v92, 7
    %v227 = vrot.slane %v93, 7
    %v228 = vsel %vm217, %v226, %v227
    %v229 = vrot.slane %v94, 7
    %v230 = vrot.slane %v95, 7
    %v231 = vsel %vm217, %v229, %v230
    %v232 = vrot.slane %v96, 7
    %v233 = vrot.slane %v97, 7
    %v234 = vsel %vm217, %v232, %v233
    %v235 = vrot.slane %v98, 7
    %v236 = vrot.slane %v99, 7
    %v237 = vsel %vm217, %v235, %v236
    %v238 = vrot.slane %v100, 7
    %v239 = vrot.slane %v101, 7
    %v240 = vsel %vm217, %v238, %v239
    %v241 = vrot.slane %v102, 7
    %v242 = vrot.slane %v103, 7
    %v243 = vsel %vm217, %v241, %v242
    %v244 = vrot.slane %v104, 7
    %v245 = vrot.slane %v105, 7
    %v246 = vsel %vm217, %v244, %v245
    %v247 = vrot.slane %v106, 7
    %v248 = vrot.slane %v107, 7
    %v249 = vsel %vm217, %v247, %v248
    %v250 = vrot.slane %v108, 7
    %v251 = vrot.slane %v109, 7
    %v252 = vsel %vm217, %v250, %v251
    %v253 = vrot.slane %v110, 7
    %v254 = vrot.slane %v111, 7
    %v255 = vsel %vm217, %v253, %v254
    %v256 = vrot.slane %v112, 7
    %v257 = vrot.slane %v113, 7
    %v258 = vsel %vm217, %v256, %v257
    %v259 = vrot.slane %v114, 7
    %v260 = vrot.slane %v115, 7
    %v261 = vsel %vm217, %v259, %v260
    %v262 = vrot.slane %v116, 7
    %v263 = vrot.slane %v117, 7
    %v264 = vsel %vm217, %v262, %v263
    %v265 = vrot.slane %v118, 7
    %v266 = vrot.slane %v119, 7
    %v267 = vsel %vm217, %v265, %v266
    %v268 = vrot.slane %v120, 7
    %v269 = vrot.slane %v121, 7
    %v270 = vsel %vm217, %v268, %v269
    %v271 = vrot.slane %v122, 7
    %v272 = vrot.slane %v123, 7
    %v273 = vsel %vm217, %v271, %v272
    %v274 = vrot.slane %v124, 7
    %v275 = vrot.slane %v125, 7
    %v276 = vsel %vm217, %v274, %v275
    %v277 = vrot.slane %v126, 7
    %v278 = vrot.slane %v127, 7
    %v279 = vsel %vm217, %v277, %v278
    %v280 = vrot.slane %v128, 7
    %v281 = vrot.slane %v129, 7
    %v282 = vsel %vm217, %v280, %v281
    %v283 = vrot.slane %v130, 7
    %v284 = vrot.slane %v131, 7
    %v285 = vsel %vm217, %v283, %v284
    %v286 = vrot.slane %v132, 7
    %v287 = vrot.slane %v133, 7
    %v288 = vsel %vm217, %v286, %v287
    %v289 = vrot.slane %v134, 7
    %v290 = vrot.slane %v135, 7
    %v291 = vsel %vm217, %v289, %v290
    %v292 = vrot.slane %v136, 7
    %v293 = vrot.slane %v137, 7
    %v294 = vsel %vm217, %v292, %v293
    %v295 = vrot.slane %v138, 7
    %v296 = vrot.slane %v139, 7
    %v297 = vsel %vm217, %v295, %v296
    %v298 = vrot.slane %v140, 7
    %v299 = vrot.slane %v141, 7
    %v300 = vsel %vm217, %v298, %v299
    %v301 = vrot.slane %v142, 7
    %v302 = vrot.slane %v143, 7
    %v303 = vsel %vm217, %v301, %v302
    %v304 = vrot.slane %v144, 7
    %v305 = vrot.slane %v145, 7
    %v306 = vsel %vm217, %v304, %v305
    %v307 = vrot.slane %v146, 7
    %v308 = vrot.slane %v147, 7
    %v309 = vsel %vm217, %v307, %v308
    %v310 = vrot.slane %v148, 7
    %v311 = vrot.slane %v149, 7
    %v312 = vsel %vm217, %v310, %v311
    %v313 = vrot.slane %v150, 7
    %v314 = vrot.slane %v151, 7
    %v315 = vsel %vm217, %v313, %v314
    %v414 = vsel %vm217, 0.0, %v218
    %v415 = vsel %vm217, 0.0, %v220
    %v416 = vsel %vm217, 0.0, %v223
    %v417 = vsel %vm217, 0.0, %v226
    %v418 = vsel %vm217, 0.0, %v229
    %v419 = vsel %vm217, 0.0, %v232
    %v420 = vsel %vm217, 0.0, %v235
    %v421 = vsel %vm217, 0.0, %v238
    %v422 = vsel %vm217, 0.0, %v241
    %v423 = vsel %vm217, 0.0, %v244
    %v424 = vsel %vm217, 0.0, %v247
    %v425 = vsel %vm217, 0.0, %v250
    %v426 = vsel %vm217, 0.0, %v253
    %v427 = vsel %vm217, 0.0, %v256
    %v428 = vsel %vm217, 0.0, %v259
    %v429 = vsel %vm217, 0.0, %v262
    %v430 = vsel %vm217, 0.0, %v265
    %v431 = vsel %vm217, 0.0, %v268
    %v432 = vsel %vm217, 0.0, %v271
    %v433 = vsel %vm217, 0.0, %v274
    %v434 = vsel %vm217, 0.0, %v277
    %v435 = vsel %vm217, 0.0, %v280
    %v436 = vsel %vm217, 0.0, %v283
    %v437 = vsel %vm217, 0.0, %v286
    %v438 = vsel %vm217, 0.0, %v289
    %v439 = vsel %vm217, 0.0, %v292
    %v440 = vsel %vm217, 0.0, %v295
    %v441 = vsel %vm217, 0.0, %v298
    %v442 = vsel %vm217, 0.0, %v301
    %v443 = vsel %vm217, 0.0, %v304
    %v444 = vsel %vm217, 0.0, %v307
    %v445 = vsel %vm217, 0.0, %v310
    %v446 = vsel %vm217, 0.0, %v313
    %v447 = vsel %vm217, %v218, 0.0
    %v448 = vsel %vm217, %v221, 0.0
    %v449 = vsel %vm217, %v224, 0.0
    %v450 = vsel %vm217, %v227, 0.0
    %v451 = vsel %vm217, %v230, 0.0
    %v452 = vsel %vm217, %v233, 0.0
    %v453 = vsel %vm217, %v236, 0.0
    %v454 = vsel %vm217, %v239, 0.0
    %v455 = vsel %vm217, %v242, 0.0
    %v456 = vsel %vm217, %v245, 0.0
    %v457 = vsel %vm217, %v248, 0.0
    %v458 = vsel %vm217, %v251, 0.0
    %v459 = vsel %vm217, %v254, 0.0
    %v460 = vsel %vm217, %v257, 0.0
    %v461 = vsel %vm217, %v260, 0.0
    %v462 = vsel %vm217, %v263, 0.0
    %v463 = vsel %vm217, %v266, 0.0
    %v464 = vsel %vm217, %v269, 0.0
    %v465 = vsel %vm217, %v272, 0.0
    %v466 = vsel %vm217, %v275, 0.0
    %v467 = vsel %vm217, %v278, 0.0
    %v468 = vsel %vm217, %v281, 0.0
    %v469 = vsel %vm217, %v284, 0.0
    %v470 = vsel %vm217, %v287, 0.0
    %v471 = vsel %vm217, %v290, 0.0
    %v472 = vsel %vm217, %v293, 0.0
    %v473 = vsel %vm217, %v296, 0.0
    %v474 = vsel %vm217, %v299, 0.0
    %v475 = vsel %vm217, %v302, 0.0
    %v476 = vsel %vm217, %v305, 0.0
    %v477 = vsel %vm217, %v308, 0.0
    %v478 = vsel %vm217, %v311, 0.0
    %v479 = vsel %vm217, %v314, 0.0
    %vm542 = vcmask 1046528
    %v543 = vrot.slane %v414, 1
    %v544 = vrot.slane %v219, 1
    %v545 = vsel %vm542, %v543, %v544
    %v546 = vrot.slane %v447, 1
    %v547 = vsel %vm542, %v544, %v546
    %v548 = vrot.slane %v415, 1
    %v549 = vrot.slane %v222, 1
    %v550 = vsel %vm542, %v548, %v549
    %v551 = vrot.slane %v448, 1
    %v552 = vsel %vm542, %v549, %v551
    %v553 = vrot.slane %v416, 1
    %v554 = vrot.slane %v225, 1
    %v555 = vsel %vm542, %v553, %v554
    %v556 = vrot.slane %v449, 1
    %v557 = vsel %vm542, %v554, %v556
    %v558 = vrot.slane %v417, 1
    %v559 = vrot.slane %v228, 1
    %v560 = vsel %vm542, %v558, %v559
    %v561 = vrot.slane %v450, 1
    %v562 = vsel %vm542, %v559, %v561
    %v563 = vrot.slane %v418, 1
    %v564 = vrot.slane %v231, 1
    %v565 = vsel %vm542, %v563, %v564
    %v566 = vrot.slane %v451, 1
    %v567 = vsel %vm542, %v564, %v566
    %v568 = vrot.slane %v419, 1
    %v569 = vrot.slane %v234, 1
    %v570 = vsel %vm542, %v568, %v569
    %v571 = vrot.slane %v452, 1
    %v572 = vsel %vm542, %v569, %v571
    %v573 = vrot.slane %v420, 1
    %v574 = vrot.slane %v237, 1
    %v575 = vsel %vm542, %v573, %v574
    %v576 = vrot.slane %v453, 1
    %v577 = vsel %vm542, %v574, %v576
    %v578 = vrot.slane %v421, 1
    %v579 = vrot.slane %v240, 1
    %v580 = vsel %vm542, %v578, %v579
    %v581 = vrot.slane %v454, 1
    %v582 = vsel %vm542, %v579, %v581
    %v583 = vrot.slane %v422, 1
    %v584 = vrot.slane %v243, 1
    %v585 = vsel %vm542, %v583, %v584
    %v586 = vrot.slane %v455, 1
    %v587 = vsel %vm542, %v584, %v586
    %v588 = vrot.slane %v423, 1
    %v589 = vrot.slane %v246, 1
    %v590 = vsel %vm542, %v588, %v589
    %v591 = vrot.slane %v456, 1
    %v592 = vsel %vm542, %v589, %v591
    %v593 = vrot.slane %v424, 1
    %v594 = vrot.slane %v249, 1
    %v595 = vsel %vm542, %v593, %v594
    %v596 = vrot.slane %v457, 1
    %v597 = vsel %vm542, %v594, %v596
    %v598 = vrot.slane %v425, 1
    %v599 = vrot.slane %v252, 1
    %v600 = vsel %vm542, %v598, %v599
    %v601 = vrot.slane %v458, 1
    %v602 = vsel %vm542, %v599, %v601
    %v603 = vrot.slane %v426, 1
    %v604 = vrot.slane %v255, 1
    %v605 = vsel %vm542, %v603, %v604
    %v606 = vrot.slane %v459, 1
    %v607 = vsel %vm542, %v604, %v606
    %v608 = vrot.slane %v427, 1
    %v609 = vrot.slane %v258, 1
    %v610 = vsel %vm542, %v608, %v609
    %v611 = vrot.slane %v460, 1
    %v612 = vsel %vm542, %v609, %v611
    %v613 = vrot.slane %v428, 1
    %v614 = vrot.slane %v261, 1
    %v615 = vsel %vm542, %v613, %v614
    %v616 = vrot.slane %v461, 1
    %v617 = vsel %vm542, %v614, %v616
    %v618 = vrot.slane %v429, 1
    %v619 = vrot.slane %v264, 1
    %v620 = vsel %vm542, %v618, %v619
    %v621 = vrot.slane %v462, 1
    %v622 = vsel %vm542, %v619, %v621
    %v623 = vrot.slane %v431, 1
    %v624 = vrot.slane %v270, 1
    %v625 = vsel %vm542, %v623, %v624
    %v626 = vrot.slane %v464, 1
    %v627 = vsel %vm542, %v624, %v626
    %v628 = vrot.slane %v432, 1
    %v629 = vrot.slane %v273, 1
    %v630 = vsel %vm542, %v628, %v629
    %v631 = vrot.slane %v465, 1
    %v632 = vsel %vm542, %v629, %v631
    %v633 = vrot.slane %v433, 1
    %v634 = vrot.slane %v276, 1
    %v635 = vsel %vm542, %v633, %v634
    %v636 = vrot.slane %v466, 1
    %v637 = vsel %vm542, %v634, %v636
    %v638 = vrot.slane %v434, 1
    %v639 = vrot.slane %v279, 1
    %v640 = vsel %vm542, %v638, %v639
    %v641 = vrot.slane %v467, 1
    %v642 = vsel %vm542, %v639, %v641
    %v643 = vrot.slane %v435, 1
    %v644 = vrot.slane %v282, 1
    %v645 = vsel %vm542, %v643, %v644
    %v646 = vrot.slane %v468, 1
    %v647 = vsel %vm542, %v644, %v646
    %v648 = vrot.slane %v436, 1
    %v649 = vrot.slane %v285, 1
    %v650 = vsel %vm542, %v648, %v649
    %v651 = vrot.slane %v469, 1
    %v652 = vsel %vm542, %v649, %v651
    %v653 = vrot.slane %v437, 1
    %v654 = vrot.slane %v288, 1
    %v655 = vsel %vm542, %v653, %v654
    %v656 = vrot.slane %v470, 1
    %v657 = vsel %vm542, %v654, %v656
    %v658 = vrot.slane %v438, 1
    %v659 = vrot.slane %v291, 1
    %v660 = vsel %vm542, %v658, %v659
    %v661 = vrot.slane %v471, 1
    %v662 = vsel %vm542, %v659, %v661
    %v663 = vrot.slane %v439, 1
    %v664 = vrot.slane %v294, 1
    %v665 = vsel %vm542, %v663, %v664
    %v666 = vrot.slane %v472, 1
    %v667 = vsel %vm542, %v664, %v666
    %v668 = vrot.slane %v440, 1
    %v669 = vrot.slane %v297, 1
    %v670 = vsel %vm542, %v668, %v669
    %v671 = vrot.slane %v473, 1
    %v672 = vsel %vm542, %v669, %v671
    %v673 = vrot.slane %v441, 1
    %v674 = vrot.slane %v300, 1
    %v675 = vsel %vm542, %v673, %v674
    %v676 = vrot.slane %v474, 1
    %v677 = vsel %vm542, %v674, %v676
    %v678 = vrot.slane %v442, 1
    %v679 = vrot.slane %v303, 1
    %v680 = vsel %vm542, %v678, %v679
    %v681 = vrot.slane %v475, 1
    %v682 = vsel %vm542, %v679, %v681
    %v683 = vrot.slane %v443, 1
    %v684 = vrot.slane %v306, 1
    %v685 = vsel %vm542, %v683, %v684
    %v686 = vrot.slane %v476, 1
    %v687 = vsel %vm542, %v684, %v686
    %v688 = vrot.slane %v444, 1
    %v689 = vrot.slane %v309, 1
    %v690 = vsel %vm542, %v688, %v689
    %v691 = vrot.slane %v477, 1
    %v692 = vsel %vm542, %v689, %v691
    %v693 = vrot.slane %v445, 1
    %v694 = vrot.slane %v312, 1
    %v695 = vsel %vm542, %v693, %v694
    %v696 = vrot.slane %v478, 1
    %v697 = vsel %vm542, %v694, %v696
    %vm760 = vcmask 1045504
    %v761 = vrot.slane %v414, 2
    %v762 = vrot.slane %v219, 2
    %v763 = vsel %vm760, %v761, %v762
    %v764 = vrot.slane %v447, 2
    %v765 = vsel %vm760, %v762, %v764
    %v766 = vrot.slane %v415, 2
    %v767 = vrot.slane %v222, 2
    %v768 = vsel %vm760, %v766, %v767
    %v769 = vrot.slane %v448, 2
    %v770 = vsel %vm760, %v767, %v769
    %v771 = vrot.slane %v416, 2
    %v772 = vrot.slane %v225, 2
    %v773 = vsel %vm760, %v771, %v772
    %v774 = vrot.slane %v449, 2
    %v775 = vsel %vm760, %v772, %v774
    %v776 = vrot.slane %v417, 2
    %v777 = vrot.slane %v228, 2
    %v778 = vsel %vm760, %v776, %v777
    %v779 = vrot.slane %v450, 2
    %v780 = vsel %vm760, %v777, %v779
    %v781 = vrot.slane %v418, 2
    %v782 = vrot.slane %v231, 2
    %v783 = vsel %vm760, %v781, %v782
    %v784 = vrot.slane %v451, 2
    %v785 = vsel %vm760, %v782, %v784
    %v786 = vrot.slane %v419, 2
    %v787 = vrot.slane %v234, 2
    %v788 = vsel %vm760, %v786, %v787
    %v789 = vrot.slane %v452, 2
    %v790 = vsel %vm760, %v787, %v789
    %v791 = vrot.slane %v420, 2
    %v792 = vrot.slane %v237, 2
    %v793 = vsel %vm760, %v791, %v792
    %v794 = vrot.slane %v453, 2
    %v795 = vsel %vm760, %v792, %v794
    %v796 = vrot.slane %v421, 2
    %v797 = vrot.slane %v240, 2
    %v798 = vsel %vm760, %v796, %v797
    %v799 = vrot.slane %v454, 2
    %v800 = vsel %vm760, %v797, %v799
    %v801 = vrot.slane %v422, 2
    %v802 = vrot.slane %v243, 2
    %v803 = vsel %vm760, %v801, %v802
    %v804 = vrot.slane %v455, 2
    %v805 = vsel %vm760, %v802, %v804
    %v806 = vrot.slane %v423, 2
    %v807 = vrot.slane %v246, 2
    %v808 = vsel %vm760, %v806, %v807
    %v809 = vrot.slane %v456, 2
    %v810 = vsel %vm760, %v807, %v809
    %v811 = vrot.slane %v424, 2
    %v812 = vrot.slane %v249, 2
    %v813 = vsel %vm760, %v811, %v812
    %v814 = vrot.slane %v457, 2
    %v815 = vsel %vm760, %v812, %v814
    %v816 = vrot.slane %v425, 2
    %v817 = vrot.slane %v252, 2
    %v818 = vsel %vm760, %v816, %v817
    %v819 = vrot.slane %v458, 2
    %v820 = vsel %vm760, %v817, %v819
    %v821 = vrot.slane %v426, 2
    %v822 = vrot.slane %v255, 2
    %v823 = vsel %vm760, %v821, %v822
    %v824 = vrot.slane %v459, 2
    %v825 = vsel %vm760, %v822, %v824
    %v826 = vrot.slane %v427, 2
    %v827 = vrot.slane %v258, 2
    %v828 = vsel %vm760, %v826, %v827
    %v829 = vrot.slane %v460, 2
    %v830 = vsel %vm760, %v827, %v829
    %v831 = vrot.slane %v428, 2
    %v832 = vrot.slane %v261, 2
    %v833 = vsel %vm760, %v831, %v832
    %v834 = vrot.slane %v461, 2
    %v835 = vsel %vm760, %v832, %v834
    %v836 = vrot.slane %v429, 2
    %v837 = vrot.slane %v264, 2
    %v838 = vsel %vm760, %v836, %v837
    %v839 = vrot.slane %v462, 2
    %v840 = vsel %vm760, %v837, %v839
    %v841 = vrot.slane %v431, 2
    %v842 = vrot.slane %v270, 2
    %v843 = vsel %vm760, %v841, %v842
    %v844 = vrot.slane %v464, 2
    %v845 = vsel %vm760, %v842, %v844
    %v846 = vrot.slane %v432, 2
    %v847 = vrot.slane %v273, 2
    %v848 = vsel %vm760, %v846, %v847
    %v849 = vrot.slane %v465, 2
    %v850 = vsel %vm760, %v847, %v849
    %v851 = vrot.slane %v433, 2
    %v852 = vrot.slane %v276, 2
    %v853 = vsel %vm760, %v851, %v852
    %v854 = vrot.slane %v466, 2
    %v855 = vsel %vm760, %v852, %v854
    %v856 = vrot.slane %v434, 2
    %v857 = vrot.slane %v279, 2
    %v858 = vsel %vm760, %v856, %v857
    %v859 = vrot.slane %v467, 2
    %v860 = vsel %vm760, %v857, %v859
    %v861 = vrot.slane %v435, 2
    %v862 = vrot.slane %v282, 2
    %v863 = vsel %vm760, %v861, %v862
    %v864 = vrot.slane %v468, 2
    %v865 = vsel %vm760, %v862, %v864
    %v866 = vrot.slane %v436, 2
    %v867 = vrot.slane %v285, 2
    %v868 = vsel %vm760, %v866, %v867
    %v869 = vrot.slane %v469, 2
    %v870 = vsel %vm760, %v867, %v869
    %v871 = vrot.slane %v437, 2
    %v872 = vrot.slane %v288, 2
    %v873 = vsel %vm760, %v871, %v872
    %v874 = vrot.slane %v470, 2
    %v875 = vsel %vm760, %v872, %v874
    %v876 = vrot.slane %v438, 2
    %v877 = vrot.slane %v291, 2
    %v878 = vsel %vm760, %v876, %v877
    %v879 = vrot.slane %v471, 2
    %v880 = vsel %vm760, %v877, %v879
    %v881 = vrot.slane %v439, 2
    %v882 = vrot.slane %v294, 2
    %v883 = vsel %vm760, %v881, %v882
    %v884 = vrot.slane %v472, 2
    %v885 = vsel %vm760, %v882, %v884
    %v886 = vrot.slane %v440, 2
    %v887 = vrot.slane %v297, 2
    %v888 = vsel %vm760, %v886, %v887
    %v889 = vrot.slane %v473, 2
    %v890 = vsel %vm760, %v887, %v889
    %v891 = vrot.slane %v441, 2
    %v892 = vrot.slane %v300, 2
    %v893 = vsel %vm760, %v891, %v892
    %v894 = vrot.slane %v474, 2
    %v895 = vsel %vm760, %v892, %v894
    %v896 = vrot.slane %v442, 2
    %v897 = vrot.slane %v303, 2
    %v898 = vsel %vm760, %v896, %v897
    %v899 = vrot.slane %v475, 2
    %v900 = vsel %vm760, %v897, %v899
    %v901 = vrot.slane %v443, 2
    %v902 = vrot.slane %v306, 2
    %v903 = vsel %vm760, %v901, %v902
    %v904 = vrot.slane %v476, 2
    %v905 = vsel %vm760, %v902, %v904
    %v906 = vrot.slane %v444, 2
    %v907 = vrot.slane %v309, 2
    %v908 = vsel %vm760, %v906, %v907
    %v909 = vrot.slane %v477, 2
    %v910 = vsel %vm760, %v907, %v909
    %v911 = vrot.slane %v445, 2
    %v912 = vrot.slane %v312, 2
    %v913 = vsel %vm760, %v911, %v912
    %v914 = vrot.slane %v478, 2
    %v915 = vsel %vm760, %v912, %v914
    %v982 = vrot.slane %v430, 1
    %v983 = vrot.slane %v267, 1
    %v984 = vsel %vm542, %v982, %v983
    %v985 = vrot.slane %v463, 1
    %v986 = vsel %vm542, %v983, %v985
    %v987 = vrot.slane %v446, 1
    %v988 = vrot.slane %v315, 1
    %v989 = vsel %vm542, %v987, %v988
    %v990 = vrot.slane %v479, 1
    %v991 = vsel %vm542, %v988, %v990
    %v996 = vrot.slane %v430, 2
    %v997 = vrot.slane %v267, 2
    %v998 = vsel %vm760, %v996, %v997
    %v999 = vrot.slane %v463, 2
    %v1000 = vsel %vm760, %v997, %v999
    %v1001 = vrot.slane %v446, 2
    %v1002 = vrot.slane %v315, 2
    %v1003 = vsel %vm760, %v1001, %v1002
    %v1004 = vrot.slane %v479, 2
    %v1005 = vsel %vm760, %v1002, %v1004
    %v1010 = vld [vmem:[#allocation5] sm:$0xff]
    %v1011 = vld [vmem:[#allocation5 + $0x8] sm:$0xff]
    %v1012 = vld [vmem:[#allocation5 + $0x10] sm:$0xff]
    %v1013 = vld [vmem:[#allocation5 + $0x18] sm:$0xff]
    %v1014 = vld [vmem:[#allocation5 + $0x20] sm:$0xff]
    %v1015 = vld [vmem:[#allocation5 + $0x28] sm:$0xff]
    %v1016 = vld [vmem:[#allocation5 + $0x30] sm:$0xff]
    %v1017 = vld [vmem:[#allocation5 + $0x38] sm:$0xff]
    %v1018 = vld [vmem:[#allocation5 + $0x40] sm:$0xff]
    %v1019 = vld [vmem:[#allocation5 + $0x48] sm:$0xff]
    %v1020 = vld [vmem:[#allocation5 + $0x50] sm:$0xff]
    %v1021 = vld [vmem:[#allocation5 + $0x58] sm:$0xff]
    %v1022 = vld [vmem:[#allocation5 + $0x60] sm:$0xff]
    %v1023 = vld [vmem:[#allocation5 + $0x68] sm:$0xff]
    %v1024 = vld [vmem:[#allocation5 + $0x70] sm:$0xff]
    %v1025 = vld [vmem:[#allocation5 + $0x78] sm:$0xff]
    %v1026 = vld [vmem:[#allocation5 + $0x80] sm:$0xff]
    %v1027 = vld [vmem:[#allocation5 + $0x88] sm:$0xff]
    %v1028 = vld [vmem:[#allocation5 + $0x90] sm:$0xff]
    %v1029 = vld [vmem:[#allocation5 + $0x98] sm:$0xff]
    %v1030 = vld [vmem:[#allocation5 + $0xa0] sm:$0xff]
    %v1031 = vld [vmem:[#allocation5 + $0xa8] sm:$0xff]
    %v1032 = vld [vmem:[#allocation5 + $0xb0] sm:$0xff]
    %v1033 = vld [vmem:[#allocation5 + $0xb8] sm:$0xff]
    %v1034 = vld [vmem:[#allocation5 + $0xc0] sm:$0xff]
    %v1035 = vld [vmem:[#allocation5 + $0xc8] sm:$0xff]
    %v1036 = vld [vmem:[#allocation5 + $0xd0] sm:$0xff]
    %v1037 = vld [vmem:[#allocation5 + $0xd8] sm:$0xff]
    %v1038 = vld [vmem:[#allocation5 + $0xe0] sm:$0xff]
    %v1039 = vld [vmem:[#allocation5 + $0xe8] sm:$0xff]
    %v1040 = vld [vmem:[#allocation5 + $0xf0] sm:$0xff]
    %v1041 = vld [vmem:[#allocation5 + $0xf8] sm:$0xff]
    %v1042 = vld [vmem:[#allocation5 + $0x100] sm:$0xff]
    %v1043 = vld [vmem:[#allocation5 + $0x108] sm:$0xff]
    %v1044 = vld [vmem:[#allocation5 + $0x110] sm:$0xff]
    %v1045 = vld [vmem:[#allocation5 + $0x118] sm:$0xff]
    %v1046 = vld [vmem:[#allocation5 + $0x120] sm:$0xff]
    %v1047 = vld [vmem:[#allocation5 + $0x128] sm:$0xff]
    %v1048 = vld [vmem:[#allocation5 + $0x130] sm:$0xff]
    %v1049 = vld [vmem:[#allocation5 + $0x138] sm:$0xff]
    %v1050 = vld [vmem:[#allocation5 + $0x140] sm:$0xff]
    %v1051 = vld [vmem:[#allocation5 + $0x148] sm:$0xff]
    %v1052 = vld [vmem:[#allocation5 + $0x150] sm:$0xff]
    %v1053 = vld [vmem:[#allocation5 + $0x158] sm:$0xff]
    %v1054 = vld [vmem:[#allocation5 + $0x160] sm:$0xff]
    %v1055 = vld [vmem:[#allocation5 + $0x168] sm:$0xff]
    %v1056 = vld [vmem:[#allocation5 + $0x170] sm:$0xff]
    %v1057 = vld [vmem:[#allocation5 + $0x178] sm:$0xff]
    %v1058 = vld [vmem:[#allocation5 + $0x180] sm:$0xff]
    %v1059 = vld [vmem:[#allocation5 + $0x188] sm:$0xff]
    %v1060 = vld [vmem:[#allocation5 + $0x190] sm:$0xff]
    %v1061 = vld [vmem:[#allocation5 + $0x198] sm:$0xff]
    %v1062 = vld [vmem:[#allocation5 + $0x1a0] sm:$0xff]
    %v1063 = vld [vmem:[#allocation5 + $0x1a8] sm:$0xff]
    %v1064 = vld [vmem:[#allocation5 + $0x1b0] sm:$0xff]
    %v1065 = vld [vmem:[#allocation5 + $0x1b8] sm:$0xff]
    %v1066 = vld [vmem:[#allocation5 + $0x1c0] sm:$0xff]
    %v1067 = vld [vmem:[#allocation5 + $0x1c8] sm:$0xff]
    %v1068 = vld [vmem:[#allocation5 + $0x1d0] sm:$0xff]
    %v1069 = vld [vmem:[#allocation5 + $0x1d8] sm:$0xff]
    %v1070 = vld [vmem:[#allocation5 + $0x1e0] sm:$0xff]
    %v1071 = vld [vmem:[#allocation5 + $0x1e8] sm:$0xff]
    %v1072 = vld [vmem:[#allocation5 + $0x1f0] sm:$0xff]
    %v1073 = vld [vmem:[#allocation5 + $0x1f8] sm:$0xff]
    %v1074 = vld [vmem:[#allocation5 + $0x200] sm:$0xff]
    %v1075 = vld [vmem:[#allocation5 + $0x208] sm:$0xff]
    %v1076 = vld [vmem:[#allocation5 + $0x210] sm:$0xff]
    %v1077 = vld [vmem:[#allocation5 + $0x218] sm:$0xff]
    %v1078 = vld [vmem:[#allocation5 + $0x220] sm:$0xff]
    %v1079 = vld [vmem:[#allocation5 + $0x228] sm:$0xff]
    %v1080 = vld [vmem:[#allocation5 + $0x230] sm:$0xff]
    %v1081 = vld [vmem:[#allocation5 + $0x238] sm:$0xff]
    %v1082 = vld [vmem:[#allocation5 + $0x240] sm:$0xff]
    %v1083 = vld [vmem:[#allocation5 + $0x248] sm:$0xff]
    %v1084 = vld [vmem:[#allocation5 + $0x250] sm:$0xff]
    %v1085 = vld [vmem:[#allocation5 + $0x258] sm:$0xff]
    %v1086 = vld [vmem:[#allocation5 + $0x260] sm:$0xff]
    %v1087 = vld [vmem:[#allocation5 + $0x268] sm:$0xff]
    %v1088 = vld [vmem:[#allocation5 + $0x270] sm:$0xff]
    %v1089 = vld [vmem:[#allocation5 + $0x278] sm:$0xff]
    %v1090 = vld [vmem:[#allocation5 + $0x280] sm:$0xff]
    %v1091 = vld [vmem:[#allocation5 + $0x288] sm:$0xff]
    %v1092 = vld [vmem:[#allocation5 + $0x290] sm:$0xff]
    %v1093 = vld [vmem:[#allocation5 + $0x298] sm:$0xff]
    %v1094 = vld [vmem:[#allocation5 + $0x2a0] sm:$0xff]
    %v1095 = vld [vmem:[#allocation5 + $0x2a8] sm:$0xff]
    %v1096 = vld [vmem:[#allocation5 + $0x2b0] sm:$0xff]
    %v1097 = vld [vmem:[#allocation5 + $0x2b8] sm:$0xff]
    %v1098 = vld [vmem:[#allocation5 + $0x2c0] sm:$0xff]
    %v1099 = vld [vmem:[#allocation5 + $0x2c8] sm:$0xff]
    %v1100 = vld [vmem:[#allocation5 + $0x2d0] sm:$0xff]
    %v1101 = vld [vmem:[#allocation5 + $0x2d8] sm:$0xff]
    %v1102 = vld [vmem:[#allocation5 + $0x2e0] sm:$0xff]
    %v1103 = vld [vmem:[#allocation5 + $0x2e8] sm:$0xff]
    %v1104 = vld [vmem:[#allocation5 + $0x2f0] sm:$0xff]
    %v1105 = vld [vmem:[#allocation5 + $0x2f8] sm:$0xff]
    %v1106 = vld [vmem:[#allocation5 + $0x300] sm:$0xff]
    %v1107 = vld [vmem:[#allocation5 + $0x308] sm:$0xff]
    %v1108 = vld [vmem:[#allocation5 + $0x310] sm:$0xff]
    %v1109 = vld [vmem:[#allocation5 + $0x318] sm:$0xff]
    %v1110 = vld [vmem:[#allocation5 + $0x320] sm:$0xff]
    %v1111 = vld [vmem:[#allocation5 + $0x328] sm:$0xff]
    %v1112 = vld [vmem:[#allocation5 + $0x330] sm:$0xff]
    %v1113 = vld [vmem:[#allocation5 + $0x338] sm:$0xff]
    %v1114 = vld [vmem:[#allocation5 + $0x340] sm:$0xff]
    %v1115 = vld [vmem:[#allocation5 + $0x348] sm:$0xff]
    %v1116 = vld [vmem:[#allocation5 + $0x350] sm:$0xff]
    %v1117 = vld [vmem:[#allocation5 + $0x358] sm:$0xff]
    %v1118 = vld [vmem:[#allocation5 + $0x360] sm:$0xff]
    %v1119 = vld [vmem:[#allocation5 + $0x368] sm:$0xff]
    %v1120 = vld [vmem:[#allocation5 + $0x370] sm:$0xff]
    %v1121 = vld [vmem:[#allocation5 + $0x378] sm:$0xff]
    %v1122 = vld [vmem:[#allocation5 + $0x380] sm:$0xff]
    %v1123 = vld [vmem:[#allocation5 + $0x388] sm:$0xff]
    %v1124 = vld [vmem:[#allocation5 + $0x390] sm:$0xff]
    %v1125 = vld [vmem:[#allocation5 + $0x398] sm:$0xff]
    %v1126 = vld [vmem:[#allocation5 + $0x3a0] sm:$0xff]
    %v1127 = vld [vmem:[#allocation5 + $0x3a8] sm:$0xff]
    %v1128 = vld [vmem:[#allocation5 + $0x3b0] sm:$0xff]
    %v1129 = vld [vmem:[#allocation5 + $0x3b8] sm:$0xff]
    %v1130 = vld [vmem:[#allocation5 + $0x3c0] sm:$0xff]
    %v1131 = vld [vmem:[#allocation5 + $0x3c8] sm:$0xff]
    %v1132 = vld [vmem:[#allocation5 + $0x3d0] sm:$0xff]
    %v1133 = vld [vmem:[#allocation5 + $0x3d8] sm:$0xff]
    %v1134 = vld [vmem:[#allocation5 + $0x3e0] sm:$0xff]
    %v1135 = vld [vmem:[#allocation5 + $0x3e8] sm:$0xff]
    %v1136 = vld [vmem:[#allocation5 + $0x3f0] sm:$0xff]
    %v1137 = vld [vmem:[#allocation5 + $0x3f8] sm:$0xff]
    %v1138 = vld [vmem:[#allocation5 + $0x400] sm:$0xff]
    %v1139 = vld [vmem:[#allocation5 + $0x408] sm:$0xff]
    %v1140 = vld [vmem:[#allocation5 + $0x410] sm:$0xff]
    %v1141 = vld [vmem:[#allocation5 + $0x418] sm:$0xff]
    %v1142 = vld [vmem:[#allocation5 + $0x420] sm:$0xff]
    %v1143 = vld [vmem:[#allocation5 + $0x428] sm:$0xff]
    %v1144 = vld [vmem:[#allocation5 + $0x430] sm:$0xff]
    %v1145 = vld [vmem:[#allocation5 + $0x438] sm:$0xff]
    %v1146 = vld [vmem:[#allocation5 + $0x440] sm:$0xff]
    %v1147 = vld [vmem:[#allocation5 + $0x448] sm:$0xff]
    %v1148 = vld [vmem:[#allocation5 + $0x450] sm:$0xff]
    %v1149 = vld [vmem:[#allocation5 + $0x458] sm:$0xff]
    %v1150 = vld [vmem:[#allocation5 + $0x460] sm:$0xff]
    %v1151 = vld [vmem:[#allocation5 + $0x468] sm:$0xff]
    %v1152 = vld [vmem:[#allocation5 + $0x470] sm:$0xff]
    %v1153 = vld [vmem:[#allocation5 + $0x478] sm:$0xff]
    %v1154 = vld [vmem:[%s2] sm:$0x1]
    %v1156 = vlaneseq
    %v1157 = vshrl.u32 %v1156, 7
    %v1158 = vsub.s32 0, %v1157
    %v1159 = vrot.slane %v1154, %v1158
    %1161 = vmatprep.subr.mxu0 0.0
    %1162 = vmatpush1.msra.mxu0 %v1010
    %1163 = vmatprep.subr.mxu0 0.0
    %1164 = vmatpush1.msra.mxu0 %v1011
    %1165 = vmatprep.subr.mxu0 0.0
    %1166 = vmatpush1.msra.mxu0 %v1012
    %1167 = vmatprep.subr.mxu0 0.0
    %1168 = vmatpush1.msra.mxu0 %v1013
    %1169 = vmatprep.subr.mxu0 0.0
    %1170 = vmatpush1.msra.mxu0 %v1014
    %1171 = vmatprep.subr.mxu0 0.0
    %1172 = vmatpush1.msra.mxu0 %v1015
    %1173 = vmatprep.subr.mxu0 0.0
    %1174 = vmatpush1.msra.mxu0 %v1016
    %1175 = vmatprep.subr.mxu0 0.0
    %1176 = vmatpush1.msra.mxu0 %v1017
    %1177 = vmatprep.subr.mxu0 0.0
    %1178 = vmatpush1.msra.mxu0 %v1018
    %1179 = vmatprep.subr.mxu0 0.0
    %1180 = vmatpush1.msra.mxu0 %v1019
    %1181 = vmatprep.subr.mxu0 0.0
    %1182 = vmatpush1.msra.mxu0 %v1020
    %1183 = vmatprep.subr.mxu0 0.0
    %1184 = vmatpush1.msra.mxu0 %v1021
    %1185 = vmatprep.subr.mxu0 0.0
    %1186 = vmatpush1.msra.mxu0 %v1022
    %1187 = vmatprep.subr.mxu0 0.0
    %1188 = vmatpush1.msra.mxu0 %v1023
    %1189 = vmatprep.subr.mxu0 0.0
    %1190 = vmatpush1.msra.mxu0 %v1024
    %1191 = vmatprep.subr.mxu0 0.0
    %1192 = vmatpush1.msra.mxu0 %v1025
    %1193 = vmatprep.subr.mxu0 0.0
    %1194 = vmatpush1.msra.mxu0 %v1026
    %1195 = vmatprep.subr.mxu0 0.0
    %1196 = vmatpush1.msra.mxu0 %v1027
    %1197 = vmatprep.subr.mxu0 0.0
    %1198 = vmatpush1.msra.mxu0 %v1028
    %1199 = vmatprep.subr.mxu0 0.0
    %1200 = vmatpush1.msra.mxu0 %v1029
    %1201 = vmatprep.subr.mxu0 0.0
    %1202 = vmatpush1.msra.mxu0 %v1030
    %1203 = vmatprep.subr.mxu0 0.0
    %1204 = vmatpush1.msra.mxu0 %v1031
    %1205 = vmatprep.subr.mxu0 0.0
    %1206 = vmatpush1.msra.mxu0 %v1032
    %1207 = vmatprep.subr.mxu0 0.0
    %1208 = vmatpush1.msra.mxu0 %v1033
    %1209 = vmatprep.subr.mxu0 0.0
    %1210 = vmatpush1.msra.mxu0 %v1034
    %1211 = vmatprep.subr.mxu0 0.0
    %1212 = vmatpush1.msra.mxu0 %v1035
    %1213 = vmatprep.subr.mxu0 0.0
    %1214 = vmatpush1.msra.mxu0 %v1036
    %1215 = vmatprep.subr.mxu0 0.0
    %1216 = vmatpush1.msra.mxu0 %v1037
    %1217 = vmatprep.subr.mxu0 0.0
    %1218 = vmatpush1.msra.mxu0 %v1038
    %1219 = vmatprep.subr.mxu0 0.0
    %1220 = vmatpush1.msra.mxu0 %v1039
    %1221 = vmatprep.subr.mxu0 0.0
    %1222 = vmatpush1.msra.mxu0 %v1040
    %1223 = vmatprep.subr.mxu0 0.0
    %1224 = vmatpush1.msra.mxu0 %v1041
    %1225 = vmatprep.mubr.f32.mxu0 %v545
    %1226 = vmatmul.mubr.f32.gmra.mrb[0].mxu0 %v414
    %v1227 = vpop.f32.mrb[0].mxu0
    %v1228 = vadd.f32 %v1159, %v1227
    %v1229 = vpop.f32.mrb[0].mxu0
    %1230 = vmatprep.mubr.f32.mxu0 %v547
    %1231 = vmatmul.mubr.f32.gmra.mrb[0].mxu0 %v219
    %v1232 = vpop.f32.mrb[0].mxu0
    %v1233 = vadd.f32 %v1159, %v1232
    %v1234 = vpop.f32.mrb[0].mxu0
    %1235 = vmatprep.mubr.f32.mxu0 %v550
    %1236 = vmatmul.mubr.f32.gmra.mrb[0].mxu0 %v415
    %v1237 = vpop.f32.mrb[0].mxu0
    %v1238 = vadd.f32 %v1159, %v1237
    %v1239 = vpop.f32.mrb[0].mxu0
    %1240 = vmatprep.mubr.f32.mxu0 %v552
    %1241 = vmatmul.mubr.f32.gmra.mrb[0].mxu0 %v222
    %v1242 = vpop.f32.mrb[0].mxu0
    %v1243 = vadd.f32 %v1159, %v1242
    %v1244 = vpop.f32.mrb[0].mxu0
    %1245 = vmatprep.mubr.f32.mxu0 %v555
    %1246 = vmatmul.mubr.f32.gmra.mrb[0].mxu0 %v416
    %v1247 = vpop.f32.mrb[0].mxu0
    %v1248 = vadd.f32 %v1159, %v1247
    %v1249 = vpop.f32.mrb[0].mxu0
    %1250 = vmatprep.mubr.f32.mxu0 %v557
    %1251 = vmatmul.mubr.f32.gmra.mrb[0].mxu0 %v225
    %v1252 = vpop.f32.mrb[0].mxu0
    %v1253 = vadd.f32 %v1159, %v1252
    %v1254 = vpop.f32.mrb[0].mxu0
    %1255 = vmatprep.mubr.f32.mxu0 %v560
    %1256 = vmatmul.mubr.f32.gmra.mrb[0].mxu0 %v417
    %v1257 = vpop.f32.mrb[0].mxu0
    %v1258 = vadd.f32 %v1159, %v1257
    %v1259 = vpop.f32.mrb[0].mxu0
    %1260 = vmatprep.mubr.f32.mxu0 %v562
    %1261 = vmatmul.mubr.f32.gmra.mrb[0].mxu0 %v228
    %v1262 = vpop.f32.mrb[0].mxu0
    %v1263 = vadd.f32 %v1159, %v1262
    %v1264 = vpop.f32.mrb[0].mxu0
    %1265 = vmatprep.mubr.f32.mxu0 %v565
    %1266 = vmatmul.mubr.f32.gmra.mrb[0].mxu0 %v418
    %v1267 = vpop.f32.mrb[0].mxu0
    %v1268 = vadd.f32 %v1159, %v1267
    %v1269 = vpop.f32.mrb[0].mxu0
    %1270 = vmatprep.mubr.f32.mxu0 %v567
    %1271 = vmatmul.mubr.f32.gmra.mrb[0].mxu0 %v231
    %v1272 = vpop.f32.mrb[0].mxu0
    %v1273 = vadd.f32 %v1159, %v1272
    %v1274 = vpop.f32.mrb[0].mxu0
    %1275 = vmatprep.mubr.f32.mxu0 %v570
    %1276 = vmatmul.mubr.f32.gmra.mrb[0].mxu0 %v419
    %v1277 = vpop.f32.mrb[0].mxu0
    %v1278 = vadd.f32 %v1159, %v1277
    %v1279 = vpop.f32.mrb[0].mxu0
    %1280 = vmatprep.mubr.f32.mxu0 %v572
    %1281 = vmatmul.mubr.f32.gmra.mrb[0].mxu0 %v234
    %v1282 = vpop.f32.mrb[0].mxu0
    %v1283 = vadd.f32 %v1159, %v1282
    %v1284 = vpop.f32.mrb[0].mxu0
    %1285 = vmatprep.mubr.f32.mxu0 %v575
    %1286 = vmatmul.mubr.f32.gmra.mrb[0].mxu0 %v420
    %v1287 = vpop.f32.mrb[0].mxu0
    %v1288 = vadd.f32 %v1159, %v1287
    %v1289 = vpop.f32.mrb[0].mxu0
    %1290 = vmatprep.mubr.f32.mxu0 %v577
    %1291 = vmatmul.mubr.f32.gmra.mrb[0].mxu0 %v237
    %v1292 = vpop.f32.mrb[0].mxu0
    %v1293 = vadd.f32 %v1159, %v1292
    %v1294 = vpop.f32.mrb[0].mxu0
    %1295 = vmatprep.mubr.f32.mxu0 %v580
    %1296 = vmatmul.mubr.f32.gmra.mrb[0].mxu0 %v421
    %v1297 = vpop.f32.mrb[0].mxu0
    %v1298 = vadd.f32 %v1159, %v1297
    %v1299 = vpop.f32.mrb[0].mxu0
    %1300 = vmatprep.mubr.f32.mxu0 %v582
    %1301 = vmatmul.mubr.f32.gmra.mrb[0].mxu0 %v240
    %v1302 = vpop.f32.mrb[0].mxu0
    %v1303 = vadd.f32 %v1159, %v1302
    %v1304 = vpop.f32.mrb[0].mxu0
    %1305 = vmatprep.mubr.f32.mxu0 %v585
    %1306 = vmatmul.mubr.f32.gmra.mrb[0].mxu0 %v422
    %v1307 = vpop.f32.mrb[0].mxu0
    %v1308 = vadd.f32 %v1159, %v1307
    %v1309 = vpop.f32.mrb[0].mxu0
    %1310 = vmatprep.mubr.f32.mxu0 %v587
    %1311 = vmatmul.mubr.f32.gmra.mrb[0].mxu0 %v243
    %v1312 = vpop.f32.mrb[0].mxu0
    %v1313 = vadd.f32 %v1159, %v1312
    %v1314 = vpop.f32.mrb[0].mxu0
    %1315 = vmatprep.mubr.f32.mxu0 %v590
    %1316 = vmatmul.mubr.f32.gmra.mrb[0].mxu0 %v423
    %v1317 = vpop.f32.mrb[0].mxu0
    %v1318 = vadd.f32 %v1159, %v1317
    %v1319 = vpop.f32.mrb[0].mxu0
    %1320 = vmatprep.mubr.f32.mxu0 %v592
    %1321 = vmatmul.mubr.f32.gmra.mrb[0].mxu0 %v246
    %v1322 = vpop.f32.mrb[0].mxu0
    %v1323 = vadd.f32 %v1159, %v1322
    %v1324 = vpop.f32.mrb[0].mxu0
    %1325 = vmatprep.mubr.f32.mxu0 %v595
    %1326 = vmatmul.mubr.f32.gmra.mrb[0].mxu0 %v424
    %v1327 = vpop.f32.mrb[0].mxu0
    %v1328 = vadd.f32 %v1159, %v1327
    %v1329 = vpop.f32.mrb[0].mxu0
    %1330 = vmatprep.mubr.f32.mxu0 %v597
    %1331 = vmatmul.mubr.f32.gmra.mrb[0].mxu0 %v249
    %v1332 = vpop.f32.mrb[0].mxu0
    %v1333 = vadd.f32 %v1159, %v1332
    %v1334 = vpop.f32.mrb[0].mxu0
    %1335 = vmatprep.mubr.f32.mxu0 %v600
    %1336 = vmatmul.mubr.f32.gmra.mrb[0].mxu0 %v425
    %v1337 = vpop.f32.mrb[0].mxu0
    %v1338 = vadd.f32 %v1159, %v1337
    %v1339 = vpop.f32.mrb[0].mxu0
    %1340 = vmatprep.mubr.f32.mxu0 %v602
    %1341 = vmatmul.mubr.f32.gmra.mrb[0].mxu0 %v252
    %v1342 = vpop.f32.mrb[0].mxu0
    %v1343 = vadd.f32 %v1159, %v1342
    %v1344 = vpop.f32.mrb[0].mxu0
    %1345 = vmatprep.mubr.f32.mxu0 %v605
    %1346 = vmatmul.mubr.f32.gmra.mrb[0].mxu0 %v426
    %v1347 = vpop.f32.mrb[0].mxu0
    %v1348 = vadd.f32 %v1159, %v1347
    %v1349 = vpop.f32.mrb[0].mxu0
    %1350 = vmatprep.mubr.f32.mxu0 %v607
    %1351 = vmatmul.mubr.f32.gmra.mrb[0].mxu0 %v255
    %v1352 = vpop.f32.mrb[0].mxu0
    %v1353 = vadd.f32 %v1159, %v1352
    %v1354 = vpop.f32.mrb[0].mxu0
    %1355 = vmatprep.mubr.f32.mxu0 %v610
    %1356 = vmatmul.mubr.f32.gmra.mrb[0].mxu0 %v427
    %v1357 = vpop.f32.mrb[0].mxu0
    %v1358 = vadd.f32 %v1159, %v1357
    %v1359 = vpop.f32.mrb[0].mxu0
    %1360 = vmatprep.mubr.f32.mxu0 %v612
    %1361 = vmatmul.mubr.f32.gmra.mrb[0].mxu0 %v258
    %v1362 = vpop.f32.mrb[0].mxu0
    %v1363 = vadd.f32 %v1159, %v1362
    %v1364 = vpop.f32.mrb[0].mxu0
    %1365 = vmatprep.mubr.f32.mxu0 %v615
    %1366 = vmatmul.mubr.f32.gmra.mrb[0].mxu0 %v428
    %v1367 = vpop.f32.mrb[0].mxu0
    %v1368 = vadd.f32 %v1159, %v1367
    %v1369 = vpop.f32.mrb[0].mxu0
    %1370 = vmatprep.mubr.f32.mxu0 %v617
    %1371 = vmatmul.mubr.f32.gmra.mrb[0].mxu0 %v261
    %v1372 = vpop.f32.mrb[0].mxu0
    %v1373 = vadd.f32 %v1159, %v1372
    %v1374 = vpop.f32.mrb[0].mxu0
    %1375 = vmatprep.mubr.f32.mxu0 %v620
    %1376 = vmatmul.mubr.f32.gmra.mrb[0].mxu0 %v429
    %v1377 = vpop.f32.mrb[0].mxu0
    %v1378 = vadd.f32 %v1159, %v1377
    %v1379 = vpop.f32.mrb[0].mxu0
    %1380 = vmatprep.mubr.f32.mxu0 %v622
    %1381 = vmatmul.mubr.f32.gmra.mrb[0].mxu0 %v264
    %v1382 = vpop.f32.mrb[0].mxu0
    %v1383 = vadd.f32 %v1159, %v1382
    %v1384 = vpop.f32.mrb[0].mxu0
    %1385 = vmatprep.mubr.f32.mxu0 %v545
    %1386 = vmatmul.mubr.f32.gmra.mrb[0].mxu0 %v414
    %v1387 = vpop.f32.mrb[0].mxu0
    %v1388 = vadd.f32 %v1159, %v1387
    %v1389 = vpop.f32.mrb[0].mxu0
    %1390 = vmatprep.mubr.f32.mxu0 %v547
    %1391 = vmatmul.mubr.f32.gmra.mrb[0].mxu0 %v219
    %v1392 = vpop.f32.mrb[0].mxu0
    %v1393 = vadd.f32 %v1159, %v1392
    %v1394 = vpop.f32.mrb[0].mxu0
    %1395 = vmatprep.mubr.f32.mxu0 %v625
    %1396 = vmatmul.mubr.f32.gmra.mrb[0].mxu0 %v431
    %v1397 = vpop.f32.mrb[0].mxu0
    %v1398 = vadd.f32 %v1159, %v1397
    %v1399 = vpop.f32.mrb[0].mxu0
    %1400 = vmatprep.mubr.f32.mxu0 %v627
    %1401 = vmatmul.mubr.f32.gmra.mrb[0].mxu0 %v270
    %v1402 = vpop.f32.mrb[0].mxu0
    %v1403 = vadd.f32 %v1159, %v1402
    %v1404 = vpop.f32.mrb[0].mxu0
    %1405 = vmatprep.mubr.f32.mxu0 %v630
    %1406 = vmatmul.mubr.f32.gmra.mrb[0].mxu0 %v432
    %v1407 = vpop.f32.mrb[0].mxu0
    %v1408 = vadd.f32 %v1159, %v1407
    %v1409 = vpop.f32.mrb[0].mxu0
    %1410 = vmatprep.mubr.f32.mxu0 %v632
    %1411 = vmatmul.mubr.f32.gmra.mrb[0].mxu0 %v273
    %v1412 = vpop.f32.mrb[0].mxu0
    %v1413 = vadd.f32 %v1159, %v1412
    %v1414 = vpop.f32.mrb[0].mxu0
    %1415 = vmatprep.mubr.f32.mxu0 %v635
    %1416 = vmatmul.mubr.f32.gmra.mrb[0].mxu0 %v433
    %v1417 = vpop.f32.mrb[0].mxu0
    %v1418 = vadd.f32 %v1159, %v1417
    %v1419 = vpop.f32.mrb[0].mxu0
    %1420 = vmatprep.mubr.f32.mxu0 %v637
    %1421 = vmatmul.mubr.f32.gmra.mrb[0].mxu0 %v276
    %v1422 = vpop.f32.mrb[0].mxu0
    %v1423 = vadd.f32 %v1159, %v1422
    %v1424 = vpop.f32.mrb[0].mxu0
    %1425 = vmatprep.mubr.f32.mxu0 %v640
    %1426 = vmatmul.mubr.f32.gmra.mrb[0].mxu0 %v434
    %v1427 = vpop.f32.mrb[0].mxu0
    %v1428 = vadd.f32 %v1159, %v1427
    %v1429 = vpop.f32.mrb[0].mxu0
    %1430 = vmatprep.mubr.f32.mxu0 %v642
    %1431 = vmatmul.mubr.f32.gmra.mrb[0].mxu0 %v279
    %v1432 = vpop.f32.mrb[0].mxu0
    %v1433 = vadd.f32 %v1159, %v1432
    %v1434 = vpop.f32.mrb[0].mxu0
    %1435 = vmatprep.mubr.f32.mxu0 %v645
    %1436 = vmatmul.mubr.f32.gmra.mrb[0].mxu0 %v435
    %v1437 = vpop.f32.mrb[0].mxu0
    %v1438 = vadd.f32 %v1159, %v1437
    %v1439 = vpop.f32.mrb[0].mxu0
    %1440 = vmatprep.mubr.f32.mxu0 %v647
    %1441 = vmatmul.mubr.f32.gmra.mrb[0].mxu0 %v282
    %v1442 = vpop.f32.mrb[0].mxu0
    %v1443 = vadd.f32 %v1159, %v1442
    %v1444 = vpop.f32.mrb[0].mxu0
    %1445 = vmatprep.mubr.f32.mxu0 %v650
    %1446 = vmatmul.mubr.f32.gmra.mrb[0].mxu0 %v436
    %v1447 = vpop.f32.mrb[0].mxu0
    %v1448 = vadd.f32 %v1159, %v1447
    %v1449 = vpop.f32.mrb[0].mxu0
    %1450 = vmatprep.mubr.f32.mxu0 %v652
    %1451 = vmatmul.mubr.f32.gmra.mrb[0].mxu0 %v285
    %v1452 = vpop.f32.mrb[0].mxu0
    %v1453 = vadd.f32 %v1159, %v1452
    %v1454 = vpop.f32.mrb[0].mxu0
    %1455 = vmatprep.mubr.f32.mxu0 %v655
    %1456 = vmatmul.mubr.f32.gmra.mrb[0].mxu0 %v437
    %v1457 = vpop.f32.mrb[0].mxu0
    %v1458 = vadd.f32 %v1159, %v1457
    %v1459 = vpop.f32.mrb[0].mxu0
    %1460 = vmatprep.mubr.f32.mxu0 %v657
    %1461 = vmatmul.mubr.f32.gmra.mrb[0].mxu0 %v288
    %v1462 = vpop.f32.mrb[0].mxu0
    %v1463 = vadd.f32 %v1159, %v1462
    %v1464 = vpop.f32.mrb[0].mxu0
    %1465 = vmatprep.mubr.f32.mxu0 %v660
    %1466 = vmatmul.mubr.f32.gmra.mrb[0].mxu0 %v438
    %v1467 = vpop.f32.mrb[0].mxu0
    %v1468 = vadd.f32 %v1159, %v1467
    %v1469 = vpop.f32.mrb[0].mxu0
    %1470 = vmatprep.mubr.f32.mxu0 %v662
    %1471 = vmatmul.mubr.f32.gmra.mrb[0].mxu0 %v291
    %v1472 = vpop.f32.mrb[0].mxu0
    %v1473 = vadd.f32 %v1159, %v1472
    %v1474 = vpop.f32.mrb[0].mxu0
    %1475 = vmatprep.mubr.f32.mxu0 %v665
    %1476 = vmatmul.mubr.f32.gmra.mrb[0].mxu0 %v439
    %v1477 = vpop.f32.mrb[0].mxu0
    %v1478 = vadd.f32 %v1159, %v1477
    %v1479 = vpop.f32.mrb[0].mxu0
    %1480 = vmatprep.mubr.f32.mxu0 %v667
    %1481 = vmatmul.mubr.f32.gmra.mrb[0].mxu0 %v294
    %v1482 = vpop.f32.mrb[0].mxu0
    %v1483 = vadd.f32 %v1159, %v1482
    %v1484 = vpop.f32.mrb[0].mxu0
    %1485 = vmatprep.mubr.f32.mxu0 %v670
    %1486 = vmatmul.mubr.f32.gmra.mrb[0].mxu0 %v440
    %v1487 = vpop.f32.mrb[0].mxu0
    %v1488 = vadd.f32 %v1159, %v1487
    %v1489 = vpop.f32.mrb[0].mxu0
    %1490 = vmatprep.mubr.f32.mxu0 %v672
    %1491 = vmatmul.mubr.f32.gmra.mrb[0].mxu0 %v297
    %v1492 = vpop.f32.mrb[0].mxu0
    %v1493 = vadd.f32 %v1159, %v1492
    %v1494 = vpop.f32.mrb[0].mxu0
    %1495 = vmatprep.mubr.f32.mxu0 %v675
    %1496 = vmatmul.mubr.f32.gmra.mrb[0].mxu0 %v441
    %v1497 = vpop.f32.mrb[0].mxu0
    %v1498 = vadd.f32 %v1159, %v1497
    %v1499 = vpop.f32.mrb[0].mxu0
    %1500 = vmatprep.mubr.f32.mxu0 %v677
    %1501 = vmatmul.mubr.f32.gmra.mrb[0].mxu0 %v300
    %v1502 = vpop.f32.mrb[0].mxu0
    %v1503 = vadd.f32 %v1159, %v1502
    %v1504 = vpop.f32.mrb[0].mxu0
    %1505 = vmatprep.mubr.f32.mxu0 %v680
    %1506 = vmatmul.mubr.f32.gmra.mrb[0].mxu0 %v442
    %v1507 = vpop.f32.mrb[0].mxu0
    %v1508 = vadd.f32 %v1159, %v1507
    %v1509 = vpop.f32.mrb[0].mxu0
    %1510 = vmatprep.mubr.f32.mxu0 %v682
    %1511 = vmatmul.mubr.f32.gmra.mrb[0].mxu0 %v303
    %v1512 = vpop.f32.mrb[0].mxu0
    %v1513 = vadd.f32 %v1159, %v1512
    %v1514 = vpop.f32.mrb[0].mxu0
    %1515 = vmatprep.mubr.f32.mxu0 %v685
    %1516 = vmatmul.mubr.f32.gmra.mrb[0].mxu0 %v443
    %v1517 = vpop.f32.mrb[0].mxu0
    %v1518 = vadd.f32 %v1159, %v1517
    %v1519 = vpop.f32.mrb[0].mxu0
    %1520 = vmatprep.mubr.f32.mxu0 %v687
    %1521 = vmatmul.mubr.f32.gmra.mrb[0].mxu0 %v306
    %v1522 = vpop.f32.mrb[0].mxu0
    %v1523 = vadd.f32 %v1159, %v1522
    %v1524 = vpop.f32.mrb[0].mxu0
    %1525 = vmatprep.mubr.f32.mxu0 %v690
    %1526 = vmatmul.mubr.f32.gmra.mrb[0].mxu0 %v444
    %v1527 = vpop.f32.mrb[0].mxu0
    %v1528 = vadd.f32 %v1159, %v1527
    %v1529 = vpop.f32.mrb[0].mxu0
    %1530 = vmatprep.mubr.f32.mxu0 %v692
    %1531 = vmatmul.mubr.f32.gmra.mrb[0].mxu0 %v309
    %v1532 = vpop.f32.mrb[0].mxu0
    %v1533 = vadd.f32 %v1159, %v1532
    %v1534 = vpop.f32.mrb[0].mxu0
    %1535 = vmatprep.mubr.f32.mxu0 %v695
    %1536 = vmatmul.mubr.f32.gmra.mrb[0].mxu0 %v445
    %v1537 = vpop.f32.mrb[0].mxu0
    %v1538 = vadd.f32 %v1159, %v1537
    %v1539 = vpop.f32.mrb[0].mxu0
    %1540 = vmatprep.mubr.f32.mxu0 %v697
    %1541 = vmatmul.mubr.f32.gmra.mrb[0].mxu0 %v312
    %v1542 = vpop.f32.mrb[0].mxu0
    %v1543 = vadd.f32 %v1159, %v1542
    %v1544 = vpop.f32.mrb[0].mxu0
    %1545 = vdwg.mxu0
    %1546 = vmatprep.subr.mxu0 0.0
    %1547 = vmatpush1.msra.mxu0 %v1042
    %1548 = vmatprep.subr.mxu0 0.0
    %1549 = vmatpush1.msra.mxu0 %v1043
    %1550 = vmatprep.subr.mxu0 0.0
    %1551 = vmatpush1.msra.mxu0 %v1044
    %1552 = vmatprep.subr.mxu0 0.0
    %1553 = vmatpush1.msra.mxu0 %v1045
    %1554 = vmatprep.subr.mxu0 0.0
    %1555 = vmatpush1.msra.mxu0 %v1046
    %1556 = vmatprep.subr.mxu0 0.0
    %1557 = vmatpush1.msra.mxu0 %v1047
    %1558 = vmatprep.subr.mxu0 0.0
    %1559 = vmatpush1.msra.mxu0 %v1048
    %1560 = vmatprep.subr.mxu0 0.0
    %1561 = vmatpush1.msra.mxu0 %v1049
    %1562 = vmatprep.subr.mxu0 0.0
    %1563 = vmatpush1.msra.mxu0 %v1050
    %1564 = vmatprep.subr.mxu0 0.0
    %1565 = vmatpush1.msra.mxu0 %v1051
    %1566 = vmatprep.subr.mxu0 0.0
    %1567 = vmatpush1.msra.mxu0 %v1052
    %1568 = vmatprep.subr.mxu0 0.0
    %1569 = vmatpush1.msra.mxu0 %v1053
    %1570 = vmatprep.subr.mxu0 0.0
    %1571 = vmatpush1.msra.mxu0 %v1054
    %1572 = vmatprep.subr.mxu0 0.0
    %1573 = vmatpush1.msra.mxu0 %v1055
    %1574 = vmatprep.subr.mxu0 0.0
    %1575 = vmatpush1.msra.mxu0 %v1056
    %1576 = vmatprep.subr.mxu0 0.0
    %1577 = vmatpush1.msra.mxu0 %v1057
    %1578 = vmatprep.subr.mxu0 0.0
    %1579 = vmatpush1.msra.mxu0 %v1058
    %1580 = vmatprep.subr.mxu0 0.0
    %1581 = vmatpush1.msra.mxu0 %v1059
    %1582 = vmatprep.subr.mxu0 0.0
    %1583 = vmatpush1.msra.mxu0 %v1060
    %1584 = vmatprep.subr.mxu0 0.0
    %1585 = vmatpush1.msra.mxu0 %v1061
    %1586 = vmatprep.subr.mxu0 0.0
    %1587 = vmatpush1.msra.mxu0 %v1062
    %1588 = vmatprep.subr.mxu0 0.0
    %1589 = vmatpush1.msra.mxu0 %v1063
    %1590 = vmatprep.subr.mxu0 0.0
    %1591 = vmatpush1.msra.mxu0 %v1064
    %1592 = vmatprep.subr.mxu0 0.0
    %1593 = vmatpush1.msra.mxu0 %v1065
    %1594 = vmatprep.subr.mxu0 0.0
    %1595 = vmatpush1.msra.mxu0 %v1066
    %1596 = vmatprep.subr.mxu0 0.0
    %1597 = vmatpush1.msra.mxu0 %v1067
    %1598 = vmatprep.subr.mxu0 0.0
    %1599 = vmatpush1.msra.mxu0 %v1068
    %1600 = vmatprep.subr.mxu0 0.0
    %1601 = vmatpush1.msra.mxu0 %v1069
    %1602 = vmatprep.subr.mxu0 0.0
    %1603 = vmatpush1.msra.mxu0 %v1070
    %1604 = vmatprep.subr.mxu0 0.0
    %1605 = vmatpush1.msra.mxu0 %v1071
    %1606 = vmatprep.subr.mxu0 0.0
    %1607 = vmatpush1.msra.mxu0 %v1072
    %1608 = vmatprep.subr.mxu0 0.0
    %1609 = vmatpush1.msra.mxu0 %v1073
    %1610 = vmatprep.mubr.f32.mxu0 %v415
    %1611 = vmatmul.mubr.f32.gmra.mrb[0].mxu0 %v763
    %v1612 = vpop.f32.mrb[0].mxu0
    %v1613 = vadd.f32 %v1228, %v1612
    %v1614 = vpop.f32.mrb[0].mxu0
    %1615 = vmatprep.mubr.f32.mxu0 %v222
    %1616 = vmatmul.mubr.f32.gmra.mrb[0].mxu0 %v765
    %v1617 = vpop.f32.mrb[0].mxu0
    %v1618 = vadd.f32 %v1233, %v1617
    %v1619 = vpop.f32.mrb[0].mxu0
    %1620 = vmatprep.mubr.f32.mxu0 %v416
    %1621 = vmatmul.mubr.f32.gmra.mrb[0].mxu0 %v768
    %v1622 = vpop.f32.mrb[0].mxu0
    %v1623 = vadd.f32 %v1238, %v1622
    %v1624 = vpop.f32.mrb[0].mxu0
    %1625 = vmatprep.mubr.f32.mxu0 %v225
    %1626 = vmatmul.mubr.f32.gmra.mrb[0].mxu0 %v770
    %v1627 = vpop.f32.mrb[0].mxu0
    %v1628 = vadd.f32 %v1243, %v1627
    %v1629 = vpop.f32.mrb[0].mxu0
    %1630 = vmatprep.mubr.f32.mxu0 %v417
    %1631 = vmatmul.mubr.f32.gmra.mrb[0].mxu0 %v773
    %v1632 = vpop.f32.mrb[0].mxu0
    %v1633 = vadd.f32 %v1248, %v1632
    %v1634 = vpop.f32.mrb[0].mxu0
    %1635 = vmatprep.mubr.f32.mxu0 %v228
    %1636 = vmatmul.mubr.f32.gmra.mrb[0].mxu0 %v775
    %v1637 = vpop.f32.mrb[0].mxu0
    %v1638 = vadd.f32 %v1253, %v1637
    %v1639 = vpop.f32.mrb[0].mxu0
    %1640 = vmatprep.mubr.f32.mxu0 %v418
    %1641 = vmatmul.mubr.f32.gmra.mrb[0].mxu0 %v778
    %v1642 = vpop.f32.mrb[0].mxu0
    %v1643 = vadd.f32 %v1258, %v1642
    %v1644 = vpop.f32.mrb[0].mxu0
    %1645 = vmatprep.mubr.f32.mxu0 %v231
    %1646 = vmatmul.mubr.f32.gmra.mrb[0].mxu0 %v780
    %v1647 = vpop.f32.mrb[0].mxu0
    %v1648 = vadd.f32 %v1263, %v1647
    %v1649 = vpop.f32.mrb[0].mxu0
    %1650 = vmatprep.mubr.f32.mxu0 %v419
    %1651 = vmatmul.mubr.f32.gmra.mrb[0].mxu0 %v783
    %v1652 = vpop.f32.mrb[0].mxu0
    %v1653 = vadd.f32 %v1268, %v1652
    %v1654 = vpop.f32.mrb[0].mxu0
    %1655 = vmatprep.mubr.f32.mxu0 %v234
    %1656 = vmatmul.mubr.f32.gmra.mrb[0].mxu0 %v785
    %v1657 = vpop.f32.mrb[0].mxu0
    %v1658 = vadd.f32 %v1273, %v1657
    %v1659 = vpop.f32.mrb[0].mxu0
    %1660 = vmatprep.mubr.f32.mxu0 %v420
    %1661 = vmatmul.mubr.f32.gmra.mrb[0].mxu0 %v788
    %v1662 = vpop.f32.mrb[0].mxu0
    %v1663 = vadd.f32 %v1278, %v1662
    %v1664 = vpop.f32.mrb[0].mxu0
    %1665 = vmatprep.mubr.f32.mxu0 %v237
    %1666 = vmatmul.mubr.f32.gmra.mrb[0].mxu0 %v790
    %v1667 = vpop.f32.mrb[0].mxu0
    %v1668 = vadd.f32 %v1283, %v1667
    %v1669 = vpop.f32.mrb[0].mxu0
    %1670 = vmatprep.mubr.f32.mxu0 %v421
    %1671 = vmatmul.mubr.f32.gmra.mrb[0].mxu0 %v793
    %v1672 = vpop.f32.mrb[0].mxu0
    %v1673 = vadd.f32 %v1288, %v1672
    %v1674 = vpop.f32.mrb[0].mxu0
    %1675 = vmatprep.mubr.f32.mxu0 %v240
    %1676 = vmatmul.mubr.f32.gmra.mrb[0].mxu0 %v795
    %v1677 = vpop.f32.mrb[0].mxu0
    %v1678 = vadd.f32 %v1293, %v1677
    %v1679 = vpop.f32.mrb[0].mxu0
    %1680 = vmatprep.mubr.f32.mxu0 %v422
    %1681 = vmatmul.mubr.f32.gmra.mrb[0].mxu0 %v798
    %v1682 = vpop.f32.mrb[0].mxu0
    %v1683 = vadd.f32 %v1298, %v1682
    %v1684 = vpop.f32.mrb[0].mxu0
    %1685 = vmatprep.mubr.f32.mxu0 %v243
    %1686 = vmatmul.mubr.f32.gmra.mrb[0].mxu0 %v800
    %v1687 = vpop.f32.mrb[0].mxu0
    %v1688 = vadd.f32 %v1303, %v1687
    %v1689 = vpop.f32.mrb[0].mxu0
    %1690 = vmatprep.mubr.f32.mxu0 %v423
    %1691 = vmatmul.mubr.f32.gmra.mrb[0].mxu0 %v803
    %v1692 = vpop.f32.mrb[0].mxu0
    %v1693 = vadd.f32 %v1308, %v1692
    %v1694 = vpop.f32.mrb[0].mxu0
    %1695 = vmatprep.mubr.f32.mxu0 %v246
    %1696 = vmatmul.mubr.f32.gmra.mrb[0].mxu0 %v805
    %v1697 = vpop.f32.mrb[0].mxu0
    %v1698 = vadd.f32 %v1313, %v1697
    %v1699 = vpop.f32.mrb[0].mxu0
    %1700 = vmatprep.mubr.f32.mxu0 %v424
    %1701 = vmatmul.mubr.f32.gmra.mrb[0].mxu0 %v808
    %v1702 = vpop.f32.mrb[0].mxu0
    %v1703 = vadd.f32 %v1318, %v1702
    %v1704 = vpop.f32.mrb[0].mxu0
    %1705 = vmatprep.mubr.f32.mxu0 %v249
    %1706 = vmatmul.mubr.f32.gmra.mrb[0].mxu0 %v810
    %v1707 = vpop.f32.mrb[0].mxu0
    %v1708 = vadd.f32 %v1323, %v1707
    %v1709 = vpop.f32.mrb[0].mxu0
    %1710 = vmatprep.mubr.f32.mxu0 %v425
    %1711 = vmatmul.mubr.f32.gmra.mrb[0].mxu0 %v813
    %v1712 = vpop.f32.mrb[0].mxu0
    %v1713 = vadd.f32 %v1328, %v1712
    %v1714 = vpop.f32.mrb[0].mxu0
    %1715 = vmatprep.mubr.f32.mxu0 %v252
    %1716 = vmatmul.mubr.f32.gmra.mrb[0].mxu0 %v815
    %v1717 = vpop.f32.mrb[0].mxu0
    %v1718 = vadd.f32 %v1333, %v1717
    %v1719 = vpop.f32.mrb[0].mxu0
    %1720 = vmatprep.mubr.f32.mxu0 %v426
    %1721 = vmatmul.mubr.f32.gmra.mrb[0].mxu0 %v818
    %v1722 = vpop.f32.mrb[0].mxu0
    %v1723 = vadd.f32 %v1338, %v1722
    %v1724 = vpop.f32.mrb[0].mxu0
    %1725 = vmatprep.mubr.f32.mxu0 %v255
    %1726 = vmatmul.mubr.f32.gmra.mrb[0].mxu0 %v820
    %v1727 = vpop.f32.mrb[0].mxu0
    %v1728 = vadd.f32 %v1343, %v1727
    %v1729 = vpop.f32.mrb[0].mxu0
    %1730 = vmatprep.mubr.f32.mxu0 %v427
    %1731 = vmatmul.mubr.f32.gmra.mrb[0].mxu0 %v823
    %v1732 = vpop.f32.mrb[0].mxu0
    %v1733 = vadd.f32 %v1348, %v1732
    %v1734 = vpop.f32.mrb[0].mxu0
    %1735 = vmatprep.mubr.f32.mxu0 %v258
    %1736 = vmatmul.mubr.f32.gmra.mrb[0].mxu0 %v825
    %v1737 = vpop.f32.mrb[0].mxu0
    %v1738 = vadd.f32 %v1353, %v1737
    %v1739 = vpop.f32.mrb[0].mxu0
    %1740 = vmatprep.mubr.f32.mxu0 %v428
    %1741 = vmatmul.mubr.f32.gmra.mrb[0].mxu0 %v828
    %v1742 = vpop.f32.mrb[0].mxu0
    %v1743 = vadd.f32 %v1358, %v1742
    %v1744 = vpop.f32.mrb[0].mxu0
    %1745 = vmatprep.mubr.f32.mxu0 %v261
    %1746 = vmatmul.mubr.f32.gmra.mrb[0].mxu0 %v830
    %v1747 = vpop.f32.mrb[0].mxu0
    %v1748 = vadd.f32 %v1363, %v1747
    %v1749 = vpop.f32.mrb[0].mxu0
    %1750 = vmatprep.mubr.f32.mxu0 %v429
    %1751 = vmatmul.mubr.f32.gmra.mrb[0].mxu0 %v833
    %v1752 = vpop.f32.mrb[0].mxu0
    %v1753 = vadd.f32 %v1368, %v1752
    %v1754 = vpop.f32.mrb[0].mxu0
    %1755 = vmatprep.mubr.f32.mxu0 %v264
    %1756 = vmatmul.mubr.f32.gmra.mrb[0].mxu0 %v835
    %v1757 = vpop.f32.mrb[0].mxu0
    %v1758 = vadd.f32 %v1373, %v1757
    %v1759 = vpop.f32.mrb[0].mxu0
    %1760 = vmatprep.mubr.f32.mxu0 %v430
    %1761 = vmatmul.mubr.f32.gmra.mrb[0].mxu0 %v838
    %v1762 = vpop.f32.mrb[0].mxu0
    %v1763 = vadd.f32 %v1378, %v1762
    %v1764 = vpop.f32.mrb[0].mxu0
    %1765 = vmatprep.mubr.f32.mxu0 %v267
    %1766 = vmatmul.mubr.f32.gmra.mrb[0].mxu0 %v840
    %v1767 = vpop.f32.mrb[0].mxu0
    %v1768 = vadd.f32 %v1383, %v1767
    %v1769 = vpop.f32.mrb[0].mxu0
    %1770 = vmatprep.mubr.f32.mxu0 %v431
    %1771 = vmatmul.mubr.f32.gmra.mrb[0].mxu0 %v763
    %v1772 = vpop.f32.mrb[0].mxu0
    %v1773 = vadd.f32 %v1388, %v1772
    %v1774 = vpop.f32.mrb[0].mxu0
    %1775 = vmatprep.mubr.f32.mxu0 %v270
    %1776 = vmatmul.mubr.f32.gmra.mrb[0].mxu0 %v765
    %v1777 = vpop.f32.mrb[0].mxu0
    %v1778 = vadd.f32 %v1393, %v1777
    %v1779 = vpop.f32.mrb[0].mxu0
    %1780 = vmatprep.mubr.f32.mxu0 %v432
    %1781 = vmatmul.mubr.f32.gmra.mrb[0].mxu0 %v843
    %v1782 = vpop.f32.mrb[0].mxu0
    %v1783 = vadd.f32 %v1398, %v1782
    %v1784 = vpop.f32.mrb[0].mxu0
    %1785 = vmatprep.mubr.f32.mxu0 %v273
    %1786 = vmatmul.mubr.f32.gmra.mrb[0].mxu0 %v845
    %v1787 = vpop.f32.mrb[0].mxu0
    %v1788 = vadd.f32 %v1403, %v1787
    %v1789 = vpop.f32.mrb[0].mxu0
    %1790 = vmatprep.mubr.f32.mxu0 %v433
    %1791 = vmatmul.mubr.f32.gmra.mrb[0].mxu0 %v848
    %v1792 = vpop.f32.mrb[0].mxu0
    %v1793 = vadd.f32 %v1408, %v1792
    %v1794 = vpop.f32.mrb[0].mxu0
    %1795 = vmatprep.mubr.f32.mxu0 %v276
    %1796 = vmatmul.mubr.f32.gmra.mrb[0].mxu0 %v850
    %v1797 = vpop.f32.mrb[0].mxu0
    %v1798 = vadd.f32 %v1413, %v1797
    %v1799 = vpop.f32.mrb[0].mxu0
    %1800 = vmatprep.mubr.f32.mxu0 %v434
    %1801 = vmatmul.mubr.f32.gmra.mrb[0].mxu0 %v853
    %v1802 = vpop.f32.mrb[0].mxu0
    %v1803 = vadd.f32 %v1418, %v1802
    %v1804 = vpop.f32.mrb[0].mxu0
    %1805 = vmatprep.mubr.f32.mxu0 %v279
    %1806 = vmatmul.mubr.f32.gmra.mrb[0].mxu0 %v855
    %v1807 = vpop.f32.mrb[0].mxu0
    %v1808 = vadd.f32 %v1423, %v1807
    %v1809 = vpop.f32.mrb[0].mxu0
    %1810 = vmatprep.mubr.f32.mxu0 %v435
    %1811 = vmatmul.mubr.f32.gmra.mrb[0].mxu0 %v858
    %v1812 = vpop.f32.mrb[0].mxu0
    %v1813 = vadd.f32 %v1428, %v1812
    %v1814 = vpop.f32.mrb[0].mxu0
    %1815 = vmatprep.mubr.f32.mxu0 %v282
    %1816 = vmatmul.mubr.f32.gmra.mrb[0].mxu0 %v860
    %v1817 = vpop.f32.mrb[0].mxu0
    %v1818 = vadd.f32 %v1433, %v1817
    %v1819 = vpop.f32.mrb[0].mxu0
    %1820 = vmatprep.mubr.f32.mxu0 %v436
    %1821 = vmatmul.mubr.f32.gmra.mrb[0].mxu0 %v863
    %v1822 = vpop.f32.mrb[0].mxu0
    %v1823 = vadd.f32 %v1438, %v1822
    %v1824 = vpop.f32.mrb[0].mxu0
    %1825 = vmatprep.mubr.f32.mxu0 %v285
    %1826 = vmatmul.mubr.f32.gmra.mrb[0].mxu0 %v865
    %v1827 = vpop.f32.mrb[0].mxu0
    %v1828 = vadd.f32 %v1443, %v1827
    %v1829 = vpop.f32.mrb[0].mxu0
    %1830 = vmatprep.mubr.f32.mxu0 %v437
    %1831 = vmatmul.mubr.f32.gmra.mrb[0].mxu0 %v868
    %v1832 = vpop.f32.mrb[0].mxu0
    %v1833 = vadd.f32 %v1448, %v1832
    %v1834 = vpop.f32.mrb[0].mxu0
    %1835 = vmatprep.mubr.f32.mxu0 %v288
    %1836 = vmatmul.mubr.f32.gmra.mrb[0].mxu0 %v870
    %v1837 = vpop.f32.mrb[0].mxu0
    %v1838 = vadd.f32 %v1453, %v1837
    %v1839 = vpop.f32.mrb[0].mxu0
    %1840 = vmatprep.mubr.f32.mxu0 %v438
    %1841 = vmatmul.mubr.f32.gmra.mrb[0].mxu0 %v873
    %v1842 = vpop.f32.mrb[0].mxu0
    %v1843 = vadd.f32 %v1458, %v1842
    %v1844 = vpop.f32.mrb[0].mxu0
    %1845 = vmatprep.mubr.f32.mxu0 %v291
    %1846 = vmatmul.mubr.f32.gmra.mrb[0].mxu0 %v875
    %v1847 = vpop.f32.mrb[0].mxu0
    %v1848 = vadd.f32 %v1463, %v1847
    %v1849 = vpop.f32.mrb[0].mxu0
    %1850 = vmatprep.mubr.f32.mxu0 %v439
    %1851 = vmatmul.mubr.f32.gmra.mrb[0].mxu0 %v878
    %v1852 = vpop.f32.mrb[0].mxu0
    %v1853 = vadd.f32 %v1468, %v1852
    %v1854 = vpop.f32.mrb[0].mxu0
    %1855 = vmatprep.mubr.f32.mxu0 %v294
    %1856 = vmatmul.mubr.f32.gmra.mrb[0].mxu0 %v880
    %v1857 = vpop.f32.mrb[0].mxu0
    %v1858 = vadd.f32 %v1473, %v1857
    %v1859 = vpop.f32.mrb[0].mxu0
    %1860 = vmatprep.mubr.f32.mxu0 %v440
    %1861 = vmatmul.mubr.f32.gmra.mrb[0].mxu0 %v883
    %v1862 = vpop.f32.mrb[0].mxu0
    %v1863 = vadd.f32 %v1478, %v1862
    %v1864 = vpop.f32.mrb[0].mxu0
    %1865 = vmatprep.mubr.f32.mxu0 %v297
    %1866 = vmatmul.mubr.f32.gmra.mrb[0].mxu0 %v885
    %v1867 = vpop.f32.mrb[0].mxu0
    %v1868 = vadd.f32 %v1483, %v1867
    %v1869 = vpop.f32.mrb[0].mxu0
    %1870 = vmatprep.mubr.f32.mxu0 %v441
    %1871 = vmatmul.mubr.f32.gmra.mrb[0].mxu0 %v888
    %v1872 = vpop.f32.mrb[0].mxu0
    %v1873 = vadd.f32 %v1488, %v1872
    %v1874 = vpop.f32.mrb[0].mxu0
    %1875 = vmatprep.mubr.f32.mxu0 %v300
    %1876 = vmatmul.mubr.f32.gmra.mrb[0].mxu0 %v890
    %v1877 = vpop.f32.mrb[0].mxu0
    %v1878 = vadd.f32 %v1493, %v1877
    %v1879 = vpop.f32.mrb[0].mxu0
    %1880 = vmatprep.mubr.f32.mxu0 %v442
    %1881 = vmatmul.mubr.f32.gmra.mrb[0].mxu0 %v893
    %v1882 = vpop.f32.mrb[0].mxu0
    %v1883 = vadd.f32 %v1498, %v1882
    %v1884 = vpop.f32.mrb[0].mxu0
    %1885 = vmatprep.mubr.f32.mxu0 %v303
    %1886 = vmatmul.mubr.f32.gmra.mrb[0].mxu0 %v895
    %v1887 = vpop.f32.mrb[0].mxu0
    %v1888 = vadd.f32 %v1503, %v1887
    %v1889 = vpop.f32.mrb[0].mxu0
    %1890 = vmatprep.mubr.f32.mxu0 %v443
    %1891 = vmatmul.mubr.f32.gmra.mrb[0].mxu0 %v898
    %v1892 = vpop.f32.mrb[0].mxu0
    %v1893 = vadd.f32 %v1508, %v1892
    %v1894 = vpop.f32.mrb[0].mxu0
    %1895 = vmatprep.mubr.f32.mxu0 %v306
    %1896 = vmatmul.mubr.f32.gmra.mrb[0].mxu0 %v900
    %v1897 = vpop.f32.mrb[0].mxu0
    %v1898 = vadd.f32 %v1513, %v1897
    %v1899 = vpop.f32.mrb[0].mxu0
    %1900 = vmatprep.mubr.f32.mxu0 %v444
    %1901 = vmatmul.mubr.f32.gmra.mrb[0].mxu0 %v903
    %v1902 = vpop.f32.mrb[0].mxu0
    %v1903 = vadd.f32 %v1518, %v1902
    %v1904 = vpop.f32.mrb[0].mxu0
    %1905 = vmatprep.mubr.f32.mxu0 %v309
    %1906 = vmatmul.mubr.f32.gmra.mrb[0].mxu0 %v905
    %v1907 = vpop.f32.mrb[0].mxu0
    %v1908 = vadd.f32 %v1523, %v1907
    %v1909 = vpop.f32.mrb[0].mxu0
    %1910 = vmatprep.mubr.f32.mxu0 %v445
    %1911 = vmatmul.mubr.f32.gmra.mrb[0].mxu0 %v908
    %v1912 = vpop.f32.mrb[0].mxu0
    %v1913 = vadd.f32 %v1528, %v1912
    %v1914 = vpop.f32.mrb[0].mxu0
    %1915 = vmatprep.mubr.f32.mxu0 %v312
    %1916 = vmatmul.mubr.f32.gmra.mrb[0].mxu0 %v910
    %v1917 = vpop.f32.mrb[0].mxu0
    %v1918 = vadd.f32 %v1533, %v1917
    %v1919 = vpop.f32.mrb[0].mxu0
    %1920 = vmatprep.mubr.f32.mxu0 %v446
    %1921 = vmatmul.mubr.f32.gmra.mrb[0].mxu0 %v913
    %v1922 = vpop.f32.mrb[0].mxu0
    %v1923 = vadd.f32 %v1538, %v1922
    %v1924 = vpop.f32.mrb[0].mxu0
    %1925 = vmatprep.mubr.f32.mxu0 %v315
    %1926 = vmatmul.mubr.f32.gmra.mrb[0].mxu0 %v915
    %v1927 = vpop.f32.mrb[0].mxu0
    %v1928 = vadd.f32 %v1543, %v1927
    %v1929 = vpop.f32.mrb[0].mxu0
    %1930 = vdwg.mxu0
    %1931 = vmatprep.subr.mxu0 0.0
    %1932 = vmatpush1.msra.mxu0 %v1074
    %1933 = vmatprep.subr.mxu0 0.0
    %1934 = vmatpush1.msra.mxu0 %v1075
    %1935 = vmatprep.subr.mxu0 0.0
    %1936 = vmatpush1.msra.mxu0 %v1076
    %1937 = vmatprep.subr.mxu0 0.0
    %1938 = vmatpush1.msra.mxu0 %v1077
    %1939 = vmatprep.subr.mxu0 0.0
    %1940 = vmatpush1.msra.mxu0 %v1078
    %1941 = vmatprep.subr.mxu0 0.0
    %1942 = vmatpush1.msra.mxu0 %v1079
    %1943 = vmatprep.subr.mxu0 0.0
    %1944 = vmatpush1.msra.mxu0 %v1080
    %1945 = vmatprep.subr.mxu0 0.0
    %1946 = vmatpush1.msra.mxu0 %v1081
    %1947 = vmatprep.subr.mxu0 0.0
    %1948 = vmatpush1.msra.mxu0 %v1082
    %1949 = vmatprep.subr.mxu0 0.0
    %1950 = vmatpush1.msra.mxu0 %v1083
    %1951 = vmatprep.subr.mxu0 0.0
    %1952 = vmatpush1.msra.mxu0 %v1084
    %1953 = vmatprep.subr.mxu0 0.0
    %1954 = vmatpush1.msra.mxu0 %v1085
    %1955 = vmatprep.subr.mxu0 0.0
    %1956 = vmatpush1.msra.mxu0 %v1086
    %1957 = vmatprep.subr.mxu0 0.0
    %1958 = vmatpush1.msra.mxu0 %v1087
    %1959 = vmatprep.subr.mxu0 0.0
    %1960 = vmatpush1.msra.mxu0 %v1088
    %1961 = vmatprep.subr.mxu0 0.0
    %1962 = vmatpush1.msra.mxu0 %v1089
    %1963 = vmatprep.subr.mxu0 0.0
    %1964 = vmatpush1.msra.mxu0 %v1090
    %1965 = vmatprep.subr.mxu0 0.0
    %1966 = vmatpush1.msra.mxu0 %v1091
    %1967 = vmatprep.subr.mxu0 0.0
    %1968 = vmatpush1.msra.mxu0 %v1092
    %1969 = vmatprep.subr.mxu0 0.0
    %1970 = vmatpush1.msra.mxu0 %v1093
    %1971 = vmatprep.subr.mxu0 0.0
    %1972 = vmatpush1.msra.mxu0 %v1094
    %1973 = vmatprep.subr.mxu0 0.0
    %1974 = vmatpush1.msra.mxu0 %v1095
    %1975 = vmatprep.subr.mxu0 0.0
    %1976 = vmatpush1.msra.mxu0 %v1096
    %1977 = vmatprep.subr.mxu0 0.0
    %1978 = vmatpush1.msra.mxu0 %v1097
    %1979 = vmatprep.subr.mxu0 0.0
    %1980 = vmatpush1.msra.mxu0 %v1098
    %1981 = vmatprep.subr.mxu0 0.0
    %1982 = vmatpush1.msra.mxu0 %v1099
    %1983 = vmatprep.subr.mxu0 0.0
    %1984 = vmatpush1.msra.mxu0 %v1100
    %1985 = vmatprep.subr.mxu0 0.0
    %1986 = vmatpush1.msra.mxu0 %v1101
    %1987 = vmatprep.subr.mxu0 0.0
    %1988 = vmatpush1.msra.mxu0 %v1102
    %1989 = vmatprep.subr.mxu0 0.0
    %1990 = vmatpush1.msra.mxu0 %v1103
    %1991 = vmatprep.subr.mxu0 0.0
    %1992 = vmatpush1.msra.mxu0 %v1104
    %1993 = vmatprep.subr.mxu0 0.0
    %1994 = vmatpush1.msra.mxu0 %v1105
    %1995 = vmatprep.mubr.f32.mxu0 %v768
    %1996 = vmatmul.mubr.f32.gmra.mrb[0].mxu0 %v550
    %v1997 = vpop.f32.mrb[0].mxu0
    %v1998 = vadd.f32 %v1613, %v1997
    %v1999 = vpop.f32.mrb[0].mxu0
    %2000 = vmatprep.mubr.f32.mxu0 %v770
    %2001 = vmatmul.mubr.f32.gmra.mrb[0].mxu0 %v552
    %v2002 = vpop.f32.mrb[0].mxu0
    %v2003 = vadd.f32 %v1618, %v2002
    %v2004 = vpop.f32.mrb[0].mxu0
    %2005 = vmatprep.mubr.f32.mxu0 %v773
    %2006 = vmatmul.mubr.f32.gmra.mrb[0].mxu0 %v555
    %v2007 = vpop.f32.mrb[0].mxu0
    %v2008 = vadd.f32 %v1623, %v2007
    %v2009 = vpop.f32.mrb[0].mxu0
    %2010 = vmatprep.mubr.f32.mxu0 %v775
    %2011 = vmatmul.mubr.f32.gmra.mrb[0].mxu0 %v557
    %v2012 = vpop.f32.mrb[0].mxu0
    %v2013 = vadd.f32 %v1628, %v2012
    %v2014 = vpop.f32.mrb[0].mxu0
    %2015 = vmatprep.mubr.f32.mxu0 %v778
    %2016 = vmatmul.mubr.f32.gmra.mrb[0].mxu0 %v560
    %v2017 = vpop.f32.mrb[0].mxu0
    %v2018 = vadd.f32 %v1633, %v2017
    %v2019 = vpop.f32.mrb[0].mxu0
    %2020 = vmatprep.mubr.f32.mxu0 %v780
    %2021 = vmatmul.mubr.f32.gmra.mrb[0].mxu0 %v562
    %v2022 = vpop.f32.mrb[0].mxu0
    %v2023 = vadd.f32 %v1638, %v2022
    %v2024 = vpop.f32.mrb[0].mxu0
    %2025 = vmatprep.mubr.f32.mxu0 %v783
    %2026 = vmatmul.mubr.f32.gmra.mrb[0].mxu0 %v565
    %v2027 = vpop.f32.mrb[0].mxu0
    %v2028 = vadd.f32 %v1643, %v2027
    %v2029 = vpop.f32.mrb[0].mxu0
    %2030 = vmatprep.mubr.f32.mxu0 %v785
    %2031 = vmatmul.mubr.f32.gmra.mrb[0].mxu0 %v567
    %v2032 = vpop.f32.mrb[0].mxu0
    %v2033 = vadd.f32 %v1648, %v2032
    %v2034 = vpop.f32.mrb[0].mxu0
    %2035 = vmatprep.mubr.f32.mxu0 %v788
    %2036 = vmatmul.mubr.f32.gmra.mrb[0].mxu0 %v570
    %v2037 = vpop.f32.mrb[0].mxu0
    %v2038 = vadd.f32 %v1653, %v2037
    %v2039 = vpop.f32.mrb[0].mxu0
    %2040 = vmatprep.mubr.f32.mxu0 %v790
    %2041 = vmatmul.mubr.f32.gmra.mrb[0].mxu0 %v572
    %v2042 = vpop.f32.mrb[0].mxu0
    %v2043 = vadd.f32 %v1658, %v2042
    %v2044 = vpop.f32.mrb[0].mxu0
    %2045 = vmatprep.mubr.f32.mxu0 %v793
    %2046 = vmatmul.mubr.f32.gmra.mrb[0].mxu0 %v575
    %v2047 = vpop.f32.mrb[0].mxu0
    %v2048 = vadd.f32 %v1663, %v2047
    %v2049 = vpop.f32.mrb[0].mxu0
    %2050 = vmatprep.mubr.f32.mxu0 %v795
    %2051 = vmatmul.mubr.f32.gmra.mrb[0].mxu0 %v577
    %v2052 = vpop.f32.mrb[0].mxu0
    %v2053 = vadd.f32 %v1668, %v2052
    %v2054 = vpop.f32.mrb[0].mxu0
    %2055 = vmatprep.mubr.f32.mxu0 %v798
    %2056 = vmatmul.mubr.f32.gmra.mrb[0].mxu0 %v580
    %v2057 = vpop.f32.mrb[0].mxu0
    %v2058 = vadd.f32 %v1673, %v2057
    %v2059 = vpop.f32.mrb[0].mxu0
    %2060 = vmatprep.mubr.f32.mxu0 %v800
    %2061 = vmatmul.mubr.f32.gmra.mrb[0].mxu0 %v582
    %v2062 = vpop.f32.mrb[0].mxu0
    %v2063 = vadd.f32 %v1678, %v2062
    %v2064 = vpop.f32.mrb[0].mxu0
    %2065 = vmatprep.mubr.f32.mxu0 %v803
    %2066 = vmatmul.mubr.f32.gmra.mrb[0].mxu0 %v585
    %v2067 = vpop.f32.mrb[0].mxu0
    %v2068 = vadd.f32 %v1683, %v2067
    %v2069 = vpop.f32.mrb[0].mxu0
    %2070 = vmatprep.mubr.f32.mxu0 %v805
    %2071 = vmatmul.mubr.f32.gmra.mrb[0].mxu0 %v587
    %v2072 = vpop.f32.mrb[0].mxu0
    %v2073 = vadd.f32 %v1688, %v2072
    %v2074 = vpop.f32.mrb[0].mxu0
    %2075 = vmatprep.mubr.f32.mxu0 %v808
    %2076 = vmatmul.mubr.f32.gmra.mrb[0].mxu0 %v590
    %v2077 = vpop.f32.mrb[0].mxu0
    %v2078 = vadd.f32 %v1693, %v2077
    %v2079 = vpop.f32.mrb[0].mxu0
    %2080 = vmatprep.mubr.f32.mxu0 %v810
    %2081 = vmatmul.mubr.f32.gmra.mrb[0].mxu0 %v592
    %v2082 = vpop.f32.mrb[0].mxu0
    %v2083 = vadd.f32 %v1698, %v2082
    %v2084 = vpop.f32.mrb[0].mxu0
    %2085 = vmatprep.mubr.f32.mxu0 %v813
    %2086 = vmatmul.mubr.f32.gmra.mrb[0].mxu0 %v595
    %v2087 = vpop.f32.mrb[0].mxu0
    %v2088 = vadd.f32 %v1703, %v2087
    %v2089 = vpop.f32.mrb[0].mxu0
    %2090 = vmatprep.mubr.f32.mxu0 %v815
    %2091 = vmatmul.mubr.f32.gmra.mrb[0].mxu0 %v597
    %v2092 = vpop.f32.mrb[0].mxu0
    %v2093 = vadd.f32 %v1708, %v2092
    %v2094 = vpop.f32.mrb[0].mxu0
    %2095 = vmatprep.mubr.f32.mxu0 %v818
    %2096 = vmatmul.mubr.f32.gmra.mrb[0].mxu0 %v600
    %v2097 = vpop.f32.mrb[0].mxu0
    %v2098 = vadd.f32 %v1713, %v2097
    %v2099 = vpop.f32.mrb[0].mxu0
    %2100 = vmatprep.mubr.f32.mxu0 %v820
    %2101 = vmatmul.mubr.f32.gmra.mrb[0].mxu0 %v602
    %v2102 = vpop.f32.mrb[0].mxu0
    %v2103 = vadd.f32 %v1718, %v2102
    %v2104 = vpop.f32.mrb[0].mxu0
    %2105 = vmatprep.mubr.f32.mxu0 %v823
    %2106 = vmatmul.mubr.f32.gmra.mrb[0].mxu0 %v605
    %v2107 = vpop.f32.mrb[0].mxu0
    %v2108 = vadd.f32 %v1723, %v2107
    %v2109 = vpop.f32.mrb[0].mxu0
    %2110 = vmatprep.mubr.f32.mxu0 %v825
    %2111 = vmatmul.mubr.f32.gmra.mrb[0].mxu0 %v607
    %v2112 = vpop.f32.mrb[0].mxu0
    %v2113 = vadd.f32 %v1728, %v2112
    %v2114 = vpop.f32.mrb[0].mxu0
    %2115 = vmatprep.mubr.f32.mxu0 %v828
    %2116 = vmatmul.mubr.f32.gmra.mrb[0].mxu0 %v610
    %v2117 = vpop.f32.mrb[0].mxu0
    %v2118 = vadd.f32 %v1733, %v2117
    %v2119 = vpop.f32.mrb[0].mxu0
    %2120 = vmatprep.mubr.f32.mxu0 %v830
    %2121 = vmatmul.mubr.f32.gmra.mrb[0].mxu0 %v612
    %v2122 = vpop.f32.mrb[0].mxu0
    %v2123 = vadd.f32 %v1738, %v2122
    %v2124 = vpop.f32.mrb[0].mxu0
    %2125 = vmatprep.mubr.f32.mxu0 %v833
    %2126 = vmatmul.mubr.f32.gmra.mrb[0].mxu0 %v615
    %v2127 = vpop.f32.mrb[0].mxu0
    %v2128 = vadd.f32 %v1743, %v2127
    %v2129 = vpop.f32.mrb[0].mxu0
    %2130 = vmatprep.mubr.f32.mxu0 %v835
    %2131 = vmatmul.mubr.f32.gmra.mrb[0].mxu0 %v617
    %v2132 = vpop.f32.mrb[0].mxu0
    %v2133 = vadd.f32 %v1748, %v2132
    %v2134 = vpop.f32.mrb[0].mxu0
    %2135 = vmatprep.mubr.f32.mxu0 %v838
    %2136 = vmatmul.mubr.f32.gmra.mrb[0].mxu0 %v620
    %v2137 = vpop.f32.mrb[0].mxu0
    %v2138 = vadd.f32 %v1753, %v2137
    %v2139 = vpop.f32.mrb[0].mxu0
    %2140 = vmatprep.mubr.f32.mxu0 %v840
    %2141 = vmatmul.mubr.f32.gmra.mrb[0].mxu0 %v622
    %v2142 = vpop.f32.mrb[0].mxu0
    %v2143 = vadd.f32 %v1758, %v2142
    %v2144 = vpop.f32.mrb[0].mxu0
    %2145 = vmatprep.mubr.f32.mxu0 %v998
    %2146 = vmatmul.mubr.f32.gmra.mrb[0].mxu0 %v984
    %v2147 = vpop.f32.mrb[0].mxu0
    %v2148 = vadd.f32 %v1763, %v2147
    %v2149 = vpop.f32.mrb[0].mxu0
    %2150 = vmatprep.mubr.f32.mxu0 %v1000
    %2151 = vmatmul.mubr.f32.gmra.mrb[0].mxu0 %v986
    %v2152 = vpop.f32.mrb[0].mxu0
    %v2153 = vadd.f32 %v1768, %v2152
    %v2154 = vpop.f32.mrb[0].mxu0
    %2155 = vmatprep.mubr.f32.mxu0 %v843
    %2156 = vmatmul.mubr.f32.gmra.mrb[0].mxu0 %v625
    %v2157 = vpop.f32.mrb[0].mxu0
    %v2158 = vadd.f32 %v1773, %v2157
    %v2159 = vpop.f32.mrb[0].mxu0
    %2160 = vmatprep.mubr.f32.mxu0 %v845
    %2161 = vmatmul.mubr.f32.gmra.mrb[0].mxu0 %v627
    %v2162 = vpop.f32.mrb[0].mxu0
    %v2163 = vadd.f32 %v1778, %v2162
    %v2164 = vpop.f32.mrb[0].mxu0
    %2165 = vmatprep.mubr.f32.mxu0 %v848
    %2166 = vmatmul.mubr.f32.gmra.mrb[0].mxu0 %v630
    %v2167 = vpop.f32.mrb[0].mxu0
    %v2168 = vadd.f32 %v1783, %v2167
    %v2169 = vpop.f32.mrb[0].mxu0
    %2170 = vmatprep.mubr.f32.mxu0 %v850
    %2171 = vmatmul.mubr.f32.gmra.mrb[0].mxu0 %v632
    %v2172 = vpop.f32.mrb[0].mxu0
    %v2173 = vadd.f32 %v1788, %v2172
    %v2174 = vpop.f32.mrb[0].mxu0
    %2175 = vmatprep.mubr.f32.mxu0 %v853
    %2176 = vmatmul.mubr.f32.gmra.mrb[0].mxu0 %v635
    %v2177 = vpop.f32.mrb[0].mxu0
    %v2178 = vadd.f32 %v1793, %v2177
    %v2179 = vpop.f32.mrb[0].mxu0
    %2180 = vmatprep.mubr.f32.mxu0 %v855
    %2181 = vmatmul.mubr.f32.gmra.mrb[0].mxu0 %v637
    %v2182 = vpop.f32.mrb[0].mxu0
    %v2183 = vadd.f32 %v1798, %v2182
    %v2184 = vpop.f32.mrb[0].mxu0
    %2185 = vmatprep.mubr.f32.mxu0 %v858
    %2186 = vmatmul.mubr.f32.gmra.mrb[0].mxu0 %v640
    %v2187 = vpop.f32.mrb[0].mxu0
    %v2188 = vadd.f32 %v1803, %v2187
    %v2189 = vpop.f32.mrb[0].mxu0
    %2190 = vmatprep.mubr.f32.mxu0 %v860
    %2191 = vmatmul.mubr.f32.gmra.mrb[0].mxu0 %v642
    %v2192 = vpop.f32.mrb[0].mxu0
    %v2193 = vadd.f32 %v1808, %v2192
    %v2194 = vpop.f32.mrb[0].mxu0
    %2195 = vmatprep.mubr.f32.mxu0 %v863
    %2196 = vmatmul.mubr.f32.gmra.mrb[0].mxu0 %v645
    %v2197 = vpop.f32.mrb[0].mxu0
    %v2198 = vadd.f32 %v1813, %v2197
    %v2199 = vpop.f32.mrb[0].mxu0
    %2200 = vmatprep.mubr.f32.mxu0 %v865
    %2201 = vmatmul.mubr.f32.gmra.mrb[0].mxu0 %v647
    %v2202 = vpop.f32.mrb[0].mxu0
    %v2203 = vadd.f32 %v1818, %v2202
    %v2204 = vpop.f32.mrb[0].mxu0
    %2205 = vmatprep.mubr.f32.mxu0 %v868
    %2206 = vmatmul.mubr.f32.gmra.mrb[0].mxu0 %v650
    %v2207 = vpop.f32.mrb[0].mxu0
    %v2208 = vadd.f32 %v1823, %v2207
    %v2209 = vpop.f32.mrb[0].mxu0
    %2210 = vmatprep.mubr.f32.mxu0 %v870
    %2211 = vmatmul.mubr.f32.gmra.mrb[0].mxu0 %v652
    %v2212 = vpop.f32.mrb[0].mxu0
    %v2213 = vadd.f32 %v1828, %v2212
    %v2214 = vpop.f32.mrb[0].mxu0
    %2215 = vmatprep.mubr.f32.mxu0 %v873
    %2216 = vmatmul.mubr.f32.gmra.mrb[0].mxu0 %v655
    %v2217 = vpop.f32.mrb[0].mxu0
    %v2218 = vadd.f32 %v1833, %v2217
    %v2219 = vpop.f32.mrb[0].mxu0
    %2220 = vmatprep.mubr.f32.mxu0 %v875
    %2221 = vmatmul.mubr.f32.gmra.mrb[0].mxu0 %v657
    %v2222 = vpop.f32.mrb[0].mxu0
    %v2223 = vadd.f32 %v1838, %v2222
    %v2224 = vpop.f32.mrb[0].mxu0
    %2225 = vmatprep.mubr.f32.mxu0 %v878
    %2226 = vmatmul.mubr.f32.gmra.mrb[0].mxu0 %v660
    %v2227 = vpop.f32.mrb[0].mxu0
    %v2228 = vadd.f32 %v1843, %v2227
    %v2229 = vpop.f32.mrb[0].mxu0
    %2230 = vmatprep.mubr.f32.mxu0 %v880
    %2231 = vmatmul.mubr.f32.gmra.mrb[0].mxu0 %v662
    %v2232 = vpop.f32.mrb[0].mxu0
    %v2233 = vadd.f32 %v1848, %v2232
    %v2234 = vpop.f32.mrb[0].mxu0
    %2235 = vmatprep.mubr.f32.mxu0 %v883
    %2236 = vmatmul.mubr.f32.gmra.mrb[0].mxu0 %v665
    %v2237 = vpop.f32.mrb[0].mxu0
    %v2238 = vadd.f32 %v1853, %v2237
    %v2239 = vpop.f32.mrb[0].mxu0
    %2240 = vmatprep.mubr.f32.mxu0 %v885
    %2241 = vmatmul.mubr.f32.gmra.mrb[0].mxu0 %v667
    %v2242 = vpop.f32.mrb[0].mxu0
    %v2243 = vadd.f32 %v1858, %v2242
    %v2244 = vpop.f32.mrb[0].mxu0
    %2245 = vmatprep.mubr.f32.mxu0 %v888
    %2246 = vmatmul.mubr.f32.gmra.mrb[0].mxu0 %v670
    %v2247 = vpop.f32.mrb[0].mxu0
    %v2248 = vadd.f32 %v1863, %v2247
    %v2249 = vpop.f32.mrb[0].mxu0
    %2250 = vmatprep.mubr.f32.mxu0 %v890
    %2251 = vmatmul.mubr.f32.gmra.mrb[0].mxu0 %v672
    %v2252 = vpop.f32.mrb[0].mxu0
    %v2253 = vadd.f32 %v1868, %v2252
    %v2254 = vpop.f32.mrb[0].mxu0
    %2255 = vmatprep.mubr.f32.mxu0 %v893
    %2256 = vmatmul.mubr.f32.gmra.mrb[0].mxu0 %v675
    %v2257 = vpop.f32.mrb[0].mxu0
    %v2258 = vadd.f32 %v1873, %v2257
    %v2259 = vpop.f32.mrb[0].mxu0
    %2260 = vmatprep.mubr.f32.mxu0 %v895
    %2261 = vmatmul.mubr.f32.gmra.mrb[0].mxu0 %v677
    %v2262 = vpop.f32.mrb[0].mxu0
    %v2263 = vadd.f32 %v1878, %v2262
    %v2264 = vpop.f32.mrb[0].mxu0
    %2265 = vmatprep.mubr.f32.mxu0 %v898
    %2266 = vmatmul.mubr.f32.gmra.mrb[0].mxu0 %v680
    %v2267 = vpop.f32.mrb[0].mxu0
    %v2268 = vadd.f32 %v1883, %v2267
    %v2269 = vpop.f32.mrb[0].mxu0
    %2270 = vmatprep.mubr.f32.mxu0 %v900
    %2271 = vmatmul.mubr.f32.gmra.mrb[0].mxu0 %v682
    %v2272 = vpop.f32.mrb[0].mxu0
    %v2273 = vadd.f32 %v1888, %v2272
    %v2274 = vpop.f32.mrb[0].mxu0
    %2275 = vmatprep.mubr.f32.mxu0 %v903
    %2276 = vmatmul.mubr.f32.gmra.mrb[0].mxu0 %v685
    %v2277 = vpop.f32.mrb[0].mxu0
    %v2278 = vadd.f32 %v1893, %v2277
    %v2279 = vpop.f32.mrb[0].mxu0
    %2280 = vmatprep.mubr.f32.mxu0 %v905
    %2281 = vmatmul.mubr.f32.gmra.mrb[0].mxu0 %v687
    %v2282 = vpop.f32.mrb[0].mxu0
    %v2283 = vadd.f32 %v1898, %v2282
    %v2284 = vpop.f32.mrb[0].mxu0
    %2285 = vmatprep.mubr.f32.mxu0 %v908
    %2286 = vmatmul.mubr.f32.gmra.mrb[0].mxu0 %v690
    %v2287 = vpop.f32.mrb[0].mxu0
    %v2288 = vadd.f32 %v1903, %v2287
    %v2289 = vpop.f32.mrb[0].mxu0
    %2290 = vmatprep.mubr.f32.mxu0 %v910
    %2291 = vmatmul.mubr.f32.gmra.mrb[0].mxu0 %v692
    %v2292 = vpop.f32.mrb[0].mxu0
    %v2293 = vadd.f32 %v1908, %v2292
    %v2294 = vpop.f32.mrb[0].mxu0
    %2295 = vmatprep.mubr.f32.mxu0 %v913
    %2296 = vmatmul.mubr.f32.gmra.mrb[0].mxu0 %v695
    %v2297 = vpop.f32.mrb[0].mxu0
    %v2298 = vadd.f32 %v1913, %v2297
    %v2299 = vpop.f32.mrb[0].mxu0
    %2300 = vmatprep.mubr.f32.mxu0 %v915
    %2301 = vmatmul.mubr.f32.gmra.mrb[0].mxu0 %v697
    %v2302 = vpop.f32.mrb[0].mxu0
    %v2303 = vadd.f32 %v1918, %v2302
    %v2304 = vpop.f32.mrb[0].mxu0
    %2305 = vmatprep.mubr.f32.mxu0 %v1003
    %2306 = vmatmul.mubr.f32.gmra.mrb[0].mxu0 %v989
    %v2307 = vpop.f32.mrb[0].mxu0
    %v2308 = vadd.f32 %v1923, %v2307
    %v2309 = vpop.f32.mrb[0].mxu0
    %2310 = vmatprep.mubr.f32.mxu0 %v1005
    %2311 = vmatmul.mubr.f32.gmra.mrb[0].mxu0 %v991
    %v2312 = vpop.f32.mrb[0].mxu0
    %v2313 = vadd.f32 %v1928, %v2312
    %v2314 = vpop.f32.mrb[0].mxu0
    %2315 = vdwg.mxu0
    %2316 = vmatprep.subr.mxu0 0.0
    %2317 = vmatpush1.msra.mxu0 %v1106
    %2318 = vmatprep.subr.mxu0 0.0
    %2319 = vmatpush1.msra.mxu0 %v1107
    %2320 = vmatprep.subr.mxu0 0.0
    %2321 = vmatpush1.msra.mxu0 %v1108
    %2322 = vmatprep.subr.mxu0 0.0
    %2323 = vmatpush1.msra.mxu0 %v1109
    %2324 = vmatprep.subr.mxu0 0.0
    %2325 = vmatpush1.msra.mxu0 %v1110
    %2326 = vmatprep.subr.mxu0 0.0
    %2327 = vmatpush1.msra.mxu0 %v1111
    %2328 = vmatprep.subr.mxu0 0.0
    %2329 = vmatpush1.msra.mxu0 %v1112
    %2330 = vmatprep.subr.mxu0 0.0
    %2331 = vmatpush1.msra.mxu0 %v1113
    %2332 = vmatprep.subr.mxu0 0.0
    %2333 = vmatpush1.msra.mxu0 %v1114
    %2334 = vmatprep.subr.mxu0 0.0
    %2335 = vmatpush1.msra.mxu0 %v1115
    %2336 = vmatprep.subr.mxu0 0.0
    %2337 = vmatpush1.msra.mxu0 %v1116
    %2338 = vmatprep.subr.mxu0 0.0
    %2339 = vmatpush1.msra.mxu0 %v1117
    %2340 = vmatprep.subr.mxu0 0.0
    %2341 = vmatpush1.msra.mxu0 %v1118
    %2342 = vmatprep.subr.mxu0 0.0
    %2343 = vmatpush1.msra.mxu0 %v1119
    %2344 = vmatprep.subr.mxu0 0.0
    %2345 = vmatpush1.msra.mxu0 %v1120
    %2346 = vmatprep.subr.mxu0 0.0
    %2347 = vmatpush1.msra.mxu0 %v1121
    %2348 = vmatprep.subr.mxu0 0.0
    %2349 = vmatpush1.msra.mxu0 %v1122
    %2350 = vmatprep.subr.mxu0 0.0
    %2351 = vmatpush1.msra.mxu0 %v1123
    %2352 = vmatprep.subr.mxu0 0.0
    %2353 = vmatpush1.msra.mxu0 %v1124
    %2354 = vmatprep.subr.mxu0 0.0
    %2355 = vmatpush1.msra.mxu0 %v1125
    %2356 = vmatprep.subr.mxu0 0.0
    %2357 = vmatpush1.msra.mxu0 %v1126
    %2358 = vmatprep.subr.mxu0 0.0
    %2359 = vmatpush1.msra.mxu0 %v1127
    %2360 = vmatprep.subr.mxu0 0.0
    %2361 = vmatpush1.msra.mxu0 %v1128
    %2362 = vmatprep.subr.mxu0 0.0
    %2363 = vmatpush1.msra.mxu0 %v1129
    %2364 = vmatprep.subr.mxu0 0.0
    %2365 = vmatpush1.msra.mxu0 %v1130
    %2366 = vmatprep.subr.mxu0 0.0
    %2367 = vmatpush1.msra.mxu0 %v1131
    %2368 = vmatprep.subr.mxu0 0.0
    %2369 = vmatpush1.msra.mxu0 %v1132
    %2370 = vmatprep.subr.mxu0 0.0
    %2371 = vmatpush1.msra.mxu0 %v1133
    %2372 = vmatprep.subr.mxu0 0.0
    %2373 = vmatpush1.msra.mxu0 %v1134
    %2374 = vmatprep.subr.mxu0 0.0
    %2375 = vmatpush1.msra.mxu0 %v1135
    %2376 = vmatprep.subr.mxu0 0.0
    %2377 = vmatpush1.msra.mxu0 %v1136
    %2378 = vmatprep.subr.mxu0 0.0
    %2379 = vmatpush1.msra.mxu0 %v1137
    %2380 = vmatprep.mubr.f32.mxu0 %v555
    %2381 = vmatmul.mubr.f32.gmra.mrb[0].mxu0 %v416
    %v2382 = vpop.f32.mrb[0].mxu0
    %v2383 = vadd.f32 %v1998, %v2382
    %v2384 = vpop.f32.mrb[0].mxu0
    %2385 = vmatprep.mubr.f32.mxu0 %v557
    %2386 = vmatmul.mubr.f32.gmra.mrb[0].mxu0 %v225
    %v2387 = vpop.f32.mrb[0].mxu0
    %v2388 = vadd.f32 %v2003, %v2387
    %v2389 = vpop.f32.mrb[0].mxu0
    %2390 = vmatprep.mubr.f32.mxu0 %v560
    %2391 = vmatmul.mubr.f32.gmra.mrb[0].mxu0 %v417
    %v2392 = vpop.f32.mrb[0].mxu0
    %v2393 = vadd.f32 %v2008, %v2392
    %v2394 = vpop.f32.mrb[0].mxu0
    %2395 = vmatprep.mubr.f32.mxu0 %v562
    %2396 = vmatmul.mubr.f32.gmra.mrb[0].mxu0 %v228
    %v2397 = vpop.f32.mrb[0].mxu0
    %v2398 = vadd.f32 %v2013, %v2397
    %v2399 = vpop.f32.mrb[0].mxu0
    %2400 = vmatprep.mubr.f32.mxu0 %v565
    %2401 = vmatmul.mubr.f32.gmra.mrb[0].mxu0 %v418
    %v2402 = vpop.f32.mrb[0].mxu0
    %v2403 = vadd.f32 %v2018, %v2402
    %v2404 = vpop.f32.mrb[0].mxu0
    %2405 = vmatprep.mubr.f32.mxu0 %v567
    %2406 = vmatmul.mubr.f32.gmra.mrb[0].mxu0 %v231
    %v2407 = vpop.f32.mrb[0].mxu0
    %v2408 = vadd.f32 %v2023, %v2407
    %v2409 = vpop.f32.mrb[0].mxu0
    %2410 = vmatprep.mubr.f32.mxu0 %v570
    %2411 = vmatmul.mubr.f32.gmra.mrb[0].mxu0 %v419
    %v2412 = vpop.f32.mrb[0].mxu0
    %v2413 = vadd.f32 %v2028, %v2412
    %v2414 = vpop.f32.mrb[0].mxu0
    %2415 = vmatprep.mubr.f32.mxu0 %v572
    %2416 = vmatmul.mubr.f32.gmra.mrb[0].mxu0 %v234
    %v2417 = vpop.f32.mrb[0].mxu0
    %v2418 = vadd.f32 %v2033, %v2417
    %v2419 = vpop.f32.mrb[0].mxu0
    %2420 = vmatprep.mubr.f32.mxu0 %v575
    %2421 = vmatmul.mubr.f32.gmra.mrb[0].mxu0 %v420
    %v2422 = vpop.f32.mrb[0].mxu0
    %v2423 = vadd.f32 %v2038, %v2422
    %v2424 = vpop.f32.mrb[0].mxu0
    %2425 = vmatprep.mubr.f32.mxu0 %v577
    %2426 = vmatmul.mubr.f32.gmra.mrb[0].mxu0 %v237
    %v2427 = vpop.f32.mrb[0].mxu0
    %v2428 = vadd.f32 %v2043, %v2427
    %v2429 = vpop.f32.mrb[0].mxu0
    %2430 = vmatprep.mubr.f32.mxu0 %v580
    %2431 = vmatmul.mubr.f32.gmra.mrb[0].mxu0 %v421
    %v2432 = vpop.f32.mrb[0].mxu0
    %v2433 = vadd.f32 %v2048, %v2432
    %v2434 = vpop.f32.mrb[0].mxu0
    %2435 = vmatprep.mubr.f32.mxu0 %v582
    %2436 = vmatmul.mubr.f32.gmra.mrb[0].mxu0 %v240
    %v2437 = vpop.f32.mrb[0].mxu0
    %v2438 = vadd.f32 %v2053, %v2437
    %v2439 = vpop.f32.mrb[0].mxu0
    %2440 = vmatprep.mubr.f32.mxu0 %v585
    %2441 = vmatmul.mubr.f32.gmra.mrb[0].mxu0 %v422
    %v2442 = vpop.f32.mrb[0].mxu0
    %v2443 = vadd.f32 %v2058, %v2442
    %v2444 = vpop.f32.mrb[0].mxu0
    %2445 = vmatprep.mubr.f32.mxu0 %v587
    %2446 = vmatmul.mubr.f32.gmra.mrb[0].mxu0 %v243
    %v2447 = vpop.f32.mrb[0].mxu0
    %v2448 = vadd.f32 %v2063, %v2447
    %v2449 = vpop.f32.mrb[0].mxu0
    %2450 = vmatprep.mubr.f32.mxu0 %v590
    %2451 = vmatmul.mubr.f32.gmra.mrb[0].mxu0 %v423
    %v2452 = vpop.f32.mrb[0].mxu0
    %v2453 = vadd.f32 %v2068, %v2452
    %v2454 = vpop.f32.mrb[0].mxu0
    %2455 = vmatprep.mubr.f32.mxu0 %v592
    %2456 = vmatmul.mubr.f32.gmra.mrb[0].mxu0 %v246
    %v2457 = vpop.f32.mrb[0].mxu0
    %v2458 = vadd.f32 %v2073, %v2457
    %v2459 = vpop.f32.mrb[0].mxu0
    %2460 = vmatprep.mubr.f32.mxu0 %v595
    %2461 = vmatmul.mubr.f32.gmra.mrb[0].mxu0 %v424
    %v2462 = vpop.f32.mrb[0].mxu0
    %v2463 = vadd.f32 %v2078, %v2462
    %v2464 = vpop.f32.mrb[0].mxu0
    %2465 = vmatprep.mubr.f32.mxu0 %v597
    %2466 = vmatmul.mubr.f32.gmra.mrb[0].mxu0 %v249
    %v2467 = vpop.f32.mrb[0].mxu0
    %v2468 = vadd.f32 %v2083, %v2467
    %v2469 = vpop.f32.mrb[0].mxu0
    %2470 = vmatprep.mubr.f32.mxu0 %v600
    %2471 = vmatmul.mubr.f32.gmra.mrb[0].mxu0 %v425
    %v2472 = vpop.f32.mrb[0].mxu0
    %v2473 = vadd.f32 %v2088, %v2472
    %v2474 = vpop.f32.mrb[0].mxu0
    %2475 = vmatprep.mubr.f32.mxu0 %v602
    %2476 = vmatmul.mubr.f32.gmra.mrb[0].mxu0 %v252
    %v2477 = vpop.f32.mrb[0].mxu0
    %v2478 = vadd.f32 %v2093, %v2477
    %v2479 = vpop.f32.mrb[0].mxu0
    %2480 = vmatprep.mubr.f32.mxu0 %v605
    %2481 = vmatmul.mubr.f32.gmra.mrb[0].mxu0 %v426
    %v2482 = vpop.f32.mrb[0].mxu0
    %v2483 = vadd.f32 %v2098, %v2482
    %v2484 = vpop.f32.mrb[0].mxu0
    %2485 = vmatprep.mubr.f32.mxu0 %v607
    %2486 = vmatmul.mubr.f32.gmra.mrb[0].mxu0 %v255
    %v2487 = vpop.f32.mrb[0].mxu0
    %v2488 = vadd.f32 %v2103, %v2487
    %v2489 = vpop.f32.mrb[0].mxu0
    %2490 = vmatprep.mubr.f32.mxu0 %v610
    %2491 = vmatmul.mubr.f32.gmra.mrb[0].mxu0 %v427
    %v2492 = vpop.f32.mrb[0].mxu0
    %v2493 = vadd.f32 %v2108, %v2492
    %v2494 = vpop.f32.mrb[0].mxu0
    %2495 = vmatprep.mubr.f32.mxu0 %v612
    %2496 = vmatmul.mubr.f32.gmra.mrb[0].mxu0 %v258
    %v2497 = vpop.f32.mrb[0].mxu0
    %v2498 = vadd.f32 %v2113, %v2497
    %v2499 = vpop.f32.mrb[0].mxu0
    %2500 = vmatprep.mubr.f32.mxu0 %v615
    %2501 = vmatmul.mubr.f32.gmra.mrb[0].mxu0 %v428
    %v2502 = vpop.f32.mrb[0].mxu0
    %v2503 = vadd.f32 %v2118, %v2502
    %v2504 = vpop.f32.mrb[0].mxu0
    %2505 = vmatprep.mubr.f32.mxu0 %v617
    %2506 = vmatmul.mubr.f32.gmra.mrb[0].mxu0 %v261
    %v2507 = vpop.f32.mrb[0].mxu0
    %v2508 = vadd.f32 %v2123, %v2507
    %v2509 = vpop.f32.mrb[0].mxu0
    %2510 = vmatprep.mubr.f32.mxu0 %v620
    %2511 = vmatmul.mubr.f32.gmra.mrb[0].mxu0 %v429
    %v2512 = vpop.f32.mrb[0].mxu0
    %v2513 = vadd.f32 %v2128, %v2512
    %v2514 = vpop.f32.mrb[0].mxu0
    %2515 = vmatprep.mubr.f32.mxu0 %v622
    %2516 = vmatmul.mubr.f32.gmra.mrb[0].mxu0 %v264
    %v2517 = vpop.f32.mrb[0].mxu0
    %v2518 = vadd.f32 %v2133, %v2517
    %v2519 = vpop.f32.mrb[0].mxu0
    %2520 = vmatprep.mubr.f32.mxu0 %v984
    %2521 = vmatmul.mubr.f32.gmra.mrb[0].mxu0 %v430
    %v2522 = vpop.f32.mrb[0].mxu0
    %v2523 = vadd.f32 %v2138, %v2522
    %v2524 = vpop.f32.mrb[0].mxu0
    %2525 = vmatprep.mubr.f32.mxu0 %v986
    %2526 = vmatmul.mubr.f32.gmra.mrb[0].mxu0 %v267
    %v2527 = vpop.f32.mrb[0].mxu0
    %v2528 = vadd.f32 %v2143, %v2527
    %v2529 = vpop.f32.mrb[0].mxu0
    %2530 = vmatprep.mubr.f32.mxu0 %v545
    %2531 = vmatmul.mubr.f32.gmra.mrb[0].mxu0 %v414
    %v2532 = vpop.f32.mrb[0].mxu0
    %v2533 = vadd.f32 %v2148, %v2532
    %v2534 = vpop.f32.mrb[0].mxu0
    %2535 = vmatprep.mubr.f32.mxu0 %v547
    %2536 = vmatmul.mubr.f32.gmra.mrb[0].mxu0 %v219
    %v2537 = vpop.f32.mrb[0].mxu0
    %v2538 = vadd.f32 %v2153, %v2537
    %v2539 = vpop.f32.mrb[0].mxu0
    %2540 = vmatprep.mubr.f32.mxu0 %v630
    %2541 = vmatmul.mubr.f32.gmra.mrb[0].mxu0 %v432
    %v2542 = vpop.f32.mrb[0].mxu0
    %v2543 = vadd.f32 %v2158, %v2542
    %v2544 = vpop.f32.mrb[0].mxu0
    %2545 = vmatprep.mubr.f32.mxu0 %v632
    %2546 = vmatmul.mubr.f32.gmra.mrb[0].mxu0 %v273
    %v2547 = vpop.f32.mrb[0].mxu0
    %v2548 = vadd.f32 %v2163, %v2547
    %v2549 = vpop.f32.mrb[0].mxu0
    %2550 = vmatprep.mubr.f32.mxu0 %v635
    %2551 = vmatmul.mubr.f32.gmra.mrb[0].mxu0 %v433
    %v2552 = vpop.f32.mrb[0].mxu0
    %v2553 = vadd.f32 %v2168, %v2552
    %v2554 = vpop.f32.mrb[0].mxu0
    %2555 = vmatprep.mubr.f32.mxu0 %v637
    %2556 = vmatmul.mubr.f32.gmra.mrb[0].mxu0 %v276
    %v2557 = vpop.f32.mrb[0].mxu0
    %v2558 = vadd.f32 %v2173, %v2557
    %v2559 = vpop.f32.mrb[0].mxu0
    %2560 = vmatprep.mubr.f32.mxu0 %v640
    %2561 = vmatmul.mubr.f32.gmra.mrb[0].mxu0 %v434
    %v2562 = vpop.f32.mrb[0].mxu0
    %v2563 = vadd.f32 %v2178, %v2562
    %v2564 = vpop.f32.mrb[0].mxu0
    %2565 = vmatprep.mubr.f32.mxu0 %v642
    %2566 = vmatmul.mubr.f32.gmra.mrb[0].mxu0 %v279
    %v2567 = vpop.f32.mrb[0].mxu0
    %v2568 = vadd.f32 %v2183, %v2567
    %v2569 = vpop.f32.mrb[0].mxu0
    %2570 = vmatprep.mubr.f32.mxu0 %v645
    %2571 = vmatmul.mubr.f32.gmra.mrb[0].mxu0 %v435
    %v2572 = vpop.f32.mrb[0].mxu0
    %v2573 = vadd.f32 %v2188, %v2572
    %v2574 = vpop.f32.mrb[0].mxu0
    %2575 = vmatprep.mubr.f32.mxu0 %v647
    %2576 = vmatmul.mubr.f32.gmra.mrb[0].mxu0 %v282
    %v2577 = vpop.f32.mrb[0].mxu0
    %v2578 = vadd.f32 %v2193, %v2577
    %v2579 = vpop.f32.mrb[0].mxu0
    %2580 = vmatprep.mubr.f32.mxu0 %v650
    %2581 = vmatmul.mubr.f32.gmra.mrb[0].mxu0 %v436
    %v2582 = vpop.f32.mrb[0].mxu0
    %v2583 = vadd.f32 %v2198, %v2582
    %v2584 = vpop.f32.mrb[0].mxu0
    %2585 = vmatprep.mubr.f32.mxu0 %v652
    %2586 = vmatmul.mubr.f32.gmra.mrb[0].mxu0 %v285
    %v2587 = vpop.f32.mrb[0].mxu0
    %v2588 = vadd.f32 %v2203, %v2587
    %v2589 = vpop.f32.mrb[0].mxu0
    %2590 = vmatprep.mubr.f32.mxu0 %v655
    %2591 = vmatmul.mubr.f32.gmra.mrb[0].mxu0 %v437
    %v2592 = vpop.f32.mrb[0].mxu0
    %v2593 = vadd.f32 %v2208, %v2592
    %v2594 = vpop.f32.mrb[0].mxu0
    %2595 = vmatprep.mubr.f32.mxu0 %v657
    %2596 = vmatmul.mubr.f32.gmra.mrb[0].mxu0 %v288
    %v2597 = vpop.f32.mrb[0].mxu0
    %v2598 = vadd.f32 %v2213, %v2597
    %v2599 = vpop.f32.mrb[0].mxu0
    %2600 = vmatprep.mubr.f32.mxu0 %v660
    %2601 = vmatmul.mubr.f32.gmra.mrb[0].mxu0 %v438
    %v2602 = vpop.f32.mrb[0].mxu0
    %v2603 = vadd.f32 %v2218, %v2602
    %v2604 = vpop.f32.mrb[0].mxu0
    %2605 = vmatprep.mubr.f32.mxu0 %v662
    %2606 = vmatmul.mubr.f32.gmra.mrb[0].mxu0 %v291
    %v2607 = vpop.f32.mrb[0].mxu0
    %v2608 = vadd.f32 %v2223, %v2607
    %v2609 = vpop.f32.mrb[0].mxu0
    %2610 = vmatprep.mubr.f32.mxu0 %v665
    %2611 = vmatmul.mubr.f32.gmra.mrb[0].mxu0 %v439
    %v2612 = vpop.f32.mrb[0].mxu0
    %v2613 = vadd.f32 %v2228, %v2612
    %v2614 = vpop.f32.mrb[0].mxu0
    %2615 = vmatprep.mubr.f32.mxu0 %v667
    %2616 = vmatmul.mubr.f32.gmra.mrb[0].mxu0 %v294
    %v2617 = vpop.f32.mrb[0].mxu0
    %v2618 = vadd.f32 %v2233, %v2617
    %v2619 = vpop.f32.mrb[0].mxu0
    %2620 = vmatprep.mubr.f32.mxu0 %v670
    %2621 = vmatmul.mubr.f32.gmra.mrb[0].mxu0 %v440
    %v2622 = vpop.f32.mrb[0].mxu0
    %v2623 = vadd.f32 %v2238, %v2622
    %v2624 = vpop.f32.mrb[0].mxu0
    %2625 = vmatprep.mubr.f32.mxu0 %v672
    %2626 = vmatmul.mubr.f32.gmra.mrb[0].mxu0 %v297
    %v2627 = vpop.f32.mrb[0].mxu0
    %v2628 = vadd.f32 %v2243, %v2627
    %v2629 = vpop.f32.mrb[0].mxu0
    %2630 = vmatprep.mubr.f32.mxu0 %v675
    %2631 = vmatmul.mubr.f32.gmra.mrb[0].mxu0 %v441
    %v2632 = vpop.f32.mrb[0].mxu0
    %v2633 = vadd.f32 %v2248, %v2632
    %v2634 = vpop.f32.mrb[0].mxu0
    %2635 = vmatprep.mubr.f32.mxu0 %v677
    %2636 = vmatmul.mubr.f32.gmra.mrb[0].mxu0 %v300
    %v2637 = vpop.f32.mrb[0].mxu0
    %v2638 = vadd.f32 %v2253, %v2637
    %v2639 = vpop.f32.mrb[0].mxu0
    %2640 = vmatprep.mubr.f32.mxu0 %v680
    %2641 = vmatmul.mubr.f32.gmra.mrb[0].mxu0 %v442
    %v2642 = vpop.f32.mrb[0].mxu0
    %v2643 = vadd.f32 %v2258, %v2642
    %v2644 = vpop.f32.mrb[0].mxu0
    %2645 = vmatprep.mubr.f32.mxu0 %v682
    %2646 = vmatmul.mubr.f32.gmra.mrb[0].mxu0 %v303
    %v2647 = vpop.f32.mrb[0].mxu0
    %v2648 = vadd.f32 %v2263, %v2647
    %v2649 = vpop.f32.mrb[0].mxu0
    %2650 = vmatprep.mubr.f32.mxu0 %v685
    %2651 = vmatmul.mubr.f32.gmra.mrb[0].mxu0 %v443
    %v2652 = vpop.f32.mrb[0].mxu0
    %v2653 = vadd.f32 %v2268, %v2652
    %v2654 = vpop.f32.mrb[0].mxu0
    %2655 = vmatprep.mubr.f32.mxu0 %v687
    %2656 = vmatmul.mubr.f32.gmra.mrb[0].mxu0 %v306
    %v2657 = vpop.f32.mrb[0].mxu0
    %v2658 = vadd.f32 %v2273, %v2657
    %v2659 = vpop.f32.mrb[0].mxu0
    %2660 = vmatprep.mubr.f32.mxu0 %v690
    %2661 = vmatmul.mubr.f32.gmra.mrb[0].mxu0 %v444
    %v2662 = vpop.f32.mrb[0].mxu0
    %v2663 = vadd.f32 %v2278, %v2662
    %v2664 = vpop.f32.mrb[0].mxu0
    %2665 = vmatprep.mubr.f32.mxu0 %v692
    %2666 = vmatmul.mubr.f32.gmra.mrb[0].mxu0 %v309
    %v2667 = vpop.f32.mrb[0].mxu0
    %v2668 = vadd.f32 %v2283, %v2667
    %v2669 = vpop.f32.mrb[0].mxu0
    %2670 = vmatprep.mubr.f32.mxu0 %v695
    %2671 = vmatmul.mubr.f32.gmra.mrb[0].mxu0 %v445
    %v2672 = vpop.f32.mrb[0].mxu0
    %v2673 = vadd.f32 %v2288, %v2672
    %v2674 = vpop.f32.mrb[0].mxu0
    %2675 = vmatprep.mubr.f32.mxu0 %v697
    %2676 = vmatmul.mubr.f32.gmra.mrb[0].mxu0 %v312
    %v2677 = vpop.f32.mrb[0].mxu0
    %v2678 = vadd.f32 %v2293, %v2677
    %v2679 = vpop.f32.mrb[0].mxu0
    %2680 = vmatprep.mubr.f32.mxu0 %v989
    %2681 = vmatmul.mubr.f32.gmra.mrb[0].mxu0 %v446
    %v2682 = vpop.f32.mrb[0].mxu0
    %v2683 = vadd.f32 %v2298, %v2682
    %v2684 = vpop.f32.mrb[0].mxu0
    %2685 = vmatprep.mubr.f32.mxu0 %v991
    %2686 = vmatmul.mubr.f32.gmra.mrb[0].mxu0 %v315
    %v2687 = vpop.f32.mrb[0].mxu0
    %v2688 = vadd.f32 %v2303, %v2687
    %v2689 = vpop.f32.mrb[0].mxu0
    %2690 = vmatprep.mubr.f32.mxu0 %v545
    %2691 = vmatmul.mubr.f32.gmra.mrb[0].mxu0 %v414
    %v2692 = vpop.f32.mrb[0].mxu0
    %v2693 = vadd.f32 %v2308, %v2692
    %v2694 = vpop.f32.mrb[0].mxu0
    %2695 = vmatprep.mubr.f32.mxu0 %v547
    %2696 = vmatmul.mubr.f32.gmra.mrb[0].mxu0 %v219
    %v2697 = vpop.f32.mrb[0].mxu0
    %v2698 = vadd.f32 %v2313, %v2697
    %v2699 = vpop.f32.mrb[0].mxu0
    %2700 = vdwg.mxu0
    %2701 = vmatprep.subr.mxu0 0.0
    %2702 = vmatpush1.msra.mxu0 %v1138
    %2703 = vmatprep.subr.mxu0 0.0
    %2704 = vmatpush1.msra.mxu0 %v1139
    %2705 = vmatprep.subr.mxu0 0.0
    %2706 = vmatpush1.msra.mxu0 %v1140
    %2707 = vmatprep.subr.mxu0 0.0
    %2708 = vmatpush1.msra.mxu0 %v1141
    %2709 = vmatprep.subr.mxu0 0.0
    %2710 = vmatpush1.msra.mxu0 %v1142
    %2711 = vmatprep.subr.mxu0 0.0
    %2712 = vmatpush1.msra.mxu0 %v1143
    %2713 = vmatprep.subr.mxu0 0.0
    %2714 = vmatpush1.msra.mxu0 %v1144
    %2715 = vmatprep.subr.mxu0 0.0
    %2716 = vmatpush1.msra.mxu0 %v1145
    %2717 = vmatprep.subr.mxu0 0.0
    %2718 = vmatpush1.msra.mxu0 %v1146
    %2719 = vmatprep.subr.mxu0 0.0
    %2720 = vmatpush1.msra.mxu0 %v1147
    %2721 = vmatprep.subr.mxu0 0.0
    %2722 = vmatpush1.msra.mxu0 %v1148
    %2723 = vmatprep.subr.mxu0 0.0
    %2724 = vmatpush1.msra.mxu0 %v1149
    %2725 = vmatprep.subr.mxu0 0.0
    %2726 = vmatpush1.msra.mxu0 %v1150
    %2727 = vmatprep.subr.mxu0 0.0
    %2728 = vmatpush1.msra.mxu0 %v1151
    %2729 = vmatprep.subr.mxu0 0.0
    %2730 = vmatpush1.msra.mxu0 %v1152
    %2731 = vmatprep.subr.mxu0 0.0
    %2732 = vmatpush1.msra.mxu0 %v1153
    %2733 = vmatprep.subr.mxu0 0.0
    %2734 = vmatpush1.msra.mxu0 0.0
    %2735 = vmatprep.subr.mxu0 0.0
    %2736 = vmatpush1.msra.mxu0 0.0
    %2737 = vmatprep.subr.mxu0 0.0
    %2738 = vmatpush1.msra.mxu0 0.0
    %2739 = vmatprep.subr.mxu0 0.0
    %2740 = vmatpush1.msra.mxu0 0.0
    %2741 = vmatprep.subr.mxu0 0.0
    %2742 = vmatpush1.msra.mxu0 0.0
    %2743 = vmatprep.subr.mxu0 0.0
    %2744 = vmatpush1.msra.mxu0 0.0
    %2745 = vmatprep.subr.mxu0 0.0
    %2746 = vmatpush1.msra.mxu0 0.0
    %2747 = vmatprep.subr.mxu0 0.0
    %2748 = vmatpush1.msra.mxu0 0.0
    %2749 = vmatprep.subr.mxu0 0.0
    %2750 = vmatpush1.msra.mxu0 0.0
    %2751 = vmatprep.subr.mxu0 0.0
    %2752 = vmatpush1.msra.mxu0 0.0
    %2753 = vmatprep.subr.mxu0 0.0
    %2754 = vmatpush1.msra.mxu0 0.0
    %2755 = vmatprep.subr.mxu0 0.0
    %2756 = vmatpush1.msra.mxu0 0.0
    %2757 = vmatprep.subr.mxu0 0.0
    %2758 = vmatpush1.msra.mxu0 0.0
    %2759 = vmatprep.subr.mxu0 0.0
    %2760 = vmatpush1.msra.mxu0 0.0
    %2761 = vmatprep.subr.mxu0 0.0
    %2762 = vmatpush1.msra.mxu0 0.0
    %2763 = vmatprep.subr.mxu0 0.0
    %2764 = vmatpush1.msra.mxu0 0.0
    %2765 = vmatprep.mubr.f32.mxu0 0.0
    %2766 = vmatmul.mubr.f32.gmra.mrb[0].mxu0 %v773
    %v2767 = vpop.f32.mrb[0].mxu0
    %v2768 = vadd.f32 %v2383, %v2767
    %v2769 = vpop.f32.mrb[0].mxu0
    %2770 = vmatprep.mubr.f32.mxu0 0.0
    %2771 = vmatmul.mubr.f32.gmra.mrb[0].mxu0 %v775
    %v2772 = vpop.f32.mrb[0].mxu0
    %v2773 = vadd.f32 %v2388, %v2772
    %v2774 = vpop.f32.mrb[0].mxu0
    %2775 = vmatprep.mubr.f32.mxu0 0.0
    %2776 = vmatmul.mubr.f32.gmra.mrb[0].mxu0 %v778
    %v2777 = vpop.f32.mrb[0].mxu0
    %v2778 = vadd.f32 %v2393, %v2777
    %v2779 = vpop.f32.mrb[0].mxu0
    %2780 = vmatprep.mubr.f32.mxu0 0.0
    %2781 = vmatmul.mubr.f32.gmra.mrb[0].mxu0 %v780
    %v2782 = vpop.f32.mrb[0].mxu0
    %v2783 = vadd.f32 %v2398, %v2782
    %v2784 = vpop.f32.mrb[0].mxu0
    %2785 = vmatprep.mubr.f32.mxu0 0.0
    %2786 = vmatmul.mubr.f32.gmra.mrb[0].mxu0 %v783
    %v2787 = vpop.f32.mrb[0].mxu0
    %v2788 = vadd.f32 %v2403, %v2787
    %v2789 = vpop.f32.mrb[0].mxu0
    %2790 = vmatprep.mubr.f32.mxu0 0.0
    %2791 = vmatmul.mubr.f32.gmra.mrb[0].mxu0 %v785
    %v2792 = vpop.f32.mrb[0].mxu0
    %v2793 = vadd.f32 %v2408, %v2792
    %v2794 = vpop.f32.mrb[0].mxu0
    %2795 = vmatprep.mubr.f32.mxu0 0.0
    %2796 = vmatmul.mubr.f32.gmra.mrb[0].mxu0 %v788
    %v2797 = vpop.f32.mrb[0].mxu0
    %v2798 = vadd.f32 %v2413, %v2797
    %v2799 = vpop.f32.mrb[0].mxu0
    %2800 = vmatprep.mubr.f32.mxu0 0.0
    %2801 = vmatmul.mubr.f32.gmra.mrb[0].mxu0 %v790
    %v2802 = vpop.f32.mrb[0].mxu0
    %v2803 = vadd.f32 %v2418, %v2802
    %v2804 = vpop.f32.mrb[0].mxu0
    %2805 = vmatprep.mubr.f32.mxu0 0.0
    %2806 = vmatmul.mubr.f32.gmra.mrb[0].mxu0 %v793
    %v2807 = vpop.f32.mrb[0].mxu0
    %v2808 = vadd.f32 %v2423, %v2807
    %v2809 = vpop.f32.mrb[0].mxu0
    %2810 = vmatprep.mubr.f32.mxu0 0.0
    %2811 = vmatmul.mubr.f32.gmra.mrb[0].mxu0 %v795
    %v2812 = vpop.f32.mrb[0].mxu0
    %v2813 = vadd.f32 %v2428, %v2812
    %v2814 = vpop.f32.mrb[0].mxu0
    %2815 = vmatprep.mubr.f32.mxu0 0.0
    %2816 = vmatmul.mubr.f32.gmra.mrb[0].mxu0 %v798
    %v2817 = vpop.f32.mrb[0].mxu0
    %v2818 = vadd.f32 %v2433, %v2817
    %v2819 = vpop.f32.mrb[0].mxu0
    %2820 = vmatprep.mubr.f32.mxu0 0.0
    %2821 = vmatmul.mubr.f32.gmra.mrb[0].mxu0 %v800
    %v2822 = vpop.f32.mrb[0].mxu0
    %v2823 = vadd.f32 %v2438, %v2822
    %v2824 = vpop.f32.mrb[0].mxu0
    %2825 = vmatprep.mubr.f32.mxu0 0.0
    %2826 = vmatmul.mubr.f32.gmra.mrb[0].mxu0 %v803
    %v2827 = vpop.f32.mrb[0].mxu0
    %v2828 = vadd.f32 %v2443, %v2827
    %v2829 = vpop.f32.mrb[0].mxu0
    %2830 = vmatprep.mubr.f32.mxu0 0.0
    %2831 = vmatmul.mubr.f32.gmra.mrb[0].mxu0 %v805
    %v2832 = vpop.f32.mrb[0].mxu0
    %v2833 = vadd.f32 %v2448, %v2832
    %v2834 = vpop.f32.mrb[0].mxu0
    %2835 = vmatprep.mubr.f32.mxu0 0.0
    %2836 = vmatmul.mubr.f32.gmra.mrb[0].mxu0 %v808
    %v2837 = vpop.f32.mrb[0].mxu0
    %v2838 = vadd.f32 %v2453, %v2837
    %v2839 = vpop.f32.mrb[0].mxu0
    %2840 = vmatprep.mubr.f32.mxu0 0.0
    %2841 = vmatmul.mubr.f32.gmra.mrb[0].mxu0 %v810
    %v2842 = vpop.f32.mrb[0].mxu0
    %v2843 = vadd.f32 %v2458, %v2842
    %v2844 = vpop.f32.mrb[0].mxu0
    %2845 = vmatprep.mubr.f32.mxu0 0.0
    %2846 = vmatmul.mubr.f32.gmra.mrb[0].mxu0 %v813
    %v2847 = vpop.f32.mrb[0].mxu0
    %v2848 = vadd.f32 %v2463, %v2847
    %v2849 = vpop.f32.mrb[0].mxu0
    %2850 = vmatprep.mubr.f32.mxu0 0.0
    %2851 = vmatmul.mubr.f32.gmra.mrb[0].mxu0 %v815
    %v2852 = vpop.f32.mrb[0].mxu0
    %v2853 = vadd.f32 %v2468, %v2852
    %v2854 = vpop.f32.mrb[0].mxu0
    %2855 = vmatprep.mubr.f32.mxu0 0.0
    %2856 = vmatmul.mubr.f32.gmra.mrb[0].mxu0 %v818
    %v2857 = vpop.f32.mrb[0].mxu0
    %v2858 = vadd.f32 %v2473, %v2857
    %v2859 = vpop.f32.mrb[0].mxu0
    %2860 = vmatprep.mubr.f32.mxu0 0.0
    %2861 = vmatmul.mubr.f32.gmra.mrb[0].mxu0 %v820
    %v2862 = vpop.f32.mrb[0].mxu0
    %v2863 = vadd.f32 %v2478, %v2862
    %v2864 = vpop.f32.mrb[0].mxu0
    %2865 = vmatprep.mubr.f32.mxu0 0.0
    %2866 = vmatmul.mubr.f32.gmra.mrb[0].mxu0 %v823
    %v2867 = vpop.f32.mrb[0].mxu0
    %v2868 = vadd.f32 %v2483, %v2867
    %v2869 = vpop.f32.mrb[0].mxu0
    %2870 = vmatprep.mubr.f32.mxu0 0.0
    %2871 = vmatmul.mubr.f32.gmra.mrb[0].mxu0 %v825
    %v2872 = vpop.f32.mrb[0].mxu0
    %v2873 = vadd.f32 %v2488, %v2872
    %v2874 = vpop.f32.mrb[0].mxu0
    %2875 = vmatprep.mubr.f32.mxu0 0.0
    %2876 = vmatmul.mubr.f32.gmra.mrb[0].mxu0 %v828
    %v2877 = vpop.f32.mrb[0].mxu0
    %v2878 = vadd.f32 %v2493, %v2877
    %v2879 = vpop.f32.mrb[0].mxu0
    %2880 = vmatprep.mubr.f32.mxu0 0.0
    %2881 = vmatmul.mubr.f32.gmra.mrb[0].mxu0 %v830
    %v2882 = vpop.f32.mrb[0].mxu0
    %v2883 = vadd.f32 %v2498, %v2882
    %v2884 = vpop.f32.mrb[0].mxu0
    %2885 = vmatprep.mubr.f32.mxu0 0.0
    %2886 = vmatmul.mubr.f32.gmra.mrb[0].mxu0 %v833
    %v2887 = vpop.f32.mrb[0].mxu0
    %v2888 = vadd.f32 %v2503, %v2887
    %v2889 = vpop.f32.mrb[0].mxu0
    %2890 = vmatprep.mubr.f32.mxu0 0.0
    %2891 = vmatmul.mubr.f32.gmra.mrb[0].mxu0 %v835
    %v2892 = vpop.f32.mrb[0].mxu0
    %v2893 = vadd.f32 %v2508, %v2892
    %v2894 = vpop.f32.mrb[0].mxu0
    %2895 = vmatprep.mubr.f32.mxu0 0.0
    %2896 = vmatmul.mubr.f32.gmra.mrb[0].mxu0 %v838
    %v2897 = vpop.f32.mrb[0].mxu0
    %v2898 = vadd.f32 %v2513, %v2897
    %v2899 = vpop.f32.mrb[0].mxu0
    %2900 = vmatprep.mubr.f32.mxu0 0.0
    %2901 = vmatmul.mubr.f32.gmra.mrb[0].mxu0 %v840
    %v2902 = vpop.f32.mrb[0].mxu0
    %v2903 = vadd.f32 %v2518, %v2902
    %v2904 = vpop.f32.mrb[0].mxu0
    %2905 = vmatprep.mubr.f32.mxu0 0.0
    %2906 = vmatmul.mubr.f32.gmra.mrb[0].mxu0 %v998
    %v2907 = vpop.f32.mrb[0].mxu0
    %v2908 = vadd.f32 %v2523, %v2907
    %v2909 = vpop.f32.mrb[0].mxu0
    %2910 = vmatprep.mubr.f32.mxu0 0.0
    %2911 = vmatmul.mubr.f32.gmra.mrb[0].mxu0 %v1000
    %v2912 = vpop.f32.mrb[0].mxu0
    %v2913 = vadd.f32 %v2528, %v2912
    %v2914 = vpop.f32.mrb[0].mxu0
    %2915 = vmatprep.mubr.f32.mxu0 0.0
    %2916 = vmatmul.mubr.f32.gmra.mrb[0].mxu0 %v763
    %v2917 = vpop.f32.mrb[0].mxu0
    %v2918 = vadd.f32 %v2533, %v2917
    %v2919 = vpop.f32.mrb[0].mxu0
    %2920 = vmatprep.mubr.f32.mxu0 0.0
    %2921 = vmatmul.mubr.f32.gmra.mrb[0].mxu0 %v765
    %v2922 = vpop.f32.mrb[0].mxu0
    %v2923 = vadd.f32 %v2538, %v2922
    %v2924 = vpop.f32.mrb[0].mxu0
    %2925 = vmatprep.mubr.f32.mxu0 0.0
    %2926 = vmatmul.mubr.f32.gmra.mrb[0].mxu0 %v848
    %v2927 = vpop.f32.mrb[0].mxu0
    %v2928 = vadd.f32 %v2543, %v2927
    %v2929 = vpop.f32.mrb[0].mxu0
    %2930 = vmatprep.mubr.f32.mxu0 0.0
    %2931 = vmatmul.mubr.f32.gmra.mrb[0].mxu0 %v850
    %v2932 = vpop.f32.mrb[0].mxu0
    %v2933 = vadd.f32 %v2548, %v2932
    %v2934 = vpop.f32.mrb[0].mxu0
    %2935 = vmatprep.mubr.f32.mxu0 0.0
    %2936 = vmatmul.mubr.f32.gmra.mrb[0].mxu0 %v853
    %v2937 = vpop.f32.mrb[0].mxu0
    %v2938 = vadd.f32 %v2553, %v2937
    %v2939 = vpop.f32.mrb[0].mxu0
    %2940 = vmatprep.mubr.f32.mxu0 0.0
    %2941 = vmatmul.mubr.f32.gmra.mrb[0].mxu0 %v855
    %v2942 = vpop.f32.mrb[0].mxu0
    %v2943 = vadd.f32 %v2558, %v2942
    %v2944 = vpop.f32.mrb[0].mxu0
    %2945 = vmatprep.mubr.f32.mxu0 0.0
    %2946 = vmatmul.mubr.f32.gmra.mrb[0].mxu0 %v858
    %v2947 = vpop.f32.mrb[0].mxu0
    %v2948 = vadd.f32 %v2563, %v2947
    %v2949 = vpop.f32.mrb[0].mxu0
    %2950 = vmatprep.mubr.f32.mxu0 0.0
    %2951 = vmatmul.mubr.f32.gmra.mrb[0].mxu0 %v860
    %v2952 = vpop.f32.mrb[0].mxu0
    %v2953 = vadd.f32 %v2568, %v2952
    %v2954 = vpop.f32.mrb[0].mxu0
    %2955 = vmatprep.mubr.f32.mxu0 0.0
    %2956 = vmatmul.mubr.f32.gmra.mrb[0].mxu0 %v863
    %v2957 = vpop.f32.mrb[0].mxu0
    %v2958 = vadd.f32 %v2573, %v2957
    %v2959 = vpop.f32.mrb[0].mxu0
    %2960 = vmatprep.mubr.f32.mxu0 0.0
    %2961 = vmatmul.mubr.f32.gmra.mrb[0].mxu0 %v865
    %v2962 = vpop.f32.mrb[0].mxu0
    %v2963 = vadd.f32 %v2578, %v2962
    %v2964 = vpop.f32.mrb[0].mxu0
    %2965 = vmatprep.mubr.f32.mxu0 0.0
    %2966 = vmatmul.mubr.f32.gmra.mrb[0].mxu0 %v868
    %v2967 = vpop.f32.mrb[0].mxu0
    %v2968 = vadd.f32 %v2583, %v2967
    %v2969 = vpop.f32.mrb[0].mxu0
    %2970 = vmatprep.mubr.f32.mxu0 0.0
    %2971 = vmatmul.mubr.f32.gmra.mrb[0].mxu0 %v870
    %v2972 = vpop.f32.mrb[0].mxu0
    %v2973 = vadd.f32 %v2588, %v2972
    %v2974 = vpop.f32.mrb[0].mxu0
    %2975 = vmatprep.mubr.f32.mxu0 0.0
    %2976 = vmatmul.mubr.f32.gmra.mrb[0].mxu0 %v873
    %v2977 = vpop.f32.mrb[0].mxu0
    %v2978 = vadd.f32 %v2593, %v2977
    %v2979 = vpop.f32.mrb[0].mxu0
    %2980 = vmatprep.mubr.f32.mxu0 0.0
    %2981 = vmatmul.mubr.f32.gmra.mrb[0].mxu0 %v875
    %v2982 = vpop.f32.mrb[0].mxu0
    %v2983 = vadd.f32 %v2598, %v2982
    %v2984 = vpop.f32.mrb[0].mxu0
    %2985 = vmatprep.mubr.f32.mxu0 0.0
    %2986 = vmatmul.mubr.f32.gmra.mrb[0].mxu0 %v878
    %v2987 = vpop.f32.mrb[0].mxu0
    %v2988 = vadd.f32 %v2603, %v2987
    %v2989 = vpop.f32.mrb[0].mxu0
    %2990 = vmatprep.mubr.f32.mxu0 0.0
    %2991 = vmatmul.mubr.f32.gmra.mrb[0].mxu0 %v880
    %v2992 = vpop.f32.mrb[0].mxu0
    %v2993 = vadd.f32 %v2608, %v2992
    %v2994 = vpop.f32.mrb[0].mxu0
    %2995 = vmatprep.mubr.f32.mxu0 0.0
    %2996 = vmatmul.mubr.f32.gmra.mrb[0].mxu0 %v883
    %v2997 = vpop.f32.mrb[0].mxu0
    %v2998 = vadd.f32 %v2613, %v2997
    %v2999 = vpop.f32.mrb[0].mxu0
    %3000 = vmatprep.mubr.f32.mxu0 0.0
    %3001 = vmatmul.mubr.f32.gmra.mrb[0].mxu0 %v885
    %v3002 = vpop.f32.mrb[0].mxu0
    %v3003 = vadd.f32 %v2618, %v3002
    %v3004 = vpop.f32.mrb[0].mxu0
    %3005 = vmatprep.mubr.f32.mxu0 0.0
    %3006 = vmatmul.mubr.f32.gmra.mrb[0].mxu0 %v888
    %v3007 = vpop.f32.mrb[0].mxu0
    %v3008 = vadd.f32 %v2623, %v3007
    %v3009 = vpop.f32.mrb[0].mxu0
    %3010 = vmatprep.mubr.f32.mxu0 0.0
    %3011 = vmatmul.mubr.f32.gmra.mrb[0].mxu0 %v890
    %v3012 = vpop.f32.mrb[0].mxu0
    %v3013 = vadd.f32 %v2628, %v3012
    %v3014 = vpop.f32.mrb[0].mxu0
    %3015 = vmatprep.mubr.f32.mxu0 0.0
    %3016 = vmatmul.mubr.f32.gmra.mrb[0].mxu0 %v893
    %v3017 = vpop.f32.mrb[0].mxu0
    %v3018 = vadd.f32 %v2633, %v3017
    %v3019 = vpop.f32.mrb[0].mxu0
    %3020 = vmatprep.mubr.f32.mxu0 0.0
    %3021 = vmatmul.mubr.f32.gmra.mrb[0].mxu0 %v895
    %v3022 = vpop.f32.mrb[0].mxu0
    %v3023 = vadd.f32 %v2638, %v3022
    %v3024 = vpop.f32.mrb[0].mxu0
    %3025 = vmatprep.mubr.f32.mxu0 0.0
    %3026 = vmatmul.mubr.f32.gmra.mrb[0].mxu0 %v898
    %v3027 = vpop.f32.mrb[0].mxu0
    %v3028 = vadd.f32 %v2643, %v3027
    %v3029 = vpop.f32.mrb[0].mxu0
    %3030 = vmatprep.mubr.f32.mxu0 0.0
    %3031 = vmatmul.mubr.f32.gmra.mrb[0].mxu0 %v900
    %v3032 = vpop.f32.mrb[0].mxu0
    %v3033 = vadd.f32 %v2648, %v3032
    %v3034 = vpop.f32.mrb[0].mxu0
    %3035 = vmatprep.mubr.f32.mxu0 0.0
    %3036 = vmatmul.mubr.f32.gmra.mrb[0].mxu0 %v903
    %v3037 = vpop.f32.mrb[0].mxu0
    %v3038 = vadd.f32 %v2653, %v3037
    %v3039 = vpop.f32.mrb[0].mxu0
    %3040 = vmatprep.mubr.f32.mxu0 0.0
    %3041 = vmatmul.mubr.f32.gmra.mrb[0].mxu0 %v905
    %v3042 = vpop.f32.mrb[0].mxu0
    %v3043 = vadd.f32 %v2658, %v3042
    %v3044 = vpop.f32.mrb[0].mxu0
    %3045 = vmatprep.mubr.f32.mxu0 0.0
    %3046 = vmatmul.mubr.f32.gmra.mrb[0].mxu0 %v908
    %v3047 = vpop.f32.mrb[0].mxu0
    %v3048 = vadd.f32 %v2663, %v3047
    %v3049 = vpop.f32.mrb[0].mxu0
    %3050 = vmatprep.mubr.f32.mxu0 0.0
    %3051 = vmatmul.mubr.f32.gmra.mrb[0].mxu0 %v910
    %v3052 = vpop.f32.mrb[0].mxu0
    %v3053 = vadd.f32 %v2668, %v3052
    %v3054 = vpop.f32.mrb[0].mxu0
    %3055 = vmatprep.mubr.f32.mxu0 0.0
    %3056 = vmatmul.mubr.f32.gmra.mrb[0].mxu0 %v913
    %v3057 = vpop.f32.mrb[0].mxu0
    %v3058 = vadd.f32 %v2673, %v3057
    %v3059 = vpop.f32.mrb[0].mxu0
    %3060 = vmatprep.mubr.f32.mxu0 0.0
    %3061 = vmatmul.mubr.f32.gmra.mrb[0].mxu0 %v915
    %v3062 = vpop.f32.mrb[0].mxu0
    %v3063 = vadd.f32 %v2678, %v3062
    %v3064 = vpop.f32.mrb[0].mxu0
    %3065 = vmatprep.mubr.f32.mxu0 0.0
    %3066 = vmatmul.mubr.f32.gmra.mrb[0].mxu0 %v1003
    %v3067 = vpop.f32.mrb[0].mxu0
    %v3068 = vadd.f32 %v2683, %v3067
    %v3069 = vpop.f32.mrb[0].mxu0
    %3070 = vmatprep.mubr.f32.mxu0 0.0
    %3071 = vmatmul.mubr.f32.gmra.mrb[0].mxu0 %v1005
    %v3072 = vpop.f32.mrb[0].mxu0
    %v3073 = vadd.f32 %v2688, %v3072
    %v3074 = vpop.f32.mrb[0].mxu0
    %3075 = vmatprep.mubr.f32.mxu0 0.0
    %3076 = vmatmul.mubr.f32.gmra.mrb[0].mxu0 %v763
    %v3077 = vpop.f32.mrb[0].mxu0
    %v3078 = vadd.f32 %v2693, %v3077
    %v3079 = vpop.f32.mrb[0].mxu0
    %3080 = vmatprep.mubr.f32.mxu0 0.0
    %3081 = vmatmul.mubr.f32.gmra.mrb[0].mxu0 %v765
    %v3082 = vpop.f32.mrb[0].mxu0
    %v3083 = vadd.f32 %v2698, %v3082
    %v3084 = vpop.f32.mrb[0].mxu0
    %3085 = vdwg.mxu0
    %v3086 = vmax.f32 %v2768, 0.0
    %v3087 = vmax.f32 %v2773, 0.0
    %v3088 = vmax.f32 %v2778, 0.0
    %v3089 = vmax.f32 %v2783, 0.0
    %v3090 = vmax.f32 %v2788, 0.0
    %v3091 = vmax.f32 %v2793, 0.0
    %v3092 = vmax.f32 %v2798, 0.0
    %v3093 = vmax.f32 %v2803, 0.0
    %v3094 = vmax.f32 %v2808, 0.0
    %v3095 = vmax.f32 %v2813, 0.0
    %v3096 = vmax.f32 %v2818, 0.0
    %v3097 = vmax.f32 %v2823, 0.0
    %v3098 = vmax.f32 %v2828, 0.0
    %v3099 = vmax.f32 %v2833, 0.0
    %v3100 = vmax.f32 %v2838, 0.0
    %v3101 = vmax.f32 %v2843, 0.0
    %v3102 = vmax.f32 %v2848, 0.0
    %v3103 = vmax.f32 %v2853, 0.0
    %v3104 = vmax.f32 %v2858, 0.0
    %v3105 = vmax.f32 %v2863, 0.0
    %v3106 = vmax.f32 %v2868, 0.0
    %v3107 = vmax.f32 %v2873, 0.0
    %v3108 = vmax.f32 %v2878, 0.0
    %v3109 = vmax.f32 %v2883, 0.0
    %v3110 = vmax.f32 %v2888, 0.0
    %v3111 = vmax.f32 %v2893, 0.0
    %v3112 = vmax.f32 %v2898, 0.0
    %v3113 = vmax.f32 %v2903, 0.0
    %v3114 = vmax.f32 %v2908, 0.0
    %v3115 = vmax.f32 %v2913, 0.0
    %v3116 = vmax.f32 %v2918, 0.0
    %v3117 = vmax.f32 %v2923, 0.0
    %v3118 = vmax.f32 %v2928, 0.0
    %v3119 = vmax.f32 %v2933, 0.0
    %v3120 = vmax.f32 %v2938, 0.0
    %v3121 = vmax.f32 %v2943, 0.0
    %v3122 = vmax.f32 %v2948, 0.0
    %v3123 = vmax.f32 %v2953, 0.0
    %v3124 = vmax.f32 %v2958, 0.0
    %v3125 = vmax.f32 %v2963, 0.0
    %v3126 = vmax.f32 %v2968, 0.0
    %v3127 = vmax.f32 %v2973, 0.0
    %v3128 = vmax.f32 %v2978, 0.0
    %v3129 = vmax.f32 %v2983, 0.0
    %v3130 = vmax.f32 %v2988, 0.0
    %v3131 = vmax.f32 %v2993, 0.0
    %v3132 = vmax.f32 %v2998, 0.0
    %v3133 = vmax.f32 %v3003, 0.0
    %v3134 = vmax.f32 %v3008, 0.0
    %v3135 = vmax.f32 %v3013, 0.0
    %v3136 = vmax.f32 %v3018, 0.0
    %v3137 = vmax.f32 %v3023, 0.0
    %v3138 = vmax.f32 %v3028, 0.0
    %v3139 = vmax.f32 %v3033, 0.0
    %v3140 = vmax.f32 %v3038, 0.0
    %v3141 = vmax.f32 %v3043, 0.0
    %v3142 = vmax.f32 %v3048, 0.0
    %v3143 = vmax.f32 %v3053, 0.0
    %v3144 = vmax.f32 %v3058, 0.0
    %v3145 = vmax.f32 %v3063, 0.0
    %v3146 = vmax.f32 %v3068, 0.0
    %v3147 = vmax.f32 %v3073, 0.0
    %v3148 = vmax.f32 %v3078, 0.0
    %v3149 = vmax.f32 %v3083, 0.0
    %v3214 = vrot.slane %v3086, 7
    %v3215 = vrot.slane %v3087, 7
    %v3216 = vsel %vm217, %v3214, %v3215
    %v3217 = vrot.slane %v3088, 7
    %v3218 = vrot.slane %v3089, 7
    %v3219 = vsel %vm217, %v3217, %v3218
    %v3220 = vrot.slane %v3090, 7
    %v3221 = vrot.slane %v3091, 7
    %v3222 = vsel %vm217, %v3220, %v3221
    %v3223 = vrot.slane %v3092, 7
    %v3224 = vrot.slane %v3093, 7
    %v3225 = vsel %vm217, %v3223, %v3224
    %v3226 = vrot.slane %v3094, 7
    %v3227 = vrot.slane %v3095, 7
    %v3228 = vsel %vm217, %v3226, %v3227
    %v3229 = vrot.slane %v3096, 7
    %v3230 = vrot.slane %v3097, 7
    %v3231 = vsel %vm217, %v3229, %v3230
    %v3232 = vrot.slane %v3098, 7
    %v3233 = vrot.slane %v3099, 7
    %v3234 = vsel %vm217, %v3232, %v3233
    %v3235 = vrot.slane %v3100, 7
    %v3236 = vrot.slane %v3101, 7
    %v3237 = vsel %vm217, %v3235, %v3236
    %v3238 = vrot.slane %v3102, 7
    %v3239 = vrot.slane %v3103, 7
    %v3240 = vsel %vm217, %v3238, %v3239
    %v3241 = vrot.slane %v3104, 7
    %v3242 = vrot.slane %v3105, 7
    %v3243 = vsel %vm217, %v3241, %v3242
    %v3244 = vrot.slane %v3106, 7
    %v3245 = vrot.slane %v3107, 7
    %v3246 = vsel %vm217, %v3244, %v3245
    %v3247 = vrot.slane %v3108, 7
    %v3248 = vrot.slane %v3109, 7
    %v3249 = vsel %vm217, %v3247, %v3248
    %v3250 = vrot.slane %v3110, 7
    %v3251 = vrot.slane %v3111, 7
    %v3252 = vsel %vm217, %v3250, %v3251
    %v3253 = vrot.slane %v3112, 7
    %v3254 = vrot.slane %v3113, 7
    %v3255 = vsel %vm217, %v3253, %v3254
    %v3256 = vrot.slane %v3114, 7
    %v3257 = vrot.slane %v3115, 7
    %v3258 = vsel %vm217, %v3256, %v3257
    %v3259 = vrot.slane %v3116, 7
    %v3260 = vrot.slane %v3117, 7
    %v3261 = vsel %vm217, %v3259, %v3260
    %v3262 = vrot.slane %v3118, 7
    %v3263 = vrot.slane %v3119, 7
    %v3264 = vsel %vm217, %v3262, %v3263
    %v3265 = vrot.slane %v3120, 7
    %v3266 = vrot.slane %v3121, 7
    %v3267 = vsel %vm217, %v3265, %v3266
    %v3268 = vrot.slane %v3122, 7
    %v3269 = vrot.slane %v3123, 7
    %v3270 = vsel %vm217, %v3268, %v3269
    %v3271 = vrot.slane %v3124, 7
    %v3272 = vrot.slane %v3125, 7
    %v3273 = vsel %vm217, %v3271, %v3272
    %v3274 = vrot.slane %v3126, 7
    %v3275 = vrot.slane %v3127, 7
    %v3276 = vsel %vm217, %v3274, %v3275
    %v3277 = vrot.slane %v3128, 7
    %v3278 = vrot.slane %v3129, 7
    %v3279 = vsel %vm217, %v3277, %v3278
    %v3280 = vrot.slane %v3130, 7
    %v3281 = vrot.slane %v3131, 7
    %v3282 = vsel %vm217, %v3280, %v3281
    %v3283 = vrot.slane %v3132, 7
    %v3284 = vrot.slane %v3133, 7
    %v3285 = vsel %vm217, %v3283, %v3284
    %v3286 = vrot.slane %v3134, 7
    %v3287 = vrot.slane %v3135, 7
    %v3288 = vsel %vm217, %v3286, %v3287
    %v3289 = vrot.slane %v3136, 7
    %v3290 = vrot.slane %v3137, 7
    %v3291 = vsel %vm217, %v3289, %v3290
    %v3292 = vrot.slane %v3138, 7
    %v3293 = vrot.slane %v3139, 7
    %v3294 = vsel %vm217, %v3292, %v3293
    %v3295 = vrot.slane %v3140, 7
    %v3296 = vrot.slane %v3141, 7
    %v3297 = vsel %vm217, %v3295, %v3296
    %v3298 = vrot.slane %v3142, 7
    %v3299 = vrot.slane %v3143, 7
    %v3300 = vsel %vm217, %v3298, %v3299
    %v3301 = vrot.slane %v3144, 7
    %v3302 = vrot.slane %v3145, 7
    %v3303 = vsel %vm217, %v3301, %v3302
    %v3304 = vrot.slane %v3146, 7
    %v3305 = vrot.slane %v3147, 7
    %v3306 = vsel %vm217, %v3304, %v3305
    %v3307 = vrot.slane %v3148, 7
    %v3308 = vrot.slane %v3149, 7
    %v3309 = vsel %vm217, %v3307, %v3308
    %v3406 = vsel %vm217, 0.0, %v3214
    %v3407 = vsel %vm217, 0.0, %v3217
    %v3408 = vsel %vm217, 0.0, %v3220
    %v3409 = vsel %vm217, 0.0, %v3223
    %v3410 = vsel %vm217, 0.0, %v3226
    %v3411 = vsel %vm217, 0.0, %v3229
    %v3412 = vsel %vm217, 0.0, %v3232
    %v3413 = vsel %vm217, 0.0, %v3235
    %v3414 = vsel %vm217, 0.0, %v3238
    %v3415 = vsel %vm217, 0.0, %v3241
    %v3416 = vsel %vm217, 0.0, %v3244
    %v3417 = vsel %vm217, 0.0, %v3247
    %v3418 = vsel %vm217, 0.0, %v3250
    %v3419 = vsel %vm217, 0.0, %v3253
    %v3420 = vsel %vm217, 0.0, %v3256
    %v3421 = vsel %vm217, 0.0, %v3259
    %v3422 = vsel %vm217, 0.0, %v3262
    %v3423 = vsel %vm217, 0.0, %v3265
    %v3424 = vsel %vm217, 0.0, %v3268
    %v3425 = vsel %vm217, 0.0, %v3271
    %v3426 = vsel %vm217, 0.0, %v3274
    %v3427 = vsel %vm217, 0.0, %v3277
    %v3428 = vsel %vm217, 0.0, %v3280
    %v3429 = vsel %vm217, 0.0, %v3283
    %v3430 = vsel %vm217, 0.0, %v3286
    %v3431 = vsel %vm217, 0.0, %v3289
    %v3432 = vsel %vm217, 0.0, %v3292
    %v3433 = vsel %vm217, 0.0, %v3295
    %v3434 = vsel %vm217, 0.0, %v3298
    %v3435 = vsel %vm217, 0.0, %v3301
    %v3436 = vsel %vm217, 0.0, %v3304
    %v3437 = vsel %vm217, 0.0, %v3307
    %v3438 = vsel %vm217, %v3215, 0.0
    %v3439 = vsel %vm217, %v3218, 0.0
    %v3440 = vsel %vm217, %v3221, 0.0
    %v3441 = vsel %vm217, %v3224, 0.0
    %v3442 = vsel %vm217, %v3227, 0.0
    %v3443 = vsel %vm217, %v3230, 0.0
    %v3444 = vsel %vm217, %v3233, 0.0
    %v3445 = vsel %vm217, %v3236, 0.0
    %v3446 = vsel %vm217, %v3239, 0.0
    %v3447 = vsel %vm217, %v3242, 0.0
    %v3448 = vsel %vm217, %v3245, 0.0
    %v3449 = vsel %vm217, %v3248, 0.0
    %v3450 = vsel %vm217, %v3251, 0.0
    %v3451 = vsel %vm217, %v3254, 0.0
    %v3452 = vsel %vm217, %v3257, 0.0
    %v3453 = vsel %vm217, %v3260, 0.0
    %v3454 = vsel %vm217, %v3263, 0.0
    %v3455 = vsel %vm217, %v3266, 0.0
    %v3456 = vsel %vm217, %v3269, 0.0
    %v3457 = vsel %vm217, %v3272, 0.0
    %v3458 = vsel %vm217, %v3275, 0.0
    %v3459 = vsel %vm217, %v3278, 0.0
    %v3460 = vsel %vm217, %v3281, 0.0
    %v3461 = vsel %vm217, %v3284, 0.0
    %v3462 = vsel %vm217, %v3287, 0.0
    %v3463 = vsel %vm217, %v3290, 0.0
    %v3464 = vsel %vm217, %v3293, 0.0
    %v3465 = vsel %vm217, %v3296, 0.0
    %v3466 = vsel %vm217, %v3299, 0.0
    %v3467 = vsel %vm217, %v3302, 0.0
    %v3468 = vsel %vm217, %v3305, 0.0
    %v3469 = vsel %vm217, %v3308, 0.0
    %v3530 = vrot.slane %v3406, 1
    %v3531 = vrot.slane %v3216, 1
    %v3532 = vsel %vm542, %v3530, %v3531
    %v3533 = vrot.slane %v3438, 1
    %v3534 = vsel %vm542, %v3531, %v3533
    %v3535 = vrot.slane %v3407, 1
    %v3536 = vrot.slane %v3219, 1
    %v3537 = vsel %vm542, %v3535, %v3536
    %v3538 = vrot.slane %v3439, 1
    %v3539 = vsel %vm542, %v3536, %v3538
    %v3540 = vrot.slane %v3408, 1
    %v3541 = vrot.slane %v3222, 1
    %v3542 = vsel %vm542, %v3540, %v3541
    %v3543 = vrot.slane %v3440, 1
    %v3544 = vsel %vm542, %v3541, %v3543
    %v3545 = vrot.slane %v3409, 1
    %v3546 = vrot.slane %v3225, 1
    %v3547 = vsel %vm542, %v3545, %v3546
    %v3548 = vrot.slane %v3441, 1
    %v3549 = vsel %vm542, %v3546, %v3548
    %v3550 = vrot.slane %v3410, 1
    %v3551 = vrot.slane %v3228, 1
    %v3552 = vsel %vm542, %v3550, %v3551
    %v3553 = vrot.slane %v3442, 1
    %v3554 = vsel %vm542, %v3551, %v3553
    %v3555 = vrot.slane %v3411, 1
    %v3556 = vrot.slane %v3231, 1
    %v3557 = vsel %vm542, %v3555, %v3556
    %v3558 = vrot.slane %v3443, 1
    %v3559 = vsel %vm542, %v3556, %v3558
    %v3560 = vrot.slane %v3412, 1
    %v3561 = vrot.slane %v3234, 1
    %v3562 = vsel %vm542, %v3560, %v3561
    %v3563 = vrot.slane %v3444, 1
    %v3564 = vsel %vm542, %v3561, %v3563
    %v3565 = vrot.slane %v3413, 1
    %v3566 = vrot.slane %v3237, 1
    %v3567 = vsel %vm542, %v3565, %v3566
    %v3568 = vrot.slane %v3445, 1
    %v3569 = vsel %vm542, %v3566, %v3568
    %v3570 = vrot.slane %v3414, 1
    %v3571 = vrot.slane %v3240, 1
    %v3572 = vsel %vm542, %v3570, %v3571
    %v3573 = vrot.slane %v3446, 1
    %v3574 = vsel %vm542, %v3571, %v3573
    %v3575 = vrot.slane %v3415, 1
    %v3576 = vrot.slane %v3243, 1
    %v3577 = vsel %vm542, %v3575, %v3576
    %v3578 = vrot.slane %v3447, 1
    %v3579 = vsel %vm542, %v3576, %v3578
    %v3580 = vrot.slane %v3416, 1
    %v3581 = vrot.slane %v3246, 1
    %v3582 = vsel %vm542, %v3580, %v3581
    %v3583 = vrot.slane %v3448, 1
    %v3584 = vsel %vm542, %v3581, %v3583
    %v3585 = vrot.slane %v3417, 1
    %v3586 = vrot.slane %v3249, 1
    %v3587 = vsel %vm542, %v3585, %v3586
    %v3588 = vrot.slane %v3449, 1
    %v3589 = vsel %vm542, %v3586, %v3588
    %v3590 = vrot.slane %v3418, 1
    %v3591 = vrot.slane %v3252, 1
    %v3592 = vsel %vm542, %v3590, %v3591
    %v3593 = vrot.slane %v3450, 1
    %v3594 = vsel %vm542, %v3591, %v3593
    %v3595 = vrot.slane %v3419, 1
    %v3596 = vrot.slane %v3255, 1
    %v3597 = vsel %vm542, %v3595, %v3596
    %v3598 = vrot.slane %v3451, 1
    %v3599 = vsel %vm542, %v3596, %v3598
    %v3600 = vrot.slane %v3420, 1
    %v3601 = vrot.slane %v3258, 1
    %v3602 = vsel %vm542, %v3600, %v3601
    %v3603 = vrot.slane %v3452, 1
    %v3604 = vsel %vm542, %v3601, %v3603
    %v3605 = vrot.slane %v3422, 1
    %v3606 = vrot.slane %v3264, 1
    %v3607 = vsel %vm542, %v3605, %v3606
    %v3608 = vrot.slane %v3454, 1
    %v3609 = vsel %vm542, %v3606, %v3608
    %v3610 = vrot.slane %v3423, 1
    %v3611 = vrot.slane %v3267, 1
    %v3612 = vsel %vm542, %v3610, %v3611
    %v3613 = vrot.slane %v3455, 1
    %v3614 = vsel %vm542, %v3611, %v3613
    %v3615 = vrot.slane %v3424, 1
    %v3616 = vrot.slane %v3270, 1
    %v3617 = vsel %vm542, %v3615, %v3616
    %v3618 = vrot.slane %v3456, 1
    %v3619 = vsel %vm542, %v3616, %v3618
    %v3620 = vrot.slane %v3425, 1
    %v3621 = vrot.slane %v3273, 1
    %v3622 = vsel %vm542, %v3620, %v3621
    %v3623 = vrot.slane %v3457, 1
    %v3624 = vsel %vm542, %v3621, %v3623
    %v3625 = vrot.slane %v3426, 1
    %v3626 = vrot.slane %v3276, 1
    %v3627 = vsel %vm542, %v3625, %v3626
    %v3628 = vrot.slane %v3458, 1
    %v3629 = vsel %vm542, %v3626, %v3628
    %v3630 = vrot.slane %v3427, 1
    %v3631 = vrot.slane %v3279, 1
    %v3632 = vsel %vm542, %v3630, %v3631
    %v3633 = vrot.slane %v3459, 1
    %v3634 = vsel %vm542, %v3631, %v3633
    %v3635 = vrot.slane %v3428, 1
    %v3636 = vrot.slane %v3282, 1
    %v3637 = vsel %vm542, %v3635, %v3636
    %v3638 = vrot.slane %v3460, 1
    %v3639 = vsel %vm542, %v3636, %v3638
    %v3640 = vrot.slane %v3429, 1
    %v3641 = vrot.slane %v3285, 1
    %v3642 = vsel %vm542, %v3640, %v3641
    %v3643 = vrot.slane %v3461, 1
    %v3644 = vsel %vm542, %v3641, %v3643
    %v3645 = vrot.slane %v3430, 1
    %v3646 = vrot.slane %v3288, 1
    %v3647 = vsel %vm542, %v3645, %v3646
    %v3648 = vrot.slane %v3462, 1
    %v3649 = vsel %vm542, %v3646, %v3648
    %v3650 = vrot.slane %v3431, 1
    %v3651 = vrot.slane %v3291, 1
    %v3652 = vsel %vm542, %v3650, %v3651
    %v3653 = vrot.slane %v3463, 1
    %v3654 = vsel %vm542, %v3651, %v3653
    %v3655 = vrot.slane %v3432, 1
    %v3656 = vrot.slane %v3294, 1
    %v3657 = vsel %vm542, %v3655, %v3656
    %v3658 = vrot.slane %v3464, 1
    %v3659 = vsel %vm542, %v3656, %v3658
    %v3660 = vrot.slane %v3433, 1
    %v3661 = vrot.slane %v3297, 1
    %v3662 = vsel %vm542, %v3660, %v3661
    %v3663 = vrot.slane %v3465, 1
    %v3664 = vsel %vm542, %v3661, %v3663
    %v3665 = vrot.slane %v3434, 1
    %v3666 = vrot.slane %v3300, 1
    %v3667 = vsel %vm542, %v3665, %v3666
    %v3668 = vrot.slane %v3466, 1
    %v3669 = vsel %vm542, %v3666, %v3668
    %v3670 = vrot.slane %v3435, 1
    %v3671 = vrot.slane %v3303, 1
    %v3672 = vsel %vm542, %v3670, %v3671
    %v3673 = vrot.slane %v3467, 1
    %v3674 = vsel %vm542, %v3671, %v3673
    %v3675 = vrot.slane %v3436, 1
    %v3676 = vrot.slane %v3306, 1
    %v3677 = vsel %vm542, %v3675, %v3676
    %v3678 = vrot.slane %v3468, 1
    %v3679 = vsel %vm542, %v3676, %v3678
    %v3740 = vrot.slane %v3406, 2
    %v3741 = vrot.slane %v3216, 2
    %v3742 = vsel %vm760, %v3740, %v3741
    %v3743 = vrot.slane %v3438, 2
    %v3744 = vsel %vm760, %v3741, %v3743
    %v3745 = vrot.slane %v3407, 2
    %v3746 = vrot.slane %v3219, 2
    %v3747 = vsel %vm760, %v3745, %v3746
    %v3748 = vrot.slane %v3439, 2
    %v3749 = vsel %vm760, %v3746, %v3748
    %v3750 = vrot.slane %v3408, 2
    %v3751 = vrot.slane %v3222, 2
    %v3752 = vsel %vm760, %v3750, %v3751
    %v3753 = vrot.slane %v3440, 2
    %v3754 = vsel %vm760, %v3751, %v3753
    %v3755 = vrot.slane %v3409, 2
    %v3756 = vrot.slane %v3225, 2
    %v3757 = vsel %vm760, %v3755, %v3756
    %v3758 = vrot.slane %v3441, 2
    %v3759 = vsel %vm760, %v3756, %v3758
    %v3760 = vrot.slane %v3410, 2
    %v3761 = vrot.slane %v3228, 2
    %v3762 = vsel %vm760, %v3760, %v3761
    %v3763 = vrot.slane %v3442, 2
    %v3764 = vsel %vm760, %v3761, %v3763
    %v3765 = vrot.slane %v3411, 2
    %v3766 = vrot.slane %v3231, 2
    %v3767 = vsel %vm760, %v3765, %v3766
    %v3768 = vrot.slane %v3443, 2
    %v3769 = vsel %vm760, %v3766, %v3768
    %v3770 = vrot.slane %v3412, 2
    %v3771 = vrot.slane %v3234, 2
    %v3772 = vsel %vm760, %v3770, %v3771
    %v3773 = vrot.slane %v3444, 2
    %v3774 = vsel %vm760, %v3771, %v3773
    %v3775 = vrot.slane %v3413, 2
    %v3776 = vrot.slane %v3237, 2
    %v3777 = vsel %vm760, %v3775, %v3776
    %v3778 = vrot.slane %v3445, 2
    %v3779 = vsel %vm760, %v3776, %v3778
    %v3780 = vrot.slane %v3414, 2
    %v3781 = vrot.slane %v3240, 2
    %v3782 = vsel %vm760, %v3780, %v3781
    %v3783 = vrot.slane %v3446, 2
    %v3784 = vsel %vm760, %v3781, %v3783
    %v3785 = vrot.slane %v3415, 2
    %v3786 = vrot.slane %v3243, 2
    %v3787 = vsel %vm760, %v3785, %v3786
    %v3788 = vrot.slane %v3447, 2
    %v3789 = vsel %vm760, %v3786, %v3788
    %v3790 = vrot.slane %v3416, 2
    %v3791 = vrot.slane %v3246, 2
    %v3792 = vsel %vm760, %v3790, %v3791
    %v3793 = vrot.slane %v3448, 2
    %v3794 = vsel %vm760, %v3791, %v3793
    %v3795 = vrot.slane %v3417, 2
    %v3796 = vrot.slane %v3249, 2
    %v3797 = vsel %vm760, %v3795, %v3796
    %v3798 = vrot.slane %v3449, 2
    %v3799 = vsel %vm760, %v3796, %v3798
    %v3800 = vrot.slane %v3418, 2
    %v3801 = vrot.slane %v3252, 2
    %v3802 = vsel %vm760, %v3800, %v3801
    %v3803 = vrot.slane %v3450, 2
    %v3804 = vsel %vm760, %v3801, %v3803
    %v3805 = vrot.slane %v3419, 2
    %v3806 = vrot.slane %v3255, 2
    %v3807 = vsel %vm760, %v3805, %v3806
    %v3808 = vrot.slane %v3451, 2
    %v3809 = vsel %vm760, %v3806, %v3808
    %v3810 = vrot.slane %v3420, 2
    %v3811 = vrot.slane %v3258, 2
    %v3812 = vsel %vm760, %v3810, %v3811
    %v3813 = vrot.slane %v3452, 2
    %v3814 = vsel %vm760, %v3811, %v3813
    %v3815 = vrot.slane %v3422, 2
    %v3816 = vrot.slane %v3264, 2
    %v3817 = vsel %vm760, %v3815, %v3816
    %v3818 = vrot.slane %v3454, 2
    %v3819 = vsel %vm760, %v3816, %v3818
    %v3820 = vrot.slane %v3423, 2
    %v3821 = vrot.slane %v3267, 2
    %v3822 = vsel %vm760, %v3820, %v3821
    %v3823 = vrot.slane %v3455, 2
    %v3824 = vsel %vm760, %v3821, %v3823
    %v3825 = vrot.slane %v3424, 2
    %v3826 = vrot.slane %v3270, 2
    %v3827 = vsel %vm760, %v3825, %v3826
    %v3828 = vrot.slane %v3456, 2
    %v3829 = vsel %vm760, %v3826, %v3828
    %v3830 = vrot.slane %v3425, 2
    %v3831 = vrot.slane %v3273, 2
    %v3832 = vsel %vm760, %v3830, %v3831
    %v3833 = vrot.slane %v3457, 2
    %v3834 = vsel %vm760, %v3831, %v3833
    %v3835 = vrot.slane %v3426, 2
    %v3836 = vrot.slane %v3276, 2
    %v3837 = vsel %vm760, %v3835, %v3836
    %v3838 = vrot.slane %v3458, 2
    %v3839 = vsel %vm760, %v3836, %v3838
    %v3840 = vrot.slane %v3427, 2
    %v3841 = vrot.slane %v3279, 2
    %v3842 = vsel %vm760, %v3840, %v3841
    %v3843 = vrot.slane %v3459, 2
    %v3844 = vsel %vm760, %v3841, %v3843
    %v3845 = vrot.slane %v3428, 2
    %v3846 = vrot.slane %v3282, 2
    %v3847 = vsel %vm760, %v3845, %v3846
    %v3848 = vrot.slane %v3460, 2
    %v3849 = vsel %vm760, %v3846, %v3848
    %v3850 = vrot.slane %v3429, 2
    %v3851 = vrot.slane %v3285, 2
    %v3852 = vsel %vm760, %v3850, %v3851
    %v3853 = vrot.slane %v3461, 2
    %v3854 = vsel %vm760, %v3851, %v3853
    %v3855 = vrot.slane %v3430, 2
    %v3856 = vrot.slane %v3288, 2
    %v3857 = vsel %vm760, %v3855, %v3856
    %v3858 = vrot.slane %v3462, 2
    %v3859 = vsel %vm760, %v3856, %v3858
    %v3860 = vrot.slane %v3431, 2
    %v3861 = vrot.slane %v3291, 2
    %v3862 = vsel %vm760, %v3860, %v3861
    %v3863 = vrot.slane %v3463, 2
    %v3864 = vsel %vm760, %v3861, %v3863
    %v3865 = vrot.slane %v3432, 2
    %v3866 = vrot.slane %v3294, 2
    %v3867 = vsel %vm760, %v3865, %v3866
    %v3868 = vrot.slane %v3464, 2
    %v3869 = vsel %vm760, %v3866, %v3868
    %v3870 = vrot.slane %v3433, 2
    %v3871 = vrot.slane %v3297, 2
    %v3872 = vsel %vm760, %v3870, %v3871
    %v3873 = vrot.slane %v3465, 2
    %v3874 = vsel %vm760, %v3871, %v3873
    %v3875 = vrot.slane %v3434, 2
    %v3876 = vrot.slane %v3300, 2
    %v3877 = vsel %vm760, %v3875, %v3876
    %v3878 = vrot.slane %v3466, 2
    %v3879 = vsel %vm760, %v3876, %v3878
    %v3880 = vrot.slane %v3435, 2
    %v3881 = vrot.slane %v3303, 2
    %v3882 = vsel %vm760, %v3880, %v3881
    %v3883 = vrot.slane %v3467, 2
    %v3884 = vsel %vm760, %v3881, %v3883
    %v3885 = vrot.slane %v3436, 2
    %v3886 = vrot.slane %v3306, 2
    %v3887 = vsel %vm760, %v3885, %v3886
    %v3888 = vrot.slane %v3468, 2
    %v3889 = vsel %vm760, %v3886, %v3888
    %v3954 = vrot.slane %v3421, 1
    %v3955 = vrot.slane %v3261, 1
    %v3956 = vsel %vm542, %v3954, %v3955
    %v3957 = vrot.slane %v3453, 1
    %v3958 = vsel %vm542, %v3955, %v3957
    %v3959 = vrot.slane %v3437, 1
    %v3960 = vrot.slane %v3309, 1
    %v3961 = vsel %vm542, %v3959, %v3960
    %v3962 = vrot.slane %v3469, 1
    %v3963 = vsel %vm542, %v3960, %v3962
    %v3968 = vrot.slane %v3421, 2
    %v3969 = vrot.slane %v3261, 2
    %v3970 = vsel %vm760, %v3968, %v3969
    %v3971 = vrot.slane %v3453, 2
    %v3972 = vsel %vm760, %v3969, %v3971
    %v3973 = vrot.slane %v3437, 2
    %v3974 = vrot.slane %v3309, 2
    %v3975 = vsel %vm760, %v3973, %v3974
    %v3976 = vrot.slane %v3469, 2
    %v3977 = vsel %vm760, %v3974, %v3976
    %v3982 = vld [vmem:[#allocation7] sm:$0xff]
    %v3983 = vld [vmem:[#allocation7 + $0x8] sm:$0xff]
    %v3984 = vld [vmem:[#allocation7 + $0x10] sm:$0xff]
    %v3985 = vld [vmem:[#allocation7 + $0x18] sm:$0xff]
    %v3986 = vld [vmem:[#allocation7 + $0x20] sm:$0xff]
    %v3987 = vld [vmem:[#allocation7 + $0x28] sm:$0xff]
    %v3988 = vld [vmem:[#allocation7 + $0x30] sm:$0xff]
    %v3989 = vld [vmem:[#allocation7 + $0x38] sm:$0xff]
    %v3990 = vld [vmem:[#allocation7 + $0x40] sm:$0xff]
    %v3991 = vld [vmem:[#allocation7 + $0x48] sm:$0xff]
    %v3992 = vld [vmem:[#allocation7 + $0x50] sm:$0xff]
    %v3993 = vld [vmem:[#allocation7 + $0x58] sm:$0xff]
    %v3994 = vld [vmem:[#allocation7 + $0x60] sm:$0xff]
    %v3995 = vld [vmem:[#allocation7 + $0x68] sm:$0xff]
    %v3996 = vld [vmem:[#allocation7 + $0x70] sm:$0xff]
    %v3997 = vld [vmem:[#allocation7 + $0x78] sm:$0xff]
    %v3998 = vld [vmem:[#allocation7 + $0x80] sm:$0xff]
    %v3999 = vld [vmem:[#allocation7 + $0x88] sm:$0xff]
    %v4000 = vld [vmem:[#allocation7 + $0x90] sm:$0xff]
    %v4001 = vld [vmem:[#allocation7 + $0x98] sm:$0xff]
    %v4002 = vld [vmem:[#allocation7 + $0xa0] sm:$0xff]
    %v4003 = vld [vmem:[#allocation7 + $0xa8] sm:$0xff]
    %v4004 = vld [vmem:[#allocation7 + $0xb0] sm:$0xff]
    %v4005 = vld [vmem:[#allocation7 + $0xb8] sm:$0xff]
    %v4006 = vld [vmem:[#allocation7 + $0xc0] sm:$0xff]
    %v4007 = vld [vmem:[#allocation7 + $0xc8] sm:$0xff]
    %v4008 = vld [vmem:[#allocation7 + $0xd0] sm:$0xff]
    %v4009 = vld [vmem:[#allocation7 + $0xd8] sm:$0xff]
    %v4010 = vld [vmem:[#allocation7 + $0xe0] sm:$0xff]
    %v4011 = vld [vmem:[#allocation7 + $0xe8] sm:$0xff]
    %v4012 = vld [vmem:[#allocation7 + $0xf0] sm:$0xff]
    %v4013 = vld [vmem:[#allocation7 + $0xf8] sm:$0xff]
    %v4014 = vld [vmem:[#allocation7 + $0x100] sm:$0xff]
    %v4015 = vld [vmem:[#allocation7 + $0x108] sm:$0xff]
    %v4016 = vld [vmem:[#allocation7 + $0x110] sm:$0xff]
    %v4017 = vld [vmem:[#allocation7 + $0x118] sm:$0xff]
    %v4018 = vld [vmem:[#allocation7 + $0x120] sm:$0xff]
    %v4019 = vld [vmem:[#allocation7 + $0x128] sm:$0xff]
    %v4020 = vld [vmem:[#allocation7 + $0x130] sm:$0xff]
    %v4021 = vld [vmem:[#allocation7 + $0x138] sm:$0xff]
    %v4022 = vld [vmem:[#allocation7 + $0x140] sm:$0xff]
    %v4023 = vld [vmem:[#allocation7 + $0x148] sm:$0xff]
    %v4024 = vld [vmem:[#allocation7 + $0x150] sm:$0xff]
    %v4025 = vld [vmem:[#allocation7 + $0x158] sm:$0xff]
    %v4026 = vld [vmem:[#allocation7 + $0x160] sm:$0xff]
    %v4027 = vld [vmem:[#allocation7 + $0x168] sm:$0xff]
    %v4028 = vld [vmem:[#allocation7 + $0x170] sm:$0xff]
    %v4029 = vld [vmem:[#allocation7 + $0x178] sm:$0xff]
    %v4030 = vld [vmem:[#allocation7 + $0x180] sm:$0xff]
    %v4031 = vld [vmem:[#allocation7 + $0x188] sm:$0xff]
    %v4032 = vld [vmem:[#allocation7 + $0x190] sm:$0xff]
    %v4033 = vld [vmem:[#allocation7 + $0x198] sm:$0xff]
    %v4034 = vld [vmem:[#allocation7 + $0x1a0] sm:$0xff]
    %v4035 = vld [vmem:[#allocation7 + $0x1a8] sm:$0xff]
    %v4036 = vld [vmem:[#allocation7 + $0x1b0] sm:$0xff]
    %v4037 = vld [vmem:[#allocation7 + $0x1b8] sm:$0xff]
    %v4038 = vld [vmem:[#allocation7 + $0x1c0] sm:$0xff]
    %v4039 = vld [vmem:[#allocation7 + $0x1c8] sm:$0xff]
    %v4040 = vld [vmem:[#allocation7 + $0x1d0] sm:$0xff]
    %v4041 = vld [vmem:[#allocation7 + $0x1d8] sm:$0xff]
    %v4042 = vld [vmem:[#allocation7 + $0x1e0] sm:$0xff]
    %v4043 = vld [vmem:[#allocation7 + $0x1e8] sm:$0xff]
    %v4044 = vld [vmem:[#allocation7 + $0x1f0] sm:$0xff]
    %v4045 = vld [vmem:[#allocation7 + $0x1f8] sm:$0xff]
    %v4046 = vld [vmem:[#allocation7 + $0x200] sm:$0xff]
    %v4047 = vld [vmem:[#allocation7 + $0x208] sm:$0xff]
    %v4048 = vld [vmem:[#allocation7 + $0x210] sm:$0xff]
    %v4049 = vld [vmem:[#allocation7 + $0x218] sm:$0xff]
    %v4050 = vld [vmem:[#allocation7 + $0x220] sm:$0xff]
    %v4051 = vld [vmem:[#allocation7 + $0x228] sm:$0xff]
    %v4052 = vld [vmem:[#allocation7 + $0x230] sm:$0xff]
    %v4053 = vld [vmem:[#allocation7 + $0x238] sm:$0xff]
    %v4054 = vld [vmem:[#allocation7 + $0x240] sm:$0xff]
    %v4055 = vld [vmem:[#allocation7 + $0x248] sm:$0xff]
    %v4056 = vld [vmem:[#allocation7 + $0x250] sm:$0xff]
    %v4057 = vld [vmem:[#allocation7 + $0x258] sm:$0xff]
    %v4058 = vld [vmem:[#allocation7 + $0x260] sm:$0xff]
    %v4059 = vld [vmem:[#allocation7 + $0x268] sm:$0xff]
    %v4060 = vld [vmem:[#allocation7 + $0x270] sm:$0xff]
    %v4061 = vld [vmem:[#allocation7 + $0x278] sm:$0xff]
    %v4062 = vld [vmem:[#allocation7 + $0x280] sm:$0xff]
    %v4063 = vld [vmem:[#allocation7 + $0x288] sm:$0xff]
    %v4064 = vld [vmem:[#allocation7 + $0x290] sm:$0xff]
    %v4065 = vld [vmem:[#allocation7 + $0x298] sm:$0xff]
    %v4066 = vld [vmem:[#allocation7 + $0x2a0] sm:$0xff]
    %v4067 = vld [vmem:[#allocation7 + $0x2a8] sm:$0xff]
    %v4068 = vld [vmem:[#allocation7 + $0x2b0] sm:$0xff]
    %v4069 = vld [vmem:[#allocation7 + $0x2b8] sm:$0xff]
    %v4070 = vld [vmem:[#allocation7 + $0x2c0] sm:$0xff]
    %v4071 = vld [vmem:[#allocation7 + $0x2c8] sm:$0xff]
    %v4072 = vld [vmem:[#allocation7 + $0x2d0] sm:$0xff]
    %v4073 = vld [vmem:[#allocation7 + $0x2d8] sm:$0xff]
    %v4074 = vld [vmem:[#allocation7 + $0x2e0] sm:$0xff]
    %v4075 = vld [vmem:[#allocation7 + $0x2e8] sm:$0xff]
    %v4076 = vld [vmem:[#allocation7 + $0x2f0] sm:$0xff]
    %v4077 = vld [vmem:[#allocation7 + $0x2f8] sm:$0xff]
    %v4078 = vld [vmem:[#allocation7 + $0x300] sm:$0xff]
    %v4079 = vld [vmem:[#allocation7 + $0x308] sm:$0xff]
    %v4080 = vld [vmem:[#allocation7 + $0x310] sm:$0xff]
    %v4081 = vld [vmem:[#allocation7 + $0x318] sm:$0xff]
    %v4082 = vld [vmem:[#allocation7 + $0x320] sm:$0xff]
    %v4083 = vld [vmem:[#allocation7 + $0x328] sm:$0xff]
    %v4084 = vld [vmem:[#allocation7 + $0x330] sm:$0xff]
    %v4085 = vld [vmem:[#allocation7 + $0x338] sm:$0xff]
    %v4086 = vld [vmem:[#allocation7 + $0x340] sm:$0xff]
    %v4087 = vld [vmem:[#allocation7 + $0x348] sm:$0xff]
    %v4088 = vld [vmem:[#allocation7 + $0x350] sm:$0xff]
    %v4089 = vld [vmem:[#allocation7 + $0x358] sm:$0xff]
    %v4090 = vld [vmem:[#allocation7 + $0x360] sm:$0xff]
    %v4091 = vld [vmem:[#allocation7 + $0x368] sm:$0xff]
    %v4092 = vld [vmem:[#allocation7 + $0x370] sm:$0xff]
    %v4093 = vld [vmem:[#allocation7 + $0x378] sm:$0xff]
    %v4094 = vld [vmem:[#allocation7 + $0x380] sm:$0xff]
    %v4095 = vld [vmem:[#allocation7 + $0x388] sm:$0xff]
    %v4096 = vld [vmem:[#allocation7 + $0x390] sm:$0xff]
    %v4097 = vld [vmem:[#allocation7 + $0x398] sm:$0xff]
    %v4098 = vld [vmem:[#allocation7 + $0x3a0] sm:$0xff]
    %v4099 = vld [vmem:[#allocation7 + $0x3a8] sm:$0xff]
    %v4100 = vld [vmem:[#allocation7 + $0x3b0] sm:$0xff]
    %v4101 = vld [vmem:[#allocation7 + $0x3b8] sm:$0xff]
    %v4102 = vld [vmem:[#allocation7 + $0x3c0] sm:$0xff]
    %v4103 = vld [vmem:[#allocation7 + $0x3c8] sm:$0xff]
    %v4104 = vld [vmem:[#allocation7 + $0x3d0] sm:$0xff]
    %v4105 = vld [vmem:[#allocation7 + $0x3d8] sm:$0xff]
    %v4106 = vld [vmem:[#allocation7 + $0x3e0] sm:$0xff]
    %v4107 = vld [vmem:[#allocation7 + $0x3e8] sm:$0xff]
    %v4108 = vld [vmem:[#allocation7 + $0x3f0] sm:$0xff]
    %v4109 = vld [vmem:[#allocation7 + $0x3f8] sm:$0xff]
    %v4110 = vld [vmem:[#allocation7 + $0x400] sm:$0xff]
    %v4111 = vld [vmem:[#allocation7 + $0x408] sm:$0xff]
    %v4112 = vld [vmem:[#allocation7 + $0x410] sm:$0xff]
    %v4113 = vld [vmem:[#allocation7 + $0x418] sm:$0xff]
    %v4114 = vld [vmem:[#allocation7 + $0x420] sm:$0xff]
    %v4115 = vld [vmem:[#allocation7 + $0x428] sm:$0xff]
    %v4116 = vld [vmem:[#allocation7 + $0x430] sm:$0xff]
    %v4117 = vld [vmem:[#allocation7 + $0x438] sm:$0xff]
    %v4118 = vld [vmem:[#allocation7 + $0x440] sm:$0xff]
    %v4119 = vld [vmem:[#allocation7 + $0x448] sm:$0xff]
    %v4120 = vld [vmem:[#allocation7 + $0x450] sm:$0xff]
    %v4121 = vld [vmem:[#allocation7 + $0x458] sm:$0xff]
    %v4122 = vld [vmem:[#allocation7 + $0x460] sm:$0xff]
    %v4123 = vld [vmem:[#allocation7 + $0x468] sm:$0xff]
    %v4124 = vld [vmem:[#allocation7 + $0x470] sm:$0xff]
    %v4125 = vld [vmem:[#allocation7 + $0x478] sm:$0xff]
    %v4126 = vld [vmem:[%s4] sm:$0x1]
    %v4128 = vlaneseq
    %v4129 = vshrl.u32 %v4128, 7
    %v4130 = vsub.s32 0, %v4129
    %v4131 = vrot.slane %v4126, %v4130
    %4133 = vmatprep.subr.mxu0 0.0
    %4134 = vmatpush1.msra.mxu0 %v3982
    %4135 = vmatprep.subr.mxu0 0.0
    %4136 = vmatpush1.msra.mxu0 %v3983
    %4137 = vmatprep.subr.mxu0 0.0
    %4138 = vmatpush1.msra.mxu0 %v3984
    %4139 = vmatprep.subr.mxu0 0.0
    %4140 = vmatpush1.msra.mxu0 %v3985
    %4141 = vmatprep.subr.mxu0 0.0
    %4142 = vmatpush1.msra.mxu0 %v3986
    %4143 = vmatprep.subr.mxu0 0.0
    %4144 = vmatpush1.msra.mxu0 %v3987
    %4145 = vmatprep.subr.mxu0 0.0
    %4146 = vmatpush1.msra.mxu0 %v3988
    %4147 = vmatprep.subr.mxu0 0.0
    %4148 = vmatpush1.msra.mxu0 %v3989
    %4149 = vmatprep.subr.mxu0 0.0
    %4150 = vmatpush1.msra.mxu0 %v3990
    %4151 = vmatprep.subr.mxu0 0.0
    %4152 = vmatpush1.msra.mxu0 %v3991
    %4153 = vmatprep.subr.mxu0 0.0
    %4154 = vmatpush1.msra.mxu0 %v3992
    %4155 = vmatprep.subr.mxu0 0.0
    %4156 = vmatpush1.msra.mxu0 %v3993
    %4157 = vmatprep.subr.mxu0 0.0
    %4158 = vmatpush1.msra.mxu0 %v3994
    %4159 = vmatprep.subr.mxu0 0.0
    %4160 = vmatpush1.msra.mxu0 %v3995
    %4161 = vmatprep.subr.mxu0 0.0
    %4162 = vmatpush1.msra.mxu0 %v3996
    %4163 = vmatprep.subr.mxu0 0.0
    %4164 = vmatpush1.msra.mxu0 %v3997
    %4165 = vmatprep.subr.mxu0 0.0
    %4166 = vmatpush1.msra.mxu0 %v3998
    %4167 = vmatprep.subr.mxu0 0.0
    %4168 = vmatpush1.msra.mxu0 %v3999
    %4169 = vmatprep.subr.mxu0 0.0
    %4170 = vmatpush1.msra.mxu0 %v4000
    %4171 = vmatprep.subr.mxu0 0.0
    %4172 = vmatpush1.msra.mxu0 %v4001
    %4173 = vmatprep.subr.mxu0 0.0
    %4174 = vmatpush1.msra.mxu0 %v4002
    %4175 = vmatprep.subr.mxu0 0.0
    %4176 = vmatpush1.msra.mxu0 %v4003
    %4177 = vmatprep.subr.mxu0 0.0
    %4178 = vmatpush1.msra.mxu0 %v4004
    %4179 = vmatprep.subr.mxu0 0.0
    %4180 = vmatpush1.msra.mxu0 %v4005
    %4181 = vmatprep.subr.mxu0 0.0
    %4182 = vmatpush1.msra.mxu0 %v4006
    %4183 = vmatprep.subr.mxu0 0.0
    %4184 = vmatpush1.msra.mxu0 %v4007
    %4185 = vmatprep.subr.mxu0 0.0
    %4186 = vmatpush1.msra.mxu0 %v4008
    %4187 = vmatprep.subr.mxu0 0.0
    %4188 = vmatpush1.msra.mxu0 %v4009
    %4189 = vmatprep.subr.mxu0 0.0
    %4190 = vmatpush1.msra.mxu0 %v4010
    %4191 = vmatprep.subr.mxu0 0.0
    %4192 = vmatpush1.msra.mxu0 %v4011
    %4193 = vmatprep.subr.mxu0 0.0
    %4194 = vmatpush1.msra.mxu0 %v4012
    %4195 = vmatprep.subr.mxu0 0.0
    %4196 = vmatpush1.msra.mxu0 %v4013
    %4197 = vmatprep.mubr.f32.mxu0 %v545
    %4198 = vmatmul.mubr.f32.gmra.mrb[0].mxu0 %v414
    %v4199 = vpop.f32.mrb[0].mxu0
    %v4200 = vadd.f32 %v4131, %v4199
    %v4201 = vpop.f32.mrb[0].mxu0
    %4202 = vmatprep.mubr.f32.mxu0 %v547
    %4203 = vmatmul.mubr.f32.gmra.mrb[0].mxu0 %v219
    %v4204 = vpop.f32.mrb[0].mxu0
    %v4205 = vadd.f32 %v4131, %v4204
    %v4206 = vpop.f32.mrb[0].mxu0
    %4207 = vmatprep.mubr.f32.mxu0 %v3532
    %4208 = vmatmul.mubr.f32.gmra.mrb[0].mxu0 %v3406
    %v4209 = vpop.f32.mrb[0].mxu0
    %v4210 = vadd.f32 %v4131, %v4209
    %v4211 = vpop.f32.mrb[0].mxu0
    %4212 = vmatprep.mubr.f32.mxu0 %v3534
    %4213 = vmatmul.mubr.f32.gmra.mrb[0].mxu0 %v3216
    %v4214 = vpop.f32.mrb[0].mxu0
    %v4215 = vadd.f32 %v4131, %v4214
    %v4216 = vpop.f32.mrb[0].mxu0
    %4217 = vmatprep.mubr.f32.mxu0 %v3537
    %4218 = vmatmul.mubr.f32.gmra.mrb[0].mxu0 %v3407
    %v4219 = vpop.f32.mrb[0].mxu0
    %v4220 = vadd.f32 %v4131, %v4219
    %v4221 = vpop.f32.mrb[0].mxu0
    %4222 = vmatprep.mubr.f32.mxu0 %v3539
    %4223 = vmatmul.mubr.f32.gmra.mrb[0].mxu0 %v3219
    %v4224 = vpop.f32.mrb[0].mxu0
    %v4225 = vadd.f32 %v4131, %v4224
    %v4226 = vpop.f32.mrb[0].mxu0
    %4227 = vmatprep.mubr.f32.mxu0 %v3542
    %4228 = vmatmul.mubr.f32.gmra.mrb[0].mxu0 %v3408
    %v4229 = vpop.f32.mrb[0].mxu0
    %v4230 = vadd.f32 %v4131, %v4229
    %v4231 = vpop.f32.mrb[0].mxu0
    %4232 = vmatprep.mubr.f32.mxu0 %v3544
    %4233 = vmatmul.mubr.f32.gmra.mrb[0].mxu0 %v3222
    %v4234 = vpop.f32.mrb[0].mxu0
    %v4235 = vadd.f32 %v4131, %v4234
    %v4236 = vpop.f32.mrb[0].mxu0
    %4237 = vmatprep.mubr.f32.mxu0 %v3547
    %4238 = vmatmul.mubr.f32.gmra.mrb[0].mxu0 %v3409
    %v4239 = vpop.f32.mrb[0].mxu0
    %v4240 = vadd.f32 %v4131, %v4239
    %v4241 = vpop.f32.mrb[0].mxu0
    %4242 = vmatprep.mubr.f32.mxu0 %v3549
    %4243 = vmatmul.mubr.f32.gmra.mrb[0].mxu0 %v3225
    %v4244 = vpop.f32.mrb[0].mxu0
    %v4245 = vadd.f32 %v4131, %v4244
    %v4246 = vpop.f32.mrb[0].mxu0
    %4247 = vmatprep.mubr.f32.mxu0 %v3552
    %4248 = vmatmul.mubr.f32.gmra.mrb[0].mxu0 %v3410
    %v4249 = vpop.f32.mrb[0].mxu0
    %v4250 = vadd.f32 %v4131, %v4249
    %v4251 = vpop.f32.mrb[0].mxu0
    %4252 = vmatprep.mubr.f32.mxu0 %v3554
    %4253 = vmatmul.mubr.f32.gmra.mrb[0].mxu0 %v3228
    %v4254 = vpop.f32.mrb[0].mxu0
    %v4255 = vadd.f32 %v4131, %v4254
    %v4256 = vpop.f32.mrb[0].mxu0
    %4257 = vmatprep.mubr.f32.mxu0 %v3557
    %4258 = vmatmul.mubr.f32.gmra.mrb[0].mxu0 %v3411
    %v4259 = vpop.f32.mrb[0].mxu0
    %v4260 = vadd.f32 %v4131, %v4259
    %v4261 = vpop.f32.mrb[0].mxu0
    %4262 = vmatprep.mubr.f32.mxu0 %v3559
    %4263 = vmatmul.mubr.f32.gmra.mrb[0].mxu0 %v3231
    %v4264 = vpop.f32.mrb[0].mxu0
    %v4265 = vadd.f32 %v4131, %v4264
    %v4266 = vpop.f32.mrb[0].mxu0
    %4267 = vmatprep.mubr.f32.mxu0 %v3562
    %4268 = vmatmul.mubr.f32.gmra.mrb[0].mxu0 %v3412
    %v4269 = vpop.f32.mrb[0].mxu0
    %v4270 = vadd.f32 %v4131, %v4269
    %v4271 = vpop.f32.mrb[0].mxu0
    %4272 = vmatprep.mubr.f32.mxu0 %v3564
    %4273 = vmatmul.mubr.f32.gmra.mrb[0].mxu0 %v3234
    %v4274 = vpop.f32.mrb[0].mxu0
    %v4275 = vadd.f32 %v4131, %v4274
    %v4276 = vpop.f32.mrb[0].mxu0
    %4277 = vmatprep.mubr.f32.mxu0 %v3567
    %4278 = vmatmul.mubr.f32.gmra.mrb[0].mxu0 %v3413
    %v4279 = vpop.f32.mrb[0].mxu0
    %v4280 = vadd.f32 %v4131, %v4279
    %v4281 = vpop.f32.mrb[0].mxu0
    %4282 = vmatprep.mubr.f32.mxu0 %v3569
    %4283 = vmatmul.mubr.f32.gmra.mrb[0].mxu0 %v3237
    %v4284 = vpop.f32.mrb[0].mxu0
    %v4285 = vadd.f32 %v4131, %v4284
    %v4286 = vpop.f32.mrb[0].mxu0
    %4287 = vmatprep.mubr.f32.mxu0 %v3572
    %4288 = vmatmul.mubr.f32.gmra.mrb[0].mxu0 %v3414
    %v4289 = vpop.f32.mrb[0].mxu0
    %v4290 = vadd.f32 %v4131, %v4289
    %v4291 = vpop.f32.mrb[0].mxu0
    %4292 = vmatprep.mubr.f32.mxu0 %v3574
    %4293 = vmatmul.mubr.f32.gmra.mrb[0].mxu0 %v3240
    %v4294 = vpop.f32.mrb[0].mxu0
    %v4295 = vadd.f32 %v4131, %v4294
    %v4296 = vpop.f32.mrb[0].mxu0
    %4297 = vmatprep.mubr.f32.mxu0 %v3577
    %4298 = vmatmul.mubr.f32.gmra.mrb[0].mxu0 %v3415
    %v4299 = vpop.f32.mrb[0].mxu0
    %v4300 = vadd.f32 %v4131, %v4299
    %v4301 = vpop.f32.mrb[0].mxu0
    %4302 = vmatprep.mubr.f32.mxu0 %v3579
    %4303 = vmatmul.mubr.f32.gmra.mrb[0].mxu0 %v3243
    %v4304 = vpop.f32.mrb[0].mxu0
    %v4305 = vadd.f32 %v4131, %v4304
    %v4306 = vpop.f32.mrb[0].mxu0
    %4307 = vmatprep.mubr.f32.mxu0 %v3582
    %4308 = vmatmul.mubr.f32.gmra.mrb[0].mxu0 %v3416
    %v4309 = vpop.f32.mrb[0].mxu0
    %v4310 = vadd.f32 %v4131, %v4309
    %v4311 = vpop.f32.mrb[0].mxu0
    %4312 = vmatprep.mubr.f32.mxu0 %v3584
    %4313 = vmatmul.mubr.f32.gmra.mrb[0].mxu0 %v3246
    %v4314 = vpop.f32.mrb[0].mxu0
    %v4315 = vadd.f32 %v4131, %v4314
    %v4316 = vpop.f32.mrb[0].mxu0
    %4317 = vmatprep.mubr.f32.mxu0 %v3587
    %4318 = vmatmul.mubr.f32.gmra.mrb[0].mxu0 %v3417
    %v4319 = vpop.f32.mrb[0].mxu0
    %v4320 = vadd.f32 %v4131, %v4319
    %v4321 = vpop.f32.mrb[0].mxu0
    %4322 = vmatprep.mubr.f32.mxu0 %v3589
    %4323 = vmatmul.mubr.f32.gmra.mrb[0].mxu0 %v3249
    %v4324 = vpop.f32.mrb[0].mxu0
    %v4325 = vadd.f32 %v4131, %v4324
    %v4326 = vpop.f32.mrb[0].mxu0
    %4327 = vmatprep.mubr.f32.mxu0 %v3592
    %4328 = vmatmul.mubr.f32.gmra.mrb[0].mxu0 %v3418
    %v4329 = vpop.f32.mrb[0].mxu0
    %v4330 = vadd.f32 %v4131, %v4329
    %v4331 = vpop.f32.mrb[0].mxu0
    %4332 = vmatprep.mubr.f32.mxu0 %v3594
    %4333 = vmatmul.mubr.f32.gmra.mrb[0].mxu0 %v3252
    %v4334 = vpop.f32.mrb[0].mxu0
    %v4335 = vadd.f32 %v4131, %v4334
    %v4336 = vpop.f32.mrb[0].mxu0
    %4337 = vmatprep.mubr.f32.mxu0 %v3597
    %4338 = vmatmul.mubr.f32.gmra.mrb[0].mxu0 %v3419
    %v4339 = vpop.f32.mrb[0].mxu0
    %v4340 = vadd.f32 %v4131, %v4339
    %v4341 = vpop.f32.mrb[0].mxu0
    %4342 = vmatprep.mubr.f32.mxu0 %v3599
    %4343 = vmatmul.mubr.f32.gmra.mrb[0].mxu0 %v3255
    %v4344 = vpop.f32.mrb[0].mxu0
    %v4345 = vadd.f32 %v4131, %v4344
    %v4346 = vpop.f32.mrb[0].mxu0
    %4347 = vmatprep.mubr.f32.mxu0 %v3602
    %4348 = vmatmul.mubr.f32.gmra.mrb[0].mxu0 %v3420
    %v4349 = vpop.f32.mrb[0].mxu0
    %v4350 = vadd.f32 %v4131, %v4349
    %v4351 = vpop.f32.mrb[0].mxu0
    %4352 = vmatprep.mubr.f32.mxu0 %v3604
    %4353 = vmatmul.mubr.f32.gmra.mrb[0].mxu0 %v3258
    %v4354 = vpop.f32.mrb[0].mxu0
    %v4355 = vadd.f32 %v4131, %v4354
    %v4356 = vpop.f32.mrb[0].mxu0
    %4357 = vmatprep.mubr.f32.mxu0 %v545
    %4358 = vmatmul.mubr.f32.gmra.mrb[0].mxu0 %v414
    %v4359 = vpop.f32.mrb[0].mxu0
    %v4360 = vadd.f32 %v4131, %v4359
    %v4361 = vpop.f32.mrb[0].mxu0
    %4362 = vmatprep.mubr.f32.mxu0 %v547
    %4363 = vmatmul.mubr.f32.gmra.mrb[0].mxu0 %v219
    %v4364 = vpop.f32.mrb[0].mxu0
    %v4365 = vadd.f32 %v4131, %v4364
    %v4366 = vpop.f32.mrb[0].mxu0
    %4367 = vmatprep.mubr.f32.mxu0 %v3607
    %4368 = vmatmul.mubr.f32.gmra.mrb[0].mxu0 %v3422
    %v4369 = vpop.f32.mrb[0].mxu0
    %v4370 = vadd.f32 %v4131, %v4369
    %v4371 = vpop.f32.mrb[0].mxu0
    %4372 = vmatprep.mubr.f32.mxu0 %v3609
    %4373 = vmatmul.mubr.f32.gmra.mrb[0].mxu0 %v3264
    %v4374 = vpop.f32.mrb[0].mxu0
    %v4375 = vadd.f32 %v4131, %v4374
    %v4376 = vpop.f32.mrb[0].mxu0
    %4377 = vmatprep.mubr.f32.mxu0 %v3612
    %4378 = vmatmul.mubr.f32.gmra.mrb[0].mxu0 %v3423
    %v4379 = vpop.f32.mrb[0].mxu0
    %v4380 = vadd.f32 %v4131, %v4379
    %v4381 = vpop.f32.mrb[0].mxu0
    %4382 = vmatprep.mubr.f32.mxu0 %v3614
    %4383 = vmatmul.mubr.f32.gmra.mrb[0].mxu0 %v3267
    %v4384 = vpop.f32.mrb[0].mxu0
    %v4385 = vadd.f32 %v4131, %v4384
    %v4386 = vpop.f32.mrb[0].mxu0
    %4387 = vmatprep.mubr.f32.mxu0 %v3617
    %4388 = vmatmul.mubr.f32.gmra.mrb[0].mxu0 %v3424
    %v4389 = vpop.f32.mrb[0].mxu0
    %v4390 = vadd.f32 %v4131, %v4389
    %v4391 = vpop.f32.mrb[0].mxu0
    %4392 = vmatprep.mubr.f32.mxu0 %v3619
    %4393 = vmatmul.mubr.f32.gmra.mrb[0].mxu0 %v3270
    %v4394 = vpop.f32.mrb[0].mxu0
    %v4395 = vadd.f32 %v4131, %v4394
    %v4396 = vpop.f32.mrb[0].mxu0
    %4397 = vmatprep.mubr.f32.mxu0 %v3622
    %4398 = vmatmul.mubr.f32.gmra.mrb[0].mxu0 %v3425
    %v4399 = vpop.f32.mrb[0].mxu0
    %v4400 = vadd.f32 %v4131, %v4399
    %v4401 = vpop.f32.mrb[0].mxu0
    %4402 = vmatprep.mubr.f32.mxu0 %v3624
    %4403 = vmatmul.mubr.f32.gmra.mrb[0].mxu0 %v3273
    %v4404 = vpop.f32.mrb[0].mxu0
    %v4405 = vadd.f32 %v4131, %v4404
    %v4406 = vpop.f32.mrb[0].mxu0
    %4407 = vmatprep.mubr.f32.mxu0 %v3627
    %4408 = vmatmul.mubr.f32.gmra.mrb[0].mxu0 %v3426
    %v4409 = vpop.f32.mrb[0].mxu0
    %v4410 = vadd.f32 %v4131, %v4409
    %v4411 = vpop.f32.mrb[0].mxu0
    %4412 = vmatprep.mubr.f32.mxu0 %v3629
    %4413 = vmatmul.mubr.f32.gmra.mrb[0].mxu0 %v3276
    %v4414 = vpop.f32.mrb[0].mxu0
    %v4415 = vadd.f32 %v4131, %v4414
    %v4416 = vpop.f32.mrb[0].mxu0
    %4417 = vmatprep.mubr.f32.mxu0 %v3632
    %4418 = vmatmul.mubr.f32.gmra.mrb[0].mxu0 %v3427
    %v4419 = vpop.f32.mrb[0].mxu0
    %v4420 = vadd.f32 %v4131, %v4419
    %v4421 = vpop.f32.mrb[0].mxu0
    %4422 = vmatprep.mubr.f32.mxu0 %v3634
    %4423 = vmatmul.mubr.f32.gmra.mrb[0].mxu0 %v3279
    %v4424 = vpop.f32.mrb[0].mxu0
    %v4425 = vadd.f32 %v4131, %v4424
    %v4426 = vpop.f32.mrb[0].mxu0
    %4427 = vmatprep.mubr.f32.mxu0 %v3637
    %4428 = vmatmul.mubr.f32.gmra.mrb[0].mxu0 %v3428
    %v4429 = vpop.f32.mrb[0].mxu0
    %v4430 = vadd.f32 %v4131, %v4429
    %v4431 = vpop.f32.mrb[0].mxu0
    %4432 = vmatprep.mubr.f32.mxu0 %v3639
    %4433 = vmatmul.mubr.f32.gmra.mrb[0].mxu0 %v3282
    %v4434 = vpop.f32.mrb[0].mxu0
    %v4435 = vadd.f32 %v4131, %v4434
    %v4436 = vpop.f32.mrb[0].mxu0
    %4437 = vmatprep.mubr.f32.mxu0 %v3642
    %4438 = vmatmul.mubr.f32.gmra.mrb[0].mxu0 %v3429
    %v4439 = vpop.f32.mrb[0].mxu0
    %v4440 = vadd.f32 %v4131, %v4439
    %v4441 = vpop.f32.mrb[0].mxu0
    %4442 = vmatprep.mubr.f32.mxu0 %v3644
    %4443 = vmatmul.mubr.f32.gmra.mrb[0].mxu0 %v3285
    %v4444 = vpop.f32.mrb[0].mxu0
    %v4445 = vadd.f32 %v4131, %v4444
    %v4446 = vpop.f32.mrb[0].mxu0
    %4447 = vmatprep.mubr.f32.mxu0 %v3647
    %4448 = vmatmul.mubr.f32.gmra.mrb[0].mxu0 %v3430
    %v4449 = vpop.f32.mrb[0].mxu0
    %v4450 = vadd.f32 %v4131, %v4449
    %v4451 = vpop.f32.mrb[0].mxu0
    %4452 = vmatprep.mubr.f32.mxu0 %v3649
    %4453 = vmatmul.mubr.f32.gmra.mrb[0].mxu0 %v3288
    %v4454 = vpop.f32.mrb[0].mxu0
    %v4455 = vadd.f32 %v4131, %v4454
    %v4456 = vpop.f32.mrb[0].mxu0
    %4457 = vmatprep.mubr.f32.mxu0 %v3652
    %4458 = vmatmul.mubr.f32.gmra.mrb[0].mxu0 %v3431
    %v4459 = vpop.f32.mrb[0].mxu0
    %v4460 = vadd.f32 %v4131, %v4459
    %v4461 = vpop.f32.mrb[0].mxu0
    %4462 = vmatprep.mubr.f32.mxu0 %v3654
    %4463 = vmatmul.mubr.f32.gmra.mrb[0].mxu0 %v3291
    %v4464 = vpop.f32.mrb[0].mxu0
    %v4465 = vadd.f32 %v4131, %v4464
    %v4466 = vpop.f32.mrb[0].mxu0
    %4467 = vmatprep.mubr.f32.mxu0 %v3657
    %4468 = vmatmul.mubr.f32.gmra.mrb[0].mxu0 %v3432
    %v4469 = vpop.f32.mrb[0].mxu0
    %v4470 = vadd.f32 %v4131, %v4469
    %v4471 = vpop.f32.mrb[0].mxu0
    %4472 = vmatprep.mubr.f32.mxu0 %v3659
    %4473 = vmatmul.mubr.f32.gmra.mrb[0].mxu0 %v3294
    %v4474 = vpop.f32.mrb[0].mxu0
    %v4475 = vadd.f32 %v4131, %v4474
    %v4476 = vpop.f32.mrb[0].mxu0
    %4477 = vmatprep.mubr.f32.mxu0 %v3662
    %4478 = vmatmul.mubr.f32.gmra.mrb[0].mxu0 %v3433
    %v4479 = vpop.f32.mrb[0].mxu0
    %v4480 = vadd.f32 %v4131, %v4479
    %v4481 = vpop.f32.mrb[0].mxu0
    %4482 = vmatprep.mubr.f32.mxu0 %v3664
    %4483 = vmatmul.mubr.f32.gmra.mrb[0].mxu0 %v3297
    %v4484 = vpop.f32.mrb[0].mxu0
    %v4485 = vadd.f32 %v4131, %v4484
    %v4486 = vpop.f32.mrb[0].mxu0
    %4487 = vmatprep.mubr.f32.mxu0 %v3667
    %4488 = vmatmul.mubr.f32.gmra.mrb[0].mxu0 %v3434
    %v4489 = vpop.f32.mrb[0].mxu0
    %v4490 = vadd.f32 %v4131, %v4489
    %v4491 = vpop.f32.mrb[0].mxu0
    %4492 = vmatprep.mubr.f32.mxu0 %v3669
    %4493 = vmatmul.mubr.f32.gmra.mrb[0].mxu0 %v3300
    %v4494 = vpop.f32.mrb[0].mxu0
    %v4495 = vadd.f32 %v4131, %v4494
    %v4496 = vpop.f32.mrb[0].mxu0
    %4497 = vmatprep.mubr.f32.mxu0 %v3672
    %4498 = vmatmul.mubr.f32.gmra.mrb[0].mxu0 %v3435
    %v4499 = vpop.f32.mrb[0].mxu0
    %v4500 = vadd.f32 %v4131, %v4499
    %v4501 = vpop.f32.mrb[0].mxu0
    %4502 = vmatprep.mubr.f32.mxu0 %v3674
    %4503 = vmatmul.mubr.f32.gmra.mrb[0].mxu0 %v3303
    %v4504 = vpop.f32.mrb[0].mxu0
    %v4505 = vadd.f32 %v4131, %v4504
    %v4506 = vpop.f32.mrb[0].mxu0
    %4507 = vmatprep.mubr.f32.mxu0 %v3677
    %4508 = vmatmul.mubr.f32.gmra.mrb[0].mxu0 %v3436
    %v4509 = vpop.f32.mrb[0].mxu0
    %v4510 = vadd.f32 %v4131, %v4509
    %v4511 = vpop.f32.mrb[0].mxu0
    %4512 = vmatprep.mubr.f32.mxu0 %v3679
    %4513 = vmatmul.mubr.f32.gmra.mrb[0].mxu0 %v3306
    %v4514 = vpop.f32.mrb[0].mxu0
    %v4515 = vadd.f32 %v4131, %v4514
    %v4516 = vpop.f32.mrb[0].mxu0
    %4517 = vdwg.mxu0
    %4518 = vmatprep.subr.mxu0 0.0
    %4519 = vmatpush1.msra.mxu0 %v4014
    %4520 = vmatprep.subr.mxu0 0.0
    %4521 = vmatpush1.msra.mxu0 %v4015
    %4522 = vmatprep.subr.mxu0 0.0
    %4523 = vmatpush1.msra.mxu0 %v4016
    %4524 = vmatprep.subr.mxu0 0.0
    %4525 = vmatpush1.msra.mxu0 %v4017
    %4526 = vmatprep.subr.mxu0 0.0
    %4527 = vmatpush1.msra.mxu0 %v4018
    %4528 = vmatprep.subr.mxu0 0.0
    %4529 = vmatpush1.msra.mxu0 %v4019
    %4530 = vmatprep.subr.mxu0 0.0
    %4531 = vmatpush1.msra.mxu0 %v4020
    %4532 = vmatprep.subr.mxu0 0.0
    %4533 = vmatpush1.msra.mxu0 %v4021
    %4534 = vmatprep.subr.mxu0 0.0
    %4535 = vmatpush1.msra.mxu0 %v4022
    %4536 = vmatprep.subr.mxu0 0.0
    %4537 = vmatpush1.msra.mxu0 %v4023
    %4538 = vmatprep.subr.mxu0 0.0
    %4539 = vmatpush1.msra.mxu0 %v4024
    %4540 = vmatprep.subr.mxu0 0.0
    %4541 = vmatpush1.msra.mxu0 %v4025
    %4542 = vmatprep.subr.mxu0 0.0
    %4543 = vmatpush1.msra.mxu0 %v4026
    %4544 = vmatprep.subr.mxu0 0.0
    %4545 = vmatpush1.msra.mxu0 %v4027
    %4546 = vmatprep.subr.mxu0 0.0
    %4547 = vmatpush1.msra.mxu0 %v4028
    %4548 = vmatprep.subr.mxu0 0.0
    %4549 = vmatpush1.msra.mxu0 %v4029
    %4550 = vmatprep.subr.mxu0 0.0
    %4551 = vmatpush1.msra.mxu0 %v4030
    %4552 = vmatprep.subr.mxu0 0.0
    %4553 = vmatpush1.msra.mxu0 %v4031
    %4554 = vmatprep.subr.mxu0 0.0
    %4555 = vmatpush1.msra.mxu0 %v4032
    %4556 = vmatprep.subr.mxu0 0.0
    %4557 = vmatpush1.msra.mxu0 %v4033
    %4558 = vmatprep.subr.mxu0 0.0
    %4559 = vmatpush1.msra.mxu0 %v4034
    %4560 = vmatprep.subr.mxu0 0.0
    %4561 = vmatpush1.msra.mxu0 %v4035
    %4562 = vmatprep.subr.mxu0 0.0
    %4563 = vmatpush1.msra.mxu0 %v4036
    %4564 = vmatprep.subr.mxu0 0.0
    %4565 = vmatpush1.msra.mxu0 %v4037
    %4566 = vmatprep.subr.mxu0 0.0
    %4567 = vmatpush1.msra.mxu0 %v4038
    %4568 = vmatprep.subr.mxu0 0.0
    %4569 = vmatpush1.msra.mxu0 %v4039
    %4570 = vmatprep.subr.mxu0 0.0
    %4571 = vmatpush1.msra.mxu0 %v4040
    %4572 = vmatprep.subr.mxu0 0.0
    %4573 = vmatpush1.msra.mxu0 %v4041
    %4574 = vmatprep.subr.mxu0 0.0
    %4575 = vmatpush1.msra.mxu0 %v4042
    %4576 = vmatprep.subr.mxu0 0.0
    %4577 = vmatpush1.msra.mxu0 %v4043
    %4578 = vmatprep.subr.mxu0 0.0
    %4579 = vmatpush1.msra.mxu0 %v4044
    %4580 = vmatprep.subr.mxu0 0.0
    %4581 = vmatpush1.msra.mxu0 %v4045
    %4582 = vmatprep.mubr.f32.mxu0 %v3406
    %4583 = vmatmul.mubr.f32.gmra.mrb[0].mxu0 %v763
    %v4584 = vpop.f32.mrb[0].mxu0
    %v4585 = vadd.f32 %v4200, %v4584
    %v4586 = vpop.f32.mrb[0].mxu0
    %4587 = vmatprep.mubr.f32.mxu0 %v3216
    %4588 = vmatmul.mubr.f32.gmra.mrb[0].mxu0 %v765
    %v4589 = vpop.f32.mrb[0].mxu0
    %v4590 = vadd.f32 %v4205, %v4589
    %v4591 = vpop.f32.mrb[0].mxu0
    %4592 = vmatprep.mubr.f32.mxu0 %v3407
    %4593 = vmatmul.mubr.f32.gmra.mrb[0].mxu0 %v3742
    %v4594 = vpop.f32.mrb[0].mxu0
    %v4595 = vadd.f32 %v4210, %v4594
    %v4596 = vpop.f32.mrb[0].mxu0
    %4597 = vmatprep.mubr.f32.mxu0 %v3219
    %4598 = vmatmul.mubr.f32.gmra.mrb[0].mxu0 %v3744
    %v4599 = vpop.f32.mrb[0].mxu0
    %v4600 = vadd.f32 %v4215, %v4599
    %v4601 = vpop.f32.mrb[0].mxu0
    %4602 = vmatprep.mubr.f32.mxu0 %v3408
    %4603 = vmatmul.mubr.f32.gmra.mrb[0].mxu0 %v3747
    %v4604 = vpop.f32.mrb[0].mxu0
    %v4605 = vadd.f32 %v4220, %v4604
    %v4606 = vpop.f32.mrb[0].mxu0
    %4607 = vmatprep.mubr.f32.mxu0 %v3222
    %4608 = vmatmul.mubr.f32.gmra.mrb[0].mxu0 %v3749
    %v4609 = vpop.f32.mrb[0].mxu0
    %v4610 = vadd.f32 %v4225, %v4609
    %v4611 = vpop.f32.mrb[0].mxu0
    %4612 = vmatprep.mubr.f32.mxu0 %v3409
    %4613 = vmatmul.mubr.f32.gmra.mrb[0].mxu0 %v3752
    %v4614 = vpop.f32.mrb[0].mxu0
    %v4615 = vadd.f32 %v4230, %v4614
    %v4616 = vpop.f32.mrb[0].mxu0
    %4617 = vmatprep.mubr.f32.mxu0 %v3225
    %4618 = vmatmul.mubr.f32.gmra.mrb[0].mxu0 %v3754
    %v4619 = vpop.f32.mrb[0].mxu0
    %v4620 = vadd.f32 %v4235, %v4619
    %v4621 = vpop.f32.mrb[0].mxu0
    %4622 = vmatprep.mubr.f32.mxu0 %v3410
    %4623 = vmatmul.mubr.f32.gmra.mrb[0].mxu0 %v3757
    %v4624 = vpop.f32.mrb[0].mxu0
    %v4625 = vadd.f32 %v4240, %v4624
    %v4626 = vpop.f32.mrb[0].mxu0
    %4627 = vmatprep.mubr.f32.mxu0 %v3228
    %4628 = vmatmul.mubr.f32.gmra.mrb[0].mxu0 %v3759
    %v4629 = vpop.f32.mrb[0].mxu0
    %v4630 = vadd.f32 %v4245, %v4629
    %v4631 = vpop.f32.mrb[0].mxu0
    %4632 = vmatprep.mubr.f32.mxu0 %v3411
    %4633 = vmatmul.mubr.f32.gmra.mrb[0].mxu0 %v3762
    %v4634 = vpop.f32.mrb[0].mxu0
    %v4635 = vadd.f32 %v4250, %v4634
    %v4636 = vpop.f32.mrb[0].mxu0
    %4637 = vmatprep.mubr.f32.mxu0 %v3231
    %4638 = vmatmul.mubr.f32.gmra.mrb[0].mxu0 %v3764
    %v4639 = vpop.f32.mrb[0].mxu0
    %v4640 = vadd.f32 %v4255, %v4639
    %v4641 = vpop.f32.mrb[0].mxu0
    %4642 = vmatprep.mubr.f32.mxu0 %v3412
    %4643 = vmatmul.mubr.f32.gmra.mrb[0].mxu0 %v3767
    %v4644 = vpop.f32.mrb[0].mxu0
    %v4645 = vadd.f32 %v4260, %v4644
    %v4646 = vpop.f32.mrb[0].mxu0
    %4647 = vmatprep.mubr.f32.mxu0 %v3234
    %4648 = vmatmul.mubr.f32.gmra.mrb[0].mxu0 %v3769
    %v4649 = vpop.f32.mrb[0].mxu0
    %v4650 = vadd.f32 %v4265, %v4649
    %v4651 = vpop.f32.mrb[0].mxu0
    %4652 = vmatprep.mubr.f32.mxu0 %v3413
    %4653 = vmatmul.mubr.f32.gmra.mrb[0].mxu0 %v3772
    %v4654 = vpop.f32.mrb[0].mxu0
    %v4655 = vadd.f32 %v4270, %v4654
    %v4656 = vpop.f32.mrb[0].mxu0
    %4657 = vmatprep.mubr.f32.mxu0 %v3237
    %4658 = vmatmul.mubr.f32.gmra.mrb[0].mxu0 %v3774
    %v4659 = vpop.f32.mrb[0].mxu0
    %v4660 = vadd.f32 %v4275, %v4659
    %v4661 = vpop.f32.mrb[0].mxu0
    %4662 = vmatprep.mubr.f32.mxu0 %v3414
    %4663 = vmatmul.mubr.f32.gmra.mrb[0].mxu0 %v3777
    %v4664 = vpop.f32.mrb[0].mxu0
    %v4665 = vadd.f32 %v4280, %v4664
    %v4666 = vpop.f32.mrb[0].mxu0
    %4667 = vmatprep.mubr.f32.mxu0 %v3240
    %4668 = vmatmul.mubr.f32.gmra.mrb[0].mxu0 %v3779
    %v4669 = vpop.f32.mrb[0].mxu0
    %v4670 = vadd.f32 %v4285, %v4669
    %v4671 = vpop.f32.mrb[0].mxu0
    %4672 = vmatprep.mubr.f32.mxu0 %v3415
    %4673 = vmatmul.mubr.f32.gmra.mrb[0].mxu0 %v3782
    %v4674 = vpop.f32.mrb[0].mxu0
    %v4675 = vadd.f32 %v4290, %v4674
    %v4676 = vpop.f32.mrb[0].mxu0
    %4677 = vmatprep.mubr.f32.mxu0 %v3243
    %4678 = vmatmul.mubr.f32.gmra.mrb[0].mxu0 %v3784
    %v4679 = vpop.f32.mrb[0].mxu0
    %v4680 = vadd.f32 %v4295, %v4679
    %v4681 = vpop.f32.mrb[0].mxu0
    %4682 = vmatprep.mubr.f32.mxu0 %v3416
    %4683 = vmatmul.mubr.f32.gmra.mrb[0].mxu0 %v3787
    %v4684 = vpop.f32.mrb[0].mxu0
    %v4685 = vadd.f32 %v4300, %v4684
    %v4686 = vpop.f32.mrb[0].mxu0
    %4687 = vmatprep.mubr.f32.mxu0 %v3246
    %4688 = vmatmul.mubr.f32.gmra.mrb[0].mxu0 %v3789
    %v4689 = vpop.f32.mrb[0].mxu0
    %v4690 = vadd.f32 %v4305, %v4689
    %v4691 = vpop.f32.mrb[0].mxu0
    %4692 = vmatprep.mubr.f32.mxu0 %v3417
    %4693 = vmatmul.mubr.f32.gmra.mrb[0].mxu0 %v3792
    %v4694 = vpop.f32.mrb[0].mxu0
    %v4695 = vadd.f32 %v4310, %v4694
    %v4696 = vpop.f32.mrb[0].mxu0
    %4697 = vmatprep.mubr.f32.mxu0 %v3249
    %4698 = vmatmul.mubr.f32.gmra.mrb[0].mxu0 %v3794
    %v4699 = vpop.f32.mrb[0].mxu0
    %v4700 = vadd.f32 %v4315, %v4699
    %v4701 = vpop.f32.mrb[0].mxu0
    %4702 = vmatprep.mubr.f32.mxu0 %v3418
    %4703 = vmatmul.mubr.f32.gmra.mrb[0].mxu0 %v3797
    %v4704 = vpop.f32.mrb[0].mxu0
    %v4705 = vadd.f32 %v4320, %v4704
    %v4706 = vpop.f32.mrb[0].mxu0
    %4707 = vmatprep.mubr.f32.mxu0 %v3252
    %4708 = vmatmul.mubr.f32.gmra.mrb[0].mxu0 %v3799
    %v4709 = vpop.f32.mrb[0].mxu0
    %v4710 = vadd.f32 %v4325, %v4709
    %v4711 = vpop.f32.mrb[0].mxu0
    %4712 = vmatprep.mubr.f32.mxu0 %v3419
    %4713 = vmatmul.mubr.f32.gmra.mrb[0].mxu0 %v3802
    %v4714 = vpop.f32.mrb[0].mxu0
    %v4715 = vadd.f32 %v4330, %v4714
    %v4716 = vpop.f32.mrb[0].mxu0
    %4717 = vmatprep.mubr.f32.mxu0 %v3255
    %4718 = vmatmul.mubr.f32.gmra.mrb[0].mxu0 %v3804
    %v4719 = vpop.f32.mrb[0].mxu0
    %v4720 = vadd.f32 %v4335, %v4719
    %v4721 = vpop.f32.mrb[0].mxu0
    %4722 = vmatprep.mubr.f32.mxu0 %v3420
    %4723 = vmatmul.mubr.f32.gmra.mrb[0].mxu0 %v3807
    %v4724 = vpop.f32.mrb[0].mxu0
    %v4725 = vadd.f32 %v4340, %v4724
    %v4726 = vpop.f32.mrb[0].mxu0
    %4727 = vmatprep.mubr.f32.mxu0 %v3258
    %4728 = vmatmul.mubr.f32.gmra.mrb[0].mxu0 %v3809
    %v4729 = vpop.f32.mrb[0].mxu0
    %v4730 = vadd.f32 %v4345, %v4729
    %v4731 = vpop.f32.mrb[0].mxu0
    %4732 = vmatprep.mubr.f32.mxu0 %v3421
    %4733 = vmatmul.mubr.f32.gmra.mrb[0].mxu0 %v3812
    %v4734 = vpop.f32.mrb[0].mxu0
    %v4735 = vadd.f32 %v4350, %v4734
    %v4736 = vpop.f32.mrb[0].mxu0
    %4737 = vmatprep.mubr.f32.mxu0 %v3261
    %4738 = vmatmul.mubr.f32.gmra.mrb[0].mxu0 %v3814
    %v4739 = vpop.f32.mrb[0].mxu0
    %v4740 = vadd.f32 %v4355, %v4739
    %v4741 = vpop.f32.mrb[0].mxu0
    %4742 = vmatprep.mubr.f32.mxu0 %v3422
    %4743 = vmatmul.mubr.f32.gmra.mrb[0].mxu0 %v763
    %v4744 = vpop.f32.mrb[0].mxu0
    %v4745 = vadd.f32 %v4360, %v4744
    %v4746 = vpop.f32.mrb[0].mxu0
    %4747 = vmatprep.mubr.f32.mxu0 %v3264
    %4748 = vmatmul.mubr.f32.gmra.mrb[0].mxu0 %v765
    %v4749 = vpop.f32.mrb[0].mxu0
    %v4750 = vadd.f32 %v4365, %v4749
    %v4751 = vpop.f32.mrb[0].mxu0
    %4752 = vmatprep.mubr.f32.mxu0 %v3423
    %4753 = vmatmul.mubr.f32.gmra.mrb[0].mxu0 %v3817
    %v4754 = vpop.f32.mrb[0].mxu0
    %v4755 = vadd.f32 %v4370, %v4754
    %v4756 = vpop.f32.mrb[0].mxu0
    %4757 = vmatprep.mubr.f32.mxu0 %v3267
    %4758 = vmatmul.mubr.f32.gmra.mrb[0].mxu0 %v3819
    %v4759 = vpop.f32.mrb[0].mxu0
    %v4760 = vadd.f32 %v4375, %v4759
    %v4761 = vpop.f32.mrb[0].mxu0
    %4762 = vmatprep.mubr.f32.mxu0 %v3424
    %4763 = vmatmul.mubr.f32.gmra.mrb[0].mxu0 %v3822
    %v4764 = vpop.f32.mrb[0].mxu0
    %v4765 = vadd.f32 %v4380, %v4764
    %v4766 = vpop.f32.mrb[0].mxu0
    %4767 = vmatprep.mubr.f32.mxu0 %v3270
    %4768 = vmatmul.mubr.f32.gmra.mrb[0].mxu0 %v3824
    %v4769 = vpop.f32.mrb[0].mxu0
    %v4770 = vadd.f32 %v4385, %v4769
    %v4771 = vpop.f32.mrb[0].mxu0
    %4772 = vmatprep.mubr.f32.mxu0 %v3425
    %4773 = vmatmul.mubr.f32.gmra.mrb[0].mxu0 %v3827
    %v4774 = vpop.f32.mrb[0].mxu0
    %v4775 = vadd.f32 %v4390, %v4774
    %v4776 = vpop.f32.mrb[0].mxu0
    %4777 = vmatprep.mubr.f32.mxu0 %v3273
    %4778 = vmatmul.mubr.f32.gmra.mrb[0].mxu0 %v3829
    %v4779 = vpop.f32.mrb[0].mxu0
    %v4780 = vadd.f32 %v4395, %v4779
    %v4781 = vpop.f32.mrb[0].mxu0
    %4782 = vmatprep.mubr.f32.mxu0 %v3426
    %4783 = vmatmul.mubr.f32.gmra.mrb[0].mxu0 %v3832
    %v4784 = vpop.f32.mrb[0].mxu0
    %v4785 = vadd.f32 %v4400, %v4784
    %v4786 = vpop.f32.mrb[0].mxu0
    %4787 = vmatprep.mubr.f32.mxu0 %v3276
    %4788 = vmatmul.mubr.f32.gmra.mrb[0].mxu0 %v3834
    %v4789 = vpop.f32.mrb[0].mxu0
    %v4790 = vadd.f32 %v4405, %v4789
    %v4791 = vpop.f32.mrb[0].mxu0
    %4792 = vmatprep.mubr.f32.mxu0 %v3427
    %4793 = vmatmul.mubr.f32.gmra.mrb[0].mxu0 %v3837
    %v4794 = vpop.f32.mrb[0].mxu0
    %v4795 = vadd.f32 %v4410, %v4794
    %v4796 = vpop.f32.mrb[0].mxu0
    %4797 = vmatprep.mubr.f32.mxu0 %v3279
    %4798 = vmatmul.mubr.f32.gmra.mrb[0].mxu0 %v3839
    %v4799 = vpop.f32.mrb[0].mxu0
    %v4800 = vadd.f32 %v4415, %v4799
    %v4801 = vpop.f32.mrb[0].mxu0
    %4802 = vmatprep.mubr.f32.mxu0 %v3428
    %4803 = vmatmul.mubr.f32.gmra.mrb[0].mxu0 %v3842
    %v4804 = vpop.f32.mrb[0].mxu0
    %v4805 = vadd.f32 %v4420, %v4804
    %v4806 = vpop.f32.mrb[0].mxu0
    %4807 = vmatprep.mubr.f32.mxu0 %v3282
    %4808 = vmatmul.mubr.f32.gmra.mrb[0].mxu0 %v3844
    %v4809 = vpop.f32.mrb[0].mxu0
    %v4810 = vadd.f32 %v4425, %v4809
    %v4811 = vpop.f32.mrb[0].mxu0
    %4812 = vmatprep.mubr.f32.mxu0 %v3429
    %4813 = vmatmul.mubr.f32.gmra.mrb[0].mxu0 %v3847
    %v4814 = vpop.f32.mrb[0].mxu0
    %v4815 = vadd.f32 %v4430, %v4814
    %v4816 = vpop.f32.mrb[0].mxu0
    %4817 = vmatprep.mubr.f32.mxu0 %v3285
    %4818 = vmatmul.mubr.f32.gmra.mrb[0].mxu0 %v3849
    %v4819 = vpop.f32.mrb[0].mxu0
    %v4820 = vadd.f32 %v4435, %v4819
    %v4821 = vpop.f32.mrb[0].mxu0
    %4822 = vmatprep.mubr.f32.mxu0 %v3430
    %4823 = vmatmul.mubr.f32.gmra.mrb[0].mxu0 %v3852
    %v4824 = vpop.f32.mrb[0].mxu0
    %v4825 = vadd.f32 %v4440, %v4824
    %v4826 = vpop.f32.mrb[0].mxu0
    %4827 = vmatprep.mubr.f32.mxu0 %v3288
    %4828 = vmatmul.mubr.f32.gmra.mrb[0].mxu0 %v3854
    %v4829 = vpop.f32.mrb[0].mxu0
    %v4830 = vadd.f32 %v4445, %v4829
    %v4831 = vpop.f32.mrb[0].mxu0
    %4832 = vmatprep.mubr.f32.mxu0 %v3431
    %4833 = vmatmul.mubr.f32.gmra.mrb[0].mxu0 %v3857
    %v4834 = vpop.f32.mrb[0].mxu0
    %v4835 = vadd.f32 %v4450, %v4834
    %v4836 = vpop.f32.mrb[0].mxu0
    %4837 = vmatprep.mubr.f32.mxu0 %v3291
    %4838 = vmatmul.mubr.f32.gmra.mrb[0].mxu0 %v3859
    %v4839 = vpop.f32.mrb[0].mxu0
    %v4840 = vadd.f32 %v4455, %v4839
    %v4841 = vpop.f32.mrb[0].mxu0
    %4842 = vmatprep.mubr.f32.mxu0 %v3432
    %4843 = vmatmul.mubr.f32.gmra.mrb[0].mxu0 %v3862
    %v4844 = vpop.f32.mrb[0].mxu0
    %v4845 = vadd.f32 %v4460, %v4844
    %v4846 = vpop.f32.mrb[0].mxu0
    %4847 = vmatprep.mubr.f32.mxu0 %v3294
    %4848 = vmatmul.mubr.f32.gmra.mrb[0].mxu0 %v3864
    %v4849 = vpop.f32.mrb[0].mxu0
    %v4850 = vadd.f32 %v4465, %v4849
    %v4851 = vpop.f32.mrb[0].mxu0
    %4852 = vmatprep.mubr.f32.mxu0 %v3433
    %4853 = vmatmul.mubr.f32.gmra.mrb[0].mxu0 %v3867
    %v4854 = vpop.f32.mrb[0].mxu0
    %v4855 = vadd.f32 %v4470, %v4854
    %v4856 = vpop.f32.mrb[0].mxu0
    %4857 = vmatprep.mubr.f32.mxu0 %v3297
    %4858 = vmatmul.mubr.f32.gmra.mrb[0].mxu0 %v3869
    %v4859 = vpop.f32.mrb[0].mxu0
    %v4860 = vadd.f32 %v4475, %v4859
    %v4861 = vpop.f32.mrb[0].mxu0
    %4862 = vmatprep.mubr.f32.mxu0 %v3434
    %4863 = vmatmul.mubr.f32.gmra.mrb[0].mxu0 %v3872
    %v4864 = vpop.f32.mrb[0].mxu0
    %v4865 = vadd.f32 %v4480, %v4864
    %v4866 = vpop.f32.mrb[0].mxu0
    %4867 = vmatprep.mubr.f32.mxu0 %v3300
    %4868 = vmatmul.mubr.f32.gmra.mrb[0].mxu0 %v3874
    %v4869 = vpop.f32.mrb[0].mxu0
    %v4870 = vadd.f32 %v4485, %v4869
    %v4871 = vpop.f32.mrb[0].mxu0
    %4872 = vmatprep.mubr.f32.mxu0 %v3435
    %4873 = vmatmul.mubr.f32.gmra.mrb[0].mxu0 %v3877
    %v4874 = vpop.f32.mrb[0].mxu0
    %v4875 = vadd.f32 %v4490, %v4874
    %v4876 = vpop.f32.mrb[0].mxu0
    %4877 = vmatprep.mubr.f32.mxu0 %v3303
    %4878 = vmatmul.mubr.f32.gmra.mrb[0].mxu0 %v3879
    %v4879 = vpop.f32.mrb[0].mxu0
    %v4880 = vadd.f32 %v4495, %v4879
    %v4881 = vpop.f32.mrb[0].mxu0
    %4882 = vmatprep.mubr.f32.mxu0 %v3436
    %4883 = vmatmul.mubr.f32.gmra.mrb[0].mxu0 %v3882
    %v4884 = vpop.f32.mrb[0].mxu0
    %v4885 = vadd.f32 %v4500, %v4884
    %v4886 = vpop.f32.mrb[0].mxu0
    %4887 = vmatprep.mubr.f32.mxu0 %v3306
    %4888 = vmatmul.mubr.f32.gmra.mrb[0].mxu0 %v3884
    %v4889 = vpop.f32.mrb[0].mxu0
    %v4890 = vadd.f32 %v4505, %v4889
    %v4891 = vpop.f32.mrb[0].mxu0
    %4892 = vmatprep.mubr.f32.mxu0 %v3437
    %4893 = vmatmul.mubr.f32.gmra.mrb[0].mxu0 %v3887
    %v4894 = vpop.f32.mrb[0].mxu0
    %v4895 = vadd.f32 %v4510, %v4894
    %v4896 = vpop.f32.mrb[0].mxu0
    %4897 = vmatprep.mubr.f32.mxu0 %v3309
    %4898 = vmatmul.mubr.f32.gmra.mrb[0].mxu0 %v3889
    %v4899 = vpop.f32.mrb[0].mxu0
    %v4900 = vadd.f32 %v4515, %v4899
    %v4901 = vpop.f32.mrb[0].mxu0
    %4902 = vdwg.mxu0
    %4903 = vmatprep.subr.mxu0 0.0
    %4904 = vmatpush1.msra.mxu0 %v4046
    %4905 = vmatprep.subr.mxu0 0.0
    %4906 = vmatpush1.msra.mxu0 %v4047
    %4907 = vmatprep.subr.mxu0 0.0
    %4908 = vmatpush1.msra.mxu0 %v4048
    %4909 = vmatprep.subr.mxu0 0.0
    %4910 = vmatpush1.msra.mxu0 %v4049
    %4911 = vmatprep.subr.mxu0 0.0
    %4912 = vmatpush1.msra.mxu0 %v4050
    %4913 = vmatprep.subr.mxu0 0.0
    %4914 = vmatpush1.msra.mxu0 %v4051
    %4915 = vmatprep.subr.mxu0 0.0
    %4916 = vmatpush1.msra.mxu0 %v4052
    %4917 = vmatprep.subr.mxu0 0.0
    %4918 = vmatpush1.msra.mxu0 %v4053
    %4919 = vmatprep.subr.mxu0 0.0
    %4920 = vmatpush1.msra.mxu0 %v4054
    %4921 = vmatprep.subr.mxu0 0.0
    %4922 = vmatpush1.msra.mxu0 %v4055
    %4923 = vmatprep.subr.mxu0 0.0
    %4924 = vmatpush1.msra.mxu0 %v4056
    %4925 = vmatprep.subr.mxu0 0.0
    %4926 = vmatpush1.msra.mxu0 %v4057
    %4927 = vmatprep.subr.mxu0 0.0
    %4928 = vmatpush1.msra.mxu0 %v4058
    %4929 = vmatprep.subr.mxu0 0.0
    %4930 = vmatpush1.msra.mxu0 %v4059
    %4931 = vmatprep.subr.mxu0 0.0
    %4932 = vmatpush1.msra.mxu0 %v4060
    %4933 = vmatprep.subr.mxu0 0.0
    %4934 = vmatpush1.msra.mxu0 %v4061
    %4935 = vmatprep.subr.mxu0 0.0
    %4936 = vmatpush1.msra.mxu0 %v4062
    %4937 = vmatprep.subr.mxu0 0.0
    %4938 = vmatpush1.msra.mxu0 %v4063
    %4939 = vmatprep.subr.mxu0 0.0
    %4940 = vmatpush1.msra.mxu0 %v4064
    %4941 = vmatprep.subr.mxu0 0.0
    %4942 = vmatpush1.msra.mxu0 %v4065
    %4943 = vmatprep.subr.mxu0 0.0
    %4944 = vmatpush1.msra.mxu0 %v4066
    %4945 = vmatprep.subr.mxu0 0.0
    %4946 = vmatpush1.msra.mxu0 %v4067
    %4947 = vmatprep.subr.mxu0 0.0
    %4948 = vmatpush1.msra.mxu0 %v4068
    %4949 = vmatprep.subr.mxu0 0.0
    %4950 = vmatpush1.msra.mxu0 %v4069
    %4951 = vmatprep.subr.mxu0 0.0
    %4952 = vmatpush1.msra.mxu0 %v4070
    %4953 = vmatprep.subr.mxu0 0.0
    %4954 = vmatpush1.msra.mxu0 %v4071
    %4955 = vmatprep.subr.mxu0 0.0
    %4956 = vmatpush1.msra.mxu0 %v4072
    %4957 = vmatprep.subr.mxu0 0.0
    %4958 = vmatpush1.msra.mxu0 %v4073
    %4959 = vmatprep.subr.mxu0 0.0
    %4960 = vmatpush1.msra.mxu0 %v4074
    %4961 = vmatprep.subr.mxu0 0.0
    %4962 = vmatpush1.msra.mxu0 %v4075
    %4963 = vmatprep.subr.mxu0 0.0
    %4964 = vmatpush1.msra.mxu0 %v4076
    %4965 = vmatprep.subr.mxu0 0.0
    %4966 = vmatpush1.msra.mxu0 %v4077
    %4967 = vmatprep.mubr.f32.mxu0 %v3742
    %4968 = vmatmul.mubr.f32.gmra.mrb[0].mxu0 %v3532
    %v4969 = vpop.f32.mrb[0].mxu0
    %v4970 = vadd.f32 %v4585, %v4969
    %v4971 = vpop.f32.mrb[0].mxu0
    %4972 = vmatprep.mubr.f32.mxu0 %v3744
    %4973 = vmatmul.mubr.f32.gmra.mrb[0].mxu0 %v3534
    %v4974 = vpop.f32.mrb[0].mxu0
    %v4975 = vadd.f32 %v4590, %v4974
    %v4976 = vpop.f32.mrb[0].mxu0
    %4977 = vmatprep.mubr.f32.mxu0 %v3747
    %4978 = vmatmul.mubr.f32.gmra.mrb[0].mxu0 %v3537
    %v4979 = vpop.f32.mrb[0].mxu0
    %v4980 = vadd.f32 %v4595, %v4979
    %v4981 = vpop.f32.mrb[0].mxu0
    %4982 = vmatprep.mubr.f32.mxu0 %v3749
    %4983 = vmatmul.mubr.f32.gmra.mrb[0].mxu0 %v3539
    %v4984 = vpop.f32.mrb[0].mxu0
    %v4985 = vadd.f32 %v4600, %v4984
    %v4986 = vpop.f32.mrb[0].mxu0
    %4987 = vmatprep.mubr.f32.mxu0 %v3752
    %4988 = vmatmul.mubr.f32.gmra.mrb[0].mxu0 %v3542
    %v4989 = vpop.f32.mrb[0].mxu0
    %v4990 = vadd.f32 %v4605, %v4989
    %v4991 = vpop.f32.mrb[0].mxu0
    %4992 = vmatprep.mubr.f32.mxu0 %v3754
    %4993 = vmatmul.mubr.f32.gmra.mrb[0].mxu0 %v3544
    %v4994 = vpop.f32.mrb[0].mxu0
    %v4995 = vadd.f32 %v4610, %v4994
    %v4996 = vpop.f32.mrb[0].mxu0
    %4997 = vmatprep.mubr.f32.mxu0 %v3757
    %4998 = vmatmul.mubr.f32.gmra.mrb[0].mxu0 %v3547
    %v4999 = vpop.f32.mrb[0].mxu0
    %v5000 = vadd.f32 %v4615, %v4999
    %v5001 = vpop.f32.mrb[0].mxu0
    %5002 = vmatprep.mubr.f32.mxu0 %v3759
    %5003 = vmatmul.mubr.f32.gmra.mrb[0].mxu0 %v3549
    %v5004 = vpop.f32.mrb[0].mxu0
    %v5005 = vadd.f32 %v4620, %v5004
    %v5006 = vpop.f32.mrb[0].mxu0
    %5007 = vmatprep.mubr.f32.mxu0 %v3762
    %5008 = vmatmul.mubr.f32.gmra.mrb[0].mxu0 %v3552
    %v5009 = vpop.f32.mrb[0].mxu0
    %v5010 = vadd.f32 %v4625, %v5009
    %v5011 = vpop.f32.mrb[0].mxu0
    %5012 = vmatprep.mubr.f32.mxu0 %v3764
    %5013 = vmatmul.mubr.f32.gmra.mrb[0].mxu0 %v3554
    %v5014 = vpop.f32.mrb[0].mxu0
    %v5015 = vadd.f32 %v4630, %v5014
    %v5016 = vpop.f32.mrb[0].mxu0
    %5017 = vmatprep.mubr.f32.mxu0 %v3767
    %5018 = vmatmul.mubr.f32.gmra.mrb[0].mxu0 %v3557
    %v5019 = vpop.f32.mrb[0].mxu0
    %v5020 = vadd.f32 %v4635, %v5019
    %v5021 = vpop.f32.mrb[0].mxu0
    %5022 = vmatprep.mubr.f32.mxu0 %v3769
    %5023 = vmatmul.mubr.f32.gmra.mrb[0].mxu0 %v3559
    %v5024 = vpop.f32.mrb[0].mxu0
    %v5025 = vadd.f32 %v4640, %v5024
    %v5026 = vpop.f32.mrb[0].mxu0
    %5027 = vmatprep.mubr.f32.mxu0 %v3772
    %5028 = vmatmul.mubr.f32.gmra.mrb[0].mxu0 %v3562
    %v5029 = vpop.f32.mrb[0].mxu0
    %v5030 = vadd.f32 %v4645, %v5029
    %v5031 = vpop.f32.mrb[0].mxu0
    %5032 = vmatprep.mubr.f32.mxu0 %v3774
    %5033 = vmatmul.mubr.f32.gmra.mrb[0].mxu0 %v3564
    %v5034 = vpop.f32.mrb[0].mxu0
    %v5035 = vadd.f32 %v4650, %v5034
    %v5036 = vpop.f32.mrb[0].mxu0
    %5037 = vmatprep.mubr.f32.mxu0 %v3777
    %5038 = vmatmul.mubr.f32.gmra.mrb[0].mxu0 %v3567
    %v5039 = vpop.f32.mrb[0].mxu0
    %v5040 = vadd.f32 %v4655, %v5039
    %v5041 = vpop.f32.mrb[0].mxu0
    %5042 = vmatprep.mubr.f32.mxu0 %v3779
    %5043 = vmatmul.mubr.f32.gmra.mrb[0].mxu0 %v3569
    %v5044 = vpop.f32.mrb[0].mxu0
    %v5045 = vadd.f32 %v4660, %v5044
    %v5046 = vpop.f32.mrb[0].mxu0
    %5047 = vmatprep.mubr.f32.mxu0 %v3782
    %5048 = vmatmul.mubr.f32.gmra.mrb[0].mxu0 %v3572
    %v5049 = vpop.f32.mrb[0].mxu0
    %v5050 = vadd.f32 %v4665, %v5049
    %v5051 = vpop.f32.mrb[0].mxu0
    %5052 = vmatprep.mubr.f32.mxu0 %v3784
    %5053 = vmatmul.mubr.f32.gmra.mrb[0].mxu0 %v3574
    %v5054 = vpop.f32.mrb[0].mxu0
    %v5055 = vadd.f32 %v4670, %v5054
    %v5056 = vpop.f32.mrb[0].mxu0
    %5057 = vmatprep.mubr.f32.mxu0 %v3787
    %5058 = vmatmul.mubr.f32.gmra.mrb[0].mxu0 %v3577
    %v5059 = vpop.f32.mrb[0].mxu0
    %v5060 = vadd.f32 %v4675, %v5059
    %v5061 = vpop.f32.mrb[0].mxu0
    %5062 = vmatprep.mubr.f32.mxu0 %v3789
    %5063 = vmatmul.mubr.f32.gmra.mrb[0].mxu0 %v3579
    %v5064 = vpop.f32.mrb[0].mxu0
    %v5065 = vadd.f32 %v4680, %v5064
    %v5066 = vpop.f32.mrb[0].mxu0
    %5067 = vmatprep.mubr.f32.mxu0 %v3792
    %5068 = vmatmul.mubr.f32.gmra.mrb[0].mxu0 %v3582
    %v5069 = vpop.f32.mrb[0].mxu0
    %v5070 = vadd.f32 %v4685, %v5069
    %v5071 = vpop.f32.mrb[0].mxu0
    %5072 = vmatprep.mubr.f32.mxu0 %v3794
    %5073 = vmatmul.mubr.f32.gmra.mrb[0].mxu0 %v3584
    %v5074 = vpop.f32.mrb[0].mxu0
    %v5075 = vadd.f32 %v4690, %v5074
    %v5076 = vpop.f32.mrb[0].mxu0
    %5077 = vmatprep.mubr.f32.mxu0 %v3797
    %5078 = vmatmul.mubr.f32.gmra.mrb[0].mxu0 %v3587
    %v5079 = vpop.f32.mrb[0].mxu0
    %v5080 = vadd.f32 %v4695, %v5079
    %v5081 = vpop.f32.mrb[0].mxu0
    %5082 = vmatprep.mubr.f32.mxu0 %v3799
    %5083 = vmatmul.mubr.f32.gmra.mrb[0].mxu0 %v3589
    %v5084 = vpop.f32.mrb[0].mxu0
    %v5085 = vadd.f32 %v4700, %v5084
    %v5086 = vpop.f32.mrb[0].mxu0
    %5087 = vmatprep.mubr.f32.mxu0 %v3802
    %5088 = vmatmul.mubr.f32.gmra.mrb[0].mxu0 %v3592
    %v5089 = vpop.f32.mrb[0].mxu0
    %v5090 = vadd.f32 %v4705, %v5089
    %v5091 = vpop.f32.mrb[0].mxu0
    %5092 = vmatprep.mubr.f32.mxu0 %v3804
    %5093 = vmatmul.mubr.f32.gmra.mrb[0].mxu0 %v3594
    %v5094 = vpop.f32.mrb[0].mxu0
    %v5095 = vadd.f32 %v4710, %v5094
    %v5096 = vpop.f32.mrb[0].mxu0
    %5097 = vmatprep.mubr.f32.mxu0 %v3807
    %5098 = vmatmul.mubr.f32.gmra.mrb[0].mxu0 %v3597
    %v5099 = vpop.f32.mrb[0].mxu0
    %v5100 = vadd.f32 %v4715, %v5099
    %v5101 = vpop.f32.mrb[0].mxu0
    %5102 = vmatprep.mubr.f32.mxu0 %v3809
    %5103 = vmatmul.mubr.f32.gmra.mrb[0].mxu0 %v3599
    %v5104 = vpop.f32.mrb[0].mxu0
    %v5105 = vadd.f32 %v4720, %v5104
    %v5106 = vpop.f32.mrb[0].mxu0
    %5107 = vmatprep.mubr.f32.mxu0 %v3812
    %5108 = vmatmul.mubr.f32.gmra.mrb[0].mxu0 %v3602
    %v5109 = vpop.f32.mrb[0].mxu0
    %v5110 = vadd.f32 %v4725, %v5109
    %v5111 = vpop.f32.mrb[0].mxu0
    %5112 = vmatprep.mubr.f32.mxu0 %v3814
    %5113 = vmatmul.mubr.f32.gmra.mrb[0].mxu0 %v3604
    %v5114 = vpop.f32.mrb[0].mxu0
    %v5115 = vadd.f32 %v4730, %v5114
    %v5116 = vpop.f32.mrb[0].mxu0
    %5117 = vmatprep.mubr.f32.mxu0 %v3970
    %5118 = vmatmul.mubr.f32.gmra.mrb[0].mxu0 %v3956
    %v5119 = vpop.f32.mrb[0].mxu0
    %v5120 = vadd.f32 %v4735, %v5119
    %v5121 = vpop.f32.mrb[0].mxu0
    %5122 = vmatprep.mubr.f32.mxu0 %v3972
    %5123 = vmatmul.mubr.f32.gmra.mrb[0].mxu0 %v3958
    %v5124 = vpop.f32.mrb[0].mxu0
    %v5125 = vadd.f32 %v4740, %v5124
    %v5126 = vpop.f32.mrb[0].mxu0
    %5127 = vmatprep.mubr.f32.mxu0 %v3817
    %5128 = vmatmul.mubr.f32.gmra.mrb[0].mxu0 %v3607
    %v5129 = vpop.f32.mrb[0].mxu0
    %v5130 = vadd.f32 %v4745, %v5129
    %v5131 = vpop.f32.mrb[0].mxu0
    %5132 = vmatprep.mubr.f32.mxu0 %v3819
    %5133 = vmatmul.mubr.f32.gmra.mrb[0].mxu0 %v3609
    %v5134 = vpop.f32.mrb[0].mxu0
    %v5135 = vadd.f32 %v4750, %v5134
    %v5136 = vpop.f32.mrb[0].mxu0
    %5137 = vmatprep.mubr.f32.mxu0 %v3822
    %5138 = vmatmul.mubr.f32.gmra.mrb[0].mxu0 %v3612
    %v5139 = vpop.f32.mrb[0].mxu0
    %v5140 = vadd.f32 %v4755, %v5139
    %v5141 = vpop.f32.mrb[0].mxu0
    %5142 = vmatprep.mubr.f32.mxu0 %v3824
    %5143 = vmatmul.mubr.f32.gmra.mrb[0].mxu0 %v3614
    %v5144 = vpop.f32.mrb[0].mxu0
    %v5145 = vadd.f32 %v4760, %v5144
    %v5146 = vpop.f32.mrb[0].mxu0
    %5147 = vmatprep.mubr.f32.mxu0 %v3827
    %5148 = vmatmul.mubr.f32.gmra.mrb[0].mxu0 %v3617
    %v5149 = vpop.f32.mrb[0].mxu0
    %v5150 = vadd.f32 %v4765, %v5149
    %v5151 = vpop.f32.mrb[0].mxu0
    %5152 = vmatprep.mubr.f32.mxu0 %v3829
    %5153 = vmatmul.mubr.f32.gmra.mrb[0].mxu0 %v3619
    %v5154 = vpop.f32.mrb[0].mxu0
    %v5155 = vadd.f32 %v4770, %v5154
    %v5156 = vpop.f32.mrb[0].mxu0
    %5157 = vmatprep.mubr.f32.mxu0 %v3832
    %5158 = vmatmul.mubr.f32.gmra.mrb[0].mxu0 %v3622
    %v5159 = vpop.f32.mrb[0].mxu0
    %v5160 = vadd.f32 %v4775, %v5159
    %v5161 = vpop.f32.mrb[0].mxu0
    %5162 = vmatprep.mubr.f32.mxu0 %v3834
    %5163 = vmatmul.mubr.f32.gmra.mrb[0].mxu0 %v3624
    %v5164 = vpop.f32.mrb[0].mxu0
    %v5165 = vadd.f32 %v4780, %v5164
    %v5166 = vpop.f32.mrb[0].mxu0
    %5167 = vmatprep.mubr.f32.mxu0 %v3837
    %5168 = vmatmul.mubr.f32.gmra.mrb[0].mxu0 %v3627
    %v5169 = vpop.f32.mrb[0].mxu0
    %v5170 = vadd.f32 %v4785, %v5169
    %v5171 = vpop.f32.mrb[0].mxu0
    %5172 = vmatprep.mubr.f32.mxu0 %v3839
    %5173 = vmatmul.mubr.f32.gmra.mrb[0].mxu0 %v3629
    %v5174 = vpop.f32.mrb[0].mxu0
    %v5175 = vadd.f32 %v4790, %v5174
    %v5176 = vpop.f32.mrb[0].mxu0
    %5177 = vmatprep.mubr.f32.mxu0 %v3842
    %5178 = vmatmul.mubr.f32.gmra.mrb[0].mxu0 %v3632
    %v5179 = vpop.f32.mrb[0].mxu0
    %v5180 = vadd.f32 %v4795, %v5179
    %v5181 = vpop.f32.mrb[0].mxu0
    %5182 = vmatprep.mubr.f32.mxu0 %v3844
    %5183 = vmatmul.mubr.f32.gmra.mrb[0].mxu0 %v3634
    %v5184 = vpop.f32.mrb[0].mxu0
    %v5185 = vadd.f32 %v4800, %v5184
    %v5186 = vpop.f32.mrb[0].mxu0
    %5187 = vmatprep.mubr.f32.mxu0 %v3847
    %5188 = vmatmul.mubr.f32.gmra.mrb[0].mxu0 %v3637
    %v5189 = vpop.f32.mrb[0].mxu0
    %v5190 = vadd.f32 %v4805, %v5189
    %v5191 = vpop.f32.mrb[0].mxu0
    %5192 = vmatprep.mubr.f32.mxu0 %v3849
    %5193 = vmatmul.mubr.f32.gmra.mrb[0].mxu0 %v3639
    %v5194 = vpop.f32.mrb[0].mxu0
    %v5195 = vadd.f32 %v4810, %v5194
    %v5196 = vpop.f32.mrb[0].mxu0
    %5197 = vmatprep.mubr.f32.mxu0 %v3852
    %5198 = vmatmul.mubr.f32.gmra.mrb[0].mxu0 %v3642
    %v5199 = vpop.f32.mrb[0].mxu0
    %v5200 = vadd.f32 %v4815, %v5199
    %v5201 = vpop.f32.mrb[0].mxu0
    %5202 = vmatprep.mubr.f32.mxu0 %v3854
    %5203 = vmatmul.mubr.f32.gmra.mrb[0].mxu0 %v3644
    %v5204 = vpop.f32.mrb[0].mxu0
    %v5205 = vadd.f32 %v4820, %v5204
    %v5206 = vpop.f32.mrb[0].mxu0
    %5207 = vmatprep.mubr.f32.mxu0 %v3857
    %5208 = vmatmul.mubr.f32.gmra.mrb[0].mxu0 %v3647
    %v5209 = vpop.f32.mrb[0].mxu0
    %v5210 = vadd.f32 %v4825, %v5209
    %v5211 = vpop.f32.mrb[0].mxu0
    %5212 = vmatprep.mubr.f32.mxu0 %v3859
    %5213 = vmatmul.mubr.f32.gmra.mrb[0].mxu0 %v3649
    %v5214 = vpop.f32.mrb[0].mxu0
    %v5215 = vadd.f32 %v4830, %v5214
    %v5216 = vpop.f32.mrb[0].mxu0
    %5217 = vmatprep.mubr.f32.mxu0 %v3862
    %5218 = vmatmul.mubr.f32.gmra.mrb[0].mxu0 %v3652
    %v5219 = vpop.f32.mrb[0].mxu0
    %v5220 = vadd.f32 %v4835, %v5219
    %v5221 = vpop.f32.mrb[0].mxu0
    %5222 = vmatprep.mubr.f32.mxu0 %v3864
    %5223 = vmatmul.mubr.f32.gmra.mrb[0].mxu0 %v3654
    %v5224 = vpop.f32.mrb[0].mxu0
    %v5225 = vadd.f32 %v4840, %v5224
    %v5226 = vpop.f32.mrb[0].mxu0
    %5227 = vmatprep.mubr.f32.mxu0 %v3867
    %5228 = vmatmul.mubr.f32.gmra.mrb[0].mxu0 %v3657
    %v5229 = vpop.f32.mrb[0].mxu0
    %v5230 = vadd.f32 %v4845, %v5229
    %v5231 = vpop.f32.mrb[0].mxu0
    %5232 = vmatprep.mubr.f32.mxu0 %v3869
    %5233 = vmatmul.mubr.f32.gmra.mrb[0].mxu0 %v3659
    %v5234 = vpop.f32.mrb[0].mxu0
    %v5235 = vadd.f32 %v4850, %v5234
    %v5236 = vpop.f32.mrb[0].mxu0
    %5237 = vmatprep.mubr.f32.mxu0 %v3872
    %5238 = vmatmul.mubr.f32.gmra.mrb[0].mxu0 %v3662
    %v5239 = vpop.f32.mrb[0].mxu0
    %v5240 = vadd.f32 %v4855, %v5239
    %v5241 = vpop.f32.mrb[0].mxu0
    %5242 = vmatprep.mubr.f32.mxu0 %v3874
    %5243 = vmatmul.mubr.f32.gmra.mrb[0].mxu0 %v3664
    %v5244 = vpop.f32.mrb[0].mxu0
    %v5245 = vadd.f32 %v4860, %v5244
    %v5246 = vpop.f32.mrb[0].mxu0
    %5247 = vmatprep.mubr.f32.mxu0 %v3877
    %5248 = vmatmul.mubr.f32.gmra.mrb[0].mxu0 %v3667
    %v5249 = vpop.f32.mrb[0].mxu0
    %v5250 = vadd.f32 %v4865, %v5249
    %v5251 = vpop.f32.mrb[0].mxu0
    %5252 = vmatprep.mubr.f32.mxu0 %v3879
    %5253 = vmatmul.mubr.f32.gmra.mrb[0].mxu0 %v3669
    %v5254 = vpop.f32.mrb[0].mxu0
    %v5255 = vadd.f32 %v4870, %v5254
    %v5256 = vpop.f32.mrb[0].mxu0
    %5257 = vmatprep.mubr.f32.mxu0 %v3882
    %5258 = vmatmul.mubr.f32.gmra.mrb[0].mxu0 %v3672
    %v5259 = vpop.f32.mrb[0].mxu0
    %v5260 = vadd.f32 %v4875, %v5259
    %v5261 = vpop.f32.mrb[0].mxu0
    %5262 = vmatprep.mubr.f32.mxu0 %v3884
    %5263 = vmatmul.mubr.f32.gmra.mrb[0].mxu0 %v3674
    %v5264 = vpop.f32.mrb[0].mxu0
    %v5265 = vadd.f32 %v4880, %v5264
    %v5266 = vpop.f32.mrb[0].mxu0
    %5267 = vmatprep.mubr.f32.mxu0 %v3887
    %5268 = vmatmul.mubr.f32.gmra.mrb[0].mxu0 %v3677
    %v5269 = vpop.f32.mrb[0].mxu0
    %v5270 = vadd.f32 %v4885, %v5269
    %v5271 = vpop.f32.mrb[0].mxu0
    %5272 = vmatprep.mubr.f32.mxu0 %v3889
    %5273 = vmatmul.mubr.f32.gmra.mrb[0].mxu0 %v3679
    %v5274 = vpop.f32.mrb[0].mxu0
    %v5275 = vadd.f32 %v4890, %v5274
    %v5276 = vpop.f32.mrb[0].mxu0
    %5277 = vmatprep.mubr.f32.mxu0 %v3975
    %5278 = vmatmul.mubr.f32.gmra.mrb[0].mxu0 %v3961
    %v5279 = vpop.f32.mrb[0].mxu0
    %v5280 = vadd.f32 %v4895, %v5279
    %v5281 = vpop.f32.mrb[0].mxu0
    %5282 = vmatprep.mubr.f32.mxu0 %v3977
    %5283 = vmatmul.mubr.f32.gmra.mrb[0].mxu0 %v3963
    %v5284 = vpop.f32.mrb[0].mxu0
    %v5285 = vadd.f32 %v4900, %v5284
    %v5286 = vpop.f32.mrb[0].mxu0
    %5287 = vdwg.mxu0
    %5288 = vmatprep.subr.mxu0 0.0
    %5289 = vmatpush1.msra.mxu0 %v4078
    %5290 = vmatprep.subr.mxu0 0.0
    %5291 = vmatpush1.msra.mxu0 %v4079
    %5292 = vmatprep.subr.mxu0 0.0
    %5293 = vmatpush1.msra.mxu0 %v4080
    %5294 = vmatprep.subr.mxu0 0.0
    %5295 = vmatpush1.msra.mxu0 %v4081
    %5296 = vmatprep.subr.mxu0 0.0
    %5297 = vmatpush1.msra.mxu0 %v4082
    %5298 = vmatprep.subr.mxu0 0.0
    %5299 = vmatpush1.msra.mxu0 %v4083
    %5300 = vmatprep.subr.mxu0 0.0
    %5301 = vmatpush1.msra.mxu0 %v4084
    %5302 = vmatprep.subr.mxu0 0.0
    %5303 = vmatpush1.msra.mxu0 %v4085
    %5304 = vmatprep.subr.mxu0 0.0
    %5305 = vmatpush1.msra.mxu0 %v4086
    %5306 = vmatprep.subr.mxu0 0.0
    %5307 = vmatpush1.msra.mxu0 %v4087
    %5308 = vmatprep.subr.mxu0 0.0
    %5309 = vmatpush1.msra.mxu0 %v4088
    %5310 = vmatprep.subr.mxu0 0.0
    %5311 = vmatpush1.msra.mxu0 %v4089
    %5312 = vmatprep.subr.mxu0 0.0
    %5313 = vmatpush1.msra.mxu0 %v4090
    %5314 = vmatprep.subr.mxu0 0.0
    %5315 = vmatpush1.msra.mxu0 %v4091
    %5316 = vmatprep.subr.mxu0 0.0
    %5317 = vmatpush1.msra.mxu0 %v4092
    %5318 = vmatprep.subr.mxu0 0.0
    %5319 = vmatpush1.msra.mxu0 %v4093
    %5320 = vmatprep.subr.mxu0 0.0
    %5321 = vmatpush1.msra.mxu0 %v4094
    %5322 = vmatprep.subr.mxu0 0.0
    %5323 = vmatpush1.msra.mxu0 %v4095
    %5324 = vmatprep.subr.mxu0 0.0
    %5325 = vmatpush1.msra.mxu0 %v4096
    %5326 = vmatprep.subr.mxu0 0.0
    %5327 = vmatpush1.msra.mxu0 %v4097
    %5328 = vmatprep.subr.mxu0 0.0
    %5329 = vmatpush1.msra.mxu0 %v4098
    %5330 = vmatprep.subr.mxu0 0.0
    %5331 = vmatpush1.msra.mxu0 %v4099
    %5332 = vmatprep.subr.mxu0 0.0
    %5333 = vmatpush1.msra.mxu0 %v4100
    %5334 = vmatprep.subr.mxu0 0.0
    %5335 = vmatpush1.msra.mxu0 %v4101
    %5336 = vmatprep.subr.mxu0 0.0
    %5337 = vmatpush1.msra.mxu0 %v4102
    %5338 = vmatprep.subr.mxu0 0.0
    %5339 = vmatpush1.msra.mxu0 %v4103
    %5340 = vmatprep.subr.mxu0 0.0
    %5341 = vmatpush1.msra.mxu0 %v4104
    %5342 = vmatprep.subr.mxu0 0.0
    %5343 = vmatpush1.msra.mxu0 %v4105
    %5344 = vmatprep.subr.mxu0 0.0
    %5345 = vmatpush1.msra.mxu0 %v4106
    %5346 = vmatprep.subr.mxu0 0.0
    %5347 = vmatpush1.msra.mxu0 %v4107
    %5348 = vmatprep.subr.mxu0 0.0
    %5349 = vmatpush1.msra.mxu0 %v4108
    %5350 = vmatprep.subr.mxu0 0.0
    %5351 = vmatpush1.msra.mxu0 %v4109
    %5352 = vmatprep.mubr.f32.mxu0 %v3537
    %5353 = vmatmul.mubr.f32.gmra.mrb[0].mxu0 %v3407
    %v5354 = vpop.f32.mrb[0].mxu0
    %v5355 = vadd.f32 %v4970, %v5354
    %v5356 = vpop.f32.mrb[0].mxu0
    %5357 = vmatprep.mubr.f32.mxu0 %v3539
    %5358 = vmatmul.mubr.f32.gmra.mrb[0].mxu0 %v3219
    %v5359 = vpop.f32.mrb[0].mxu0
    %v5360 = vadd.f32 %v4975, %v5359
    %v5361 = vpop.f32.mrb[0].mxu0
    %5362 = vmatprep.mubr.f32.mxu0 %v3542
    %5363 = vmatmul.mubr.f32.gmra.mrb[0].mxu0 %v3408
    %v5364 = vpop.f32.mrb[0].mxu0
    %v5365 = vadd.f32 %v4980, %v5364
    %v5366 = vpop.f32.mrb[0].mxu0
    %5367 = vmatprep.mubr.f32.mxu0 %v3544
    %5368 = vmatmul.mubr.f32.gmra.mrb[0].mxu0 %v3222
    %v5369 = vpop.f32.mrb[0].mxu0
    %v5370 = vadd.f32 %v4985, %v5369
    %v5371 = vpop.f32.mrb[0].mxu0
    %5372 = vmatprep.mubr.f32.mxu0 %v3547
    %5373 = vmatmul.mubr.f32.gmra.mrb[0].mxu0 %v3409
    %v5374 = vpop.f32.mrb[0].mxu0
    %v5375 = vadd.f32 %v4990, %v5374
    %v5376 = vpop.f32.mrb[0].mxu0
    %5377 = vmatprep.mubr.f32.mxu0 %v3549
    %5378 = vmatmul.mubr.f32.gmra.mrb[0].mxu0 %v3225
    %v5379 = vpop.f32.mrb[0].mxu0
    %v5380 = vadd.f32 %v4995, %v5379
    %v5381 = vpop.f32.mrb[0].mxu0
    %5382 = vmatprep.mubr.f32.mxu0 %v3552
    %5383 = vmatmul.mubr.f32.gmra.mrb[0].mxu0 %v3410
    %v5384 = vpop.f32.mrb[0].mxu0
    %v5385 = vadd.f32 %v5000, %v5384
    %v5386 = vpop.f32.mrb[0].mxu0
    %5387 = vmatprep.mubr.f32.mxu0 %v3554
    %5388 = vmatmul.mubr.f32.gmra.mrb[0].mxu0 %v3228
    %v5389 = vpop.f32.mrb[0].mxu0
    %v5390 = vadd.f32 %v5005, %v5389
    %v5391 = vpop.f32.mrb[0].mxu0
    %5392 = vmatprep.mubr.f32.mxu0 %v3557
    %5393 = vmatmul.mubr.f32.gmra.mrb[0].mxu0 %v3411
    %v5394 = vpop.f32.mrb[0].mxu0
    %v5395 = vadd.f32 %v5010, %v5394
    %v5396 = vpop.f32.mrb[0].mxu0
    %5397 = vmatprep.mubr.f32.mxu0 %v3559
    %5398 = vmatmul.mubr.f32.gmra.mrb[0].mxu0 %v3231
    %v5399 = vpop.f32.mrb[0].mxu0
    %v5400 = vadd.f32 %v5015, %v5399
    %v5401 = vpop.f32.mrb[0].mxu0
    %5402 = vmatprep.mubr.f32.mxu0 %v3562
    %5403 = vmatmul.mubr.f32.gmra.mrb[0].mxu0 %v3412
    %v5404 = vpop.f32.mrb[0].mxu0
    %v5405 = vadd.f32 %v5020, %v5404
    %v5406 = vpop.f32.mrb[0].mxu0
    %5407 = vmatprep.mubr.f32.mxu0 %v3564
    %5408 = vmatmul.mubr.f32.gmra.mrb[0].mxu0 %v3234
    %v5409 = vpop.f32.mrb[0].mxu0
    %v5410 = vadd.f32 %v5025, %v5409
    %v5411 = vpop.f32.mrb[0].mxu0
    %5412 = vmatprep.mubr.f32.mxu0 %v3567
    %5413 = vmatmul.mubr.f32.gmra.mrb[0].mxu0 %v3413
    %v5414 = vpop.f32.mrb[0].mxu0
    %v5415 = vadd.f32 %v5030, %v5414
    %v5416 = vpop.f32.mrb[0].mxu0
    %5417 = vmatprep.mubr.f32.mxu0 %v3569
    %5418 = vmatmul.mubr.f32.gmra.mrb[0].mxu0 %v3237
    %v5419 = vpop.f32.mrb[0].mxu0
    %v5420 = vadd.f32 %v5035, %v5419
    %v5421 = vpop.f32.mrb[0].mxu0
    %5422 = vmatprep.mubr.f32.mxu0 %v3572
    %5423 = vmatmul.mubr.f32.gmra.mrb[0].mxu0 %v3414
    %v5424 = vpop.f32.mrb[0].mxu0
    %v5425 = vadd.f32 %v5040, %v5424
    %v5426 = vpop.f32.mrb[0].mxu0
    %5427 = vmatprep.mubr.f32.mxu0 %v3574
    %5428 = vmatmul.mubr.f32.gmra.mrb[0].mxu0 %v3240
    %v5429 = vpop.f32.mrb[0].mxu0
    %v5430 = vadd.f32 %v5045, %v5429
    %v5431 = vpop.f32.mrb[0].mxu0
    %5432 = vmatprep.mubr.f32.mxu0 %v3577
    %5433 = vmatmul.mubr.f32.gmra.mrb[0].mxu0 %v3415
    %v5434 = vpop.f32.mrb[0].mxu0
    %v5435 = vadd.f32 %v5050, %v5434
    %v5436 = vpop.f32.mrb[0].mxu0
    %5437 = vmatprep.mubr.f32.mxu0 %v3579
    %5438 = vmatmul.mubr.f32.gmra.mrb[0].mxu0 %v3243
    %v5439 = vpop.f32.mrb[0].mxu0
    %v5440 = vadd.f32 %v5055, %v5439
    %v5441 = vpop.f32.mrb[0].mxu0
    %5442 = vmatprep.mubr.f32.mxu0 %v3582
    %5443 = vmatmul.mubr.f32.gmra.mrb[0].mxu0 %v3416
    %v5444 = vpop.f32.mrb[0].mxu0
    %v5445 = vadd.f32 %v5060, %v5444
    %v5446 = vpop.f32.mrb[0].mxu0
    %5447 = vmatprep.mubr.f32.mxu0 %v3584
    %5448 = vmatmul.mubr.f32.gmra.mrb[0].mxu0 %v3246
    %v5449 = vpop.f32.mrb[0].mxu0
    %v5450 = vadd.f32 %v5065, %v5449
    %v5451 = vpop.f32.mrb[0].mxu0
    %5452 = vmatprep.mubr.f32.mxu0 %v3587
    %5453 = vmatmul.mubr.f32.gmra.mrb[0].mxu0 %v3417
    %v5454 = vpop.f32.mrb[0].mxu0
    %v5455 = vadd.f32 %v5070, %v5454
    %v5456 = vpop.f32.mrb[0].mxu0
    %5457 = vmatprep.mubr.f32.mxu0 %v3589
    %5458 = vmatmul.mubr.f32.gmra.mrb[0].mxu0 %v3249
    %v5459 = vpop.f32.mrb[0].mxu0
    %v5460 = vadd.f32 %v5075, %v5459
    %v5461 = vpop.f32.mrb[0].mxu0
    %5462 = vmatprep.mubr.f32.mxu0 %v3592
    %5463 = vmatmul.mubr.f32.gmra.mrb[0].mxu0 %v3418
    %v5464 = vpop.f32.mrb[0].mxu0
    %v5465 = vadd.f32 %v5080, %v5464
    %v5466 = vpop.f32.mrb[0].mxu0
    %5467 = vmatprep.mubr.f32.mxu0 %v3594
    %5468 = vmatmul.mubr.f32.gmra.mrb[0].mxu0 %v3252
    %v5469 = vpop.f32.mrb[0].mxu0
    %v5470 = vadd.f32 %v5085, %v5469
    %v5471 = vpop.f32.mrb[0].mxu0
    %5472 = vmatprep.mubr.f32.mxu0 %v3597
    %5473 = vmatmul.mubr.f32.gmra.mrb[0].mxu0 %v3419
    %v5474 = vpop.f32.mrb[0].mxu0
    %v5475 = vadd.f32 %v5090, %v5474
    %v5476 = vpop.f32.mrb[0].mxu0
    %5477 = vmatprep.mubr.f32.mxu0 %v3599
    %5478 = vmatmul.mubr.f32.gmra.mrb[0].mxu0 %v3255
    %v5479 = vpop.f32.mrb[0].mxu0
    %v5480 = vadd.f32 %v5095, %v5479
    %v5481 = vpop.f32.mrb[0].mxu0
    %5482 = vmatprep.mubr.f32.mxu0 %v3602
    %5483 = vmatmul.mubr.f32.gmra.mrb[0].mxu0 %v3420
    %v5484 = vpop.f32.mrb[0].mxu0
    %v5485 = vadd.f32 %v5100, %v5484
    %v5486 = vpop.f32.mrb[0].mxu0
    %5487 = vmatprep.mubr.f32.mxu0 %v3604
    %5488 = vmatmul.mubr.f32.gmra.mrb[0].mxu0 %v3258
    %v5489 = vpop.f32.mrb[0].mxu0
    %v5490 = vadd.f32 %v5105, %v5489
    %v5491 = vpop.f32.mrb[0].mxu0
    %5492 = vmatprep.mubr.f32.mxu0 %v3956
    %5493 = vmatmul.mubr.f32.gmra.mrb[0].mxu0 %v3421
    %v5494 = vpop.f32.mrb[0].mxu0
    %v5495 = vadd.f32 %v5110, %v5494
    %v5496 = vpop.f32.mrb[0].mxu0
    %5497 = vmatprep.mubr.f32.mxu0 %v3958
    %5498 = vmatmul.mubr.f32.gmra.mrb[0].mxu0 %v3261
    %v5499 = vpop.f32.mrb[0].mxu0
    %v5500 = vadd.f32 %v5115, %v5499
    %v5501 = vpop.f32.mrb[0].mxu0
    %5502 = vmatprep.mubr.f32.mxu0 %v545
    %5503 = vmatmul.mubr.f32.gmra.mrb[0].mxu0 %v414
    %v5504 = vpop.f32.mrb[0].mxu0
    %v5505 = vadd.f32 %v5120, %v5504
    %v5506 = vpop.f32.mrb[0].mxu0
    %5507 = vmatprep.mubr.f32.mxu0 %v547
    %5508 = vmatmul.mubr.f32.gmra.mrb[0].mxu0 %v219
    %v5509 = vpop.f32.mrb[0].mxu0
    %v5510 = vadd.f32 %v5125, %v5509
    %v5511 = vpop.f32.mrb[0].mxu0
    %5512 = vmatprep.mubr.f32.mxu0 %v3612
    %5513 = vmatmul.mubr.f32.gmra.mrb[0].mxu0 %v3423
    %v5514 = vpop.f32.mrb[0].mxu0
    %v5515 = vadd.f32 %v5130, %v5514
    %v5516 = vpop.f32.mrb[0].mxu0
    %5517 = vmatprep.mubr.f32.mxu0 %v3614
    %5518 = vmatmul.mubr.f32.gmra.mrb[0].mxu0 %v3267
    %v5519 = vpop.f32.mrb[0].mxu0
    %v5520 = vadd.f32 %v5135, %v5519
    %v5521 = vpop.f32.mrb[0].mxu0
    %5522 = vmatprep.mubr.f32.mxu0 %v3617
    %5523 = vmatmul.mubr.f32.gmra.mrb[0].mxu0 %v3424
    %v5524 = vpop.f32.mrb[0].mxu0
    %v5525 = vadd.f32 %v5140, %v5524
    %v5526 = vpop.f32.mrb[0].mxu0
    %5527 = vmatprep.mubr.f32.mxu0 %v3619
    %5528 = vmatmul.mubr.f32.gmra.mrb[0].mxu0 %v3270
    %v5529 = vpop.f32.mrb[0].mxu0
    %v5530 = vadd.f32 %v5145, %v5529
    %v5531 = vpop.f32.mrb[0].mxu0
    %5532 = vmatprep.mubr.f32.mxu0 %v3622
    %5533 = vmatmul.mubr.f32.gmra.mrb[0].mxu0 %v3425
    %v5534 = vpop.f32.mrb[0].mxu0
    %v5535 = vadd.f32 %v5150, %v5534
    %v5536 = vpop.f32.mrb[0].mxu0
    %5537 = vmatprep.mubr.f32.mxu0 %v3624
    %5538 = vmatmul.mubr.f32.gmra.mrb[0].mxu0 %v3273
    %v5539 = vpop.f32.mrb[0].mxu0
    %v5540 = vadd.f32 %v5155, %v5539
    %v5541 = vpop.f32.mrb[0].mxu0
    %5542 = vmatprep.mubr.f32.mxu0 %v3627
    %5543 = vmatmul.mubr.f32.gmra.mrb[0].mxu0 %v3426
    %v5544 = vpop.f32.mrb[0].mxu0
    %v5545 = vadd.f32 %v5160, %v5544
    %v5546 = vpop.f32.mrb[0].mxu0
    %5547 = vmatprep.mubr.f32.mxu0 %v3629
    %5548 = vmatmul.mubr.f32.gmra.mrb[0].mxu0 %v3276
    %v5549 = vpop.f32.mrb[0].mxu0
    %v5550 = vadd.f32 %v5165, %v5549
    %v5551 = vpop.f32.mrb[0].mxu0
    %5552 = vmatprep.mubr.f32.mxu0 %v3632
    %5553 = vmatmul.mubr.f32.gmra.mrb[0].mxu0 %v3427
    %v5554 = vpop.f32.mrb[0].mxu0
    %v5555 = vadd.f32 %v5170, %v5554
    %v5556 = vpop.f32.mrb[0].mxu0
    %5557 = vmatprep.mubr.f32.mxu0 %v3634
    %5558 = vmatmul.mubr.f32.gmra.mrb[0].mxu0 %v3279
    %v5559 = vpop.f32.mrb[0].mxu0
    %v5560 = vadd.f32 %v5175, %v5559
    %v5561 = vpop.f32.mrb[0].mxu0
    %5562 = vmatprep.mubr.f32.mxu0 %v3637
    %5563 = vmatmul.mubr.f32.gmra.mrb[0].mxu0 %v3428
    %v5564 = vpop.f32.mrb[0].mxu0
    %v5565 = vadd.f32 %v5180, %v5564
    %v5566 = vpop.f32.mrb[0].mxu0
    %5567 = vmatprep.mubr.f32.mxu0 %v3639
    %5568 = vmatmul.mubr.f32.gmra.mrb[0].mxu0 %v3282
    %v5569 = vpop.f32.mrb[0].mxu0
    %v5570 = vadd.f32 %v5185, %v5569
    %v5571 = vpop.f32.mrb[0].mxu0
    %5572 = vmatprep.mubr.f32.mxu0 %v3642
    %5573 = vmatmul.mubr.f32.gmra.mrb[0].mxu0 %v3429
    %v5574 = vpop.f32.mrb[0].mxu0
    %v5575 = vadd.f32 %v5190, %v5574
    %v5576 = vpop.f32.mrb[0].mxu0
    %5577 = vmatprep.mubr.f32.mxu0 %v3644
    %5578 = vmatmul.mubr.f32.gmra.mrb[0].mxu0 %v3285
    %v5579 = vpop.f32.mrb[0].mxu0
    %v5580 = vadd.f32 %v5195, %v5579
    %v5581 = vpop.f32.mrb[0].mxu0
    %5582 = vmatprep.mubr.f32.mxu0 %v3647
    %5583 = vmatmul.mubr.f32.gmra.mrb[0].mxu0 %v3430
    %v5584 = vpop.f32.mrb[0].mxu0
    %v5585 = vadd.f32 %v5200, %v5584
    %v5586 = vpop.f32.mrb[0].mxu0
    %5587 = vmatprep.mubr.f32.mxu0 %v3649
    %5588 = vmatmul.mubr.f32.gmra.mrb[0].mxu0 %v3288
    %v5589 = vpop.f32.mrb[0].mxu0
    %v5590 = vadd.f32 %v5205, %v5589
    %v5591 = vpop.f32.mrb[0].mxu0
    %5592 = vmatprep.mubr.f32.mxu0 %v3652
    %5593 = vmatmul.mubr.f32.gmra.mrb[0].mxu0 %v3431
    %v5594 = vpop.f32.mrb[0].mxu0
    %v5595 = vadd.f32 %v5210, %v5594
    %v5596 = vpop.f32.mrb[0].mxu0
    %5597 = vmatprep.mubr.f32.mxu0 %v3654
    %5598 = vmatmul.mubr.f32.gmra.mrb[0].mxu0 %v3291
    %v5599 = vpop.f32.mrb[0].mxu0
    %v5600 = vadd.f32 %v5215, %v5599
    %v5601 = vpop.f32.mrb[0].mxu0
    %5602 = vmatprep.mubr.f32.mxu0 %v3657
    %5603 = vmatmul.mubr.f32.gmra.mrb[0].mxu0 %v3432
    %v5604 = vpop.f32.mrb[0].mxu0
    %v5605 = vadd.f32 %v5220, %v5604
    %v5606 = vpop.f32.mrb[0].mxu0
    %5607 = vmatprep.mubr.f32.mxu0 %v3659
    %5608 = vmatmul.mubr.f32.gmra.mrb[0].mxu0 %v3294
    %v5609 = vpop.f32.mrb[0].mxu0
    %v5610 = vadd.f32 %v5225, %v5609
    %v5611 = vpop.f32.mrb[0].mxu0
    %5612 = vmatprep.mubr.f32.mxu0 %v3662
    %5613 = vmatmul.mubr.f32.gmra.mrb[0].mxu0 %v3433
    %v5614 = vpop.f32.mrb[0].mxu0
    %v5615 = vadd.f32 %v5230, %v5614
    %v5616 = vpop.f32.mrb[0].mxu0
    %5617 = vmatprep.mubr.f32.mxu0 %v3664
    %5618 = vmatmul.mubr.f32.gmra.mrb[0].mxu0 %v3297
    %v5619 = vpop.f32.mrb[0].mxu0
    %v5620 = vadd.f32 %v5235, %v5619
    %v5621 = vpop.f32.mrb[0].mxu0
    %5622 = vmatprep.mubr.f32.mxu0 %v3667
    %5623 = vmatmul.mubr.f32.gmra.mrb[0].mxu0 %v3434
    %v5624 = vpop.f32.mrb[0].mxu0
    %v5625 = vadd.f32 %v5240, %v5624
    %v5626 = vpop.f32.mrb[0].mxu0
    %5627 = vmatprep.mubr.f32.mxu0 %v3669
    %5628 = vmatmul.mubr.f32.gmra.mrb[0].mxu0 %v3300
    %v5629 = vpop.f32.mrb[0].mxu0
    %v5630 = vadd.f32 %v5245, %v5629
    %v5631 = vpop.f32.mrb[0].mxu0
    %5632 = vmatprep.mubr.f32.mxu0 %v3672
    %5633 = vmatmul.mubr.f32.gmra.mrb[0].mxu0 %v3435
    %v5634 = vpop.f32.mrb[0].mxu0
    %v5635 = vadd.f32 %v5250, %v5634
    %v5636 = vpop.f32.mrb[0].mxu0
    %5637 = vmatprep.mubr.f32.mxu0 %v3674
    %5638 = vmatmul.mubr.f32.gmra.mrb[0].mxu0 %v3303
    %v5639 = vpop.f32.mrb[0].mxu0
    %v5640 = vadd.f32 %v5255, %v5639
    %v5641 = vpop.f32.mrb[0].mxu0
    %5642 = vmatprep.mubr.f32.mxu0 %v3677
    %5643 = vmatmul.mubr.f32.gmra.mrb[0].mxu0 %v3436
    %v5644 = vpop.f32.mrb[0].mxu0
    %v5645 = vadd.f32 %v5260, %v5644
    %v5646 = vpop.f32.mrb[0].mxu0
    %5647 = vmatprep.mubr.f32.mxu0 %v3679
    %5648 = vmatmul.mubr.f32.gmra.mrb[0].mxu0 %v3306
    %v5649 = vpop.f32.mrb[0].mxu0
    %v5650 = vadd.f32 %v5265, %v5649
    %v5651 = vpop.f32.mrb[0].mxu0
    %5652 = vmatprep.mubr.f32.mxu0 %v3961
    %5653 = vmatmul.mubr.f32.gmra.mrb[0].mxu0 %v3437
    %v5654 = vpop.f32.mrb[0].mxu0
    %v5655 = vadd.f32 %v5270, %v5654
    %v5656 = vpop.f32.mrb[0].mxu0
    %5657 = vmatprep.mubr.f32.mxu0 %v3963
    %5658 = vmatmul.mubr.f32.gmra.mrb[0].mxu0 %v3309
    %v5659 = vpop.f32.mrb[0].mxu0
    %v5660 = vadd.f32 %v5275, %v5659
    %v5661 = vpop.f32.mrb[0].mxu0
    %5662 = vmatprep.mubr.f32.mxu0 %v545
    %5663 = vmatmul.mubr.f32.gmra.mrb[0].mxu0 %v414
    %v5664 = vpop.f32.mrb[0].mxu0
    %v5665 = vadd.f32 %v5280, %v5664
    %v5666 = vpop.f32.mrb[0].mxu0
    %5667 = vmatprep.mubr.f32.mxu0 %v547
    %5668 = vmatmul.mubr.f32.gmra.mrb[0].mxu0 %v219
    %v5669 = vpop.f32.mrb[0].mxu0
    %v5670 = vadd.f32 %v5285, %v5669
    %v5671 = vpop.f32.mrb[0].mxu0
    %5672 = vdwg.mxu0
    %5673 = vmatprep.subr.mxu0 0.0
    %5674 = vmatpush1.msra.mxu0 %v4110
    %5675 = vmatprep.subr.mxu0 0.0
    %5676 = vmatpush1.msra.mxu0 %v4111
    %5677 = vmatprep.subr.mxu0 0.0
    %5678 = vmatpush1.msra.mxu0 %v4112
    %5679 = vmatprep.subr.mxu0 0.0
    %5680 = vmatpush1.msra.mxu0 %v4113
    %5681 = vmatprep.subr.mxu0 0.0
    %5682 = vmatpush1.msra.mxu0 %v4114
    %5683 = vmatprep.subr.mxu0 0.0
    %5684 = vmatpush1.msra.mxu0 %v4115
    %5685 = vmatprep.subr.mxu0 0.0
    %5686 = vmatpush1.msra.mxu0 %v4116
    %5687 = vmatprep.subr.mxu0 0.0
    %5688 = vmatpush1.msra.mxu0 %v4117
    %5689 = vmatprep.subr.mxu0 0.0
    %5690 = vmatpush1.msra.mxu0 %v4118
    %5691 = vmatprep.subr.mxu0 0.0
    %5692 = vmatpush1.msra.mxu0 %v4119
    %5693 = vmatprep.subr.mxu0 0.0
    %5694 = vmatpush1.msra.mxu0 %v4120
    %5695 = vmatprep.subr.mxu0 0.0
    %5696 = vmatpush1.msra.mxu0 %v4121
    %5697 = vmatprep.subr.mxu0 0.0
    %5698 = vmatpush1.msra.mxu0 %v4122
    %5699 = vmatprep.subr.mxu0 0.0
    %5700 = vmatpush1.msra.mxu0 %v4123
    %5701 = vmatprep.subr.mxu0 0.0
    %5702 = vmatpush1.msra.mxu0 %v4124
    %5703 = vmatprep.subr.mxu0 0.0
    %5704 = vmatpush1.msra.mxu0 %v4125
    %5705 = vmatprep.subr.mxu0 0.0
    %5706 = vmatpush1.msra.mxu0 0.0
    %5707 = vmatprep.subr.mxu0 0.0
    %5708 = vmatpush1.msra.mxu0 0.0
    %5709 = vmatprep.subr.mxu0 0.0
    %5710 = vmatpush1.msra.mxu0 0.0
    %5711 = vmatprep.subr.mxu0 0.0
    %5712 = vmatpush1.msra.mxu0 0.0
    %5713 = vmatprep.subr.mxu0 0.0
    %5714 = vmatpush1.msra.mxu0 0.0
    %5715 = vmatprep.subr.mxu0 0.0
    %5716 = vmatpush1.msra.mxu0 0.0
    %5717 = vmatprep.subr.mxu0 0.0
    %5718 = vmatpush1.msra.mxu0 0.0
    %5719 = vmatprep.subr.mxu0 0.0
    %5720 = vmatpush1.msra.mxu0 0.0
    %5721 = vmatprep.subr.mxu0 0.0
    %5722 = vmatpush1.msra.mxu0 0.0
    %5723 = vmatprep.subr.mxu0 0.0
    %5724 = vmatpush1.msra.mxu0 0.0
    %5725 = vmatprep.subr.mxu0 0.0
    %5726 = vmatpush1.msra.mxu0 0.0
    %5727 = vmatprep.subr.mxu0 0.0
    %5728 = vmatpush1.msra.mxu0 0.0
    %5729 = vmatprep.subr.mxu0 0.0
    %5730 = vmatpush1.msra.mxu0 0.0
    %5731 = vmatprep.subr.mxu0 0.0
    %5732 = vmatpush1.msra.mxu0 0.0
    %5733 = vmatprep.subr.mxu0 0.0
    %5734 = vmatpush1.msra.mxu0 0.0
    %5735 = vmatprep.subr.mxu0 0.0
    %5736 = vmatpush1.msra.mxu0 0.0
    %5737 = vmatprep.mubr.f32.mxu0 0.0
    %5738 = vmatmul.mubr.f32.gmra.mrb[0].mxu0 %v3747
    %v5739 = vpop.f32.mrb[0].mxu0
    %v5740 = vadd.f32 %v5355, %v5739
    %v5741 = vpop.f32.mrb[0].mxu0
    %5742 = vmatprep.mubr.f32.mxu0 0.0
    %5743 = vmatmul.mubr.f32.gmra.mrb[0].mxu0 %v3749
    %v5744 = vpop.f32.mrb[0].mxu0
    %v5745 = vadd.f32 %v5360, %v5744
    %v5746 = vpop.f32.mrb[0].mxu0
    %5747 = vmatprep.mubr.f32.mxu0 0.0
    %5748 = vmatmul.mubr.f32.gmra.mrb[0].mxu0 %v3752
    %v5749 = vpop.f32.mrb[0].mxu0
    %v5750 = vadd.f32 %v5365, %v5749
    %v5751 = vpop.f32.mrb[0].mxu0
    %5752 = vmatprep.mubr.f32.mxu0 0.0
    %5753 = vmatmul.mubr.f32.gmra.mrb[0].mxu0 %v3754
    %v5754 = vpop.f32.mrb[0].mxu0
    %v5755 = vadd.f32 %v5370, %v5754
    %v5756 = vpop.f32.mrb[0].mxu0
    %5757 = vmatprep.mubr.f32.mxu0 0.0
    %5758 = vmatmul.mubr.f32.gmra.mrb[0].mxu0 %v3757
    %v5759 = vpop.f32.mrb[0].mxu0
    %v5760 = vadd.f32 %v5375, %v5759
    %v5761 = vpop.f32.mrb[0].mxu0
    %5762 = vmatprep.mubr.f32.mxu0 0.0
    %5763 = vmatmul.mubr.f32.gmra.mrb[0].mxu0 %v3759
    %v5764 = vpop.f32.mrb[0].mxu0
    %v5765 = vadd.f32 %v5380, %v5764
    %v5766 = vpop.f32.mrb[0].mxu0
    %5767 = vmatprep.mubr.f32.mxu0 0.0
    %5768 = vmatmul.mubr.f32.gmra.mrb[0].mxu0 %v3762
    %v5769 = vpop.f32.mrb[0].mxu0
    %v5770 = vadd.f32 %v5385, %v5769
    %v5771 = vpop.f32.mrb[0].mxu0
    %5772 = vmatprep.mubr.f32.mxu0 0.0
    %5773 = vmatmul.mubr.f32.gmra.mrb[0].mxu0 %v3764
    %v5774 = vpop.f32.mrb[0].mxu0
    %v5775 = vadd.f32 %v5390, %v5774
    %v5776 = vpop.f32.mrb[0].mxu0
    %5777 = vmatprep.mubr.f32.mxu0 0.0
    %5778 = vmatmul.mubr.f32.gmra.mrb[0].mxu0 %v3767
    %v5779 = vpop.f32.mrb[0].mxu0
    %v5780 = vadd.f32 %v5395, %v5779
    %v5781 = vpop.f32.mrb[0].mxu0
    %5782 = vmatprep.mubr.f32.mxu0 0.0
    %5783 = vmatmul.mubr.f32.gmra.mrb[0].mxu0 %v3769
    %v5784 = vpop.f32.mrb[0].mxu0
    %v5785 = vadd.f32 %v5400, %v5784
    %v5786 = vpop.f32.mrb[0].mxu0
    %5787 = vmatprep.mubr.f32.mxu0 0.0
    %5788 = vmatmul.mubr.f32.gmra.mrb[0].mxu0 %v3772
    %v5789 = vpop.f32.mrb[0].mxu0
    %v5790 = vadd.f32 %v5405, %v5789
    %v5791 = vpop.f32.mrb[0].mxu0
    %5792 = vmatprep.mubr.f32.mxu0 0.0
    %5793 = vmatmul.mubr.f32.gmra.mrb[0].mxu0 %v3774
    %v5794 = vpop.f32.mrb[0].mxu0
    %v5795 = vadd.f32 %v5410, %v5794
    %v5796 = vpop.f32.mrb[0].mxu0
    %5797 = vmatprep.mubr.f32.mxu0 0.0
    %5798 = vmatmul.mubr.f32.gmra.mrb[0].mxu0 %v3777
    %v5799 = vpop.f32.mrb[0].mxu0
    %v5800 = vadd.f32 %v5415, %v5799
    %v5801 = vpop.f32.mrb[0].mxu0
    %5802 = vmatprep.mubr.f32.mxu0 0.0
    %5803 = vmatmul.mubr.f32.gmra.mrb[0].mxu0 %v3779
    %v5804 = vpop.f32.mrb[0].mxu0
    %v5805 = vadd.f32 %v5420, %v5804
    %v5806 = vpop.f32.mrb[0].mxu0
    %5807 = vmatprep.mubr.f32.mxu0 0.0
    %5808 = vmatmul.mubr.f32.gmra.mrb[0].mxu0 %v3782
    %v5809 = vpop.f32.mrb[0].mxu0
    %v5810 = vadd.f32 %v5425, %v5809
    %v5811 = vpop.f32.mrb[0].mxu0
    %5812 = vmatprep.mubr.f32.mxu0 0.0
    %5813 = vmatmul.mubr.f32.gmra.mrb[0].mxu0 %v3784
    %v5814 = vpop.f32.mrb[0].mxu0
    %v5815 = vadd.f32 %v5430, %v5814
    %v5816 = vpop.f32.mrb[0].mxu0
    %5817 = vmatprep.mubr.f32.mxu0 0.0
    %5818 = vmatmul.mubr.f32.gmra.mrb[0].mxu0 %v3787
    %v5819 = vpop.f32.mrb[0].mxu0
    %v5820 = vadd.f32 %v5435, %v5819
    %v5821 = vpop.f32.mrb[0].mxu0
    %5822 = vmatprep.mubr.f32.mxu0 0.0
    %5823 = vmatmul.mubr.f32.gmra.mrb[0].mxu0 %v3789
    %v5824 = vpop.f32.mrb[0].mxu0
    %v5825 = vadd.f32 %v5440, %v5824
    %v5826 = vpop.f32.mrb[0].mxu0
    %5827 = vmatprep.mubr.f32.mxu0 0.0
    %5828 = vmatmul.mubr.f32.gmra.mrb[0].mxu0 %v3792
    %v5829 = vpop.f32.mrb[0].mxu0
    %v5830 = vadd.f32 %v5445, %v5829
    %v5831 = vpop.f32.mrb[0].mxu0
    %5832 = vmatprep.mubr.f32.mxu0 0.0
    %5833 = vmatmul.mubr.f32.gmra.mrb[0].mxu0 %v3794
    %v5834 = vpop.f32.mrb[0].mxu0
    %v5835 = vadd.f32 %v5450, %v5834
    %v5836 = vpop.f32.mrb[0].mxu0
    %5837 = vmatprep.mubr.f32.mxu0 0.0
    %5838 = vmatmul.mubr.f32.gmra.mrb[0].mxu0 %v3797
    %v5839 = vpop.f32.mrb[0].mxu0
    %v5840 = vadd.f32 %v5455, %v5839
    %v5841 = vpop.f32.mrb[0].mxu0
    %5842 = vmatprep.mubr.f32.mxu0 0.0
    %5843 = vmatmul.mubr.f32.gmra.mrb[0].mxu0 %v3799
    %v5844 = vpop.f32.mrb[0].mxu0
    %v5845 = vadd.f32 %v5460, %v5844
    %v5846 = vpop.f32.mrb[0].mxu0
    %5847 = vmatprep.mubr.f32.mxu0 0.0
    %5848 = vmatmul.mubr.f32.gmra.mrb[0].mxu0 %v3802
    %v5849 = vpop.f32.mrb[0].mxu0
    %v5850 = vadd.f32 %v5465, %v5849
    %v5851 = vpop.f32.mrb[0].mxu0
    %5852 = vmatprep.mubr.f32.mxu0 0.0
    %5853 = vmatmul.mubr.f32.gmra.mrb[0].mxu0 %v3804
    %v5854 = vpop.f32.mrb[0].mxu0
    %v5855 = vadd.f32 %v5470, %v5854
    %v5856 = vpop.f32.mrb[0].mxu0
    %5857 = vmatprep.mubr.f32.mxu0 0.0
    %5858 = vmatmul.mubr.f32.gmra.mrb[0].mxu0 %v3807
    %v5859 = vpop.f32.mrb[0].mxu0
    %v5860 = vadd.f32 %v5475, %v5859
    %v5861 = vpop.f32.mrb[0].mxu0
    %5862 = vmatprep.mubr.f32.mxu0 0.0
    %5863 = vmatmul.mubr.f32.gmra.mrb[0].mxu0 %v3809
    %v5864 = vpop.f32.mrb[0].mxu0
    %v5865 = vadd.f32 %v5480, %v5864
    %v5866 = vpop.f32.mrb[0].mxu0
    %5867 = vmatprep.mubr.f32.mxu0 0.0
    %5868 = vmatmul.mubr.f32.gmra.mrb[0].mxu0 %v3812
    %v5869 = vpop.f32.mrb[0].mxu0
    %v5870 = vadd.f32 %v5485, %v5869
    %v5871 = vpop.f32.mrb[0].mxu0
    %5872 = vmatprep.mubr.f32.mxu0 0.0
    %5873 = vmatmul.mubr.f32.gmra.mrb[0].mxu0 %v3814
    %v5874 = vpop.f32.mrb[0].mxu0
    %v5875 = vadd.f32 %v5490, %v5874
    %v5876 = vpop.f32.mrb[0].mxu0
    %5877 = vmatprep.mubr.f32.mxu0 0.0
    %5878 = vmatmul.mubr.f32.gmra.mrb[0].mxu0 %v3970
    %v5879 = vpop.f32.mrb[0].mxu0
    %v5880 = vadd.f32 %v5495, %v5879
    %v5881 = vpop.f32.mrb[0].mxu0
    %5882 = vmatprep.mubr.f32.mxu0 0.0
    %5883 = vmatmul.mubr.f32.gmra.mrb[0].mxu0 %v3972
    %v5884 = vpop.f32.mrb[0].mxu0
    %v5885 = vadd.f32 %v5500, %v5884
    %v5886 = vpop.f32.mrb[0].mxu0
    %5887 = vmatprep.mubr.f32.mxu0 0.0
    %5888 = vmatmul.mubr.f32.gmra.mrb[0].mxu0 %v763
    %v5889 = vpop.f32.mrb[0].mxu0
    %v5890 = vadd.f32 %v5505, %v5889
    %v5891 = vpop.f32.mrb[0].mxu0
    %5892 = vmatprep.mubr.f32.mxu0 0.0
    %5893 = vmatmul.mubr.f32.gmra.mrb[0].mxu0 %v765
    %v5894 = vpop.f32.mrb[0].mxu0
    %v5895 = vadd.f32 %v5510, %v5894
    %v5896 = vpop.f32.mrb[0].mxu0
    %5897 = vmatprep.mubr.f32.mxu0 0.0
    %5898 = vmatmul.mubr.f32.gmra.mrb[0].mxu0 %v3822
    %v5899 = vpop.f32.mrb[0].mxu0
    %v5900 = vadd.f32 %v5515, %v5899
    %v5901 = vpop.f32.mrb[0].mxu0
    %5902 = vmatprep.mubr.f32.mxu0 0.0
    %5903 = vmatmul.mubr.f32.gmra.mrb[0].mxu0 %v3824
    %v5904 = vpop.f32.mrb[0].mxu0
    %v5905 = vadd.f32 %v5520, %v5904
    %v5906 = vpop.f32.mrb[0].mxu0
    %5907 = vmatprep.mubr.f32.mxu0 0.0
    %5908 = vmatmul.mubr.f32.gmra.mrb[0].mxu0 %v3827
    %v5909 = vpop.f32.mrb[0].mxu0
    %v5910 = vadd.f32 %v5525, %v5909
    %v5911 = vpop.f32.mrb[0].mxu0
    %5912 = vmatprep.mubr.f32.mxu0 0.0
    %5913 = vmatmul.mubr.f32.gmra.mrb[0].mxu0 %v3829
    %v5914 = vpop.f32.mrb[0].mxu0
    %v5915 = vadd.f32 %v5530, %v5914
    %v5916 = vpop.f32.mrb[0].mxu0
    %5917 = vmatprep.mubr.f32.mxu0 0.0
    %5918 = vmatmul.mubr.f32.gmra.mrb[0].mxu0 %v3832
    %v5919 = vpop.f32.mrb[0].mxu0
    %v5920 = vadd.f32 %v5535, %v5919
    %v5921 = vpop.f32.mrb[0].mxu0
    %5922 = vmatprep.mubr.f32.mxu0 0.0
    %5923 = vmatmul.mubr.f32.gmra.mrb[0].mxu0 %v3834
    %v5924 = vpop.f32.mrb[0].mxu0
    %v5925 = vadd.f32 %v5540, %v5924
    %v5926 = vpop.f32.mrb[0].mxu0
    %5927 = vmatprep.mubr.f32.mxu0 0.0
    %5928 = vmatmul.mubr.f32.gmra.mrb[0].mxu0 %v3837
    %v5929 = vpop.f32.mrb[0].mxu0
    %v5930 = vadd.f32 %v5545, %v5929
    %v5931 = vpop.f32.mrb[0].mxu0
    %5932 = vmatprep.mubr.f32.mxu0 0.0
    %5933 = vmatmul.mubr.f32.gmra.mrb[0].mxu0 %v3839
    %v5934 = vpop.f32.mrb[0].mxu0
    %v5935 = vadd.f32 %v5550, %v5934
    %v5936 = vpop.f32.mrb[0].mxu0
    %5937 = vmatprep.mubr.f32.mxu0 0.0
    %5938 = vmatmul.mubr.f32.gmra.mrb[0].mxu0 %v3842
    %v5939 = vpop.f32.mrb[0].mxu0
    %v5940 = vadd.f32 %v5555, %v5939
    %v5941 = vpop.f32.mrb[0].mxu0
    %5942 = vmatprep.mubr.f32.mxu0 0.0
    %5943 = vmatmul.mubr.f32.gmra.mrb[0].mxu0 %v3844
    %v5944 = vpop.f32.mrb[0].mxu0
    %v5945 = vadd.f32 %v5560, %v5944
    %v5946 = vpop.f32.mrb[0].mxu0
    %5947 = vmatprep.mubr.f32.mxu0 0.0
    %5948 = vmatmul.mubr.f32.gmra.mrb[0].mxu0 %v3847
    %v5949 = vpop.f32.mrb[0].mxu0
    %v5950 = vadd.f32 %v5565, %v5949
    %v5951 = vpop.f32.mrb[0].mxu0
    %5952 = vmatprep.mubr.f32.mxu0 0.0
    %5953 = vmatmul.mubr.f32.gmra.mrb[0].mxu0 %v3849
    %v5954 = vpop.f32.mrb[0].mxu0
    %v5955 = vadd.f32 %v5570, %v5954
    %v5956 = vpop.f32.mrb[0].mxu0
    %5957 = vmatprep.mubr.f32.mxu0 0.0
    %5958 = vmatmul.mubr.f32.gmra.mrb[0].mxu0 %v3852
    %v5959 = vpop.f32.mrb[0].mxu0
    %v5960 = vadd.f32 %v5575, %v5959
    %v5961 = vpop.f32.mrb[0].mxu0
    %5962 = vmatprep.mubr.f32.mxu0 0.0
    %5963 = vmatmul.mubr.f32.gmra.mrb[0].mxu0 %v3854
    %v5964 = vpop.f32.mrb[0].mxu0
    %v5965 = vadd.f32 %v5580, %v5964
    %v5966 = vpop.f32.mrb[0].mxu0
    %5967 = vmatprep.mubr.f32.mxu0 0.0
    %5968 = vmatmul.mubr.f32.gmra.mrb[0].mxu0 %v3857
    %v5969 = vpop.f32.mrb[0].mxu0
    %v5970 = vadd.f32 %v5585, %v5969
    %v5971 = vpop.f32.mrb[0].mxu0
    %5972 = vmatprep.mubr.f32.mxu0 0.0
    %5973 = vmatmul.mubr.f32.gmra.mrb[0].mxu0 %v3859
    %v5974 = vpop.f32.mrb[0].mxu0
    %v5975 = vadd.f32 %v5590, %v5974
    %v5976 = vpop.f32.mrb[0].mxu0
    %5977 = vmatprep.mubr.f32.mxu0 0.0
    %5978 = vmatmul.mubr.f32.gmra.mrb[0].mxu0 %v3862
    %v5979 = vpop.f32.mrb[0].mxu0
    %v5980 = vadd.f32 %v5595, %v5979
    %v5981 = vpop.f32.mrb[0].mxu0
    %5982 = vmatprep.mubr.f32.mxu0 0.0
    %5983 = vmatmul.mubr.f32.gmra.mrb[0].mxu0 %v3864
    %v5984 = vpop.f32.mrb[0].mxu0
    %v5985 = vadd.f32 %v5600, %v5984
    %v5986 = vpop.f32.mrb[0].mxu0
    %5987 = vmatprep.mubr.f32.mxu0 0.0
    %5988 = vmatmul.mubr.f32.gmra.mrb[0].mxu0 %v3867
    %v5989 = vpop.f32.mrb[0].mxu0
    %v5990 = vadd.f32 %v5605, %v5989
    %v5991 = vpop.f32.mrb[0].mxu0
    %5992 = vmatprep.mubr.f32.mxu0 0.0
    %5993 = vmatmul.mubr.f32.gmra.mrb[0].mxu0 %v3869
    %v5994 = vpop.f32.mrb[0].mxu0
    %v5995 = vadd.f32 %v5610, %v5994
    %v5996 = vpop.f32.mrb[0].mxu0
    %5997 = vmatprep.mubr.f32.mxu0 0.0
    %5998 = vmatmul.mubr.f32.gmra.mrb[0].mxu0 %v3872
    %v5999 = vpop.f32.mrb[0].mxu0
    %v6000 = vadd.f32 %v5615, %v5999
    %v6001 = vpop.f32.mrb[0].mxu0
    %6002 = vmatprep.mubr.f32.mxu0 0.0
    %6003 = vmatmul.mubr.f32.gmra.mrb[0].mxu0 %v3874
    %v6004 = vpop.f32.mrb[0].mxu0
    %v6005 = vadd.f32 %v5620, %v6004
    %v6006 = vpop.f32.mrb[0].mxu0
    %6007 = vmatprep.mubr.f32.mxu0 0.0
    %6008 = vmatmul.mubr.f32.gmra.mrb[0].mxu0 %v3877
    %v6009 = vpop.f32.mrb[0].mxu0
    %v6010 = vadd.f32 %v5625, %v6009
    %v6011 = vpop.f32.mrb[0].mxu0
    %6012 = vmatprep.mubr.f32.mxu0 0.0
    %6013 = vmatmul.mubr.f32.gmra.mrb[0].mxu0 %v3879
    %v6014 = vpop.f32.mrb[0].mxu0
    %v6015 = vadd.f32 %v5630, %v6014
    %v6016 = vpop.f32.mrb[0].mxu0
    %6017 = vmatprep.mubr.f32.mxu0 0.0
    %6018 = vmatmul.mubr.f32.gmra.mrb[0].mxu0 %v3882
    %v6019 = vpop.f32.mrb[0].mxu0
    %v6020 = vadd.f32 %v5635, %v6019
    %v6021 = vpop.f32.mrb[0].mxu0
    %6022 = vmatprep.mubr.f32.mxu0 0.0
    %6023 = vmatmul.mubr.f32.gmra.mrb[0].mxu0 %v3884
    %v6024 = vpop.f32.mrb[0].mxu0
    %v6025 = vadd.f32 %v5640, %v6024
    %v6026 = vpop.f32.mrb[0].mxu0
    %6027 = vmatprep.mubr.f32.mxu0 0.0
    %6028 = vmatmul.mubr.f32.gmra.mrb[0].mxu0 %v3887
    %v6029 = vpop.f32.mrb[0].mxu0
    %v6030 = vadd.f32 %v5645, %v6029
    %v6031 = vpop.f32.mrb[0].mxu0
    %6032 = vmatprep.mubr.f32.mxu0 0.0
    %6033 = vmatmul.mubr.f32.gmra.mrb[0].mxu0 %v3889
    %v6034 = vpop.f32.mrb[0].mxu0
    %v6035 = vadd.f32 %v5650, %v6034
    %v6036 = vpop.f32.mrb[0].mxu0
    %6037 = vmatprep.mubr.f32.mxu0 0.0
    %6038 = vmatmul.mubr.f32.gmra.mrb[0].mxu0 %v3975
    %v6039 = vpop.f32.mrb[0].mxu0
    %v6040 = vadd.f32 %v5655, %v6039
    %v6041 = vpop.f32.mrb[0].mxu0
    %6042 = vmatprep.mubr.f32.mxu0 0.0
    %6043 = vmatmul.mubr.f32.gmra.mrb[0].mxu0 %v3977
    %v6044 = vpop.f32.mrb[0].mxu0
    %v6045 = vadd.f32 %v5660, %v6044
    %v6046 = vpop.f32.mrb[0].mxu0
    %6047 = vmatprep.mubr.f32.mxu0 0.0
    %6048 = vmatmul.mubr.f32.gmra.mrb[0].mxu0 %v763
    %v6049 = vpop.f32.mrb[0].mxu0
    %v6050 = vadd.f32 %v5665, %v6049
    %v6051 = vpop.f32.mrb[0].mxu0
    %6052 = vmatprep.mubr.f32.mxu0 0.0
    %6053 = vmatmul.mubr.f32.gmra.mrb[0].mxu0 %v765
    %v6054 = vpop.f32.mrb[0].mxu0
    %v6055 = vadd.f32 %v5670, %v6054
    %v6056 = vpop.f32.mrb[0].mxu0
    %6057 = vdwg.mxu0
    %v6058 = vmax.f32 %v5740, 0.0
    %v6059 = vmax.f32 %v5745, 0.0
    %v6060 = vmax.f32 %v5750, 0.0
    %v6061 = vmax.f32 %v5755, 0.0
    %v6062 = vmax.f32 %v5760, 0.0
    %v6063 = vmax.f32 %v5765, 0.0
    %v6064 = vmax.f32 %v5770, 0.0
    %v6065 = vmax.f32 %v5775, 0.0
    %v6066 = vmax.f32 %v5780, 0.0
    %v6067 = vmax.f32 %v5785, 0.0
    %v6068 = vmax.f32 %v5790, 0.0
    %v6069 = vmax.f32 %v5795, 0.0
    %v6070 = vmax.f32 %v5800, 0.0
    %v6071 = vmax.f32 %v5805, 0.0
    %v6072 = vmax.f32 %v5810, 0.0
    %v6073 = vmax.f32 %v5815, 0.0
    %v6074 = vmax.f32 %v5820, 0.0
    %v6075 = vmax.f32 %v5825, 0.0
    %v6076 = vmax.f32 %v5830, 0.0
    %v6077 = vmax.f32 %v5835, 0.0
    %v6078 = vmax.f32 %v5840, 0.0
    %v6079 = vmax.f32 %v5845, 0.0
    %v6080 = vmax.f32 %v5850, 0.0
    %v6081 = vmax.f32 %v5855, 0.0
    %v6082 = vmax.f32 %v5860, 0.0
    %v6083 = vmax.f32 %v5865, 0.0
    %v6084 = vmax.f32 %v5870, 0.0
    %v6085 = vmax.f32 %v5875, 0.0
    %v6086 = vmax.f32 %v5880, 0.0
    %v6087 = vmax.f32 %v5885, 0.0
    %v6088 = vmax.f32 %v5890, 0.0
    %v6089 = vmax.f32 %v5895, 0.0
    %v6090 = vmax.f32 %v5900, 0.0
    %v6091 = vmax.f32 %v5905, 0.0
    %v6092 = vmax.f32 %v5910, 0.0
    %v6093 = vmax.f32 %v5915, 0.0
    %v6094 = vmax.f32 %v5920, 0.0
    %v6095 = vmax.f32 %v5925, 0.0
    %v6096 = vmax.f32 %v5930, 0.0
    %v6097 = vmax.f32 %v5935, 0.0
    %v6098 = vmax.f32 %v5940, 0.0
    %v6099 = vmax.f32 %v5945, 0.0
    %v6100 = vmax.f32 %v5950, 0.0
    %v6101 = vmax.f32 %v5955, 0.0
    %v6102 = vmax.f32 %v5960, 0.0
    %v6103 = vmax.f32 %v5965, 0.0
    %v6104 = vmax.f32 %v5970, 0.0
    %v6105 = vmax.f32 %v5975, 0.0
    %v6106 = vmax.f32 %v5980, 0.0
    %v6107 = vmax.f32 %v5985, 0.0
    %v6108 = vmax.f32 %v5990, 0.0
    %v6109 = vmax.f32 %v5995, 0.0
    %v6110 = vmax.f32 %v6000, 0.0
    %v6111 = vmax.f32 %v6005, 0.0
    %v6112 = vmax.f32 %v6010, 0.0
    %v6113 = vmax.f32 %v6015, 0.0
    %v6114 = vmax.f32 %v6020, 0.0
    %v6115 = vmax.f32 %v6025, 0.0
    %v6116 = vmax.f32 %v6030, 0.0
    %v6117 = vmax.f32 %v6035, 0.0
    %v6118 = vmax.f32 %v6040, 0.0
    %v6119 = vmax.f32 %v6045, 0.0
    %v6120 = vmax.f32 %v6050, 0.0
    %v6121 = vmax.f32 %v6055, 0.0
    %v6122 = vadd.f32 %v6058, %v6059
    %v6123 = vadd.f32 %v6122, %v6060
    %v6124 = vadd.f32 %v6123, %v6061
    %v6125 = vadd.f32 %v6124, %v6062
    %v6126 = vadd.f32 %v6125, %v6063
    %v6127 = vadd.f32 %v6126, %v6064
    %v6128 = vadd.f32 %v6127, %v6065
    %v6129 = vadd.f32 %v6128, %v6066
    %v6130 = vadd.f32 %v6129, %v6067
    %v6131 = vadd.f32 %v6130, %v6068
    %v6132 = vadd.f32 %v6131, %v6069
    %v6133 = vadd.f32 %v6132, %v6070
    %v6134 = vadd.f32 %v6133, %v6071
    %v6135 = vadd.f32 %v6134, %v6072
    %v6136 = vadd.f32 %v6135, %v6073
    %v6137 = vadd.f32 %v6136, %v6074
    %v6138 = vadd.f32 %v6137, %v6075
    %v6139 = vadd.f32 %v6138, %v6076
    %v6140 = vadd.f32 %v6139, %v6077
    %v6141 = vadd.f32 %v6140, %v6078
    %v6142 = vadd.f32 %v6141, %v6079
    %v6143 = vadd.f32 %v6142, %v6080
    %v6144 = vadd.f32 %v6143, %v6081
    %v6145 = vadd.f32 %v6144, %v6082
    %v6146 = vadd.f32 %v6145, %v6083
    %v6147 = vadd.f32 %v6146, %v6084
    %v6148 = vadd.f32 %v6147, %v6085
    %v6149 = vadd.f32 %v6148, %v6086
    %v6150 = vadd.f32 %v6149, %v6087
    %v6151 = vadd.f32 %v6150, %v6088
    %v6152 = vadd.f32 %v6151, %v6089
    %v6153 = vadd.f32 %v6152, %v6090
    %v6154 = vadd.f32 %v6153, %v6091
    %v6155 = vadd.f32 %v6154, %v6092
    %v6156 = vadd.f32 %v6155, %v6093
    %v6157 = vadd.f32 %v6156, %v6094
    %v6158 = vadd.f32 %v6157, %v6095
    %v6159 = vadd.f32 %v6158, %v6096
    %v6160 = vadd.f32 %v6159, %v6097
    %v6161 = vadd.f32 %v6160, %v6098
    %v6162 = vadd.f32 %v6161, %v6099
    %v6163 = vadd.f32 %v6162, %v6100
    %v6164 = vadd.f32 %v6163, %v6101
    %v6165 = vadd.f32 %v6164, %v6102
    %v6166 = vadd.f32 %v6165, %v6103
    %v6167 = vadd.f32 %v6166, %v6104
    %v6168 = vadd.f32 %v6167, %v6105
    %v6169 = vadd.f32 %v6168, %v6106
    %v6170 = vadd.f32 %v6169, %v6107
    %v6171 = vadd.f32 %v6170, %v6108
    %v6172 = vadd.f32 %v6171, %v6109
    %v6173 = vadd.f32 %v6172, %v6110
    %v6174 = vadd.f32 %v6173, %v6111
    %v6175 = vadd.f32 %v6174, %v6112
    %v6176 = vadd.f32 %v6175, %v6113
    %v6177 = vadd.f32 %v6176, %v6114
    %v6178 = vadd.f32 %v6177, %v6115
    %v6179 = vadd.f32 %v6178, %v6116
    %v6180 = vadd.f32 %v6179, %v6117
    %v6181 = vadd.f32 %v6180, %v6118
    %v6182 = vadd.f32 %v6181, %v6119
    %v6183 = vadd.f32 %v6182, %v6120
    %v6184 = vadd.f32 %v6183, %v6121
    %v6185 = vrot.slane %v6184, 4
    %v6186 = vadd.f32 %v6184, %v6185
    %v6187 = vrot.slane %v6186, 2
    %v6188 = vadd.f32 %v6186, %v6187
    %v6189 = vrot.slane %v6188, 1
    %v6190 = vadd.f32 %v6188, %v6189
    %v6191 = vrcp.pop 512.0
    %v6192 = vmul.f32 %v6190, %v6191
    %v6193 = vsub.f32 %v6058, %v6192
    %v6194 = vsub.f32 %v6059, %v6192
    %v6195 = vsub.f32 %v6060, %v6192
    %v6196 = vsub.f32 %v6061, %v6192
    %v6197 = vsub.f32 %v6062, %v6192
    %v6198 = vsub.f32 %v6063, %v6192
    %v6199 = vsub.f32 %v6064, %v6192
    %v6200 = vsub.f32 %v6065, %v6192
    %v6201 = vsub.f32 %v6066, %v6192
    %v6202 = vsub.f32 %v6067, %v6192
    %v6203 = vsub.f32 %v6068, %v6192
    %v6204 = vsub.f32 %v6069, %v6192
    %v6205 = vsub.f32 %v6070, %v6192
    %v6206 = vsub.f32 %v6071, %v6192
    %v6207 = vsub.f32 %v6072, %v6192
    %v6208 = vsub.f32 %v6073, %v6192
    %v6209 = vsub.f32 %v6074, %v6192
    %v6210 = vsub.f32 %v6075, %v6192
    %v6211 = vsub.f32 %v6076, %v6192
    %v6212 = vsub.f32 %v6077, %v6192
    %v6213 = vsub.f32 %v6078, %v6192
    %v6214 = vsub.f32 %v6079, %v6192
    %v6215 = vsub.f32 %v6080, %v6192
    %v6216 = vsub.f32 %v6081, %v6192
    %v6217 = vsub.f32 %v6082, %v6192
    %v6218 = vsub.f32 %v6083, %v6192
    %v6219 = vsub.f32 %v6084, %v6192
    %v6220 = vsub.f32 %v6085, %v6192
    %v6221 = vsub.f32 %v6086, %v6192
    %v6222 = vsub.f32 %v6087, %v6192
    %v6223 = vsub.f32 %v6088, %v6192
    %v6224 = vsub.f32 %v6089, %v6192
    %v6225 = vsub.f32 %v6090, %v6192
    %v6226 = vsub.f32 %v6091, %v6192
    %v6227 = vsub.f32 %v6092, %v6192
    %v6228 = vsub.f32 %v6093, %v6192
    %v6229 = vsub.f32 %v6094, %v6192
    %v6230 = vsub.f32 %v6095, %v6192
    %v6231 = vsub.f32 %v6096, %v6192
    %v6232 = vsub.f32 %v6097, %v6192
    %v6233 = vsub.f32 %v6098, %v6192
    %v6234 = vsub.f32 %v6099, %v6192
    %v6235 = vsub.f32 %v6100, %v6192
    %v6236 = vsub.f32 %v6101, %v6192
    %v6237 = vsub.f32 %v6102, %v6192
    %v6238 = vsub.f32 %v6103, %v6192
    %v6239 = vsub.f32 %v6104, %v6192
    %v6240 = vsub.f32 %v6105, %v6192
    %v6241 = vsub.f32 %v6106, %v6192
    %v6242 = vsub.f32 %v6107, %v6192
    %v6243 = vsub.f32 %v6108, %v6192
    %v6244 = vsub.f32 %v6109, %v6192
    %v6245 = vsub.f32 %v6110, %v6192
    %v6246 = vsub.f32 %v6111, %v6192
    %v6247 = vsub.f32 %v6112, %v6192
    %v6248 = vsub.f32 %v6113, %v6192
    %v6249 = vsub.f32 %v6114, %v6192
    %v6250 = vsub.f32 %v6115, %v6192
    %v6251 = vsub.f32 %v6116, %v6192
    %v6252 = vsub.f32 %v6117, %v6192
    %v6253 = vsub.f32 %v6118, %v6192
    %v6254 = vsub.f32 %v6119, %v6192
    %v6255 = vsub.f32 %v6120, %v6192
    %v6256 = vsub.f32 %v6121, %v6192
    %v6257 = vmul.f32 %v6193, %v6193
    %v6258 = vmul.f32 %v6194, %v6194
    %v6259 = vmul.f32 %v6195, %v6195
    %v6260 = vmul.f32 %v6196, %v6196
    %v6261 = vmul.f32 %v6197, %v6197
    %v6262 = vmul.f32 %v6198, %v6198
    %v6263 = vmul.f32 %v6199, %v6199
    %v6264 = vmul.f32 %v6200, %v6200
    %v6265 = vmul.f32 %v6201, %v6201
    %v6266 = vmul.f32 %v6202, %v6202
    %v6267 = vmul.f32 %v6203, %v6203
    %v6268 = vmul.f32 %v6204, %v6204
    %v6269 = vmul.f32 %v6205, %v6205
    %v6270 = vmul.f32 %v6206, %v6206
    %v6271 = vmul.f32 %v6207, %v6207
    %v6272 = vmul.f32 %v6208, %v6208
    %v6273 = vmul.f32 %v6209, %v6209
    %v6274 = vmul.f32 %v6210, %v6210
    %v6275 = vmul.f32 %v6211, %v6211
    %v6276 = vmul.f32 %v6212, %v6212
    %v6277 = vmul.f32 %v6213, %v6213
    %v6278 = vmul.f32 %v6214, %v6214
    %v6279 = vmul.f32 %v6215, %v6215
    %v6280 = vmul.f32 %v6216, %v6216
    %v6281 = vmul.f32 %v6217, %v6217
    %v6282 = vmul.f32 %v6218, %v6218
    %v6283 = vmul.f32 %v6219, %v6219
    %v6284 = vmul.f32 %v6220, %v6220
    %v6285 = vmul.f32 %v6221, %v6221
    %v6286 = vmul.f32 %v6222, %v6222
    %v6287 = vmul.f32 %v6223, %v6223
    %v6288 = vmul.f32 %v6224, %v6224
    %v6289 = vmul.f32 %v6225, %v6225
    %v6290 = vmul.f32 %v6226, %v6226
    %v6291 = vmul.f32 %v6227, %v6227
    %v6292 = vmul.f32 %v6228, %v6228
    %v6293 = vmul.f32 %v6229, %v6229
    %v6294 = vmul.f32 %v6230, %v6230
    %v6295 = vmul.f32 %v6231, %v6231
    %v6296 = vmul.f32 %v6232, %v6232
    %v6297 = vmul.f32 %v6233, %v6233
    %v6298 = vmul.f32 %v6234, %v6234
    %v6299 = vmul.f32 %v6235, %v6235
    %v6300 = vmul.f32 %v6236, %v6236
    %v6301 = vmul.f32 %v6237, %v6237
    %v6302 = vmul.f32 %v6238, %v6238
    %v6303 = vmul.f32 %v6239, %v6239
    %v6304 = vmul.f32 %v6240, %v6240
    %v6305 = vmul.f32 %v6241, %v6241
    %v6306 = vmul.f32 %v6242, %v6242
    %v6307 = vmul.f32 %v6243, %v6243
    %v6308 = vmul.f32 %v6244, %v6244
    %v6309 = vmul.f32 %v6245, %v6245
    %v6310 = vmul.f32 %v6246, %v6246
    %v6311 = vmul.f32 %v6247, %v6247
    %v6312 = vmul.f32 %v6248, %v6248
    %v6313 = vmul.f32 %v6249, %v6249
    %v6314 = vmul.f32 %v6250, %v6250
    %v6315 = vmul.f32 %v6251, %v6251
    %v6316 = vmul.f32 %v6252, %v6252
    %v6317 = vmul.f32 %v6253, %v6253
    %v6318 = vmul.f32 %v6254, %v6254
    %v6319 = vmul.f32 %v6255, %v6255
    %v6320 = vmul.f32 %v6256, %v6256
    %v6321 = vadd.f32 %v6257, %v6258
    %v6322 = vadd.f32 %v6321, %v6259
    %v6323 = vadd.f32 %v6322, %v6260
    %v6324 = vadd.f32 %v6323, %v6261
    %v6325 = vadd.f32 %v6324, %v6262
    %v6326 = vadd.f32 %v6325, %v6263
    %v6327 = vadd.f32 %v6326, %v6264
    %v6328 = vadd.f32 %v6327, %v6265
    %v6329 = vadd.f32 %v6328, %v6266
    %v6330 = vadd.f32 %v6329, %v6267
    %v6331 = vadd.f32 %v6330, %v6268
    %v6332 = vadd.f32 %v6331, %v6269
    %v6333 = vadd.f32 %v6332, %v6270
    %v6334 = vadd.f32 %v6333, %v6271
    %v6335 = vadd.f32 %v6334, %v6272
    %v6336 = vadd.f32 %v6335, %v6273
    %v6337 = vadd.f32 %v6336, %v6274
    %v6338 = vadd.f32 %v6337, %v6275
    %v6339 = vadd.f32 %v6338, %v6276
    %v6340 = vadd.f32 %v6339, %v6277
    %v6341 = vadd.f32 %v6340, %v6278
    %v6342 = vadd.f32 %v6341, %v6279
    %v6343 = vadd.f32 %v6342, %v6280
    %v6344 = vadd.f32 %v6343, %v6281
    %v6345 = vadd.f32 %v6344, %v6282
    %v6346 = vadd.f32 %v6345, %v6283
    %v6347 = vadd.f32 %v6346, %v6284
    %v6348 = vadd.f32 %v6347, %v6285
    %v6349 = vadd.f32 %v6348, %v6286
    %v6350 = vadd.f32 %v6349, %v6287
    %v6351 = vadd.f32 %v6350, %v6288
    %v6352 = vadd.f32 %v6351, %v6289
    %v6353 = vadd.f32 %v6352, %v6290
    %v6354 = vadd.f32 %v6353, %v6291
    %v6355 = vadd.f32 %v6354, %v6292
    %v6356 = vadd.f32 %v6355, %v6293
    %v6357 = vadd.f32 %v6356, %v6294
    %v6358 = vadd.f32 %v6357, %v6295
    %v6359 = vadd.f32 %v6358, %v6296
    %v6360 = vadd.f32 %v6359, %v6297
    %v6361 = vadd.f32 %v6360, %v6298
    %v6362 = vadd.f32 %v6361, %v6299
    %v6363 = vadd.f32 %v6362, %v6300
    %v6364 = vadd.f32 %v6363, %v6301
    %v6365 = vadd.f32 %v6364, %v6302
    %v6366 = vadd.f32 %v6365, %v6303
    %v6367 = vadd.f32 %v6366, %v6304
    %v6368 = vadd.f32 %v6367, %v6305
    %v6369 = vadd.f32 %v6368, %v6306
    %v6370 = vadd.f32 %v6369, %v6307
    %v6371 = vadd.f32 %v6370, %v6308
    %v6372 = vadd.f32 %v6371, %v6309
    %v6373 = vadd.f32 %v6372, %v6310
    %v6374 = vadd.f32 %v6373, %v6311
    %v6375 = vadd.f32 %v6374, %v6312
    %v6376 = vadd.f32 %v6375, %v6313
    %v6377 = vadd.f32 %v6376, %v6314
    %v6378 = vadd.f32 %v6377, %v6315
    %v6379 = vadd.f32 %v6378, %v6316
    %v6380 = vadd.f32 %v6379, %v6317
    %v6381 = vadd.f32 %v6380, %v6318
    %v6382 = vadd.f32 %v6381, %v6319
    %v6383 = vadd.f32 %v6382, %v6320
    %v6384 = vrot.slane %v6383, 4
    %v6385 = vadd.f32 %v6383, %v6384
    %v6386 = vrot.slane %v6385, 2
    %v6387 = vadd.f32 %v6385, %v6386
    %v6388 = vrot.slane %v6387, 1
    %v6389 = vadd.f32 %v6387, %v6388
    %v6390 = vmul.f32 %v6389, %v6191
    %v6391 = vld [vmem:[%s7] sm:$0x1]
    %v6392 = vadd.f32 %v6390, 1e-05
    %v6393 = vrsqrt.pop %v6392
    %v6394 = vmul.f32 %v6391, %v6393
    %v6395 = vld [vmem:[%s8] sm:$0x1]
    %v6396 = vmul.f32 %v6192, %v6394
    %v6397 = vsub.f32 %v6395, %v6396
    %v6399 = vlaneseq
    %v6400 = vshrl.u32 %v6399, 7
    %v6401 = vsub.s32 0, %v6400
    %v6402 = vrot.slane %v6394, %v6401
    %v6404 = vmul.f32 %v6058, %v6402
    %v6405 = vmul.f32 %v6059, %v6402
    %v6406 = vmul.f32 %v6060, %v6402
    %v6407 = vmul.f32 %v6061, %v6402
    %v6408 = vmul.f32 %v6062, %v6402
    %v6409 = vmul.f32 %v6063, %v6402
    %v6410 = vmul.f32 %v6064, %v6402
    %v6411 = vmul.f32 %v6065, %v6402
    %v6412 = vmul.f32 %v6066, %v6402
    %v6413 = vmul.f32 %v6067, %v6402
    %v6414 = vmul.f32 %v6068, %v6402
    %v6415 = vmul.f32 %v6069, %v6402
    %v6416 = vmul.f32 %v6070, %v6402
    %v6417 = vmul.f32 %v6071, %v6402
    %v6418 = vmul.f32 %v6072, %v6402
    %v6419 = vmul.f32 %v6073, %v6402
    %v6420 = vmul.f32 %v6074, %v6402
    %v6421 = vmul.f32 %v6075, %v6402
    %v6422 = vmul.f32 %v6076, %v6402
    %v6423 = vmul.f32 %v6077, %v6402
    %v6424 = vmul.f32 %v6078, %v6402
    %v6425 = vmul.f32 %v6079, %v6402
    %v6426 = vmul.f32 %v6080, %v6402
    %v6427 = vmul.f32 %v6081, %v6402
    %v6428 = vmul.f32 %v6082, %v6402
    %v6429 = vmul.f32 %v6083, %v6402
    %v6430 = vmul.f32 %v6084, %v6402
    %v6431 = vmul.f32 %v6085, %v6402
    %v6432 = vmul.f32 %v6086, %v6402
    %v6433 = vmul.f32 %v6087, %v6402
    %v6434 = vmul.f32 %v6088, %v6402
    %v6435 = vmul.f32 %v6089, %v6402
    %v6436 = vmul.f32 %v6090, %v6402
    %v6437 = vmul.f32 %v6091, %v6402
    %v6438 = vmul.f32 %v6092, %v6402
    %v6439 = vmul.f32 %v6093, %v6402
    %v6440 = vmul.f32 %v6094, %v6402
    %v6441 = vmul.f32 %v6095, %v6402
    %v6442 = vmul.f32 %v6096, %v6402
    %v6443 = vmul.f32 %v6097, %v6402
    %v6444 = vmul.f32 %v6098, %v6402
    %v6445 = vmul.f32 %v6099, %v6402
    %v6446 = vmul.f32 %v6100, %v6402
    %v6447 = vmul.f32 %v6101, %v6402
    %v6448 = vmul.f32 %v6102, %v6402
    %v6449 = vmul.f32 %v6103, %v6402
    %v6450 = vmul.f32 %v6104, %v6402
    %v6451 = vmul.f32 %v6105, %v6402
    %v6452 = vmul.f32 %v6106, %v6402
    %v6453 = vmul.f32 %v6107, %v6402
    %v6454 = vmul.f32 %v6108, %v6402
    %v6455 = vmul.f32 %v6109, %v6402
    %v6456 = vmul.f32 %v6110, %v6402
    %v6457 = vmul.f32 %v6111, %v6402
    %v6458 = vmul.f32 %v6112, %v6402
    %v6459 = vmul.f32 %v6113, %v6402
    %v6460 = vmul.f32 %v6114, %v6402
    %v6461 = vmul.f32 %v6115, %v6402
    %v6462 = vmul.f32 %v6116, %v6402
    %v6463 = vmul.f32 %v6117, %v6402
    %v6464 = vmul.f32 %v6118, %v6402
    %v6465 = vmul.f32 %v6119, %v6402
    %v6466 = vmul.f32 %v6120, %v6402
    %v6467 = vmul.f32 %v6121, %v6402
    %v6469 = vlaneseq
    %v6470 = vshrl.u32 %v6469, 7
    %v6471 = vsub.s32 0, %v6470
    %v6472 = vrot.slane %v6397, %v6471
    %v6474 = vadd.f32 %v6404, %v6472
    %v6475 = vadd.f32 %v6405, %v6472
    %v6476 = vadd.f32 %v6406, %v6472
    %v6477 = vadd.f32 %v6407, %v6472
    %v6478 = vadd.f32 %v6408, %v6472
    %v6479 = vadd.f32 %v6409, %v6472
    %v6480 = vadd.f32 %v6410, %v6472
    %v6481 = vadd.f32 %v6411, %v6472
    %v6482 = vadd.f32 %v6412, %v6472
    %v6483 = vadd.f32 %v6413, %v6472
    %v6484 = vadd.f32 %v6414, %v6472
    %v6485 = vadd.f32 %v6415, %v6472
    %v6486 = vadd.f32 %v6416, %v6472
    %v6487 = vadd.f32 %v6417, %v6472
    %v6488 = vadd.f32 %v6418, %v6472
    %v6489 = vadd.f32 %v6419, %v6472
    %v6490 = vadd.f32 %v6420, %v6472
    %v6491 = vadd.f32 %v6421, %v6472
    %v6492 = vadd.f32 %v6422, %v6472
    %v6493 = vadd.f32 %v6423, %v6472
    %v6494 = vadd.f32 %v6424, %v6472
    %v6495 = vadd.f32 %v6425, %v6472
    %v6496 = vadd.f32 %v6426, %v6472
    %v6497 = vadd.f32 %v6427, %v6472
    %v6498 = vadd.f32 %v6428, %v6472
    %v6499 = vadd.f32 %v6429, %v6472
    %v6500 = vadd.f32 %v6430, %v6472
    %v6501 = vadd.f32 %v6431, %v6472
    %v6502 = vadd.f32 %v6432, %v6472
    %v6503 = vadd.f32 %v6433, %v6472
    %v6504 = vadd.f32 %v6434, %v6472
    %v6505 = vadd.f32 %v6435, %v6472
    %v6506 = vadd.f32 %v6436, %v6472
    %v6507 = vadd.f32 %v6437, %v6472
    %v6508 = vadd.f32 %v6438, %v6472
    %v6509 = vadd.f32 %v6439, %v6472
    %v6510 = vadd.f32 %v6440, %v6472
    %v6511 = vadd.f32 %v6441, %v6472
    %v6512 = vadd.f32 %v6442, %v6472
    %v6513 = vadd.f32 %v6443, %v6472
    %v6514 = vadd.f32 %v6444, %v6472
    %v6515 = vadd.f32 %v6445, %v6472
    %v6516 = vadd.f32 %v6446, %v6472
    %v6517 = vadd.f32 %v6447, %v6472
    %v6518 = vadd.f32 %v6448, %v6472
    %v6519 = vadd.f32 %v6449, %v6472
    %v6520 = vadd.f32 %v6450, %v6472
    %v6521 = vadd.f32 %v6451, %v6472
    %v6522 = vadd.f32 %v6452, %v6472
    %v6523 = vadd.f32 %v6453, %v6472
    %v6524 = vadd.f32 %v6454, %v6472
    %v6525 = vadd.f32 %v6455, %v6472
    %v6526 = vadd.f32 %v6456, %v6472
    %v6527 = vadd.f32 %v6457, %v6472
    %v6528 = vadd.f32 %v6458, %v6472
    %v6529 = vadd.f32 %v6459, %v6472
    %v6530 = vadd.f32 %v6460, %v6472
    %v6531 = vadd.f32 %v6461, %v6472
    %v6532 = vadd.f32 %v6462, %v6472
    %v6533 = vadd.f32 %v6463, %v6472
    %v6534 = vadd.f32 %v6464, %v6472
    %v6535 = vadd.f32 %v6465, %v6472
    %v6536 = vadd.f32 %v6466, %v6472
    %v6537 = vadd.f32 %v6467, %v6472
    %v6602 = vrot.slane %v6474, 7
    %v6603 = vrot.slane %v6475, 7
    %v6604 = vsel %vm217, %v6602, %v6603
    %v6605 = vrot.slane %v6476, 7
    %v6606 = vrot.slane %v6477, 7
    %v6607 = vsel %vm217, %v6605, %v6606
    %v6608 = vrot.slane %v6478, 7
    %v6609 = vrot.slane %v6479, 7
    %v6610 = vsel %vm217, %v6608, %v6609
    %v6611 = vrot.slane %v6480, 7
    %v6612 = vrot.slane %v6481, 7
    %v6613 = vsel %vm217, %v6611, %v6612
    %v6614 = vrot.slane %v6482, 7
    %v6615 = vrot.slane %v6483, 7
    %v6616 = vsel %vm217, %v6614, %v6615
    %v6617 = vrot.slane %v6484, 7
    %v6618 = vrot.slane %v6485, 7
    %v6619 = vsel %vm217, %v6617, %v6618
    %v6620 = vrot.slane %v6486, 7
    %v6621 = vrot.slane %v6487, 7
    %v6622 = vsel %vm217, %v6620, %v6621
    %v6623 = vrot.slane %v6488, 7
    %v6624 = vrot.slane %v6489, 7
    %v6625 = vsel %vm217, %v6623, %v6624
    %v6626 = vrot.slane %v6490, 7
    %v6627 = vrot.slane %v6491, 7
    %v6628 = vsel %vm217, %v6626, %v6627
    %v6629 = vrot.slane %v6492, 7
    %v6630 = vrot.slane %v6493, 7
    %v6631 = vsel %vm217, %v6629, %v6630
    %v6632 = vrot.slane %v6494, 7
    %v6633 = vrot.slane %v6495, 7
    %v6634 = vsel %vm217, %v6632, %v6633
    %v6635 = vrot.slane %v6496, 7
    %v6636 = vrot.slane %v6497, 7
    %v6637 = vsel %vm217, %v6635, %v6636
    %v6638 = vrot.slane %v6498, 7
    %v6639 = vrot.slane %v6499, 7
    %v6640 = vsel %vm217, %v6638, %v6639
    %v6641 = vrot.slane %v6500, 7
    %v6642 = vrot.slane %v6501, 7
    %v6643 = vsel %vm217, %v6641, %v6642
    %v6644 = vrot.slane %v6502, 7
    %v6645 = vrot.slane %v6503, 7
    %v6646 = vsel %vm217, %v6644, %v6645
    %v6647 = vrot.slane %v6504, 7
    %v6648 = vrot.slane %v6505, 7
    %v6649 = vsel %vm217, %v6647, %v6648
    %v6650 = vrot.slane %v6506, 7
    %v6651 = vrot.slane %v6507, 7
    %v6652 = vsel %vm217, %v6650, %v6651
    %v6653 = vrot.slane %v6508, 7
    %v6654 = vrot.slane %v6509, 7
    %v6655 = vsel %vm217, %v6653, %v6654
    %v6656 = vrot.slane %v6510, 7
    %v6657 = vrot.slane %v6511, 7
    %v6658 = vsel %vm217, %v6656, %v6657
    %v6659 = vrot.slane %v6512, 7
    %v6660 = vrot.slane %v6513, 7
    %v6661 = vsel %vm217, %v6659, %v6660
    %v6662 = vrot.slane %v6514, 7
    %v6663 = vrot.slane %v6515, 7
    %v6664 = vsel %vm217, %v6662, %v6663
    %v6665 = vrot.slane %v6516, 7
    %v6666 = vrot.slane %v6517, 7
    %v6667 = vsel %vm217, %v6665, %v6666
    %v6668 = vrot.slane %v6518, 7
    %v6669 = vrot.slane %v6519, 7
    %v6670 = vsel %vm217, %v6668, %v6669
    %v6671 = vrot.slane %v6520, 7
    %v6672 = vrot.slane %v6521, 7
    %v6673 = vsel %vm217, %v6671, %v6672
    %v6674 = vrot.slane %v6522, 7
    %v6675 = vrot.slane %v6523, 7
    %v6676 = vsel %vm217, %v6674, %v6675
    %v6677 = vrot.slane %v6524, 7
    %v6678 = vrot.slane %v6525, 7
    %v6679 = vsel %vm217, %v6677, %v6678
    %v6680 = vrot.slane %v6526, 7
    %v6681 = vrot.slane %v6527, 7
    %v6682 = vsel %vm217, %v6680, %v6681
    %v6683 = vrot.slane %v6528, 7
    %v6684 = vrot.slane %v6529, 7
    %v6685 = vsel %vm217, %v6683, %v6684
    %v6686 = vrot.slane %v6530, 7
    %v6687 = vrot.slane %v6531, 7
    %v6688 = vsel %vm217, %v6686, %v6687
    %v6689 = vrot.slane %v6532, 7
    %v6690 = vrot.slane %v6533, 7
    %v6691 = vsel %vm217, %v6689, %v6690
    %v6692 = vrot.slane %v6534, 7
    %v6693 = vrot.slane %v6535, 7
    %v6694 = vsel %vm217, %v6692, %v6693
    %v6695 = vrot.slane %v6536, 7
    %v6696 = vrot.slane %v6537, 7
    %v6697 = vsel %vm217, %v6695, %v6696
    %v6794 = vsel %vm217, 0.0, %v6602
    %v6795 = vsel %vm217, 0.0, %v6605
    %v6796 = vsel %vm217, 0.0, %v6608
    %v6797 = vsel %vm217, 0.0, %v6611
    %v6798 = vsel %vm217, 0.0, %v6614
    %v6799 = vsel %vm217, 0.0, %v6617
    %v6800 = vsel %vm217, 0.0, %v6620
    %v6801 = vsel %vm217, 0.0, %v6623
    %v6802 = vsel %vm217, 0.0, %v6626
    %v6803 = vsel %vm217, 0.0, %v6629
    %v6804 = vsel %vm217, 0.0, %v6632
    %v6805 = vsel %vm217, 0.0, %v6635
    %v6806 = vsel %vm217, 0.0, %v6638
    %v6807 = vsel %vm217, 0.0, %v6641
    %v6808 = vsel %vm217, 0.0, %v6644
    %v6809 = vsel %vm217, 0.0, %v6647
    %v6810 = vsel %vm217, 0.0, %v6650
    %v6811 = vsel %vm217, 0.0, %v6653
    %v6812 = vsel %vm217, 0.0, %v6656
    %v6813 = vsel %vm217, 0.0, %v6659
    %v6814 = vsel %vm217, 0.0, %v6662
    %v6815 = vsel %vm217, 0.0, %v6665
    %v6816 = vsel %vm217, 0.0, %v6668
    %v6817 = vsel %vm217, 0.0, %v6671
    %v6818 = vsel %vm217, 0.0, %v6674
    %v6819 = vsel %vm217, 0.0, %v6677
    %v6820 = vsel %vm217, 0.0, %v6680
    %v6821 = vsel %vm217, 0.0, %v6683
    %v6822 = vsel %vm217, 0.0, %v6686
    %v6823 = vsel %vm217, 0.0, %v6689
    %v6824 = vsel %vm217, 0.0, %v6692
    %v6825 = vsel %vm217, 0.0, %v6695
    %v6826 = vsel %vm217, %v6603, 0.0
    %v6827 = vsel %vm217, %v6606, 0.0
    %v6828 = vsel %vm217, %v6609, 0.0
    %v6829 = vsel %vm217, %v6612, 0.0
    %v6830 = vsel %vm217, %v6615, 0.0
    %v6831 = vsel %vm217, %v6618, 0.0
    %v6832 = vsel %vm217, %v6621, 0.0
    %v6833 = vsel %vm217, %v6624, 0.0
    %v6834 = vsel %vm217, %v6627, 0.0
    %v6835 = vsel %vm217, %v6630, 0.0
    %v6836 = vsel %vm217, %v6633, 0.0
    %v6837 = vsel %vm217, %v6636, 0.0
    %v6838 = vsel %vm217, %v6639, 0.0
    %v6839 = vsel %vm217, %v6642, 0.0
    %v6840 = vsel %vm217, %v6645, 0.0
    %v6841 = vsel %vm217, %v6648, 0.0
    %v6842 = vsel %vm217, %v6651, 0.0
    %v6843 = vsel %vm217, %v6654, 0.0
    %v6844 = vsel %vm217, %v6657, 0.0
    %v6845 = vsel %vm217, %v6660, 0.0
    %v6846 = vsel %vm217, %v6663, 0.0
    %v6847 = vsel %vm217, %v6666, 0.0
    %v6848 = vsel %vm217, %v6669, 0.0
    %v6849 = vsel %vm217, %v6672, 0.0
    %v6850 = vsel %vm217, %v6675, 0.0
    %v6851 = vsel %vm217, %v6678, 0.0
    %v6852 = vsel %vm217, %v6681, 0.0
    %v6853 = vsel %vm217, %v6684, 0.0
    %v6854 = vsel %vm217, %v6687, 0.0
    %v6855 = vsel %vm217, %v6690, 0.0
    %v6856 = vsel %vm217, %v6693, 0.0
    %v6857 = vsel %vm217, %v6696, 0.0
    %v6918 = vrot.slane %v6794, 1
    %v6919 = vrot.slane %v6604, 1
    %v6920 = vsel %vm542, %v6918, %v6919
    %v6921 = vrot.slane %v6826, 1
    %v6922 = vsel %vm542, %v6919, %v6921
    %v6923 = vrot.slane %v6795, 1
    %v6924 = vrot.slane %v6607, 1
    %v6925 = vsel %vm542, %v6923, %v6924
    %v6926 = vrot.slane %v6827, 1
    %v6927 = vsel %vm542, %v6924, %v6926
    %v6928 = vrot.slane %v6796, 1
    %v6929 = vrot.slane %v6610, 1
    %v6930 = vsel %vm542, %v6928, %v6929
    %v6931 = vrot.slane %v6828, 1
    %v6932 = vsel %vm542, %v6929, %v6931
    %v6933 = vrot.slane %v6797, 1
    %v6934 = vrot.slane %v6613, 1
    %v6935 = vsel %vm542, %v6933, %v6934
    %v6936 = vrot.slane %v6829, 1
    %v6937 = vsel %vm542, %v6934, %v6936
    %v6938 = vrot.slane %v6798, 1
    %v6939 = vrot.slane %v6616, 1
    %v6940 = vsel %vm542, %v6938, %v6939
    %v6941 = vrot.slane %v6830, 1
    %v6942 = vsel %vm542, %v6939, %v6941
    %v6943 = vrot.slane %v6799, 1
    %v6944 = vrot.slane %v6619, 1
    %v6945 = vsel %vm542, %v6943, %v6944
    %v6946 = vrot.slane %v6831, 1
    %v6947 = vsel %vm542, %v6944, %v6946
    %v6948 = vrot.slane %v6800, 1
    %v6949 = vrot.slane %v6622, 1
    %v6950 = vsel %vm542, %v6948, %v6949
    %v6951 = vrot.slane %v6832, 1
    %v6952 = vsel %vm542, %v6949, %v6951
    %v6953 = vrot.slane %v6801, 1
    %v6954 = vrot.slane %v6625, 1
    %v6955 = vsel %vm542, %v6953, %v6954
    %v6956 = vrot.slane %v6833, 1
    %v6957 = vsel %vm542, %v6954, %v6956
    %v6958 = vrot.slane %v6802, 1
    %v6959 = vrot.slane %v6628, 1
    %v6960 = vsel %vm542, %v6958, %v6959
    %v6961 = vrot.slane %v6834, 1
    %v6962 = vsel %vm542, %v6959, %v6961
    %v6963 = vrot.slane %v6803, 1
    %v6964 = vrot.slane %v6631, 1
    %v6965 = vsel %vm542, %v6963, %v6964
    %v6966 = vrot.slane %v6835, 1
    %v6967 = vsel %vm542, %v6964, %v6966
    %v6968 = vrot.slane %v6804, 1
    %v6969 = vrot.slane %v6634, 1
    %v6970 = vsel %vm542, %v6968, %v6969
    %v6971 = vrot.slane %v6836, 1
    %v6972 = vsel %vm542, %v6969, %v6971
    %v6973 = vrot.slane %v6805, 1
    %v6974 = vrot.slane %v6637, 1
    %v6975 = vsel %vm542, %v6973, %v6974
    %v6976 = vrot.slane %v6837, 1
    %v6977 = vsel %vm542, %v6974, %v6976
    %v6978 = vrot.slane %v6806, 1
    %v6979 = vrot.slane %v6640, 1
    %v6980 = vsel %vm542, %v6978, %v6979
    %v6981 = vrot.slane %v6838, 1
    %v6982 = vsel %vm542, %v6979, %v6981
    %v6983 = vrot.slane %v6807, 1
    %v6984 = vrot.slane %v6643, 1
    %v6985 = vsel %vm542, %v6983, %v6984
    %v6986 = vrot.slane %v6839, 1
    %v6987 = vsel %vm542, %v6984, %v6986
    %v6988 = vrot.slane %v6808, 1
    %v6989 = vrot.slane %v6646, 1
    %v6990 = vsel %vm542, %v6988, %v6989
    %v6991 = vrot.slane %v6840, 1
    %v6992 = vsel %vm542, %v6989, %v6991
    %v6993 = vrot.slane %v6810, 1
    %v6994 = vrot.slane %v6652, 1
    %v6995 = vsel %vm542, %v6993, %v6994
    %v6996 = vrot.slane %v6842, 1
    %v6997 = vsel %vm542, %v6994, %v6996
    %v6998 = vrot.slane %v6811, 1
    %v6999 = vrot.slane %v6655, 1
    %v7000 = vsel %vm542, %v6998, %v6999
    %v7001 = vrot.slane %v6843, 1
    %v7002 = vsel %vm542, %v6999, %v7001
    %v7003 = vrot.slane %v6812, 1
    %v7004 = vrot.slane %v6658, 1
    %v7005 = vsel %vm542, %v7003, %v7004
    %v7006 = vrot.slane %v6844, 1
    %v7007 = vsel %vm542, %v7004, %v7006
    %v7008 = vrot.slane %v6813, 1
    %v7009 = vrot.slane %v6661, 1
    %v7010 = vsel %vm542, %v7008, %v7009
    %v7011 = vrot.slane %v6845, 1
    %v7012 = vsel %vm542, %v7009, %v7011
    %v7013 = vrot.slane %v6814, 1
    %v7014 = vrot.slane %v6664, 1
    %v7015 = vsel %vm542, %v7013, %v7014
    %v7016 = vrot.slane %v6846, 1
    %v7017 = vsel %vm542, %v7014, %v7016
    %v7018 = vrot.slane %v6815, 1
    %v7019 = vrot.slane %v6667, 1
    %v7020 = vsel %vm542, %v7018, %v7019
    %v7021 = vrot.slane %v6847, 1
    %v7022 = vsel %vm542, %v7019, %v7021
    %v7023 = vrot.slane %v6816, 1
    %v7024 = vrot.slane %v6670, 1
    %v7025 = vsel %vm542, %v7023, %v7024
    %v7026 = vrot.slane %v6848, 1
    %v7027 = vsel %vm542, %v7024, %v7026
    %v7028 = vrot.slane %v6817, 1
    %v7029 = vrot.slane %v6673, 1
    %v7030 = vsel %vm542, %v7028, %v7029
    %v7031 = vrot.slane %v6849, 1
    %v7032 = vsel %vm542, %v7029, %v7031
    %v7033 = vrot.slane %v6818, 1
    %v7034 = vrot.slane %v6676, 1
    %v7035 = vsel %vm542, %v7033, %v7034
    %v7036 = vrot.slane %v6850, 1
    %v7037 = vsel %vm542, %v7034, %v7036
    %v7038 = vrot.slane %v6819, 1
    %v7039 = vrot.slane %v6679, 1
    %v7040 = vsel %vm542, %v7038, %v7039
    %v7041 = vrot.slane %v6851, 1
    %v7042 = vsel %vm542, %v7039, %v7041
    %v7043 = vrot.slane %v6820, 1
    %v7044 = vrot.slane %v6682, 1
    %v7045 = vsel %vm542, %v7043, %v7044
    %v7046 = vrot.slane %v6852, 1
    %v7047 = vsel %vm542, %v7044, %v7046
    %v7048 = vrot.slane %v6821, 1
    %v7049 = vrot.slane %v6685, 1
    %v7050 = vsel %vm542, %v7048, %v7049
    %v7051 = vrot.slane %v6853, 1
    %v7052 = vsel %vm542, %v7049, %v7051
    %v7053 = vrot.slane %v6822, 1
    %v7054 = vrot.slane %v6688, 1
    %v7055 = vsel %vm542, %v7053, %v7054
    %v7056 = vrot.slane %v6854, 1
    %v7057 = vsel %vm542, %v7054, %v7056
    %v7058 = vrot.slane %v6823, 1
    %v7059 = vrot.slane %v6691, 1
    %v7060 = vsel %vm542, %v7058, %v7059
    %v7061 = vrot.slane %v6855, 1
    %v7062 = vsel %vm542, %v7059, %v7061
    %v7063 = vrot.slane %v6824, 1
    %v7064 = vrot.slane %v6694, 1
    %v7065 = vsel %vm542, %v7063, %v7064
    %v7066 = vrot.slane %v6856, 1
    %v7067 = vsel %vm542, %v7064, %v7066
    %v7128 = vrot.slane %v6794, 2
    %v7129 = vrot.slane %v6604, 2
    %v7130 = vsel %vm760, %v7128, %v7129
    %v7131 = vrot.slane %v6826, 2
    %v7132 = vsel %vm760, %v7129, %v7131
    %v7133 = vrot.slane %v6795, 2
    %v7134 = vrot.slane %v6607, 2
    %v7135 = vsel %vm760, %v7133, %v7134
    %v7136 = vrot.slane %v6827, 2
    %v7137 = vsel %vm760, %v7134, %v7136
    %v7138 = vrot.slane %v6796, 2
    %v7139 = vrot.slane %v6610, 2
    %v7140 = vsel %vm760, %v7138, %v7139
    %v7141 = vrot.slane %v6828, 2
    %v7142 = vsel %vm760, %v7139, %v7141
    %v7143 = vrot.slane %v6797, 2
    %v7144 = vrot.slane %v6613, 2
    %v7145 = vsel %vm760, %v7143, %v7144
    %v7146 = vrot.slane %v6829, 2
    %v7147 = vsel %vm760, %v7144, %v7146
    %v7148 = vrot.slane %v6798, 2
    %v7149 = vrot.slane %v6616, 2
    %v7150 = vsel %vm760, %v7148, %v7149
    %v7151 = vrot.slane %v6830, 2
    %v7152 = vsel %vm760, %v7149, %v7151
    %v7153 = vrot.slane %v6799, 2
    %v7154 = vrot.slane %v6619, 2
    %v7155 = vsel %vm760, %v7153, %v7154
    %v7156 = vrot.slane %v6831, 2
    %v7157 = vsel %vm760, %v7154, %v7156
    %v7158 = vrot.slane %v6800, 2
    %v7159 = vrot.slane %v6622, 2
    %v7160 = vsel %vm760, %v7158, %v7159
    %v7161 = vrot.slane %v6832, 2
    %v7162 = vsel %vm760, %v7159, %v7161
    %v7163 = vrot.slane %v6801, 2
    %v7164 = vrot.slane %v6625, 2
    %v7165 = vsel %vm760, %v7163, %v7164
    %v7166 = vrot.slane %v6833, 2
    %v7167 = vsel %vm760, %v7164, %v7166
    %v7168 = vrot.slane %v6802, 2
    %v7169 = vrot.slane %v6628, 2
    %v7170 = vsel %vm760, %v7168, %v7169
    %v7171 = vrot.slane %v6834, 2
    %v7172 = vsel %vm760, %v7169, %v7171
    %v7173 = vrot.slane %v6803, 2
    %v7174 = vrot.slane %v6631, 2
    %v7175 = vsel %vm760, %v7173, %v7174
    %v7176 = vrot.slane %v6835, 2
    %v7177 = vsel %vm760, %v7174, %v7176
    %v7178 = vrot.slane %v6804, 2
    %v7179 = vrot.slane %v6634, 2
    %v7180 = vsel %vm760, %v7178, %v7179
    %v7181 = vrot.slane %v6836, 2
    %v7182 = vsel %vm760, %v7179, %v7181
    %v7183 = vrot.slane %v6805, 2
    %v7184 = vrot.slane %v6637, 2
    %v7185 = vsel %vm760, %v7183, %v7184
    %v7186 = vrot.slane %v6837, 2
    %v7187 = vsel %vm760, %v7184, %v7186
    %v7188 = vrot.slane %v6806, 2
    %v7189 = vrot.slane %v6640, 2
    %v7190 = vsel %vm760, %v7188, %v7189
    %v7191 = vrot.slane %v6838, 2
    %v7192 = vsel %vm760, %v7189, %v7191
    %v7193 = vrot.slane %v6807, 2
    %v7194 = vrot.slane %v6643, 2
    %v7195 = vsel %vm760, %v7193, %v7194
    %v7196 = vrot.slane %v6839, 2
    %v7197 = vsel %vm760, %v7194, %v7196
    %v7198 = vrot.slane %v6808, 2
    %v7199 = vrot.slane %v6646, 2
    %v7200 = vsel %vm760, %v7198, %v7199
    %v7201 = vrot.slane %v6840, 2
    %v7202 = vsel %vm760, %v7199, %v7201
    %v7203 = vrot.slane %v6810, 2
    %v7204 = vrot.slane %v6652, 2
    %v7205 = vsel %vm760, %v7203, %v7204
    %v7206 = vrot.slane %v6842, 2
    %v7207 = vsel %vm760, %v7204, %v7206
    %v7208 = vrot.slane %v6811, 2
    %v7209 = vrot.slane %v6655, 2
    %v7210 = vsel %vm760, %v7208, %v7209
    %v7211 = vrot.slane %v6843, 2
    %v7212 = vsel %vm760, %v7209, %v7211
    %v7213 = vrot.slane %v6812, 2
    %v7214 = vrot.slane %v6658, 2
    %v7215 = vsel %vm760, %v7213, %v7214
    %v7216 = vrot.slane %v6844, 2
    %v7217 = vsel %vm760, %v7214, %v7216
    %v7218 = vrot.slane %v6813, 2
    %v7219 = vrot.slane %v6661, 2
    %v7220 = vsel %vm760, %v7218, %v7219
    %v7221 = vrot.slane %v6845, 2
    %v7222 = vsel %vm760, %v7219, %v7221
    %v7223 = vrot.slane %v6814, 2
    %v7224 = vrot.slane %v6664, 2
    %v7225 = vsel %vm760, %v7223, %v7224
    %v7226 = vrot.slane %v6846, 2
    %v7227 = vsel %vm760, %v7224, %v7226
    %v7228 = vrot.slane %v6815, 2
    %v7229 = vrot.slane %v6667, 2
    %v7230 = vsel %vm760, %v7228, %v7229
    %v7231 = vrot.slane %v6847, 2
    %v7232 = vsel %vm760, %v7229, %v7231
    %v7233 = vrot.slane %v6816, 2
    %v7234 = vrot.slane %v6670, 2
    %v7235 = vsel %vm760, %v7233, %v7234
    %v7236 = vrot.slane %v6848, 2
    %v7237 = vsel %vm760, %v7234, %v7236
    %v7238 = vrot.slane %v6817, 2
    %v7239 = vrot.slane %v6673, 2
    %v7240 = vsel %vm760, %v7238, %v7239
    %v7241 = vrot.slane %v6849, 2
    %v7242 = vsel %vm760, %v7239, %v7241
    %v7243 = vrot.slane %v6818, 2
    %v7244 = vrot.slane %v6676, 2
    %v7245 = vsel %vm760, %v7243, %v7244
    %v7246 = vrot.slane %v6850, 2
    %v7247 = vsel %vm760, %v7244, %v7246
    %v7248 = vrot.slane %v6819, 2
    %v7249 = vrot.slane %v6679, 2
    %v7250 = vsel %vm760, %v7248, %v7249
    %v7251 = vrot.slane %v6851, 2
    %v7252 = vsel %vm760, %v7249, %v7251
    %v7253 = vrot.slane %v6820, 2
    %v7254 = vrot.slane %v6682, 2
    %v7255 = vsel %vm760, %v7253, %v7254
    %v7256 = vrot.slane %v6852, 2
    %v7257 = vsel %vm760, %v7254, %v7256
    %v7258 = vrot.slane %v6821, 2
    %v7259 = vrot.slane %v6685, 2
    %v7260 = vsel %vm760, %v7258, %v7259
    %v7261 = vrot.slane %v6853, 2
    %v7262 = vsel %vm760, %v7259, %v7261
    %v7263 = vrot.slane %v6822, 2
    %v7264 = vrot.slane %v6688, 2
    %v7265 = vsel %vm760, %v7263, %v7264
    %v7266 = vrot.slane %v6854, 2
    %v7267 = vsel %vm760, %v7264, %v7266
    %v7268 = vrot.slane %v6823, 2
    %v7269 = vrot.slane %v6691, 2
    %v7270 = vsel %vm760, %v7268, %v7269
    %v7271 = vrot.slane %v6855, 2
    %v7272 = vsel %vm760, %v7269, %v7271
    %v7273 = vrot.slane %v6824, 2
    %v7274 = vrot.slane %v6694, 2
    %v7275 = vsel %vm760, %v7273, %v7274
    %v7276 = vrot.slane %v6856, 2
    %v7277 = vsel %vm760, %v7274, %v7276
    %v7342 = vrot.slane %v6809, 1
    %v7343 = vrot.slane %v6649, 1
    %v7344 = vsel %vm542, %v7342, %v7343
    %v7345 = vrot.slane %v6841, 1
    %v7346 = vsel %vm542, %v7343, %v7345
    %v7347 = vrot.slane %v6825, 1
    %v7348 = vrot.slane %v6697, 1
    %v7349 = vsel %vm542, %v7347, %v7348
    %v7350 = vrot.slane %v6857, 1
    %v7351 = vsel %vm542, %v7348, %v7350
    %v7356 = vrot.slane %v6809, 2
    %v7357 = vrot.slane %v6649, 2
    %v7358 = vsel %vm760, %v7356, %v7357
    %v7359 = vrot.slane %v6841, 2
    %v7360 = vsel %vm760, %v7357, %v7359
    %v7361 = vrot.slane %v6825, 2
    %v7362 = vrot.slane %v6697, 2
    %v7363 = vsel %vm760, %v7361, %v7362
    %v7364 = vrot.slane %v6857, 2
    %v7365 = vsel %vm760, %v7362, %v7364
    %v7370 = vld [vmem:[#allocation8] sm:$0xff]
    %v7371 = vld [vmem:[#allocation8 + $0x8] sm:$0xff]
    %v7372 = vld [vmem:[#allocation8 + $0x10] sm:$0xff]
    %v7373 = vld [vmem:[#allocation8 + $0x18] sm:$0xff]
    %v7374 = vld [vmem:[#allocation8 + $0x20] sm:$0xff]
    %v7375 = vld [vmem:[#allocation8 + $0x28] sm:$0xff]
    %v7376 = vld [vmem:[#allocation8 + $0x30] sm:$0xff]
    %v7377 = vld [vmem:[#allocation8 + $0x38] sm:$0xff]
    %v7378 = vld [vmem:[#allocation8 + $0x40] sm:$0xff]
    %v7379 = vld [vmem:[#allocation8 + $0x48] sm:$0xff]
    %v7380 = vld [vmem:[#allocation8 + $0x50] sm:$0xff]
    %v7381 = vld [vmem:[#allocation8 + $0x58] sm:$0xff]
    %v7382 = vld [vmem:[#allocation8 + $0x60] sm:$0xff]
    %v7383 = vld [vmem:[#allocation8 + $0x68] sm:$0xff]
    %v7384 = vld [vmem:[#allocation8 + $0x70] sm:$0xff]
    %v7385 = vld [vmem:[#allocation8 + $0x78] sm:$0xff]
    %v7386 = vld [vmem:[#allocation8 + $0x80] sm:$0xff]
    %v7387 = vld [vmem:[#allocation8 + $0x88] sm:$0xff]
    %v7388 = vld [vmem:[#allocation8 + $0x90] sm:$0xff]
    %v7389 = vld [vmem:[#allocation8 + $0x98] sm:$0xff]
    %v7390 = vld [vmem:[#allocation8 + $0xa0] sm:$0xff]
    %v7391 = vld [vmem:[#allocation8 + $0xa8] sm:$0xff]
    %v7392 = vld [vmem:[#allocation8 + $0xb0] sm:$0xff]
    %v7393 = vld [vmem:[#allocation8 + $0xb8] sm:$0xff]
    %v7394 = vld [vmem:[#allocation8 + $0xc0] sm:$0xff]
    %v7395 = vld [vmem:[#allocation8 + $0xc8] sm:$0xff]
    %v7396 = vld [vmem:[#allocation8 + $0xd0] sm:$0xff]
    %v7397 = vld [vmem:[#allocation8 + $0xd8] sm:$0xff]
    %v7398 = vld [vmem:[#allocation8 + $0xe0] sm:$0xff]
    %v7399 = vld [vmem:[#allocation8 + $0xe8] sm:$0xff]
    %v7400 = vld [vmem:[#allocation8 + $0xf0] sm:$0xff]
    %v7401 = vld [vmem:[#allocation8 + $0xf8] sm:$0xff]
    %v7402 = vld [vmem:[#allocation8 + $0x100] sm:$0xff]
    %v7403 = vld [vmem:[#allocation8 + $0x108] sm:$0xff]
    %v7404 = vld [vmem:[#allocation8 + $0x110] sm:$0xff]
    %v7405 = vld [vmem:[#allocation8 + $0x118] sm:$0xff]
    %v7406 = vld [vmem:[#allocation8 + $0x120] sm:$0xff]
    %v7407 = vld [vmem:[#allocation8 + $0x128] sm:$0xff]
    %v7408 = vld [vmem:[#allocation8 + $0x130] sm:$0xff]
    %v7409 = vld [vmem:[#allocation8 + $0x138] sm:$0xff]
    %v7410 = vld [vmem:[#allocation8 + $0x140] sm:$0xff]
    %v7411 = vld [vmem:[#allocation8 + $0x148] sm:$0xff]
    %v7412 = vld [vmem:[#allocation8 + $0x150] sm:$0xff]
    %v7413 = vld [vmem:[#allocation8 + $0x158] sm:$0xff]
    %v7414 = vld [vmem:[#allocation8 + $0x160] sm:$0xff]
    %v7415 = vld [vmem:[#allocation8 + $0x168] sm:$0xff]
    %v7416 = vld [vmem:[#allocation8 + $0x170] sm:$0xff]
    %v7417 = vld [vmem:[#allocation8 + $0x178] sm:$0xff]
    %v7418 = vld [vmem:[#allocation8 + $0x180] sm:$0xff]
    %v7419 = vld [vmem:[#allocation8 + $0x188] sm:$0xff]
    %v7420 = vld [vmem:[#allocation8 + $0x190] sm:$0xff]
    %v7421 = vld [vmem:[#allocation8 + $0x198] sm:$0xff]
    %v7422 = vld [vmem:[#allocation8 + $0x1a0] sm:$0xff]
    %v7423 = vld [vmem:[#allocation8 + $0x1a8] sm:$0xff]
    %v7424 = vld [vmem:[#allocation8 + $0x1b0] sm:$0xff]
    %v7425 = vld [vmem:[#allocation8 + $0x1b8] sm:$0xff]
    %v7426 = vld [vmem:[#allocation8 + $0x1c0] sm:$0xff]
    %v7427 = vld [vmem:[#allocation8 + $0x1c8] sm:$0xff]
    %v7428 = vld [vmem:[#allocation8 + $0x1d0] sm:$0xff]
    %v7429 = vld [vmem:[#allocation8 + $0x1d8] sm:$0xff]
    %v7430 = vld [vmem:[#allocation8 + $0x1e0] sm:$0xff]
    %v7431 = vld [vmem:[#allocation8 + $0x1e8] sm:$0xff]
    %v7432 = vld [vmem:[#allocation8 + $0x1f0] sm:$0xff]
    %v7433 = vld [vmem:[#allocation8 + $0x1f8] sm:$0xff]
    %v7434 = vld [vmem:[#allocation8 + $0x200] sm:$0xff]
    %v7435 = vld [vmem:[#allocation8 + $0x208] sm:$0xff]
    %v7436 = vld [vmem:[#allocation8 + $0x210] sm:$0xff]
    %v7437 = vld [vmem:[#allocation8 + $0x218] sm:$0xff]
    %v7438 = vld [vmem:[#allocation8 + $0x220] sm:$0xff]
    %v7439 = vld [vmem:[#allocation8 + $0x228] sm:$0xff]
    %v7440 = vld [vmem:[#allocation8 + $0x230] sm:$0xff]
    %v7441 = vld [vmem:[#allocation8 + $0x238] sm:$0xff]
    %v7442 = vld [vmem:[#allocation8 + $0x240] sm:$0xff]
    %v7443 = vld [vmem:[#allocation8 + $0x248] sm:$0xff]
    %v7444 = vld [vmem:[#allocation8 + $0x250] sm:$0xff]
    %v7445 = vld [vmem:[#allocation8 + $0x258] sm:$0xff]
    %v7446 = vld [vmem:[#allocation8 + $0x260] sm:$0xff]
    %v7447 = vld [vmem:[#allocation8 + $0x268] sm:$0xff]
    %v7448 = vld [vmem:[#allocation8 + $0x270] sm:$0xff]
    %v7449 = vld [vmem:[#allocation8 + $0x278] sm:$0xff]
    %v7450 = vld [vmem:[#allocation8 + $0x280] sm:$0xff]
    %v7451 = vld [vmem:[#allocation8 + $0x288] sm:$0xff]
    %v7452 = vld [vmem:[#allocation8 + $0x290] sm:$0xff]
    %v7453 = vld [vmem:[#allocation8 + $0x298] sm:$0xff]
    %v7454 = vld [vmem:[#allocation8 + $0x2a0] sm:$0xff]
    %v7455 = vld [vmem:[#allocation8 + $0x2a8] sm:$0xff]
    %v7456 = vld [vmem:[#allocation8 + $0x2b0] sm:$0xff]
    %v7457 = vld [vmem:[#allocation8 + $0x2b8] sm:$0xff]
    %v7458 = vld [vmem:[#allocation8 + $0x2c0] sm:$0xff]
    %v7459 = vld [vmem:[#allocation8 + $0x2c8] sm:$0xff]
    %v7460 = vld [vmem:[#allocation8 + $0x2d0] sm:$0xff]
    %v7461 = vld [vmem:[#allocation8 + $0x2d8] sm:$0xff]
    %v7462 = vld [vmem:[#allocation8 + $0x2e0] sm:$0xff]
    %v7463 = vld [vmem:[#allocation8 + $0x2e8] sm:$0xff]
    %v7464 = vld [vmem:[#allocation8 + $0x2f0] sm:$0xff]
    %v7465 = vld [vmem:[#allocation8 + $0x2f8] sm:$0xff]
    %v7466 = vld [vmem:[#allocation8 + $0x300] sm:$0xff]
    %v7467 = vld [vmem:[#allocation8 + $0x308] sm:$0xff]
    %v7468 = vld [vmem:[#allocation8 + $0x310] sm:$0xff]
    %v7469 = vld [vmem:[#allocation8 + $0x318] sm:$0xff]
    %v7470 = vld [vmem:[#allocation8 + $0x320] sm:$0xff]
    %v7471 = vld [vmem:[#allocation8 + $0x328] sm:$0xff]
    %v7472 = vld [vmem:[#allocation8 + $0x330] sm:$0xff]
    %v7473 = vld [vmem:[#allocation8 + $0x338] sm:$0xff]
    %v7474 = vld [vmem:[#allocation8 + $0x340] sm:$0xff]
    %v7475 = vld [vmem:[#allocation8 + $0x348] sm:$0xff]
    %v7476 = vld [vmem:[#allocation8 + $0x350] sm:$0xff]
    %v7477 = vld [vmem:[#allocation8 + $0x358] sm:$0xff]
    %v7478 = vld [vmem:[#allocation8 + $0x360] sm:$0xff]
    %v7479 = vld [vmem:[#allocation8 + $0x368] sm:$0xff]
    %v7480 = vld [vmem:[#allocation8 + $0x370] sm:$0xff]
    %v7481 = vld [vmem:[#allocation8 + $0x378] sm:$0xff]
    %v7482 = vld [vmem:[#allocation8 + $0x380] sm:$0xff]
    %v7483 = vld [vmem:[#allocation8 + $0x388] sm:$0xff]
    %v7484 = vld [vmem:[#allocation8 + $0x390] sm:$0xff]
    %v7485 = vld [vmem:[#allocation8 + $0x398] sm:$0xff]
    %v7486 = vld [vmem:[#allocation8 + $0x3a0] sm:$0xff]
    %v7487 = vld [vmem:[#allocation8 + $0x3a8] sm:$0xff]
    %v7488 = vld [vmem:[#allocation8 + $0x3b0] sm:$0xff]
    %v7489 = vld [vmem:[#allocation8 + $0x3b8] sm:$0xff]
    %v7490 = vld [vmem:[#allocation8 + $0x3c0] sm:$0xff]
    %v7491 = vld [vmem:[#allocation8 + $0x3c8] sm:$0xff]
    %v7492 = vld [vmem:[#allocation8 + $0x3d0] sm:$0xff]
    %v7493 = vld [vmem:[#allocation8 + $0x3d8] sm:$0xff]
    %v7494 = vld [vmem:[#allocation8 + $0x3e0] sm:$0xff]
    %v7495 = vld [vmem:[#allocation8 + $0x3e8] sm:$0xff]
    %v7496 = vld [vmem:[#allocation8 + $0x3f0] sm:$0xff]
    %v7497 = vld [vmem:[#allocation8 + $0x3f8] sm:$0xff]
    %v7498 = vld [vmem:[#allocation8 + $0x400] sm:$0xff]
    %v7499 = vld [vmem:[#allocation8 + $0x408] sm:$0xff]
    %v7500 = vld [vmem:[#allocation8 + $0x410] sm:$0xff]
    %v7501 = vld [vmem:[#allocation8 + $0x418] sm:$0xff]
    %v7502 = vld [vmem:[#allocation8 + $0x420] sm:$0xff]
    %v7503 = vld [vmem:[#allocation8 + $0x428] sm:$0xff]
    %v7504 = vld [vmem:[#allocation8 + $0x430] sm:$0xff]
    %v7505 = vld [vmem:[#allocation8 + $0x438] sm:$0xff]
    %v7506 = vld [vmem:[#allocation8 + $0x440] sm:$0xff]
    %v7507 = vld [vmem:[#allocation8 + $0x448] sm:$0xff]
    %v7508 = vld [vmem:[#allocation8 + $0x450] sm:$0xff]
    %v7509 = vld [vmem:[#allocation8 + $0x458] sm:$0xff]
    %v7510 = vld [vmem:[#allocation8 + $0x460] sm:$0xff]
    %v7511 = vld [vmem:[#allocation8 + $0x468] sm:$0xff]
    %v7512 = vld [vmem:[#allocation8 + $0x470] sm:$0xff]
    %v7513 = vld [vmem:[#allocation8 + $0x478] sm:$0xff]
    %v7514 = vld [vmem:[%s6] sm:$0x1]
    %v7516 = vlaneseq
    %v7517 = vshrl.u32 %v7516, 7
    %v7518 = vsub.s32 0, %v7517
    %v7519 = vrot.slane %v7514, %v7518
    %7521 = vmatprep.subr.mxu0 0.0
    %7522 = vmatpush1.msra.mxu0 %v7370
    %7523 = vmatprep.subr.mxu0 0.0
    %7524 = vmatpush1.msra.mxu0 %v7371
    %7525 = vmatprep.subr.mxu0 0.0
    %7526 = vmatpush1.msra.mxu0 %v7372
    %7527 = vmatprep.subr.mxu0 0.0
    %7528 = vmatpush1.msra.mxu0 %v7373
    %7529 = vmatprep.subr.mxu0 0.0
    %7530 = vmatpush1.msra.mxu0 %v7374
    %7531 = vmatprep.subr.mxu0 0.0
    %7532 = vmatpush1.msra.mxu0 %v7375
    %7533 = vmatprep.subr.mxu0 0.0
    %7534 = vmatpush1.msra.mxu0 %v7376
    %7535 = vmatprep.subr.mxu0 0.0
    %7536 = vmatpush1.msra.mxu0 %v7377
    %7537 = vmatprep.subr.mxu0 0.0
    %7538 = vmatpush1.msra.mxu0 %v7378
    %7539 = vmatprep.subr.mxu0 0.0
    %7540 = vmatpush1.msra.mxu0 %v7379
    %7541 = vmatprep.subr.mxu0 0.0
    %7542 = vmatpush1.msra.mxu0 %v7380
    %7543 = vmatprep.subr.mxu0 0.0
    %7544 = vmatpush1.msra.mxu0 %v7381
    %7545 = vmatprep.subr.mxu0 0.0
    %7546 = vmatpush1.msra.mxu0 %v7382
    %7547 = vmatprep.subr.mxu0 0.0
    %7548 = vmatpush1.msra.mxu0 %v7383
    %7549 = vmatprep.subr.mxu0 0.0
    %7550 = vmatpush1.msra.mxu0 %v7384
    %7551 = vmatprep.subr.mxu0 0.0
    %7552 = vmatpush1.msra.mxu0 %v7385
    %7553 = vmatprep.subr.mxu0 0.0
    %7554 = vmatpush1.msra.mxu0 %v7386
    %7555 = vmatprep.subr.mxu0 0.0
    %7556 = vmatpush1.msra.mxu0 %v7387
    %7557 = vmatprep.subr.mxu0 0.0
    %7558 = vmatpush1.msra.mxu0 %v7388
    %7559 = vmatprep.subr.mxu0 0.0
    %7560 = vmatpush1.msra.mxu0 %v7389
    %7561 = vmatprep.subr.mxu0 0.0
    %7562 = vmatpush1.msra.mxu0 %v7390
    %7563 = vmatprep.subr.mxu0 0.0
    %7564 = vmatpush1.msra.mxu0 %v7391
    %7565 = vmatprep.subr.mxu0 0.0
    %7566 = vmatpush1.msra.mxu0 %v7392
    %7567 = vmatprep.subr.mxu0 0.0
    %7568 = vmatpush1.msra.mxu0 %v7393
    %7569 = vmatprep.subr.mxu0 0.0
    %7570 = vmatpush1.msra.mxu0 %v7394
    %7571 = vmatprep.subr.mxu0 0.0
    %7572 = vmatpush1.msra.mxu0 %v7395
    %7573 = vmatprep.subr.mxu0 0.0
    %7574 = vmatpush1.msra.mxu0 %v7396
    %7575 = vmatprep.subr.mxu0 0.0
    %7576 = vmatpush1.msra.mxu0 %v7397
    %7577 = vmatprep.subr.mxu0 0.0
    %7578 = vmatpush1.msra.mxu0 %v7398
    %7579 = vmatprep.subr.mxu0 0.0
    %7580 = vmatpush1.msra.mxu0 %v7399
    %7581 = vmatprep.subr.mxu0 0.0
    %7582 = vmatpush1.msra.mxu0 %v7400
    %7583 = vmatprep.subr.mxu0 0.0
    %7584 = vmatpush1.msra.mxu0 %v7401
    %7585 = vmatprep.mubr.f32.mxu0 %v545
    %7586 = vmatmul.mubr.f32.gmra.mrb[0].mxu0 %v414
    %v7587 = vpop.f32.mrb[0].mxu0
    %v7588 = vadd.f32 %v7519, %v7587
    %v7589 = vpop.f32.mrb[0].mxu0
    %7590 = vmatprep.mubr.f32.mxu0 %v547
    %7591 = vmatmul.mubr.f32.gmra.mrb[0].mxu0 %v219
    %v7592 = vpop.f32.mrb[0].mxu0
    %v7593 = vadd.f32 %v7519, %v7592
    %v7594 = vpop.f32.mrb[0].mxu0
    %7595 = vmatprep.mubr.f32.mxu0 %v6920
    %7596 = vmatmul.mubr.f32.gmra.mrb[0].mxu0 %v6794
    %v7597 = vpop.f32.mrb[0].mxu0
    %v7598 = vadd.f32 %v7519, %v7597
    %v7599 = vpop.f32.mrb[0].mxu0
    %7600 = vmatprep.mubr.f32.mxu0 %v6922
    %7601 = vmatmul.mubr.f32.gmra.mrb[0].mxu0 %v6604
    %v7602 = vpop.f32.mrb[0].mxu0
    %v7603 = vadd.f32 %v7519, %v7602
    %v7604 = vpop.f32.mrb[0].mxu0
    %7605 = vmatprep.mubr.f32.mxu0 %v6925
    %7606 = vmatmul.mubr.f32.gmra.mrb[0].mxu0 %v6795
    %v7607 = vpop.f32.mrb[0].mxu0
    %v7608 = vadd.f32 %v7519, %v7607
    %v7609 = vpop.f32.mrb[0].mxu0
    %7610 = vmatprep.mubr.f32.mxu0 %v6927
    %7611 = vmatmul.mubr.f32.gmra.mrb[0].mxu0 %v6607
    %v7612 = vpop.f32.mrb[0].mxu0
    %v7613 = vadd.f32 %v7519, %v7612
    %v7614 = vpop.f32.mrb[0].mxu0
    %7615 = vmatprep.mubr.f32.mxu0 %v6930
    %7616 = vmatmul.mubr.f32.gmra.mrb[0].mxu0 %v6796
    %v7617 = vpop.f32.mrb[0].mxu0
    %v7618 = vadd.f32 %v7519, %v7617
    %v7619 = vpop.f32.mrb[0].mxu0
    %7620 = vmatprep.mubr.f32.mxu0 %v6932
    %7621 = vmatmul.mubr.f32.gmra.mrb[0].mxu0 %v6610
    %v7622 = vpop.f32.mrb[0].mxu0
    %v7623 = vadd.f32 %v7519, %v7622
    %v7624 = vpop.f32.mrb[0].mxu0
    %7625 = vmatprep.mubr.f32.mxu0 %v6935
    %7626 = vmatmul.mubr.f32.gmra.mrb[0].mxu0 %v6797
    %v7627 = vpop.f32.mrb[0].mxu0
    %v7628 = vadd.f32 %v7519, %v7627
    %v7629 = vpop.f32.mrb[0].mxu0
    %7630 = vmatprep.mubr.f32.mxu0 %v6937
    %7631 = vmatmul.mubr.f32.gmra.mrb[0].mxu0 %v6613
    %v7632 = vpop.f32.mrb[0].mxu0
    %v7633 = vadd.f32 %v7519, %v7632
    %v7634 = vpop.f32.mrb[0].mxu0
    %7635 = vmatprep.mubr.f32.mxu0 %v6940
    %7636 = vmatmul.mubr.f32.gmra.mrb[0].mxu0 %v6798
    %v7637 = vpop.f32.mrb[0].mxu0
    %v7638 = vadd.f32 %v7519, %v7637
    %v7639 = vpop.f32.mrb[0].mxu0
    %7640 = vmatprep.mubr.f32.mxu0 %v6942
    %7641 = vmatmul.mubr.f32.gmra.mrb[0].mxu0 %v6616
    %v7642 = vpop.f32.mrb[0].mxu0
    %v7643 = vadd.f32 %v7519, %v7642
    %v7644 = vpop.f32.mrb[0].mxu0
    %7645 = vmatprep.mubr.f32.mxu0 %v6945
    %7646 = vmatmul.mubr.f32.gmra.mrb[0].mxu0 %v6799
    %v7647 = vpop.f32.mrb[0].mxu0
    %v7648 = vadd.f32 %v7519, %v7647
    %v7649 = vpop.f32.mrb[0].mxu0
    %7650 = vmatprep.mubr.f32.mxu0 %v6947
    %7651 = vmatmul.mubr.f32.gmra.mrb[0].mxu0 %v6619
    %v7652 = vpop.f32.mrb[0].mxu0
    %v7653 = vadd.f32 %v7519, %v7652
    %v7654 = vpop.f32.mrb[0].mxu0
    %7655 = vmatprep.mubr.f32.mxu0 %v6950
    %7656 = vmatmul.mubr.f32.gmra.mrb[0].mxu0 %v6800
    %v7657 = vpop.f32.mrb[0].mxu0
    %v7658 = vadd.f32 %v7519, %v7657
    %v7659 = vpop.f32.mrb[0].mxu0
    %7660 = vmatprep.mubr.f32.mxu0 %v6952
    %7661 = vmatmul.mubr.f32.gmra.mrb[0].mxu0 %v6622
    %v7662 = vpop.f32.mrb[0].mxu0
    %v7663 = vadd.f32 %v7519, %v7662
    %v7664 = vpop.f32.mrb[0].mxu0
    %7665 = vmatprep.mubr.f32.mxu0 %v6955
    %7666 = vmatmul.mubr.f32.gmra.mrb[0].mxu0 %v6801
    %v7667 = vpop.f32.mrb[0].mxu0
    %v7668 = vadd.f32 %v7519, %v7667
    %v7669 = vpop.f32.mrb[0].mxu0
    %7670 = vmatprep.mubr.f32.mxu0 %v6957
    %7671 = vmatmul.mubr.f32.gmra.mrb[0].mxu0 %v6625
    %v7672 = vpop.f32.mrb[0].mxu0
    %v7673 = vadd.f32 %v7519, %v7672
    %v7674 = vpop.f32.mrb[0].mxu0
    %7675 = vmatprep.mubr.f32.mxu0 %v6960
    %7676 = vmatmul.mubr.f32.gmra.mrb[0].mxu0 %v6802
    %v7677 = vpop.f32.mrb[0].mxu0
    %v7678 = vadd.f32 %v7519, %v7677
    %v7679 = vpop.f32.mrb[0].mxu0
    %7680 = vmatprep.mubr.f32.mxu0 %v6962
    %7681 = vmatmul.mubr.f32.gmra.mrb[0].mxu0 %v6628
    %v7682 = vpop.f32.mrb[0].mxu0
    %v7683 = vadd.f32 %v7519, %v7682
    %v7684 = vpop.f32.mrb[0].mxu0
    %7685 = vmatprep.mubr.f32.mxu0 %v6965
    %7686 = vmatmul.mubr.f32.gmra.mrb[0].mxu0 %v6803
    %v7687 = vpop.f32.mrb[0].mxu0
    %v7688 = vadd.f32 %v7519, %v7687
    %v7689 = vpop.f32.mrb[0].mxu0
    %7690 = vmatprep.mubr.f32.mxu0 %v6967
    %7691 = vmatmul.mubr.f32.gmra.mrb[0].mxu0 %v6631
    %v7692 = vpop.f32.mrb[0].mxu0
    %v7693 = vadd.f32 %v7519, %v7692
    %v7694 = vpop.f32.mrb[0].mxu0
    %7695 = vmatprep.mubr.f32.mxu0 %v6970
    %7696 = vmatmul.mubr.f32.gmra.mrb[0].mxu0 %v6804
    %v7697 = vpop.f32.mrb[0].mxu0
    %v7698 = vadd.f32 %v7519, %v7697
    %v7699 = vpop.f32.mrb[0].mxu0
    %7700 = vmatprep.mubr.f32.mxu0 %v6972
    %7701 = vmatmul.mubr.f32.gmra.mrb[0].mxu0 %v6634
    %v7702 = vpop.f32.mrb[0].mxu0
    %v7703 = vadd.f32 %v7519, %v7702
    %v7704 = vpop.f32.mrb[0].mxu0
    %7705 = vmatprep.mubr.f32.mxu0 %v6975
    %7706 = vmatmul.mubr.f32.gmra.mrb[0].mxu0 %v6805
    %v7707 = vpop.f32.mrb[0].mxu0
    %v7708 = vadd.f32 %v7519, %v7707
    %v7709 = vpop.f32.mrb[0].mxu0
    %7710 = vmatprep.mubr.f32.mxu0 %v6977
    %7711 = vmatmul.mubr.f32.gmra.mrb[0].mxu0 %v6637
    %v7712 = vpop.f32.mrb[0].mxu0
    %v7713 = vadd.f32 %v7519, %v7712
    %v7714 = vpop.f32.mrb[0].mxu0
    %7715 = vmatprep.mubr.f32.mxu0 %v6980
    %7716 = vmatmul.mubr.f32.gmra.mrb[0].mxu0 %v6806
    %v7717 = vpop.f32.mrb[0].mxu0
    %v7718 = vadd.f32 %v7519, %v7717
    %v7719 = vpop.f32.mrb[0].mxu0
    %7720 = vmatprep.mubr.f32.mxu0 %v6982
    %7721 = vmatmul.mubr.f32.gmra.mrb[0].mxu0 %v6640
    %v7722 = vpop.f32.mrb[0].mxu0
    %v7723 = vadd.f32 %v7519, %v7722
    %v7724 = vpop.f32.mrb[0].mxu0
    %7725 = vmatprep.mubr.f32.mxu0 %v6985
    %7726 = vmatmul.mubr.f32.gmra.mrb[0].mxu0 %v6807
    %v7727 = vpop.f32.mrb[0].mxu0
    %v7728 = vadd.f32 %v7519, %v7727
    %v7729 = vpop.f32.mrb[0].mxu0
    %7730 = vmatprep.mubr.f32.mxu0 %v6987
    %7731 = vmatmul.mubr.f32.gmra.mrb[0].mxu0 %v6643
    %v7732 = vpop.f32.mrb[0].mxu0
    %v7733 = vadd.f32 %v7519, %v7732
    %v7734 = vpop.f32.mrb[0].mxu0
    %7735 = vmatprep.mubr.f32.mxu0 %v6990
    %7736 = vmatmul.mubr.f32.gmra.mrb[0].mxu0 %v6808
    %v7737 = vpop.f32.mrb[0].mxu0
    %v7738 = vadd.f32 %v7519, %v7737
    %v7739 = vpop.f32.mrb[0].mxu0
    %7740 = vmatprep.mubr.f32.mxu0 %v6992
    %7741 = vmatmul.mubr.f32.gmra.mrb[0].mxu0 %v6646
    %v7742 = vpop.f32.mrb[0].mxu0
    %v7743 = vadd.f32 %v7519, %v7742
    %v7744 = vpop.f32.mrb[0].mxu0
    %7745 = vmatprep.mubr.f32.mxu0 %v545
    %7746 = vmatmul.mubr.f32.gmra.mrb[0].mxu0 %v414
    %v7747 = vpop.f32.mrb[0].mxu0
    %v7748 = vadd.f32 %v7519, %v7747
    %v7749 = vpop.f32.mrb[0].mxu0
    %7750 = vmatprep.mubr.f32.mxu0 %v547
    %7751 = vmatmul.mubr.f32.gmra.mrb[0].mxu0 %v219
    %v7752 = vpop.f32.mrb[0].mxu0
    %v7753 = vadd.f32 %v7519, %v7752
    %v7754 = vpop.f32.mrb[0].mxu0
    %7755 = vmatprep.mubr.f32.mxu0 %v6995
    %7756 = vmatmul.mubr.f32.gmra.mrb[0].mxu0 %v6810
    %v7757 = vpop.f32.mrb[0].mxu0
    %v7758 = vadd.f32 %v7519, %v7757
    %v7759 = vpop.f32.mrb[0].mxu0
    %7760 = vmatprep.mubr.f32.mxu0 %v6997
    %7761 = vmatmul.mubr.f32.gmra.mrb[0].mxu0 %v6652
    %v7762 = vpop.f32.mrb[0].mxu0
    %v7763 = vadd.f32 %v7519, %v7762
    %v7764 = vpop.f32.mrb[0].mxu0
    %7765 = vmatprep.mubr.f32.mxu0 %v7000
    %7766 = vmatmul.mubr.f32.gmra.mrb[0].mxu0 %v6811
    %v7767 = vpop.f32.mrb[0].mxu0
    %v7768 = vadd.f32 %v7519, %v7767
    %v7769 = vpop.f32.mrb[0].mxu0
    %7770 = vmatprep.mubr.f32.mxu0 %v7002
    %7771 = vmatmul.mubr.f32.gmra.mrb[0].mxu0 %v6655
    %v7772 = vpop.f32.mrb[0].mxu0
    %v7773 = vadd.f32 %v7519, %v7772
    %v7774 = vpop.f32.mrb[0].mxu0
    %7775 = vmatprep.mubr.f32.mxu0 %v7005
    %7776 = vmatmul.mubr.f32.gmra.mrb[0].mxu0 %v6812
    %v7777 = vpop.f32.mrb[0].mxu0
    %v7778 = vadd.f32 %v7519, %v7777
    %v7779 = vpop.f32.mrb[0].mxu0
    %7780 = vmatprep.mubr.f32.mxu0 %v7007
    %7781 = vmatmul.mubr.f32.gmra.mrb[0].mxu0 %v6658
    %v7782 = vpop.f32.mrb[0].mxu0
    %v7783 = vadd.f32 %v7519, %v7782
    %v7784 = vpop.f32.mrb[0].mxu0
    %7785 = vmatprep.mubr.f32.mxu0 %v7010
    %7786 = vmatmul.mubr.f32.gmra.mrb[0].mxu0 %v6813
    %v7787 = vpop.f32.mrb[0].mxu0
    %v7788 = vadd.f32 %v7519, %v7787
    %v7789 = vpop.f32.mrb[0].mxu0
    %7790 = vmatprep.mubr.f32.mxu0 %v7012
    %7791 = vmatmul.mubr.f32.gmra.mrb[0].mxu0 %v6661
    %v7792 = vpop.f32.mrb[0].mxu0
    %v7793 = vadd.f32 %v7519, %v7792
    %v7794 = vpop.f32.mrb[0].mxu0
    %7795 = vmatprep.mubr.f32.mxu0 %v7015
    %7796 = vmatmul.mubr.f32.gmra.mrb[0].mxu0 %v6814
    %v7797 = vpop.f32.mrb[0].mxu0
    %v7798 = vadd.f32 %v7519, %v7797
    %v7799 = vpop.f32.mrb[0].mxu0
    %7800 = vmatprep.mubr.f32.mxu0 %v7017
    %7801 = vmatmul.mubr.f32.gmra.mrb[0].mxu0 %v6664
    %v7802 = vpop.f32.mrb[0].mxu0
    %v7803 = vadd.f32 %v7519, %v7802
    %v7804 = vpop.f32.mrb[0].mxu0
    %7805 = vmatprep.mubr.f32.mxu0 %v7020
    %7806 = vmatmul.mubr.f32.gmra.mrb[0].mxu0 %v6815
    %v7807 = vpop.f32.mrb[0].mxu0
    %v7808 = vadd.f32 %v7519, %v7807
    %v7809 = vpop.f32.mrb[0].mxu0
    %7810 = vmatprep.mubr.f32.mxu0 %v7022
    %7811 = vmatmul.mubr.f32.gmra.mrb[0].mxu0 %v6667
    %v7812 = vpop.f32.mrb[0].mxu0
    %v7813 = vadd.f32 %v7519, %v7812
    %v7814 = vpop.f32.mrb[0].mxu0
    %7815 = vmatprep.mubr.f32.mxu0 %v7025
    %7816 = vmatmul.mubr.f32.gmra.mrb[0].mxu0 %v6816
    %v7817 = vpop.f32.mrb[0].mxu0
    %v7818 = vadd.f32 %v7519, %v7817
    %v7819 = vpop.f32.mrb[0].mxu0
    %7820 = vmatprep.mubr.f32.mxu0 %v7027
    %7821 = vmatmul.mubr.f32.gmra.mrb[0].mxu0 %v6670
    %v7822 = vpop.f32.mrb[0].mxu0
    %v7823 = vadd.f32 %v7519, %v7822
    %v7824 = vpop.f32.mrb[0].mxu0
    %7825 = vmatprep.mubr.f32.mxu0 %v7030
    %7826 = vmatmul.mubr.f32.gmra.mrb[0].mxu0 %v6817
    %v7827 = vpop.f32.mrb[0].mxu0
    %v7828 = vadd.f32 %v7519, %v7827
    %v7829 = vpop.f32.mrb[0].mxu0
    %7830 = vmatprep.mubr.f32.mxu0 %v7032
    %7831 = vmatmul.mubr.f32.gmra.mrb[0].mxu0 %v6673
    %v7832 = vpop.f32.mrb[0].mxu0
    %v7833 = vadd.f32 %v7519, %v7832
    %v7834 = vpop.f32.mrb[0].mxu0
    %7835 = vmatprep.mubr.f32.mxu0 %v7035
    %7836 = vmatmul.mubr.f32.gmra.mrb[0].mxu0 %v6818
    %v7837 = vpop.f32.mrb[0].mxu0
    %v7838 = vadd.f32 %v7519, %v7837
    %v7839 = vpop.f32.mrb[0].mxu0
    %7840 = vmatprep.mubr.f32.mxu0 %v7037
    %7841 = vmatmul.mubr.f32.gmra.mrb[0].mxu0 %v6676
    %v7842 = vpop.f32.mrb[0].mxu0
    %v7843 = vadd.f32 %v7519, %v7842
    %v7844 = vpop.f32.mrb[0].mxu0
    %7845 = vmatprep.mubr.f32.mxu0 %v7040
    %7846 = vmatmul.mubr.f32.gmra.mrb[0].mxu0 %v6819
    %v7847 = vpop.f32.mrb[0].mxu0
    %v7848 = vadd.f32 %v7519, %v7847
    %v7849 = vpop.f32.mrb[0].mxu0
    %7850 = vmatprep.mubr.f32.mxu0 %v7042
    %7851 = vmatmul.mubr.f32.gmra.mrb[0].mxu0 %v6679
    %v7852 = vpop.f32.mrb[0].mxu0
    %v7853 = vadd.f32 %v7519, %v7852
    %v7854 = vpop.f32.mrb[0].mxu0
    %7855 = vmatprep.mubr.f32.mxu0 %v7045
    %7856 = vmatmul.mubr.f32.gmra.mrb[0].mxu0 %v6820
    %v7857 = vpop.f32.mrb[0].mxu0
    %v7858 = vadd.f32 %v7519, %v7857
    %v7859 = vpop.f32.mrb[0].mxu0
    %7860 = vmatprep.mubr.f32.mxu0 %v7047
    %7861 = vmatmul.mubr.f32.gmra.mrb[0].mxu0 %v6682
    %v7862 = vpop.f32.mrb[0].mxu0
    %v7863 = vadd.f32 %v7519, %v7862
    %v7864 = vpop.f32.mrb[0].mxu0
    %7865 = vmatprep.mubr.f32.mxu0 %v7050
    %7866 = vmatmul.mubr.f32.gmra.mrb[0].mxu0 %v6821
    %v7867 = vpop.f32.mrb[0].mxu0
    %v7868 = vadd.f32 %v7519, %v7867
    %v7869 = vpop.f32.mrb[0].mxu0
    %7870 = vmatprep.mubr.f32.mxu0 %v7052
    %7871 = vmatmul.mubr.f32.gmra.mrb[0].mxu0 %v6685
    %v7872 = vpop.f32.mrb[0].mxu0
    %v7873 = vadd.f32 %v7519, %v7872
    %v7874 = vpop.f32.mrb[0].mxu0
    %7875 = vmatprep.mubr.f32.mxu0 %v7055
    %7876 = vmatmul.mubr.f32.gmra.mrb[0].mxu0 %v6822
    %v7877 = vpop.f32.mrb[0].mxu0
    %v7878 = vadd.f32 %v7519, %v7877
    %v7879 = vpop.f32.mrb[0].mxu0
    %7880 = vmatprep.mubr.f32.mxu0 %v7057
    %7881 = vmatmul.mubr.f32.gmra.mrb[0].mxu0 %v6688
    %v7882 = vpop.f32.mrb[0].mxu0
    %v7883 = vadd.f32 %v7519, %v7882
    %v7884 = vpop.f32.mrb[0].mxu0
    %7885 = vmatprep.mubr.f32.mxu0 %v7060
    %7886 = vmatmul.mubr.f32.gmra.mrb[0].mxu0 %v6823
    %v7887 = vpop.f32.mrb[0].mxu0
    %v7888 = vadd.f32 %v7519, %v7887
    %v7889 = vpop.f32.mrb[0].mxu0
    %7890 = vmatprep.mubr.f32.mxu0 %v7062
    %7891 = vmatmul.mubr.f32.gmra.mrb[0].mxu0 %v6691
    %v7892 = vpop.f32.mrb[0].mxu0
    %v7893 = vadd.f32 %v7519, %v7892
    %v7894 = vpop.f32.mrb[0].mxu0
    %7895 = vmatprep.mubr.f32.mxu0 %v7065
    %7896 = vmatmul.mubr.f32.gmra.mrb[0].mxu0 %v6824
    %v7897 = vpop.f32.mrb[0].mxu0
    %v7898 = vadd.f32 %v7519, %v7897
    %v7899 = vpop.f32.mrb[0].mxu0
    %7900 = vmatprep.mubr.f32.mxu0 %v7067
    %7901 = vmatmul.mubr.f32.gmra.mrb[0].mxu0 %v6694
    %v7902 = vpop.f32.mrb[0].mxu0
    %v7903 = vadd.f32 %v7519, %v7902
    %v7904 = vpop.f32.mrb[0].mxu0
    %7905 = vdwg.mxu0
    %7906 = vmatprep.subr.mxu0 0.0
    %7907 = vmatpush1.msra.mxu0 %v7402
    %7908 = vmatprep.subr.mxu0 0.0
    %7909 = vmatpush1.msra.mxu0 %v7403
    %7910 = vmatprep.subr.mxu0 0.0
    %7911 = vmatpush1.msra.mxu0 %v7404
    %7912 = vmatprep.subr.mxu0 0.0
    %7913 = vmatpush1.msra.mxu0 %v7405
    %7914 = vmatprep.subr.mxu0 0.0
    %7915 = vmatpush1.msra.mxu0 %v7406
    %7916 = vmatprep.subr.mxu0 0.0
    %7917 = vmatpush1.msra.mxu0 %v7407
    %7918 = vmatprep.subr.mxu0 0.0
    %7919 = vmatpush1.msra.mxu0 %v7408
    %7920 = vmatprep.subr.mxu0 0.0
    %7921 = vmatpush1.msra.mxu0 %v7409
    %7922 = vmatprep.subr.mxu0 0.0
    %7923 = vmatpush1.msra.mxu0 %v7410
    %7924 = vmatprep.subr.mxu0 0.0
    %7925 = vmatpush1.msra.mxu0 %v7411
    %7926 = vmatprep.subr.mxu0 0.0
    %7927 = vmatpush1.msra.mxu0 %v7412
    %7928 = vmatprep.subr.mxu0 0.0
    %7929 = vmatpush1.msra.mxu0 %v7413
    %7930 = vmatprep.subr.mxu0 0.0
    %7931 = vmatpush1.msra.mxu0 %v7414
    %7932 = vmatprep.subr.mxu0 0.0
    %7933 = vmatpush1.msra.mxu0 %v7415
    %7934 = vmatprep.subr.mxu0 0.0
    %7935 = vmatpush1.msra.mxu0 %v7416
    %7936 = vmatprep.subr.mxu0 0.0
    %7937 = vmatpush1.msra.mxu0 %v7417
    %7938 = vmatprep.subr.mxu0 0.0
    %7939 = vmatpush1.msra.mxu0 %v7418
    %7940 = vmatprep.subr.mxu0 0.0
    %7941 = vmatpush1.msra.mxu0 %v7419
    %7942 = vmatprep.subr.mxu0 0.0
    %7943 = vmatpush1.msra.mxu0 %v7420
    %7944 = vmatprep.subr.mxu0 0.0
    %7945 = vmatpush1.msra.mxu0 %v7421
    %7946 = vmatprep.subr.mxu0 0.0
    %7947 = vmatpush1.msra.mxu0 %v7422
    %7948 = vmatprep.subr.mxu0 0.0
    %7949 = vmatpush1.msra.mxu0 %v7423
    %7950 = vmatprep.subr.mxu0 0.0
    %7951 = vmatpush1.msra.mxu0 %v7424
    %7952 = vmatprep.subr.mxu0 0.0
    %7953 = vmatpush1.msra.mxu0 %v7425
    %7954 = vmatprep.subr.mxu0 0.0
    %7955 = vmatpush1.msra.mxu0 %v7426
    %7956 = vmatprep.subr.mxu0 0.0
    %7957 = vmatpush1.msra.mxu0 %v7427
    %7958 = vmatprep.subr.mxu0 0.0
    %7959 = vmatpush1.msra.mxu0 %v7428
    %7960 = vmatprep.subr.mxu0 0.0
    %7961 = vmatpush1.msra.mxu0 %v7429
    %7962 = vmatprep.subr.mxu0 0.0
    %7963 = vmatpush1.msra.mxu0 %v7430
    %7964 = vmatprep.subr.mxu0 0.0
    %7965 = vmatpush1.msra.mxu0 %v7431
    %7966 = vmatprep.subr.mxu0 0.0
    %7967 = vmatpush1.msra.mxu0 %v7432
    %7968 = vmatprep.subr.mxu0 0.0
    %7969 = vmatpush1.msra.mxu0 %v7433
    %7970 = vmatprep.mubr.f32.mxu0 %v6794
    %7971 = vmatmul.mubr.f32.gmra.mrb[0].mxu0 %v763
    %v7972 = vpop.f32.mrb[0].mxu0
    %v7973 = vadd.f32 %v7588, %v7972
    %v7974 = vpop.f32.mrb[0].mxu0
    %7975 = vmatprep.mubr.f32.mxu0 %v6604
    %7976 = vmatmul.mubr.f32.gmra.mrb[0].mxu0 %v765
    %v7977 = vpop.f32.mrb[0].mxu0
    %v7978 = vadd.f32 %v7593, %v7977
    %v7979 = vpop.f32.mrb[0].mxu0
    %7980 = vmatprep.mubr.f32.mxu0 %v6795
    %7981 = vmatmul.mubr.f32.gmra.mrb[0].mxu0 %v7130
    %v7982 = vpop.f32.mrb[0].mxu0
    %v7983 = vadd.f32 %v7598, %v7982
    %v7984 = vpop.f32.mrb[0].mxu0
    %7985 = vmatprep.mubr.f32.mxu0 %v6607
    %7986 = vmatmul.mubr.f32.gmra.mrb[0].mxu0 %v7132
    %v7987 = vpop.f32.mrb[0].mxu0
    %v7988 = vadd.f32 %v7603, %v7987
    %v7989 = vpop.f32.mrb[0].mxu0
    %7990 = vmatprep.mubr.f32.mxu0 %v6796
    %7991 = vmatmul.mubr.f32.gmra.mrb[0].mxu0 %v7135
    %v7992 = vpop.f32.mrb[0].mxu0
    %v7993 = vadd.f32 %v7608, %v7992
    %v7994 = vpop.f32.mrb[0].mxu0
    %7995 = vmatprep.mubr.f32.mxu0 %v6610
    %7996 = vmatmul.mubr.f32.gmra.mrb[0].mxu0 %v7137
    %v7997 = vpop.f32.mrb[0].mxu0
    %v7998 = vadd.f32 %v7613, %v7997
    %v7999 = vpop.f32.mrb[0].mxu0
    %8000 = vmatprep.mubr.f32.mxu0 %v6797
    %8001 = vmatmul.mubr.f32.gmra.mrb[0].mxu0 %v7140
    %v8002 = vpop.f32.mrb[0].mxu0
    %v8003 = vadd.f32 %v7618, %v8002
    %v8004 = vpop.f32.mrb[0].mxu0
    %8005 = vmatprep.mubr.f32.mxu0 %v6613
    %8006 = vmatmul.mubr.f32.gmra.mrb[0].mxu0 %v7142
    %v8007 = vpop.f32.mrb[0].mxu0
    %v8008 = vadd.f32 %v7623, %v8007
    %v8009 = vpop.f32.mrb[0].mxu0
    %8010 = vmatprep.mubr.f32.mxu0 %v6798
    %8011 = vmatmul.mubr.f32.gmra.mrb[0].mxu0 %v7145
    %v8012 = vpop.f32.mrb[0].mxu0
    %v8013 = vadd.f32 %v7628, %v8012
    %v8014 = vpop.f32.mrb[0].mxu0
    %8015 = vmatprep.mubr.f32.mxu0 %v6616
    %8016 = vmatmul.mubr.f32.gmra.mrb[0].mxu0 %v7147
    %v8017 = vpop.f32.mrb[0].mxu0
    %v8018 = vadd.f32 %v7633, %v8017
    %v8019 = vpop.f32.mrb[0].mxu0
    %8020 = vmatprep.mubr.f32.mxu0 %v6799
    %8021 = vmatmul.mubr.f32.gmra.mrb[0].mxu0 %v7150
    %v8022 = vpop.f32.mrb[0].mxu0
    %v8023 = vadd.f32 %v7638, %v8022
    %v8024 = vpop.f32.mrb[0].mxu0
    %8025 = vmatprep.mubr.f32.mxu0 %v6619
    %8026 = vmatmul.mubr.f32.gmra.mrb[0].mxu0 %v7152
    %v8027 = vpop.f32.mrb[0].mxu0
    %v8028 = vadd.f32 %v7643, %v8027
    %v8029 = vpop.f32.mrb[0].mxu0
    %8030 = vmatprep.mubr.f32.mxu0 %v6800
    %8031 = vmatmul.mubr.f32.gmra.mrb[0].mxu0 %v7155
    %v8032 = vpop.f32.mrb[0].mxu0
    %v8033 = vadd.f32 %v7648, %v8032
    %v8034 = vpop.f32.mrb[0].mxu0
    %8035 = vmatprep.mubr.f32.mxu0 %v6622
    %8036 = vmatmul.mubr.f32.gmra.mrb[0].mxu0 %v7157
    %v8037 = vpop.f32.mrb[0].mxu0
    %v8038 = vadd.f32 %v7653, %v8037
    %v8039 = vpop.f32.mrb[0].mxu0
    %8040 = vmatprep.mubr.f32.mxu0 %v6801
    %8041 = vmatmul.mubr.f32.gmra.mrb[0].mxu0 %v7160
    %v8042 = vpop.f32.mrb[0].mxu0
    %v8043 = vadd.f32 %v7658, %v8042
    %v8044 = vpop.f32.mrb[0].mxu0
    %8045 = vmatprep.mubr.f32.mxu0 %v6625
    %8046 = vmatmul.mubr.f32.gmra.mrb[0].mxu0 %v7162
    %v8047 = vpop.f32.mrb[0].mxu0
    %v8048 = vadd.f32 %v7663, %v8047
    %v8049 = vpop.f32.mrb[0].mxu0
    %8050 = vmatprep.mubr.f32.mxu0 %v6802
    %8051 = vmatmul.mubr.f32.gmra.mrb[0].mxu0 %v7165
    %v8052 = vpop.f32.mrb[0].mxu0
    %v8053 = vadd.f32 %v7668, %v8052
    %v8054 = vpop.f32.mrb[0].mxu0
    %8055 = vmatprep.mubr.f32.mxu0 %v6628
    %8056 = vmatmul.mubr.f32.gmra.mrb[0].mxu0 %v7167
    %v8057 = vpop.f32.mrb[0].mxu0
    %v8058 = vadd.f32 %v7673, %v8057
    %v8059 = vpop.f32.mrb[0].mxu0
    %8060 = vmatprep.mubr.f32.mxu0 %v6803
    %8061 = vmatmul.mubr.f32.gmra.mrb[0].mxu0 %v7170
    %v8062 = vpop.f32.mrb[0].mxu0
    %v8063 = vadd.f32 %v7678, %v8062
    %v8064 = vpop.f32.mrb[0].mxu0
    %8065 = vmatprep.mubr.f32.mxu0 %v6631
    %8066 = vmatmul.mubr.f32.gmra.mrb[0].mxu0 %v7172
    %v8067 = vpop.f32.mrb[0].mxu0
    %v8068 = vadd.f32 %v7683, %v8067
    %v8069 = vpop.f32.mrb[0].mxu0
    %8070 = vmatprep.mubr.f32.mxu0 %v6804
    %8071 = vmatmul.mubr.f32.gmra.mrb[0].mxu0 %v7175
    %v8072 = vpop.f32.mrb[0].mxu0
    %v8073 = vadd.f32 %v7688, %v8072
    %v8074 = vpop.f32.mrb[0].mxu0
    %8075 = vmatprep.mubr.f32.mxu0 %v6634
    %8076 = vmatmul.mubr.f32.gmra.mrb[0].mxu0 %v7177
    %v8077 = vpop.f32.mrb[0].mxu0
    %v8078 = vadd.f32 %v7693, %v8077
    %v8079 = vpop.f32.mrb[0].mxu0
    %8080 = vmatprep.mubr.f32.mxu0 %v6805
    %8081 = vmatmul.mubr.f32.gmra.mrb[0].mxu0 %v7180
    %v8082 = vpop.f32.mrb[0].mxu0
    %v8083 = vadd.f32 %v7698, %v8082
    %v8084 = vpop.f32.mrb[0].mxu0
    %8085 = vmatprep.mubr.f32.mxu0 %v6637
    %8086 = vmatmul.mubr.f32.gmra.mrb[0].mxu0 %v7182
    %v8087 = vpop.f32.mrb[0].mxu0
    %v8088 = vadd.f32 %v7703, %v8087
    %v8089 = vpop.f32.mrb[0].mxu0
    %8090 = vmatprep.mubr.f32.mxu0 %v6806
    %8091 = vmatmul.mubr.f32.gmra.mrb[0].mxu0 %v7185
    %v8092 = vpop.f32.mrb[0].mxu0
    %v8093 = vadd.f32 %v7708, %v8092
    %v8094 = vpop.f32.mrb[0].mxu0
    %8095 = vmatprep.mubr.f32.mxu0 %v6640
    %8096 = vmatmul.mubr.f32.gmra.mrb[0].mxu0 %v7187
    %v8097 = vpop.f32.mrb[0].mxu0
    %v8098 = vadd.f32 %v7713, %v8097
    %v8099 = vpop.f32.mrb[0].mxu0
    %8100 = vmatprep.mubr.f32.mxu0 %v6807
    %8101 = vmatmul.mubr.f32.gmra.mrb[0].mxu0 %v7190
    %v8102 = vpop.f32.mrb[0].mxu0
    %v8103 = vadd.f32 %v7718, %v8102
    %v8104 = vpop.f32.mrb[0].mxu0
    %8105 = vmatprep.mubr.f32.mxu0 %v6643
    %8106 = vmatmul.mubr.f32.gmra.mrb[0].mxu0 %v7192
    %v8107 = vpop.f32.mrb[0].mxu0
    %v8108 = vadd.f32 %v7723, %v8107
    %v8109 = vpop.f32.mrb[0].mxu0
    %8110 = vmatprep.mubr.f32.mxu0 %v6808
    %8111 = vmatmul.mubr.f32.gmra.mrb[0].mxu0 %v7195
    %v8112 = vpop.f32.mrb[0].mxu0
    %v8113 = vadd.f32 %v7728, %v8112
    %v8114 = vpop.f32.mrb[0].mxu0
    %8115 = vmatprep.mubr.f32.mxu0 %v6646
    %8116 = vmatmul.mubr.f32.gmra.mrb[0].mxu0 %v7197
    %v8117 = vpop.f32.mrb[0].mxu0
    %v8118 = vadd.f32 %v7733, %v8117
    %v8119 = vpop.f32.mrb[0].mxu0
    %8120 = vmatprep.mubr.f32.mxu0 %v6809
    %8121 = vmatmul.mubr.f32.gmra.mrb[0].mxu0 %v7200
    %v8122 = vpop.f32.mrb[0].mxu0
    %v8123 = vadd.f32 %v7738, %v8122
    %v8124 = vpop.f32.mrb[0].mxu0
    %8125 = vmatprep.mubr.f32.mxu0 %v6649
    %8126 = vmatmul.mubr.f32.gmra.mrb[0].mxu0 %v7202
    %v8127 = vpop.f32.mrb[0].mxu0
    %v8128 = vadd.f32 %v7743, %v8127
    %v8129 = vpop.f32.mrb[0].mxu0
    %8130 = vmatprep.mubr.f32.mxu0 %v6810
    %8131 = vmatmul.mubr.f32.gmra.mrb[0].mxu0 %v763
    %v8132 = vpop.f32.mrb[0].mxu0
    %v8133 = vadd.f32 %v7748, %v8132
    %v8134 = vpop.f32.mrb[0].mxu0
    %8135 = vmatprep.mubr.f32.mxu0 %v6652
    %8136 = vmatmul.mubr.f32.gmra.mrb[0].mxu0 %v765
    %v8137 = vpop.f32.mrb[0].mxu0
    %v8138 = vadd.f32 %v7753, %v8137
    %v8139 = vpop.f32.mrb[0].mxu0
    %8140 = vmatprep.mubr.f32.mxu0 %v6811
    %8141 = vmatmul.mubr.f32.gmra.mrb[0].mxu0 %v7205
    %v8142 = vpop.f32.mrb[0].mxu0
    %v8143 = vadd.f32 %v7758, %v8142
    %v8144 = vpop.f32.mrb[0].mxu0
    %8145 = vmatprep.mubr.f32.mxu0 %v6655
    %8146 = vmatmul.mubr.f32.gmra.mrb[0].mxu0 %v7207
    %v8147 = vpop.f32.mrb[0].mxu0
    %v8148 = vadd.f32 %v7763, %v8147
    %v8149 = vpop.f32.mrb[0].mxu0
    %8150 = vmatprep.mubr.f32.mxu0 %v6812
    %8151 = vmatmul.mubr.f32.gmra.mrb[0].mxu0 %v7210
    %v8152 = vpop.f32.mrb[0].mxu0
    %v8153 = vadd.f32 %v7768, %v8152
    %v8154 = vpop.f32.mrb[0].mxu0
    %8155 = vmatprep.mubr.f32.mxu0 %v6658
    %8156 = vmatmul.mubr.f32.gmra.mrb[0].mxu0 %v7212
    %v8157 = vpop.f32.mrb[0].mxu0
    %v8158 = vadd.f32 %v7773, %v8157
    %v8159 = vpop.f32.mrb[0].mxu0
    %8160 = vmatprep.mubr.f32.mxu0 %v6813
    %8161 = vmatmul.mubr.f32.gmra.mrb[0].mxu0 %v7215
    %v8162 = vpop.f32.mrb[0].mxu0
    %v8163 = vadd.f32 %v7778, %v8162
    %v8164 = vpop.f32.mrb[0].mxu0
    %8165 = vmatprep.mubr.f32.mxu0 %v6661
    %8166 = vmatmul.mubr.f32.gmra.mrb[0].mxu0 %v7217
    %v8167 = vpop.f32.mrb[0].mxu0
    %v8168 = vadd.f32 %v7783, %v8167
    %v8169 = vpop.f32.mrb[0].mxu0
    %8170 = vmatprep.mubr.f32.mxu0 %v6814
    %8171 = vmatmul.mubr.f32.gmra.mrb[0].mxu0 %v7220
    %v8172 = vpop.f32.mrb[0].mxu0
    %v8173 = vadd.f32 %v7788, %v8172
    %v8174 = vpop.f32.mrb[0].mxu0
    %8175 = vmatprep.mubr.f32.mxu0 %v6664
    %8176 = vmatmul.mubr.f32.gmra.mrb[0].mxu0 %v7222
    %v8177 = vpop.f32.mrb[0].mxu0
    %v8178 = vadd.f32 %v7793, %v8177
    %v8179 = vpop.f32.mrb[0].mxu0
    %8180 = vmatprep.mubr.f32.mxu0 %v6815
    %8181 = vmatmul.mubr.f32.gmra.mrb[0].mxu0 %v7225
    %v8182 = vpop.f32.mrb[0].mxu0
    %v8183 = vadd.f32 %v7798, %v8182
    %v8184 = vpop.f32.mrb[0].mxu0
    %8185 = vmatprep.mubr.f32.mxu0 %v6667
    %8186 = vmatmul.mubr.f32.gmra.mrb[0].mxu0 %v7227
    %v8187 = vpop.f32.mrb[0].mxu0
    %v8188 = vadd.f32 %v7803, %v8187
    %v8189 = vpop.f32.mrb[0].mxu0
    %8190 = vmatprep.mubr.f32.mxu0 %v6816
    %8191 = vmatmul.mubr.f32.gmra.mrb[0].mxu0 %v7230
    %v8192 = vpop.f32.mrb[0].mxu0
    %v8193 = vadd.f32 %v7808, %v8192
    %v8194 = vpop.f32.mrb[0].mxu0
    %8195 = vmatprep.mubr.f32.mxu0 %v6670
    %8196 = vmatmul.mubr.f32.gmra.mrb[0].mxu0 %v7232
    %v8197 = vpop.f32.mrb[0].mxu0
    %v8198 = vadd.f32 %v7813, %v8197
    %v8199 = vpop.f32.mrb[0].mxu0
    %8200 = vmatprep.mubr.f32.mxu0 %v6817
    %8201 = vmatmul.mubr.f32.gmra.mrb[0].mxu0 %v7235
    %v8202 = vpop.f32.mrb[0].mxu0
    %v8203 = vadd.f32 %v7818, %v8202
    %v8204 = vpop.f32.mrb[0].mxu0
    %8205 = vmatprep.mubr.f32.mxu0 %v6673
    %8206 = vmatmul.mubr.f32.gmra.mrb[0].mxu0 %v7237
    %v8207 = vpop.f32.mrb[0].mxu0
    %v8208 = vadd.f32 %v7823, %v8207
    %v8209 = vpop.f32.mrb[0].mxu0
    %8210 = vmatprep.mubr.f32.mxu0 %v6818
    %8211 = vmatmul.mubr.f32.gmra.mrb[0].mxu0 %v7240
    %v8212 = vpop.f32.mrb[0].mxu0
    %v8213 = vadd.f32 %v7828, %v8212
    %v8214 = vpop.f32.mrb[0].mxu0
    %8215 = vmatprep.mubr.f32.mxu0 %v6676
    %8216 = vmatmul.mubr.f32.gmra.mrb[0].mxu0 %v7242
    %v8217 = vpop.f32.mrb[0].mxu0
    %v8218 = vadd.f32 %v7833, %v8217
    %v8219 = vpop.f32.mrb[0].mxu0
    %8220 = vmatprep.mubr.f32.mxu0 %v6819
    %8221 = vmatmul.mubr.f32.gmra.mrb[0].mxu0 %v7245
    %v8222 = vpop.f32.mrb[0].mxu0
    %v8223 = vadd.f32 %v7838, %v8222
    %v8224 = vpop.f32.mrb[0].mxu0
    %8225 = vmatprep.mubr.f32.mxu0 %v6679
    %8226 = vmatmul.mubr.f32.gmra.mrb[0].mxu0 %v7247
    %v8227 = vpop.f32.mrb[0].mxu0
    %v8228 = vadd.f32 %v7843, %v8227
    %v8229 = vpop.f32.mrb[0].mxu0
    %8230 = vmatprep.mubr.f32.mxu0 %v6820
    %8231 = vmatmul.mubr.f32.gmra.mrb[0].mxu0 %v7250
    %v8232 = vpop.f32.mrb[0].mxu0
    %v8233 = vadd.f32 %v7848, %v8232
    %v8234 = vpop.f32.mrb[0].mxu0
    %8235 = vmatprep.mubr.f32.mxu0 %v6682
    %8236 = vmatmul.mubr.f32.gmra.mrb[0].mxu0 %v7252
    %v8237 = vpop.f32.mrb[0].mxu0
    %v8238 = vadd.f32 %v7853, %v8237
    %v8239 = vpop.f32.mrb[0].mxu0
    %8240 = vmatprep.mubr.f32.mxu0 %v6821
    %8241 = vmatmul.mubr.f32.gmra.mrb[0].mxu0 %v7255
    %v8242 = vpop.f32.mrb[0].mxu0
    %v8243 = vadd.f32 %v7858, %v8242
    %v8244 = vpop.f32.mrb[0].mxu0
    %8245 = vmatprep.mubr.f32.mxu0 %v6685
    %8246 = vmatmul.mubr.f32.gmra.mrb[0].mxu0 %v7257
    %v8247 = vpop.f32.mrb[0].mxu0
    %v8248 = vadd.f32 %v7863, %v8247
    %v8249 = vpop.f32.mrb[0].mxu0
    %8250 = vmatprep.mubr.f32.mxu0 %v6822
    %8251 = vmatmul.mubr.f32.gmra.mrb[0].mxu0 %v7260
    %v8252 = vpop.f32.mrb[0].mxu0
    %v8253 = vadd.f32 %v7868, %v8252
    %v8254 = vpop.f32.mrb[0].mxu0
    %8255 = vmatprep.mubr.f32.mxu0 %v6688
    %8256 = vmatmul.mubr.f32.gmra.mrb[0].mxu0 %v7262
    %v8257 = vpop.f32.mrb[0].mxu0
    %v8258 = vadd.f32 %v7873, %v8257
    %v8259 = vpop.f32.mrb[0].mxu0
    %8260 = vmatprep.mubr.f32.mxu0 %v6823
    %8261 = vmatmul.mubr.f32.gmra.mrb[0].mxu0 %v7265
    %v8262 = vpop.f32.mrb[0].mxu0
    %v8263 = vadd.f32 %v7878, %v8262
    %v8264 = vpop.f32.mrb[0].mxu0
    %8265 = vmatprep.mubr.f32.mxu0 %v6691
    %8266 = vmatmul.mubr.f32.gmra.mrb[0].mxu0 %v7267
    %v8267 = vpop.f32.mrb[0].mxu0
    %v8268 = vadd.f32 %v7883, %v8267
    %v8269 = vpop.f32.mrb[0].mxu0
    %8270 = vmatprep.mubr.f32.mxu0 %v6824
    %8271 = vmatmul.mubr.f32.gmra.mrb[0].mxu0 %v7270
    %v8272 = vpop.f32.mrb[0].mxu0
    %v8273 = vadd.f32 %v7888, %v8272
    %v8274 = vpop.f32.mrb[0].mxu0
    %8275 = vmatprep.mubr.f32.mxu0 %v6694
    %8276 = vmatmul.mubr.f32.gmra.mrb[0].mxu0 %v7272
    %v8277 = vpop.f32.mrb[0].mxu0
    %v8278 = vadd.f32 %v7893, %v8277
    %v8279 = vpop.f32.mrb[0].mxu0
    %8280 = vmatprep.mubr.f32.mxu0 %v6825
    %8281 = vmatmul.mubr.f32.gmra.mrb[0].mxu0 %v7275
    %v8282 = vpop.f32.mrb[0].mxu0
    %v8283 = vadd.f32 %v7898, %v8282
    %v8284 = vpop.f32.mrb[0].mxu0
    %8285 = vmatprep.mubr.f32.mxu0 %v6697
    %8286 = vmatmul.mubr.f32.gmra.mrb[0].mxu0 %v7277
    %v8287 = vpop.f32.mrb[0].mxu0
    %v8288 = vadd.f32 %v7903, %v8287
    %v8289 = vpop.f32.mrb[0].mxu0
    %8290 = vdwg.mxu0
    %8291 = vmatprep.subr.mxu0 0.0
    %8292 = vmatpush1.msra.mxu0 %v7434
    %8293 = vmatprep.subr.mxu0 0.0
    %8294 = vmatpush1.msra.mxu0 %v7435
    %8295 = vmatprep.subr.mxu0 0.0
    %8296 = vmatpush1.msra.mxu0 %v7436
    %8297 = vmatprep.subr.mxu0 0.0
    %8298 = vmatpush1.msra.mxu0 %v7437
    %8299 = vmatprep.subr.mxu0 0.0
    %8300 = vmatpush1.msra.mxu0 %v7438
    %8301 = vmatprep.subr.mxu0 0.0
    %8302 = vmatpush1.msra.mxu0 %v7439
    %8303 = vmatprep.subr.mxu0 0.0
    %8304 = vmatpush1.msra.mxu0 %v7440
    %8305 = vmatprep.subr.mxu0 0.0
    %8306 = vmatpush1.msra.mxu0 %v7441
    %8307 = vmatprep.subr.mxu0 0.0
    %8308 = vmatpush1.msra.mxu0 %v7442
    %8309 = vmatprep.subr.mxu0 0.0
    %8310 = vmatpush1.msra.mxu0 %v7443
    %8311 = vmatprep.subr.mxu0 0.0
    %8312 = vmatpush1.msra.mxu0 %v7444
    %8313 = vmatprep.subr.mxu0 0.0
    %8314 = vmatpush1.msra.mxu0 %v7445
    %8315 = vmatprep.subr.mxu0 0.0
    %8316 = vmatpush1.msra.mxu0 %v7446
    %8317 = vmatprep.subr.mxu0 0.0
    %8318 = vmatpush1.msra.mxu0 %v7447
    %8319 = vmatprep.subr.mxu0 0.0
    %8320 = vmatpush1.msra.mxu0 %v7448
    %8321 = vmatprep.subr.mxu0 0.0
    %8322 = vmatpush1.msra.mxu0 %v7449
    %8323 = vmatprep.subr.mxu0 0.0
    %8324 = vmatpush1.msra.mxu0 %v7450
    %8325 = vmatprep.subr.mxu0 0.0
    %8326 = vmatpush1.msra.mxu0 %v7451
    %8327 = vmatprep.subr.mxu0 0.0
    %8328 = vmatpush1.msra.mxu0 %v7452
    %8329 = vmatprep.subr.mxu0 0.0
    %8330 = vmatpush1.msra.mxu0 %v7453
    %8331 = vmatprep.subr.mxu0 0.0
    %8332 = vmatpush1.msra.mxu0 %v7454
    %8333 = vmatprep.subr.mxu0 0.0
    %8334 = vmatpush1.msra.mxu0 %v7455
    %8335 = vmatprep.subr.mxu0 0.0
    %8336 = vmatpush1.msra.mxu0 %v7456
    %8337 = vmatprep.subr.mxu0 0.0
    %8338 = vmatpush1.msra.mxu0 %v7457
    %8339 = vmatprep.subr.mxu0 0.0
    %8340 = vmatpush1.msra.mxu0 %v7458
    %8341 = vmatprep.subr.mxu0 0.0
    %8342 = vmatpush1.msra.mxu0 %v7459
    %8343 = vmatprep.subr.mxu0 0.0
    %8344 = vmatpush1.msra.mxu0 %v7460
    %8345 = vmatprep.subr.mxu0 0.0
    %8346 = vmatpush1.msra.mxu0 %v7461
    %8347 = vmatprep.subr.mxu0 0.0
    %8348 = vmatpush1.msra.mxu0 %v7462
    %8349 = vmatprep.subr.mxu0 0.0
    %8350 = vmatpush1.msra.mxu0 %v7463
    %8351 = vmatprep.subr.mxu0 0.0
    %8352 = vmatpush1.msra.mxu0 %v7464
    %8353 = vmatprep.subr.mxu0 0.0
    %8354 = vmatpush1.msra.mxu0 %v7465
    %8355 = vmatprep.mubr.f32.mxu0 %v7130
    %8356 = vmatmul.mubr.f32.gmra.mrb[0].mxu0 %v6920
    %v8357 = vpop.f32.mrb[0].mxu0
    %v8358 = vadd.f32 %v7973, %v8357
    %v8359 = vpop.f32.mrb[0].mxu0
    %8360 = vmatprep.mubr.f32.mxu0 %v7132
    %8361 = vmatmul.mubr.f32.gmra.mrb[0].mxu0 %v6922
    %v8362 = vpop.f32.mrb[0].mxu0
    %v8363 = vadd.f32 %v7978, %v8362
    %v8364 = vpop.f32.mrb[0].mxu0
    %8365 = vmatprep.mubr.f32.mxu0 %v7135
    %8366 = vmatmul.mubr.f32.gmra.mrb[0].mxu0 %v6925
    %v8367 = vpop.f32.mrb[0].mxu0
    %v8368 = vadd.f32 %v7983, %v8367
    %v8369 = vpop.f32.mrb[0].mxu0
    %8370 = vmatprep.mubr.f32.mxu0 %v7137
    %8371 = vmatmul.mubr.f32.gmra.mrb[0].mxu0 %v6927
    %v8372 = vpop.f32.mrb[0].mxu0
    %v8373 = vadd.f32 %v7988, %v8372
    %v8374 = vpop.f32.mrb[0].mxu0
    %8375 = vmatprep.mubr.f32.mxu0 %v7140
    %8376 = vmatmul.mubr.f32.gmra.mrb[0].mxu0 %v6930
    %v8377 = vpop.f32.mrb[0].mxu0
    %v8378 = vadd.f32 %v7993, %v8377
    %v8379 = vpop.f32.mrb[0].mxu0
    %8380 = vmatprep.mubr.f32.mxu0 %v7142
    %8381 = vmatmul.mubr.f32.gmra.mrb[0].mxu0 %v6932
    %v8382 = vpop.f32.mrb[0].mxu0
    %v8383 = vadd.f32 %v7998, %v8382
    %v8384 = vpop.f32.mrb[0].mxu0
    %8385 = vmatprep.mubr.f32.mxu0 %v7145
    %8386 = vmatmul.mubr.f32.gmra.mrb[0].mxu0 %v6935
    %v8387 = vpop.f32.mrb[0].mxu0
    %v8388 = vadd.f32 %v8003, %v8387
    %v8389 = vpop.f32.mrb[0].mxu0
    %8390 = vmatprep.mubr.f32.mxu0 %v7147
    %8391 = vmatmul.mubr.f32.gmra.mrb[0].mxu0 %v6937
    %v8392 = vpop.f32.mrb[0].mxu0
    %v8393 = vadd.f32 %v8008, %v8392
    %v8394 = vpop.f32.mrb[0].mxu0
    %8395 = vmatprep.mubr.f32.mxu0 %v7150
    %8396 = vmatmul.mubr.f32.gmra.mrb[0].mxu0 %v6940
    %v8397 = vpop.f32.mrb[0].mxu0
    %v8398 = vadd.f32 %v8013, %v8397
    %v8399 = vpop.f32.mrb[0].mxu0
    %8400 = vmatprep.mubr.f32.mxu0 %v7152
    %8401 = vmatmul.mubr.f32.gmra.mrb[0].mxu0 %v6942
    %v8402 = vpop.f32.mrb[0].mxu0
    %v8403 = vadd.f32 %v8018, %v8402
    %v8404 = vpop.f32.mrb[0].mxu0
    %8405 = vmatprep.mubr.f32.mxu0 %v7155
    %8406 = vmatmul.mubr.f32.gmra.mrb[0].mxu0 %v6945
    %v8407 = vpop.f32.mrb[0].mxu0
    %v8408 = vadd.f32 %v8023, %v8407
    %v8409 = vpop.f32.mrb[0].mxu0
    %8410 = vmatprep.mubr.f32.mxu0 %v7157
    %8411 = vmatmul.mubr.f32.gmra.mrb[0].mxu0 %v6947
    %v8412 = vpop.f32.mrb[0].mxu0
    %v8413 = vadd.f32 %v8028, %v8412
    %v8414 = vpop.f32.mrb[0].mxu0
    %8415 = vmatprep.mubr.f32.mxu0 %v7160
    %8416 = vmatmul.mubr.f32.gmra.mrb[0].mxu0 %v6950
    %v8417 = vpop.f32.mrb[0].mxu0
    %v8418 = vadd.f32 %v8033, %v8417
    %v8419 = vpop.f32.mrb[0].mxu0
    %8420 = vmatprep.mubr.f32.mxu0 %v7162
    %8421 = vmatmul.mubr.f32.gmra.mrb[0].mxu0 %v6952
    %v8422 = vpop.f32.mrb[0].mxu0
    %v8423 = vadd.f32 %v8038, %v8422
    %v8424 = vpop.f32.mrb[0].mxu0
    %8425 = vmatprep.mubr.f32.mxu0 %v7165
    %8426 = vmatmul.mubr.f32.gmra.mrb[0].mxu0 %v6955
    %v8427 = vpop.f32.mrb[0].mxu0
    %v8428 = vadd.f32 %v8043, %v8427
    %v8429 = vpop.f32.mrb[0].mxu0
    %8430 = vmatprep.mubr.f32.mxu0 %v7167
    %8431 = vmatmul.mubr.f32.gmra.mrb[0].mxu0 %v6957
    %v8432 = vpop.f32.mrb[0].mxu0
    %v8433 = vadd.f32 %v8048, %v8432
    %v8434 = vpop.f32.mrb[0].mxu0
    %8435 = vmatprep.mubr.f32.mxu0 %v7170
    %8436 = vmatmul.mubr.f32.gmra.mrb[0].mxu0 %v6960
    %v8437 = vpop.f32.mrb[0].mxu0
    %v8438 = vadd.f32 %v8053, %v8437
    %v8439 = vpop.f32.mrb[0].mxu0
    %8440 = vmatprep.mubr.f32.mxu0 %v7172
    %8441 = vmatmul.mubr.f32.gmra.mrb[0].mxu0 %v6962
    %v8442 = vpop.f32.mrb[0].mxu0
    %v8443 = vadd.f32 %v8058, %v8442
    %v8444 = vpop.f32.mrb[0].mxu0
    %8445 = vmatprep.mubr.f32.mxu0 %v7175
    %8446 = vmatmul.mubr.f32.gmra.mrb[0].mxu0 %v6965
    %v8447 = vpop.f32.mrb[0].mxu0
    %v8448 = vadd.f32 %v8063, %v8447
    %v8449 = vpop.f32.mrb[0].mxu0
    %8450 = vmatprep.mubr.f32.mxu0 %v7177
    %8451 = vmatmul.mubr.f32.gmra.mrb[0].mxu0 %v6967
    %v8452 = vpop.f32.mrb[0].mxu0
    %v8453 = vadd.f32 %v8068, %v8452
    %v8454 = vpop.f32.mrb[0].mxu0
    %8455 = vmatprep.mubr.f32.mxu0 %v7180
    %8456 = vmatmul.mubr.f32.gmra.mrb[0].mxu0 %v6970
    %v8457 = vpop.f32.mrb[0].mxu0
    %v8458 = vadd.f32 %v8073, %v8457
    %v8459 = vpop.f32.mrb[0].mxu0
    %8460 = vmatprep.mubr.f32.mxu0 %v7182
    %8461 = vmatmul.mubr.f32.gmra.mrb[0].mxu0 %v6972
    %v8462 = vpop.f32.mrb[0].mxu0
    %v8463 = vadd.f32 %v8078, %v8462
    %v8464 = vpop.f32.mrb[0].mxu0
    %8465 = vmatprep.mubr.f32.mxu0 %v7185
    %8466 = vmatmul.mubr.f32.gmra.mrb[0].mxu0 %v6975
    %v8467 = vpop.f32.mrb[0].mxu0
    %v8468 = vadd.f32 %v8083, %v8467
    %v8469 = vpop.f32.mrb[0].mxu0
    %8470 = vmatprep.mubr.f32.mxu0 %v7187
    %8471 = vmatmul.mubr.f32.gmra.mrb[0].mxu0 %v6977
    %v8472 = vpop.f32.mrb[0].mxu0
    %v8473 = vadd.f32 %v8088, %v8472
    %v8474 = vpop.f32.mrb[0].mxu0
    %8475 = vmatprep.mubr.f32.mxu0 %v7190
    %8476 = vmatmul.mubr.f32.gmra.mrb[0].mxu0 %v6980
    %v8477 = vpop.f32.mrb[0].mxu0
    %v8478 = vadd.f32 %v8093, %v8477
    %v8479 = vpop.f32.mrb[0].mxu0
    %8480 = vmatprep.mubr.f32.mxu0 %v7192
    %8481 = vmatmul.mubr.f32.gmra.mrb[0].mxu0 %v6982
    %v8482 = vpop.f32.mrb[0].mxu0
    %v8483 = vadd.f32 %v8098, %v8482
    %v8484 = vpop.f32.mrb[0].mxu0
    %8485 = vmatprep.mubr.f32.mxu0 %v7195
    %8486 = vmatmul.mubr.f32.gmra.mrb[0].mxu0 %v6985
    %v8487 = vpop.f32.mrb[0].mxu0
    %v8488 = vadd.f32 %v8103, %v8487
    %v8489 = vpop.f32.mrb[0].mxu0
    %8490 = vmatprep.mubr.f32.mxu0 %v7197
    %8491 = vmatmul.mubr.f32.gmra.mrb[0].mxu0 %v6987
    %v8492 = vpop.f32.mrb[0].mxu0
    %v8493 = vadd.f32 %v8108, %v8492
    %v8494 = vpop.f32.mrb[0].mxu0
    %8495 = vmatprep.mubr.f32.mxu0 %v7200
    %8496 = vmatmul.mubr.f32.gmra.mrb[0].mxu0 %v6990
    %v8497 = vpop.f32.mrb[0].mxu0
    %v8498 = vadd.f32 %v8113, %v8497
    %v8499 = vpop.f32.mrb[0].mxu0
    %8500 = vmatprep.mubr.f32.mxu0 %v7202
    %8501 = vmatmul.mubr.f32.gmra.mrb[0].mxu0 %v6992
    %v8502 = vpop.f32.mrb[0].mxu0
    %v8503 = vadd.f32 %v8118, %v8502
    %v8504 = vpop.f32.mrb[0].mxu0
    %8505 = vmatprep.mubr.f32.mxu0 %v7358
    %8506 = vmatmul.mubr.f32.gmra.mrb[0].mxu0 %v7344
    %v8507 = vpop.f32.mrb[0].mxu0
    %v8508 = vadd.f32 %v8123, %v8507
    %v8509 = vpop.f32.mrb[0].mxu0
    %8510 = vmatprep.mubr.f32.mxu0 %v7360
    %8511 = vmatmul.mubr.f32.gmra.mrb[0].mxu0 %v7346
    %v8512 = vpop.f32.mrb[0].mxu0
    %v8513 = vadd.f32 %v8128, %v8512
    %v8514 = vpop.f32.mrb[0].mxu0
    %8515 = vmatprep.mubr.f32.mxu0 %v7205
    %8516 = vmatmul.mubr.f32.gmra.mrb[0].mxu0 %v6995
    %v8517 = vpop.f32.mrb[0].mxu0
    %v8518 = vadd.f32 %v8133, %v8517
    %v8519 = vpop.f32.mrb[0].mxu0
    %8520 = vmatprep.mubr.f32.mxu0 %v7207
    %8521 = vmatmul.mubr.f32.gmra.mrb[0].mxu0 %v6997
    %v8522 = vpop.f32.mrb[0].mxu0
    %v8523 = vadd.f32 %v8138, %v8522
    %v8524 = vpop.f32.mrb[0].mxu0
    %8525 = vmatprep.mubr.f32.mxu0 %v7210
    %8526 = vmatmul.mubr.f32.gmra.mrb[0].mxu0 %v7000
    %v8527 = vpop.f32.mrb[0].mxu0
    %v8528 = vadd.f32 %v8143, %v8527
    %v8529 = vpop.f32.mrb[0].mxu0
    %8530 = vmatprep.mubr.f32.mxu0 %v7212
    %8531 = vmatmul.mubr.f32.gmra.mrb[0].mxu0 %v7002
    %v8532 = vpop.f32.mrb[0].mxu0
    %v8533 = vadd.f32 %v8148, %v8532
    %v8534 = vpop.f32.mrb[0].mxu0
    %8535 = vmatprep.mubr.f32.mxu0 %v7215
    %8536 = vmatmul.mubr.f32.gmra.mrb[0].mxu0 %v7005
    %v8537 = vpop.f32.mrb[0].mxu0
    %v8538 = vadd.f32 %v8153, %v8537
    %v8539 = vpop.f32.mrb[0].mxu0
    %8540 = vmatprep.mubr.f32.mxu0 %v7217
    %8541 = vmatmul.mubr.f32.gmra.mrb[0].mxu0 %v7007
    %v8542 = vpop.f32.mrb[0].mxu0
    %v8543 = vadd.f32 %v8158, %v8542
    %v8544 = vpop.f32.mrb[0].mxu0
    %8545 = vmatprep.mubr.f32.mxu0 %v7220
    %8546 = vmatmul.mubr.f32.gmra.mrb[0].mxu0 %v7010
    %v8547 = vpop.f32.mrb[0].mxu0
    %v8548 = vadd.f32 %v8163, %v8547
    %v8549 = vpop.f32.mrb[0].mxu0
    %8550 = vmatprep.mubr.f32.mxu0 %v7222
    %8551 = vmatmul.mubr.f32.gmra.mrb[0].mxu0 %v7012
    %v8552 = vpop.f32.mrb[0].mxu0
    %v8553 = vadd.f32 %v8168, %v8552
    %v8554 = vpop.f32.mrb[0].mxu0
    %8555 = vmatprep.mubr.f32.mxu0 %v7225
    %8556 = vmatmul.mubr.f32.gmra.mrb[0].mxu0 %v7015
    %v8557 = vpop.f32.mrb[0].mxu0
    %v8558 = vadd.f32 %v8173, %v8557
    %v8559 = vpop.f32.mrb[0].mxu0
    %8560 = vmatprep.mubr.f32.mxu0 %v7227
    %8561 = vmatmul.mubr.f32.gmra.mrb[0].mxu0 %v7017
    %v8562 = vpop.f32.mrb[0].mxu0
    %v8563 = vadd.f32 %v8178, %v8562
    %v8564 = vpop.f32.mrb[0].mxu0
    %8565 = vmatprep.mubr.f32.mxu0 %v7230
    %8566 = vmatmul.mubr.f32.gmra.mrb[0].mxu0 %v7020
    %v8567 = vpop.f32.mrb[0].mxu0
    %v8568 = vadd.f32 %v8183, %v8567
    %v8569 = vpop.f32.mrb[0].mxu0
    %8570 = vmatprep.mubr.f32.mxu0 %v7232
    %8571 = vmatmul.mubr.f32.gmra.mrb[0].mxu0 %v7022
    %v8572 = vpop.f32.mrb[0].mxu0
    %v8573 = vadd.f32 %v8188, %v8572
    %v8574 = vpop.f32.mrb[0].mxu0
    %8575 = vmatprep.mubr.f32.mxu0 %v7235
    %8576 = vmatmul.mubr.f32.gmra.mrb[0].mxu0 %v7025
    %v8577 = vpop.f32.mrb[0].mxu0
    %v8578 = vadd.f32 %v8193, %v8577
    %v8579 = vpop.f32.mrb[0].mxu0
    %8580 = vmatprep.mubr.f32.mxu0 %v7237
    %8581 = vmatmul.mubr.f32.gmra.mrb[0].mxu0 %v7027
    %v8582 = vpop.f32.mrb[0].mxu0
    %v8583 = vadd.f32 %v8198, %v8582
    %v8584 = vpop.f32.mrb[0].mxu0
    %8585 = vmatprep.mubr.f32.mxu0 %v7240
    %8586 = vmatmul.mubr.f32.gmra.mrb[0].mxu0 %v7030
    %v8587 = vpop.f32.mrb[0].mxu0
    %v8588 = vadd.f32 %v8203, %v8587
    %v8589 = vpop.f32.mrb[0].mxu0
    %8590 = vmatprep.mubr.f32.mxu0 %v7242
    %8591 = vmatmul.mubr.f32.gmra.mrb[0].mxu0 %v7032
    %v8592 = vpop.f32.mrb[0].mxu0
    %v8593 = vadd.f32 %v8208, %v8592
    %v8594 = vpop.f32.mrb[0].mxu0
    %8595 = vmatprep.mubr.f32.mxu0 %v7245
    %8596 = vmatmul.mubr.f32.gmra.mrb[0].mxu0 %v7035
    %v8597 = vpop.f32.mrb[0].mxu0
    %v8598 = vadd.f32 %v8213, %v8597
    %v8599 = vpop.f32.mrb[0].mxu0
    %8600 = vmatprep.mubr.f32.mxu0 %v7247
    %8601 = vmatmul.mubr.f32.gmra.mrb[0].mxu0 %v7037
    %v8602 = vpop.f32.mrb[0].mxu0
    %v8603 = vadd.f32 %v8218, %v8602
    %v8604 = vpop.f32.mrb[0].mxu0
    %8605 = vmatprep.mubr.f32.mxu0 %v7250
    %8606 = vmatmul.mubr.f32.gmra.mrb[0].mxu0 %v7040
    %v8607 = vpop.f32.mrb[0].mxu0
    %v8608 = vadd.f32 %v8223, %v8607
    %v8609 = vpop.f32.mrb[0].mxu0
    %8610 = vmatprep.mubr.f32.mxu0 %v7252
    %8611 = vmatmul.mubr.f32.gmra.mrb[0].mxu0 %v7042
    %v8612 = vpop.f32.mrb[0].mxu0
    %v8613 = vadd.f32 %v8228, %v8612
    %v8614 = vpop.f32.mrb[0].mxu0
    %8615 = vmatprep.mubr.f32.mxu0 %v7255
    %8616 = vmatmul.mubr.f32.gmra.mrb[0].mxu0 %v7045
    %v8617 = vpop.f32.mrb[0].mxu0
    %v8618 = vadd.f32 %v8233, %v8617
    %v8619 = vpop.f32.mrb[0].mxu0
    %8620 = vmatprep.mubr.f32.mxu0 %v7257
    %8621 = vmatmul.mubr.f32.gmra.mrb[0].mxu0 %v7047
    %v8622 = vpop.f32.mrb[0].mxu0
    %v8623 = vadd.f32 %v8238, %v8622
    %v8624 = vpop.f32.mrb[0].mxu0
    %8625 = vmatprep.mubr.f32.mxu0 %v7260
    %8626 = vmatmul.mubr.f32.gmra.mrb[0].mxu0 %v7050
    %v8627 = vpop.f32.mrb[0].mxu0
    %v8628 = vadd.f32 %v8243, %v8627
    %v8629 = vpop.f32.mrb[0].mxu0
    %8630 = vmatprep.mubr.f32.mxu0 %v7262
    %8631 = vmatmul.mubr.f32.gmra.mrb[0].mxu0 %v7052
    %v8632 = vpop.f32.mrb[0].mxu0
    %v8633 = vadd.f32 %v8248, %v8632
    %v8634 = vpop.f32.mrb[0].mxu0
    %8635 = vmatprep.mubr.f32.mxu0 %v7265
    %8636 = vmatmul.mubr.f32.gmra.mrb[0].mxu0 %v7055
    %v8637 = vpop.f32.mrb[0].mxu0
    %v8638 = vadd.f32 %v8253, %v8637
    %v8639 = vpop.f32.mrb[0].mxu0
    %8640 = vmatprep.mubr.f32.mxu0 %v7267
    %8641 = vmatmul.mubr.f32.gmra.mrb[0].mxu0 %v7057
    %v8642 = vpop.f32.mrb[0].mxu0
    %v8643 = vadd.f32 %v8258, %v8642
    %v8644 = vpop.f32.mrb[0].mxu0
    %8645 = vmatprep.mubr.f32.mxu0 %v7270
    %8646 = vmatmul.mubr.f32.gmra.mrb[0].mxu0 %v7060
    %v8647 = vpop.f32.mrb[0].mxu0
    %v8648 = vadd.f32 %v8263, %v8647
    %v8649 = vpop.f32.mrb[0].mxu0
    %8650 = vmatprep.mubr.f32.mxu0 %v7272
    %8651 = vmatmul.mubr.f32.gmra.mrb[0].mxu0 %v7062
    %v8652 = vpop.f32.mrb[0].mxu0
    %v8653 = vadd.f32 %v8268, %v8652
    %v8654 = vpop.f32.mrb[0].mxu0
    %8655 = vmatprep.mubr.f32.mxu0 %v7275
    %8656 = vmatmul.mubr.f32.gmra.mrb[0].mxu0 %v7065
    %v8657 = vpop.f32.mrb[0].mxu0
    %v8658 = vadd.f32 %v8273, %v8657
    %v8659 = vpop.f32.mrb[0].mxu0
    %8660 = vmatprep.mubr.f32.mxu0 %v7277
    %8661 = vmatmul.mubr.f32.gmra.mrb[0].mxu0 %v7067
    %v8662 = vpop.f32.mrb[0].mxu0
    %v8663 = vadd.f32 %v8278, %v8662
    %v8664 = vpop.f32.mrb[0].mxu0
    %8665 = vmatprep.mubr.f32.mxu0 %v7363
    %8666 = vmatmul.mubr.f32.gmra.mrb[0].mxu0 %v7349
    %v8667 = vpop.f32.mrb[0].mxu0
    %v8668 = vadd.f32 %v8283, %v8667
    %v8669 = vpop.f32.mrb[0].mxu0
    %8670 = vmatprep.mubr.f32.mxu0 %v7365
    %8671 = vmatmul.mubr.f32.gmra.mrb[0].mxu0 %v7351
    %v8672 = vpop.f32.mrb[0].mxu0
    %v8673 = vadd.f32 %v8288, %v8672
    %v8674 = vpop.f32.mrb[0].mxu0
    %8675 = vdwg.mxu0
    %8676 = vmatprep.subr.mxu0 0.0
    %8677 = vmatpush1.msra.mxu0 %v7466
    %8678 = vmatprep.subr.mxu0 0.0
    %8679 = vmatpush1.msra.mxu0 %v7467
    %8680 = vmatprep.subr.mxu0 0.0
    %8681 = vmatpush1.msra.mxu0 %v7468
    %8682 = vmatprep.subr.mxu0 0.0
    %8683 = vmatpush1.msra.mxu0 %v7469
    %8684 = vmatprep.subr.mxu0 0.0
    %8685 = vmatpush1.msra.mxu0 %v7470
    %8686 = vmatprep.subr.mxu0 0.0
    %8687 = vmatpush1.msra.mxu0 %v7471
    %8688 = vmatprep.subr.mxu0 0.0
    %8689 = vmatpush1.msra.mxu0 %v7472
    %8690 = vmatprep.subr.mxu0 0.0
    %8691 = vmatpush1.msra.mxu0 %v7473
    %8692 = vmatprep.subr.mxu0 0.0
    %8693 = vmatpush1.msra.mxu0 %v7474
    %8694 = vmatprep.subr.mxu0 0.0
    %8695 = vmatpush1.msra.mxu0 %v7475
    %8696 = vmatprep.subr.mxu0 0.0
    %8697 = vmatpush1.msra.mxu0 %v7476
    %8698 = vmatprep.subr.mxu0 0.0
    %8699 = vmatpush1.msra.mxu0 %v7477
    %8700 = vmatprep.subr.mxu0 0.0
    %8701 = vmatpush1.msra.mxu0 %v7478
    %8702 = vmatprep.subr.mxu0 0.0
    %8703 = vmatpush1.msra.mxu0 %v7479
    %8704 = vmatprep.subr.mxu0 0.0
    %8705 = vmatpush1.msra.mxu0 %v7480
    %8706 = vmatprep.subr.mxu0 0.0
    %8707 = vmatpush1.msra.mxu0 %v7481
    %8708 = vmatprep.subr.mxu0 0.0
    %8709 = vmatpush1.msra.mxu0 %v7482
    %8710 = vmatprep.subr.mxu0 0.0
    %8711 = vmatpush1.msra.mxu0 %v7483
    %8712 = vmatprep.subr.mxu0 0.0
    %8713 = vmatpush1.msra.mxu0 %v7484
    %8714 = vmatprep.subr.mxu0 0.0
    %8715 = vmatpush1.msra.mxu0 %v7485
    %8716 = vmatprep.subr.mxu0 0.0
    %8717 = vmatpush1.msra.mxu0 %v7486
    %8718 = vmatprep.subr.mxu0 0.0
    %8719 = vmatpush1.msra.mxu0 %v7487
    %8720 = vmatprep.subr.mxu0 0.0
    %8721 = vmatpush1.msra.mxu0 %v7488
    %8722 = vmatprep.subr.mxu0 0.0
    %8723 = vmatpush1.msra.mxu0 %v7489
    %8724 = vmatprep.subr.mxu0 0.0
    %8725 = vmatpush1.msra.mxu0 %v7490
    %8726 = vmatprep.subr.mxu0 0.0
    %8727 = vmatpush1.msra.mxu0 %v7491
    %8728 = vmatprep.subr.mxu0 0.0
    %8729 = vmatpush1.msra.mxu0 %v7492
    %8730 = vmatprep.subr.mxu0 0.0
    %8731 = vmatpush1.msra.mxu0 %v7493
    %8732 = vmatprep.subr.mxu0 0.0
    %8733 = vmatpush1.msra.mxu0 %v7494
    %8734 = vmatprep.subr.mxu0 0.0
    %8735 = vmatpush1.msra.mxu0 %v7495
    %8736 = vmatprep.subr.mxu0 0.0
    %8737 = vmatpush1.msra.mxu0 %v7496
    %8738 = vmatprep.subr.mxu0 0.0
    %8739 = vmatpush1.msra.mxu0 %v7497
    %8740 = vmatprep.mubr.f32.mxu0 %v6925
    %8741 = vmatmul.mubr.f32.gmra.mrb[0].mxu0 %v6795
    %v8742 = vpop.f32.mrb[0].mxu0
    %v8743 = vadd.f32 %v8358, %v8742
    %v8744 = vpop.f32.mrb[0].mxu0
    %8745 = vmatprep.mubr.f32.mxu0 %v6927
    %8746 = vmatmul.mubr.f32.gmra.mrb[0].mxu0 %v6607
    %v8747 = vpop.f32.mrb[0].mxu0
    %v8748 = vadd.f32 %v8363, %v8747
    %v8749 = vpop.f32.mrb[0].mxu0
    %8750 = vmatprep.mubr.f32.mxu0 %v6930
    %8751 = vmatmul.mubr.f32.gmra.mrb[0].mxu0 %v6796
    %v8752 = vpop.f32.mrb[0].mxu0
    %v8753 = vadd.f32 %v8368, %v8752
    %v8754 = vpop.f32.mrb[0].mxu0
    %8755 = vmatprep.mubr.f32.mxu0 %v6932
    %8756 = vmatmul.mubr.f32.gmra.mrb[0].mxu0 %v6610
    %v8757 = vpop.f32.mrb[0].mxu0
    %v8758 = vadd.f32 %v8373, %v8757
    %v8759 = vpop.f32.mrb[0].mxu0
    %8760 = vmatprep.mubr.f32.mxu0 %v6935
    %8761 = vmatmul.mubr.f32.gmra.mrb[0].mxu0 %v6797
    %v8762 = vpop.f32.mrb[0].mxu0
    %v8763 = vadd.f32 %v8378, %v8762
    %v8764 = vpop.f32.mrb[0].mxu0
    %8765 = vmatprep.mubr.f32.mxu0 %v6937
    %8766 = vmatmul.mubr.f32.gmra.mrb[0].mxu0 %v6613
    %v8767 = vpop.f32.mrb[0].mxu0
    %v8768 = vadd.f32 %v8383, %v8767
    %v8769 = vpop.f32.mrb[0].mxu0
    %8770 = vmatprep.mubr.f32.mxu0 %v6940
    %8771 = vmatmul.mubr.f32.gmra.mrb[0].mxu0 %v6798
    %v8772 = vpop.f32.mrb[0].mxu0
    %v8773 = vadd.f32 %v8388, %v8772
    %v8774 = vpop.f32.mrb[0].mxu0
    %8775 = vmatprep.mubr.f32.mxu0 %v6942
    %8776 = vmatmul.mubr.f32.gmra.mrb[0].mxu0 %v6616
    %v8777 = vpop.f32.mrb[0].mxu0
    %v8778 = vadd.f32 %v8393, %v8777
    %v8779 = vpop.f32.mrb[0].mxu0
    %8780 = vmatprep.mubr.f32.mxu0 %v6945
    %8781 = vmatmul.mubr.f32.gmra.mrb[0].mxu0 %v6799
    %v8782 = vpop.f32.mrb[0].mxu0
    %v8783 = vadd.f32 %v8398, %v8782
    %v8784 = vpop.f32.mrb[0].mxu0
    %8785 = vmatprep.mubr.f32.mxu0 %v6947
    %8786 = vmatmul.mubr.f32.gmra.mrb[0].mxu0 %v6619
    %v8787 = vpop.f32.mrb[0].mxu0
    %v8788 = vadd.f32 %v8403, %v8787
    %v8789 = vpop.f32.mrb[0].mxu0
    %8790 = vmatprep.mubr.f32.mxu0 %v6950
    %8791 = vmatmul.mubr.f32.gmra.mrb[0].mxu0 %v6800
    %v8792 = vpop.f32.mrb[0].mxu0
    %v8793 = vadd.f32 %v8408, %v8792
    %v8794 = vpop.f32.mrb[0].mxu0
    %8795 = vmatprep.mubr.f32.mxu0 %v6952
    %8796 = vmatmul.mubr.f32.gmra.mrb[0].mxu0 %v6622
    %v8797 = vpop.f32.mrb[0].mxu0
    %v8798 = vadd.f32 %v8413, %v8797
    %v8799 = vpop.f32.mrb[0].mxu0
    %8800 = vmatprep.mubr.f32.mxu0 %v6955
    %8801 = vmatmul.mubr.f32.gmra.mrb[0].mxu0 %v6801
    %v8802 = vpop.f32.mrb[0].mxu0
    %v8803 = vadd.f32 %v8418, %v8802
    %v8804 = vpop.f32.mrb[0].mxu0
    %8805 = vmatprep.mubr.f32.mxu0 %v6957
    %8806 = vmatmul.mubr.f32.gmra.mrb[0].mxu0 %v6625
    %v8807 = vpop.f32.mrb[0].mxu0
    %v8808 = vadd.f32 %v8423, %v8807
    %v8809 = vpop.f32.mrb[0].mxu0
    %8810 = vmatprep.mubr.f32.mxu0 %v6960
    %8811 = vmatmul.mubr.f32.gmra.mrb[0].mxu0 %v6802
    %v8812 = vpop.f32.mrb[0].mxu0
    %v8813 = vadd.f32 %v8428, %v8812
    %v8814 = vpop.f32.mrb[0].mxu0
    %8815 = vmatprep.mubr.f32.mxu0 %v6962
    %8816 = vmatmul.mubr.f32.gmra.mrb[0].mxu0 %v6628
    %v8817 = vpop.f32.mrb[0].mxu0
    %v8818 = vadd.f32 %v8433, %v8817
    %v8819 = vpop.f32.mrb[0].mxu0
    %8820 = vmatprep.mubr.f32.mxu0 %v6965
    %8821 = vmatmul.mubr.f32.gmra.mrb[0].mxu0 %v6803
    %v8822 = vpop.f32.mrb[0].mxu0
    %v8823 = vadd.f32 %v8438, %v8822
    %v8824 = vpop.f32.mrb[0].mxu0
    %8825 = vmatprep.mubr.f32.mxu0 %v6967
    %8826 = vmatmul.mubr.f32.gmra.mrb[0].mxu0 %v6631
    %v8827 = vpop.f32.mrb[0].mxu0
    %v8828 = vadd.f32 %v8443, %v8827
    %v8829 = vpop.f32.mrb[0].mxu0
    %8830 = vmatprep.mubr.f32.mxu0 %v6970
    %8831 = vmatmul.mubr.f32.gmra.mrb[0].mxu0 %v6804
    %v8832 = vpop.f32.mrb[0].mxu0
    %v8833 = vadd.f32 %v8448, %v8832
    %v8834 = vpop.f32.mrb[0].mxu0
    %8835 = vmatprep.mubr.f32.mxu0 %v6972
    %8836 = vmatmul.mubr.f32.gmra.mrb[0].mxu0 %v6634
    %v8837 = vpop.f32.mrb[0].mxu0
    %v8838 = vadd.f32 %v8453, %v8837
    %v8839 = vpop.f32.mrb[0].mxu0
    %8840 = vmatprep.mubr.f32.mxu0 %v6975
    %8841 = vmatmul.mubr.f32.gmra.mrb[0].mxu0 %v6805
    %v8842 = vpop.f32.mrb[0].mxu0
    %v8843 = vadd.f32 %v8458, %v8842
    %v8844 = vpop.f32.mrb[0].mxu0
    %8845 = vmatprep.mubr.f32.mxu0 %v6977
    %8846 = vmatmul.mubr.f32.gmra.mrb[0].mxu0 %v6637
    %v8847 = vpop.f32.mrb[0].mxu0
    %v8848 = vadd.f32 %v8463, %v8847
    %v8849 = vpop.f32.mrb[0].mxu0
    %8850 = vmatprep.mubr.f32.mxu0 %v6980
    %8851 = vmatmul.mubr.f32.gmra.mrb[0].mxu0 %v6806
    %v8852 = vpop.f32.mrb[0].mxu0
    %v8853 = vadd.f32 %v8468, %v8852
    %v8854 = vpop.f32.mrb[0].mxu0
    %8855 = vmatprep.mubr.f32.mxu0 %v6982
    %8856 = vmatmul.mubr.f32.gmra.mrb[0].mxu0 %v6640
    %v8857 = vpop.f32.mrb[0].mxu0
    %v8858 = vadd.f32 %v8473, %v8857
    %v8859 = vpop.f32.mrb[0].mxu0
    %8860 = vmatprep.mubr.f32.mxu0 %v6985
    %8861 = vmatmul.mubr.f32.gmra.mrb[0].mxu0 %v6807
    %v8862 = vpop.f32.mrb[0].mxu0
    %v8863 = vadd.f32 %v8478, %v8862
    %v8864 = vpop.f32.mrb[0].mxu0
    %8865 = vmatprep.mubr.f32.mxu0 %v6987
    %8866 = vmatmul.mubr.f32.gmra.mrb[0].mxu0 %v6643
    %v8867 = vpop.f32.mrb[0].mxu0
    %v8868 = vadd.f32 %v8483, %v8867
    %v8869 = vpop.f32.mrb[0].mxu0
    %8870 = vmatprep.mubr.f32.mxu0 %v6990
    %8871 = vmatmul.mubr.f32.gmra.mrb[0].mxu0 %v6808
    %v8872 = vpop.f32.mrb[0].mxu0
    %v8873 = vadd.f32 %v8488, %v8872
    %v8874 = vpop.f32.mrb[0].mxu0
    %8875 = vmatprep.mubr.f32.mxu0 %v6992
    %8876 = vmatmul.mubr.f32.gmra.mrb[0].mxu0 %v6646
    %v8877 = vpop.f32.mrb[0].mxu0
    %v8878 = vadd.f32 %v8493, %v8877
    %v8879 = vpop.f32.mrb[0].mxu0
    %8880 = vmatprep.mubr.f32.mxu0 %v7344
    %8881 = vmatmul.mubr.f32.gmra.mrb[0].mxu0 %v6809
    %v8882 = vpop.f32.mrb[0].mxu0
    %v8883 = vadd.f32 %v8498, %v8882
    %v8884 = vpop.f32.mrb[0].mxu0
    %8885 = vmatprep.mubr.f32.mxu0 %v7346
    %8886 = vmatmul.mubr.f32.gmra.mrb[0].mxu0 %v6649
    %v8887 = vpop.f32.mrb[0].mxu0
    %v8888 = vadd.f32 %v8503, %v8887
    %v8889 = vpop.f32.mrb[0].mxu0
    %8890 = vmatprep.mubr.f32.mxu0 %v545
    %8891 = vmatmul.mubr.f32.gmra.mrb[0].mxu0 %v414
    %v8892 = vpop.f32.mrb[0].mxu0
    %v8893 = vadd.f32 %v8508, %v8892
    %v8894 = vpop.f32.mrb[0].mxu0
    %8895 = vmatprep.mubr.f32.mxu0 %v547
    %8896 = vmatmul.mubr.f32.gmra.mrb[0].mxu0 %v219
    %v8897 = vpop.f32.mrb[0].mxu0
    %v8898 = vadd.f32 %v8513, %v8897
    %v8899 = vpop.f32.mrb[0].mxu0
    %8900 = vmatprep.mubr.f32.mxu0 %v7000
    %8901 = vmatmul.mubr.f32.gmra.mrb[0].mxu0 %v6811
    %v8902 = vpop.f32.mrb[0].mxu0
    %v8903 = vadd.f32 %v8518, %v8902
    %v8904 = vpop.f32.mrb[0].mxu0
    %8905 = vmatprep.mubr.f32.mxu0 %v7002
    %8906 = vmatmul.mubr.f32.gmra.mrb[0].mxu0 %v6655
    %v8907 = vpop.f32.mrb[0].mxu0
    %v8908 = vadd.f32 %v8523, %v8907
    %v8909 = vpop.f32.mrb[0].mxu0
    %8910 = vmatprep.mubr.f32.mxu0 %v7005
    %8911 = vmatmul.mubr.f32.gmra.mrb[0].mxu0 %v6812
    %v8912 = vpop.f32.mrb[0].mxu0
    %v8913 = vadd.f32 %v8528, %v8912
    %v8914 = vpop.f32.mrb[0].mxu0
    %8915 = vmatprep.mubr.f32.mxu0 %v7007
    %8916 = vmatmul.mubr.f32.gmra.mrb[0].mxu0 %v6658
    %v8917 = vpop.f32.mrb[0].mxu0
    %v8918 = vadd.f32 %v8533, %v8917
    %v8919 = vpop.f32.mrb[0].mxu0
    %8920 = vmatprep.mubr.f32.mxu0 %v7010
    %8921 = vmatmul.mubr.f32.gmra.mrb[0].mxu0 %v6813
    %v8922 = vpop.f32.mrb[0].mxu0
    %v8923 = vadd.f32 %v8538, %v8922
    %v8924 = vpop.f32.mrb[0].mxu0
    %8925 = vmatprep.mubr.f32.mxu0 %v7012
    %8926 = vmatmul.mubr.f32.gmra.mrb[0].mxu0 %v6661
    %v8927 = vpop.f32.mrb[0].mxu0
    %v8928 = vadd.f32 %v8543, %v8927
    %v8929 = vpop.f32.mrb[0].mxu0
    %8930 = vmatprep.mubr.f32.mxu0 %v7015
    %8931 = vmatmul.mubr.f32.gmra.mrb[0].mxu0 %v6814
    %v8932 = vpop.f32.mrb[0].mxu0
    %v8933 = vadd.f32 %v8548, %v8932
    %v8934 = vpop.f32.mrb[0].mxu0
    %8935 = vmatprep.mubr.f32.mxu0 %v7017
    %8936 = vmatmul.mubr.f32.gmra.mrb[0].mxu0 %v6664
    %v8937 = vpop.f32.mrb[0].mxu0
    %v8938 = vadd.f32 %v8553, %v8937
    %v8939 = vpop.f32.mrb[0].mxu0
    %8940 = vmatprep.mubr.f32.mxu0 %v7020
    %8941 = vmatmul.mubr.f32.gmra.mrb[0].mxu0 %v6815
    %v8942 = vpop.f32.mrb[0].mxu0
    %v8943 = vadd.f32 %v8558, %v8942
    %v8944 = vpop.f32.mrb[0].mxu0
    %8945 = vmatprep.mubr.f32.mxu0 %v7022
    %8946 = vmatmul.mubr.f32.gmra.mrb[0].mxu0 %v6667
    %v8947 = vpop.f32.mrb[0].mxu0
    %v8948 = vadd.f32 %v8563, %v8947
    %v8949 = vpop.f32.mrb[0].mxu0
    %8950 = vmatprep.mubr.f32.mxu0 %v7025
    %8951 = vmatmul.mubr.f32.gmra.mrb[0].mxu0 %v6816
    %v8952 = vpop.f32.mrb[0].mxu0
    %v8953 = vadd.f32 %v8568, %v8952
    %v8954 = vpop.f32.mrb[0].mxu0
    %8955 = vmatprep.mubr.f32.mxu0 %v7027
    %8956 = vmatmul.mubr.f32.gmra.mrb[0].mxu0 %v6670
    %v8957 = vpop.f32.mrb[0].mxu0
    %v8958 = vadd.f32 %v8573, %v8957
    %v8959 = vpop.f32.mrb[0].mxu0
    %8960 = vmatprep.mubr.f32.mxu0 %v7030
    %8961 = vmatmul.mubr.f32.gmra.mrb[0].mxu0 %v6817
    %v8962 = vpop.f32.mrb[0].mxu0
    %v8963 = vadd.f32 %v8578, %v8962
    %v8964 = vpop.f32.mrb[0].mxu0
    %8965 = vmatprep.mubr.f32.mxu0 %v7032
    %8966 = vmatmul.mubr.f32.gmra.mrb[0].mxu0 %v6673
    %v8967 = vpop.f32.mrb[0].mxu0
    %v8968 = vadd.f32 %v8583, %v8967
    %v8969 = vpop.f32.mrb[0].mxu0
    %8970 = vmatprep.mubr.f32.mxu0 %v7035
    %8971 = vmatmul.mubr.f32.gmra.mrb[0].mxu0 %v6818
    %v8972 = vpop.f32.mrb[0].mxu0
    %v8973 = vadd.f32 %v8588, %v8972
    %v8974 = vpop.f32.mrb[0].mxu0
    %8975 = vmatprep.mubr.f32.mxu0 %v7037
    %8976 = vmatmul.mubr.f32.gmra.mrb[0].mxu0 %v6676
    %v8977 = vpop.f32.mrb[0].mxu0
    %v8978 = vadd.f32 %v8593, %v8977
    %v8979 = vpop.f32.mrb[0].mxu0
    %8980 = vmatprep.mubr.f32.mxu0 %v7040
    %8981 = vmatmul.mubr.f32.gmra.mrb[0].mxu0 %v6819
    %v8982 = vpop.f32.mrb[0].mxu0
    %v8983 = vadd.f32 %v8598, %v8982
    %v8984 = vpop.f32.mrb[0].mxu0
    %8985 = vmatprep.mubr.f32.mxu0 %v7042
    %8986 = vmatmul.mubr.f32.gmra.mrb[0].mxu0 %v6679
    %v8987 = vpop.f32.mrb[0].mxu0
    %v8988 = vadd.f32 %v8603, %v8987
    %v8989 = vpop.f32.mrb[0].mxu0
    %8990 = vmatprep.mubr.f32.mxu0 %v7045
    %8991 = vmatmul.mubr.f32.gmra.mrb[0].mxu0 %v6820
    %v8992 = vpop.f32.mrb[0].mxu0
    %v8993 = vadd.f32 %v8608, %v8992
    %v8994 = vpop.f32.mrb[0].mxu0
    %8995 = vmatprep.mubr.f32.mxu0 %v7047
    %8996 = vmatmul.mubr.f32.gmra.mrb[0].mxu0 %v6682
    %v8997 = vpop.f32.mrb[0].mxu0
    %v8998 = vadd.f32 %v8613, %v8997
    %v8999 = vpop.f32.mrb[0].mxu0
    %9000 = vmatprep.mubr.f32.mxu0 %v7050
    %9001 = vmatmul.mubr.f32.gmra.mrb[0].mxu0 %v6821
    %v9002 = vpop.f32.mrb[0].mxu0
    %v9003 = vadd.f32 %v8618, %v9002
    %v9004 = vpop.f32.mrb[0].mxu0
    %9005 = vmatprep.mubr.f32.mxu0 %v7052
    %9006 = vmatmul.mubr.f32.gmra.mrb[0].mxu0 %v6685
    %v9007 = vpop.f32.mrb[0].mxu0
    %v9008 = vadd.f32 %v8623, %v9007
    %v9009 = vpop.f32.mrb[0].mxu0
    %9010 = vmatprep.mubr.f32.mxu0 %v7055
    %9011 = vmatmul.mubr.f32.gmra.mrb[0].mxu0 %v6822
    %v9012 = vpop.f32.mrb[0].mxu0
    %v9013 = vadd.f32 %v8628, %v9012
    %v9014 = vpop.f32.mrb[0].mxu0
    %9015 = vmatprep.mubr.f32.mxu0 %v7057
    %9016 = vmatmul.mubr.f32.gmra.mrb[0].mxu0 %v6688
    %v9017 = vpop.f32.mrb[0].mxu0
    %v9018 = vadd.f32 %v8633, %v9017
    %v9019 = vpop.f32.mrb[0].mxu0
    %9020 = vmatprep.mubr.f32.mxu0 %v7060
    %9021 = vmatmul.mubr.f32.gmra.mrb[0].mxu0 %v6823
    %v9022 = vpop.f32.mrb[0].mxu0
    %v9023 = vadd.f32 %v8638, %v9022
    %v9024 = vpop.f32.mrb[0].mxu0
    %9025 = vmatprep.mubr.f32.mxu0 %v7062
    %9026 = vmatmul.mubr.f32.gmra.mrb[0].mxu0 %v6691
    %v9027 = vpop.f32.mrb[0].mxu0
    %v9028 = vadd.f32 %v8643, %v9027
    %v9029 = vpop.f32.mrb[0].mxu0
    %9030 = vmatprep.mubr.f32.mxu0 %v7065
    %9031 = vmatmul.mubr.f32.gmra.mrb[0].mxu0 %v6824
    %v9032 = vpop.f32.mrb[0].mxu0
    %v9033 = vadd.f32 %v8648, %v9032
    %v9034 = vpop.f32.mrb[0].mxu0
    %9035 = vmatprep.mubr.f32.mxu0 %v7067
    %9036 = vmatmul.mubr.f32.gmra.mrb[0].mxu0 %v6694
    %v9037 = vpop.f32.mrb[0].mxu0
    %v9038 = vadd.f32 %v8653, %v9037
    %v9039 = vpop.f32.mrb[0].mxu0
    %9040 = vmatprep.mubr.f32.mxu0 %v7349
    %9041 = vmatmul.mubr.f32.gmra.mrb[0].mxu0 %v6825
    %v9042 = vpop.f32.mrb[0].mxu0
    %v9043 = vadd.f32 %v8658, %v9042
    %v9044 = vpop.f32.mrb[0].mxu0
    %9045 = vmatprep.mubr.f32.mxu0 %v7351
    %9046 = vmatmul.mubr.f32.gmra.mrb[0].mxu0 %v6697
    %v9047 = vpop.f32.mrb[0].mxu0
    %v9048 = vadd.f32 %v8663, %v9047
    %v9049 = vpop.f32.mrb[0].mxu0
    %9050 = vmatprep.mubr.f32.mxu0 %v545
    %9051 = vmatmul.mubr.f32.gmra.mrb[0].mxu0 %v414
    %v9052 = vpop.f32.mrb[0].mxu0
    %v9053 = vadd.f32 %v8668, %v9052
    %v9054 = vpop.f32.mrb[0].mxu0
    %9055 = vmatprep.mubr.f32.mxu0 %v547
    %9056 = vmatmul.mubr.f32.gmra.mrb[0].mxu0 %v219
    %v9057 = vpop.f32.mrb[0].mxu0
    %v9058 = vadd.f32 %v8673, %v9057
    %v9059 = vpop.f32.mrb[0].mxu0
    %9060 = vdwg.mxu0
    %9061 = vmatprep.subr.mxu0 0.0
    %9062 = vmatpush1.msra.mxu0 %v7498
    %9063 = vmatprep.subr.mxu0 0.0
    %9064 = vmatpush1.msra.mxu0 %v7499
    %9065 = vmatprep.subr.mxu0 0.0
    %9066 = vmatpush1.msra.mxu0 %v7500
    %9067 = vmatprep.subr.mxu0 0.0
    %9068 = vmatpush1.msra.mxu0 %v7501
    %9069 = vmatprep.subr.mxu0 0.0
    %9070 = vmatpush1.msra.mxu0 %v7502
    %9071 = vmatprep.subr.mxu0 0.0
    %9072 = vmatpush1.msra.mxu0 %v7503
    %9073 = vmatprep.subr.mxu0 0.0
    %9074 = vmatpush1.msra.mxu0 %v7504
    %9075 = vmatprep.subr.mxu0 0.0
    %9076 = vmatpush1.msra.mxu0 %v7505
    %9077 = vmatprep.subr.mxu0 0.0
    %9078 = vmatpush1.msra.mxu0 %v7506
    %9079 = vmatprep.subr.mxu0 0.0
    %9080 = vmatpush1.msra.mxu0 %v7507
    %9081 = vmatprep.subr.mxu0 0.0
    %9082 = vmatpush1.msra.mxu0 %v7508
    %9083 = vmatprep.subr.mxu0 0.0
    %9084 = vmatpush1.msra.mxu0 %v7509
    %9085 = vmatprep.subr.mxu0 0.0
    %9086 = vmatpush1.msra.mxu0 %v7510
    %9087 = vmatprep.subr.mxu0 0.0
    %9088 = vmatpush1.msra.mxu0 %v7511
    %9089 = vmatprep.subr.mxu0 0.0
    %9090 = vmatpush1.msra.mxu0 %v7512
    %9091 = vmatprep.subr.mxu0 0.0
    %9092 = vmatpush1.msra.mxu0 %v7513
    %9093 = vmatprep.subr.mxu0 0.0
    %9094 = vmatpush1.msra.mxu0 0.0
    %9095 = vmatprep.subr.mxu0 0.0
    %9096 = vmatpush1.msra.mxu0 0.0
    %9097 = vmatprep.subr.mxu0 0.0
    %9098 = vmatpush1.msra.mxu0 0.0
    %9099 = vmatprep.subr.mxu0 0.0
    %9100 = vmatpush1.msra.mxu0 0.0
    %9101 = vmatprep.subr.mxu0 0.0
    %9102 = vmatpush1.msra.mxu0 0.0
    %9103 = vmatprep.subr.mxu0 0.0
    %9104 = vmatpush1.msra.mxu0 0.0
    %9105 = vmatprep.subr.mxu0 0.0
    %9106 = vmatpush1.msra.mxu0 0.0
    %9107 = vmatprep.subr.mxu0 0.0
    %9108 = vmatpush1.msra.mxu0 0.0
    %9109 = vmatprep.subr.mxu0 0.0
    %9110 = vmatpush1.msra.mxu0 0.0
    %9111 = vmatprep.subr.mxu0 0.0
    %9112 = vmatpush1.msra.mxu0 0.0
    %9113 = vmatprep.subr.mxu0 0.0
    %9114 = vmatpush1.msra.mxu0 0.0
    %9115 = vmatprep.subr.mxu0 0.0
    %9116 = vmatpush1.msra.mxu0 0.0
    %9117 = vmatprep.subr.mxu0 0.0
    %9118 = vmatpush1.msra.mxu0 0.0
    %9119 = vmatprep.subr.mxu0 0.0
    %9120 = vmatpush1.msra.mxu0 0.0
    %9121 = vmatprep.subr.mxu0 0.0
    %9122 = vmatpush1.msra.mxu0 0.0
    %9123 = vmatprep.subr.mxu0 0.0
    %9124 = vmatpush1.msra.mxu0 0.0
    %9125 = vmatprep.mubr.f32.mxu0 0.0
    %9126 = vmatmul.mubr.f32.gmra.mrb[0].mxu0 %v7135
    %v9127 = vpop.f32.mrb[0].mxu0
    %v9128 = vadd.f32 %v8743, %v9127
    %v9129 = vpop.f32.mrb[0].mxu0
    %9130 = vmatprep.mubr.f32.mxu0 0.0
    %9131 = vmatmul.mubr.f32.gmra.mrb[0].mxu0 %v7137
    %v9132 = vpop.f32.mrb[0].mxu0
    %v9133 = vadd.f32 %v8748, %v9132
    %v9134 = vpop.f32.mrb[0].mxu0
    %9135 = vmatprep.mubr.f32.mxu0 0.0
    %9136 = vmatmul.mubr.f32.gmra.mrb[0].mxu0 %v7140
    %v9137 = vpop.f32.mrb[0].mxu0
    %v9138 = vadd.f32 %v8753, %v9137
    %v9139 = vpop.f32.mrb[0].mxu0
    %9140 = vmatprep.mubr.f32.mxu0 0.0
    %9141 = vmatmul.mubr.f32.gmra.mrb[0].mxu0 %v7142
    %v9142 = vpop.f32.mrb[0].mxu0
    %v9143 = vadd.f32 %v8758, %v9142
    %v9144 = vpop.f32.mrb[0].mxu0
    %9145 = vmatprep.mubr.f32.mxu0 0.0
    %9146 = vmatmul.mubr.f32.gmra.mrb[0].mxu0 %v7145
    %v9147 = vpop.f32.mrb[0].mxu0
    %v9148 = vadd.f32 %v8763, %v9147
    %v9149 = vpop.f32.mrb[0].mxu0
    %9150 = vmatprep.mubr.f32.mxu0 0.0
    %9151 = vmatmul.mubr.f32.gmra.mrb[0].mxu0 %v7147
    %v9152 = vpop.f32.mrb[0].mxu0
    %v9153 = vadd.f32 %v8768, %v9152
    %v9154 = vpop.f32.mrb[0].mxu0
    %9155 = vmatprep.mubr.f32.mxu0 0.0
    %9156 = vmatmul.mubr.f32.gmra.mrb[0].mxu0 %v7150
    %v9157 = vpop.f32.mrb[0].mxu0
    %v9158 = vadd.f32 %v8773, %v9157
    %v9159 = vpop.f32.mrb[0].mxu0
    %9160 = vmatprep.mubr.f32.mxu0 0.0
    %9161 = vmatmul.mubr.f32.gmra.mrb[0].mxu0 %v7152
    %v9162 = vpop.f32.mrb[0].mxu0
    %v9163 = vadd.f32 %v8778, %v9162
    %v9164 = vpop.f32.mrb[0].mxu0
    %9165 = vmatprep.mubr.f32.mxu0 0.0
    %9166 = vmatmul.mubr.f32.gmra.mrb[0].mxu0 %v7155
    %v9167 = vpop.f32.mrb[0].mxu0
    %v9168 = vadd.f32 %v8783, %v9167
    %v9169 = vpop.f32.mrb[0].mxu0
    %9170 = vmatprep.mubr.f32.mxu0 0.0
    %9171 = vmatmul.mubr.f32.gmra.mrb[0].mxu0 %v7157
    %v9172 = vpop.f32.mrb[0].mxu0
    %v9173 = vadd.f32 %v8788, %v9172
    %v9174 = vpop.f32.mrb[0].mxu0
    %9175 = vmatprep.mubr.f32.mxu0 0.0
    %9176 = vmatmul.mubr.f32.gmra.mrb[0].mxu0 %v7160
    %v9177 = vpop.f32.mrb[0].mxu0
    %v9178 = vadd.f32 %v8793, %v9177
    %v9179 = vpop.f32.mrb[0].mxu0
    %9180 = vmatprep.mubr.f32.mxu0 0.0
    %9181 = vmatmul.mubr.f32.gmra.mrb[0].mxu0 %v7162
    %v9182 = vpop.f32.mrb[0].mxu0
    %v9183 = vadd.f32 %v8798, %v9182
    %v9184 = vpop.f32.mrb[0].mxu0
    %9185 = vmatprep.mubr.f32.mxu0 0.0
    %9186 = vmatmul.mubr.f32.gmra.mrb[0].mxu0 %v7165
    %v9187 = vpop.f32.mrb[0].mxu0
    %v9188 = vadd.f32 %v8803, %v9187
    %v9189 = vpop.f32.mrb[0].mxu0
    %9190 = vmatprep.mubr.f32.mxu0 0.0
    %9191 = vmatmul.mubr.f32.gmra.mrb[0].mxu0 %v7167
    %v9192 = vpop.f32.mrb[0].mxu0
    %v9193 = vadd.f32 %v8808, %v9192
    %v9194 = vpop.f32.mrb[0].mxu0
    %9195 = vmatprep.mubr.f32.mxu0 0.0
    %9196 = vmatmul.mubr.f32.gmra.mrb[0].mxu0 %v7170
    %v9197 = vpop.f32.mrb[0].mxu0
    %v9198 = vadd.f32 %v8813, %v9197
    %v9199 = vpop.f32.mrb[0].mxu0
    %9200 = vmatprep.mubr.f32.mxu0 0.0
    %9201 = vmatmul.mubr.f32.gmra.mrb[0].mxu0 %v7172
    %v9202 = vpop.f32.mrb[0].mxu0
    %v9203 = vadd.f32 %v8818, %v9202
    %v9204 = vpop.f32.mrb[0].mxu0
    %9205 = vmatprep.mubr.f32.mxu0 0.0
    %9206 = vmatmul.mubr.f32.gmra.mrb[0].mxu0 %v7175
    %v9207 = vpop.f32.mrb[0].mxu0
    %v9208 = vadd.f32 %v8823, %v9207
    %v9209 = vpop.f32.mrb[0].mxu0
    %9210 = vmatprep.mubr.f32.mxu0 0.0
    %9211 = vmatmul.mubr.f32.gmra.mrb[0].mxu0 %v7177
    %v9212 = vpop.f32.mrb[0].mxu0
    %v9213 = vadd.f32 %v8828, %v9212
    %v9214 = vpop.f32.mrb[0].mxu0
    %9215 = vmatprep.mubr.f32.mxu0 0.0
    %9216 = vmatmul.mubr.f32.gmra.mrb[0].mxu0 %v7180
    %v9217 = vpop.f32.mrb[0].mxu0
    %v9218 = vadd.f32 %v8833, %v9217
    %v9219 = vpop.f32.mrb[0].mxu0
    %9220 = vmatprep.mubr.f32.mxu0 0.0
    %9221 = vmatmul.mubr.f32.gmra.mrb[0].mxu0 %v7182
    %v9222 = vpop.f32.mrb[0].mxu0
    %v9223 = vadd.f32 %v8838, %v9222
    %v9224 = vpop.f32.mrb[0].mxu0
    %9225 = vmatprep.mubr.f32.mxu0 0.0
    %9226 = vmatmul.mubr.f32.gmra.mrb[0].mxu0 %v7185
    %v9227 = vpop.f32.mrb[0].mxu0
    %v9228 = vadd.f32 %v8843, %v9227
    %v9229 = vpop.f32.mrb[0].mxu0
    %9230 = vmatprep.mubr.f32.mxu0 0.0
    %9231 = vmatmul.mubr.f32.gmra.mrb[0].mxu0 %v7187
    %v9232 = vpop.f32.mrb[0].mxu0
    %v9233 = vadd.f32 %v8848, %v9232
    %v9234 = vpop.f32.mrb[0].mxu0
    %9235 = vmatprep.mubr.f32.mxu0 0.0
    %9236 = vmatmul.mubr.f32.gmra.mrb[0].mxu0 %v7190
    %v9237 = vpop.f32.mrb[0].mxu0
    %v9238 = vadd.f32 %v8853, %v9237
    %v9239 = vpop.f32.mrb[0].mxu0
    %9240 = vmatprep.mubr.f32.mxu0 0.0
    %9241 = vmatmul.mubr.f32.gmra.mrb[0].mxu0 %v7192
    %v9242 = vpop.f32.mrb[0].mxu0
    %v9243 = vadd.f32 %v8858, %v9242
    %v9244 = vpop.f32.mrb[0].mxu0
    %9245 = vmatprep.mubr.f32.mxu0 0.0
    %9246 = vmatmul.mubr.f32.gmra.mrb[0].mxu0 %v7195
    %v9247 = vpop.f32.mrb[0].mxu0
    %v9248 = vadd.f32 %v8863, %v9247
    %v9249 = vpop.f32.mrb[0].mxu0
    %9250 = vmatprep.mubr.f32.mxu0 0.0
    %9251 = vmatmul.mubr.f32.gmra.mrb[0].mxu0 %v7197
    %v9252 = vpop.f32.mrb[0].mxu0
    %v9253 = vadd.f32 %v8868, %v9252
    %v9254 = vpop.f32.mrb[0].mxu0
    %9255 = vmatprep.mubr.f32.mxu0 0.0
    %9256 = vmatmul.mubr.f32.gmra.mrb[0].mxu0 %v7200
    %v9257 = vpop.f32.mrb[0].mxu0
    %v9258 = vadd.f32 %v8873, %v9257
    %v9259 = vpop.f32.mrb[0].mxu0
    %9260 = vmatprep.mubr.f32.mxu0 0.0
    %9261 = vmatmul.mubr.f32.gmra.mrb[0].mxu0 %v7202
    %v9262 = vpop.f32.mrb[0].mxu0
    %v9263 = vadd.f32 %v8878, %v9262
    %v9264 = vpop.f32.mrb[0].mxu0
    %9265 = vmatprep.mubr.f32.mxu0 0.0
    %9266 = vmatmul.mubr.f32.gmra.mrb[0].mxu0 %v7358
    %v9267 = vpop.f32.mrb[0].mxu0
    %v9268 = vadd.f32 %v8883, %v9267
    %v9269 = vpop.f32.mrb[0].mxu0
    %9270 = vmatprep.mubr.f32.mxu0 0.0
    %9271 = vmatmul.mubr.f32.gmra.mrb[0].mxu0 %v7360
    %v9272 = vpop.f32.mrb[0].mxu0
    %v9273 = vadd.f32 %v8888, %v9272
    %v9274 = vpop.f32.mrb[0].mxu0
    %9275 = vmatprep.mubr.f32.mxu0 0.0
    %9276 = vmatmul.mubr.f32.gmra.mrb[0].mxu0 %v763
    %v9277 = vpop.f32.mrb[0].mxu0
    %v9278 = vadd.f32 %v8893, %v9277
    %v9279 = vpop.f32.mrb[0].mxu0
    %9280 = vmatprep.mubr.f32.mxu0 0.0
    %9281 = vmatmul.mubr.f32.gmra.mrb[0].mxu0 %v765
    %v9282 = vpop.f32.mrb[0].mxu0
    %v9283 = vadd.f32 %v8898, %v9282
    %v9284 = vpop.f32.mrb[0].mxu0
    %9285 = vmatprep.mubr.f32.mxu0 0.0
    %9286 = vmatmul.mubr.f32.gmra.mrb[0].mxu0 %v7210
    %v9287 = vpop.f32.mrb[0].mxu0
    %v9288 = vadd.f32 %v8903, %v9287
    %v9289 = vpop.f32.mrb[0].mxu0
    %9290 = vmatprep.mubr.f32.mxu0 0.0
    %9291 = vmatmul.mubr.f32.gmra.mrb[0].mxu0 %v7212
    %v9292 = vpop.f32.mrb[0].mxu0
    %v9293 = vadd.f32 %v8908, %v9292
    %v9294 = vpop.f32.mrb[0].mxu0
    %9295 = vmatprep.mubr.f32.mxu0 0.0
    %9296 = vmatmul.mubr.f32.gmra.mrb[0].mxu0 %v7215
    %v9297 = vpop.f32.mrb[0].mxu0
    %v9298 = vadd.f32 %v8913, %v9297
    %v9299 = vpop.f32.mrb[0].mxu0
    %9300 = vmatprep.mubr.f32.mxu0 0.0
    %9301 = vmatmul.mubr.f32.gmra.mrb[0].mxu0 %v7217
    %v9302 = vpop.f32.mrb[0].mxu0
    %v9303 = vadd.f32 %v8918, %v9302
    %v9304 = vpop.f32.mrb[0].mxu0
    %9305 = vmatprep.mubr.f32.mxu0 0.0
    %9306 = vmatmul.mubr.f32.gmra.mrb[0].mxu0 %v7220
    %v9307 = vpop.f32.mrb[0].mxu0
    %v9308 = vadd.f32 %v8923, %v9307
    %v9309 = vpop.f32.mrb[0].mxu0
    %9310 = vmatprep.mubr.f32.mxu0 0.0
    %9311 = vmatmul.mubr.f32.gmra.mrb[0].mxu0 %v7222
    %v9312 = vpop.f32.mrb[0].mxu0
    %v9313 = vadd.f32 %v8928, %v9312
    %v9314 = vpop.f32.mrb[0].mxu0
    %9315 = vmatprep.mubr.f32.mxu0 0.0
    %9316 = vmatmul.mubr.f32.gmra.mrb[0].mxu0 %v7225
    %v9317 = vpop.f32.mrb[0].mxu0
    %v9318 = vadd.f32 %v8933, %v9317
    %v9319 = vpop.f32.mrb[0].mxu0
    %9320 = vmatprep.mubr.f32.mxu0 0.0
    %9321 = vmatmul.mubr.f32.gmra.mrb[0].mxu0 %v7227
    %v9322 = vpop.f32.mrb[0].mxu0
    %v9323 = vadd.f32 %v8938, %v9322
    %v9324 = vpop.f32.mrb[0].mxu0
    %9325 = vmatprep.mubr.f32.mxu0 0.0
    %9326 = vmatmul.mubr.f32.gmra.mrb[0].mxu0 %v7230
    %v9327 = vpop.f32.mrb[0].mxu0
    %v9328 = vadd.f32 %v8943, %v9327
    %v9329 = vpop.f32.mrb[0].mxu0
    %9330 = vmatprep.mubr.f32.mxu0 0.0
    %9331 = vmatmul.mubr.f32.gmra.mrb[0].mxu0 %v7232
    %v9332 = vpop.f32.mrb[0].mxu0
    %v9333 = vadd.f32 %v8948, %v9332
    %v9334 = vpop.f32.mrb[0].mxu0
    %9335 = vmatprep.mubr.f32.mxu0 0.0
    %9336 = vmatmul.mubr.f32.gmra.mrb[0].mxu0 %v7235
    %v9337 = vpop.f32.mrb[0].mxu0
    %v9338 = vadd.f32 %v8953, %v9337
    %v9339 = vpop.f32.mrb[0].mxu0
    %9340 = vmatprep.mubr.f32.mxu0 0.0
    %9341 = vmatmul.mubr.f32.gmra.mrb[0].mxu0 %v7237
    %v9342 = vpop.f32.mrb[0].mxu0
    %v9343 = vadd.f32 %v8958, %v9342
    %v9344 = vpop.f32.mrb[0].mxu0
    %9345 = vmatprep.mubr.f32.mxu0 0.0
    %9346 = vmatmul.mubr.f32.gmra.mrb[0].mxu0 %v7240
    %v9347 = vpop.f32.mrb[0].mxu0
    %v9348 = vadd.f32 %v8963, %v9347
    %v9349 = vpop.f32.mrb[0].mxu0
    %9350 = vmatprep.mubr.f32.mxu0 0.0
    %9351 = vmatmul.mubr.f32.gmra.mrb[0].mxu0 %v7242
    %v9352 = vpop.f32.mrb[0].mxu0
    %v9353 = vadd.f32 %v8968, %v9352
    %v9354 = vpop.f32.mrb[0].mxu0
    %9355 = vmatprep.mubr.f32.mxu0 0.0
    %9356 = vmatmul.mubr.f32.gmra.mrb[0].mxu0 %v7245
    %v9357 = vpop.f32.mrb[0].mxu0
    %v9358 = vadd.f32 %v8973, %v9357
    %v9359 = vpop.f32.mrb[0].mxu0
    %9360 = vmatprep.mubr.f32.mxu0 0.0
    %9361 = vmatmul.mubr.f32.gmra.mrb[0].mxu0 %v7247
    %v9362 = vpop.f32.mrb[0].mxu0
    %v9363 = vadd.f32 %v8978, %v9362
    %v9364 = vpop.f32.mrb[0].mxu0
    %9365 = vmatprep.mubr.f32.mxu0 0.0
    %9366 = vmatmul.mubr.f32.gmra.mrb[0].mxu0 %v7250
    %v9367 = vpop.f32.mrb[0].mxu0
    %v9368 = vadd.f32 %v8983, %v9367
    %v9369 = vpop.f32.mrb[0].mxu0
    %9370 = vmatprep.mubr.f32.mxu0 0.0
    %9371 = vmatmul.mubr.f32.gmra.mrb[0].mxu0 %v7252
    %v9372 = vpop.f32.mrb[0].mxu0
    %v9373 = vadd.f32 %v8988, %v9372
    %v9374 = vpop.f32.mrb[0].mxu0
    %9375 = vmatprep.mubr.f32.mxu0 0.0
    %9376 = vmatmul.mubr.f32.gmra.mrb[0].mxu0 %v7255
    %v9377 = vpop.f32.mrb[0].mxu0
    %v9378 = vadd.f32 %v8993, %v9377
    %v9379 = vpop.f32.mrb[0].mxu0
    %9380 = vmatprep.mubr.f32.mxu0 0.0
    %9381 = vmatmul.mubr.f32.gmra.mrb[0].mxu0 %v7257
    %v9382 = vpop.f32.mrb[0].mxu0
    %v9383 = vadd.f32 %v8998, %v9382
    %v9384 = vpop.f32.mrb[0].mxu0
    %9385 = vmatprep.mubr.f32.mxu0 0.0
    %9386 = vmatmul.mubr.f32.gmra.mrb[0].mxu0 %v7260
    %v9387 = vpop.f32.mrb[0].mxu0
    %v9388 = vadd.f32 %v9003, %v9387
    %v9389 = vpop.f32.mrb[0].mxu0
    %9390 = vmatprep.mubr.f32.mxu0 0.0
    %9391 = vmatmul.mubr.f32.gmra.mrb[0].mxu0 %v7262
    %v9392 = vpop.f32.mrb[0].mxu0
    %v9393 = vadd.f32 %v9008, %v9392
    %v9394 = vpop.f32.mrb[0].mxu0
    %9395 = vmatprep.mubr.f32.mxu0 0.0
    %9396 = vmatmul.mubr.f32.gmra.mrb[0].mxu0 %v7265
    %v9397 = vpop.f32.mrb[0].mxu0
    %v9398 = vadd.f32 %v9013, %v9397
    %v9399 = vpop.f32.mrb[0].mxu0
    %9400 = vmatprep.mubr.f32.mxu0 0.0
    %9401 = vmatmul.mubr.f32.gmra.mrb[0].mxu0 %v7267
    %v9402 = vpop.f32.mrb[0].mxu0
    %v9403 = vadd.f32 %v9018, %v9402
    %v9404 = vpop.f32.mrb[0].mxu0
    %9405 = vmatprep.mubr.f32.mxu0 0.0
    %9406 = vmatmul.mubr.f32.gmra.mrb[0].mxu0 %v7270
    %v9407 = vpop.f32.mrb[0].mxu0
    %v9408 = vadd.f32 %v9023, %v9407
    %v9409 = vpop.f32.mrb[0].mxu0
    %9410 = vmatprep.mubr.f32.mxu0 0.0
    %9411 = vmatmul.mubr.f32.gmra.mrb[0].mxu0 %v7272
    %v9412 = vpop.f32.mrb[0].mxu0
    %v9413 = vadd.f32 %v9028, %v9412
    %v9414 = vpop.f32.mrb[0].mxu0
    %9415 = vmatprep.mubr.f32.mxu0 0.0
    %9416 = vmatmul.mubr.f32.gmra.mrb[0].mxu0 %v7275
    %v9417 = vpop.f32.mrb[0].mxu0
    %v9418 = vadd.f32 %v9033, %v9417
    %v9419 = vpop.f32.mrb[0].mxu0
    %9420 = vmatprep.mubr.f32.mxu0 0.0
    %9421 = vmatmul.mubr.f32.gmra.mrb[0].mxu0 %v7277
    %v9422 = vpop.f32.mrb[0].mxu0
    %v9423 = vadd.f32 %v9038, %v9422
    %v9424 = vpop.f32.mrb[0].mxu0
    %9425 = vmatprep.mubr.f32.mxu0 0.0
    %9426 = vmatmul.mubr.f32.gmra.mrb[0].mxu0 %v7363
    %v9427 = vpop.f32.mrb[0].mxu0
    %v9428 = vadd.f32 %v9043, %v9427
    %v9429 = vpop.f32.mrb[0].mxu0
    %9430 = vmatprep.mubr.f32.mxu0 0.0
    %9431 = vmatmul.mubr.f32.gmra.mrb[0].mxu0 %v7365
    %v9432 = vpop.f32.mrb[0].mxu0
    %v9433 = vadd.f32 %v9048, %v9432
    %v9434 = vpop.f32.mrb[0].mxu0
    %9435 = vmatprep.mubr.f32.mxu0 0.0
    %9436 = vmatmul.mubr.f32.gmra.mrb[0].mxu0 %v763
    %v9437 = vpop.f32.mrb[0].mxu0
    %v9438 = vadd.f32 %v9053, %v9437
    %v9439 = vpop.f32.mrb[0].mxu0
    %9440 = vmatprep.mubr.f32.mxu0 0.0
    %9441 = vmatmul.mubr.f32.gmra.mrb[0].mxu0 %v765
    %v9442 = vpop.f32.mrb[0].mxu0
    %v9443 = vadd.f32 %v9058, %v9442
    %v9444 = vpop.f32.mrb[0].mxu0
    %9445 = vdwg.mxu0
    %v9446 = vmax.f32 %v9128, 0.0
    %v9447 = vmax.f32 %v9133, 0.0
    %v9448 = vmax.f32 %v9138, 0.0
    %v9449 = vmax.f32 %v9143, 0.0
    %v9450 = vmax.f32 %v9148, 0.0
    %v9451 = vmax.f32 %v9153, 0.0
    %v9452 = vmax.f32 %v9158, 0.0
    %v9453 = vmax.f32 %v9163, 0.0
    %v9454 = vmax.f32 %v9168, 0.0
    %v9455 = vmax.f32 %v9173, 0.0
    %v9456 = vmax.f32 %v9178, 0.0
    %v9457 = vmax.f32 %v9183, 0.0
    %v9458 = vmax.f32 %v9188, 0.0
    %v9459 = vmax.f32 %v9193, 0.0
    %v9460 = vmax.f32 %v9198, 0.0
    %v9461 = vmax.f32 %v9203, 0.0
    %v9462 = vmax.f32 %v9208, 0.0
    %v9463 = vmax.f32 %v9213, 0.0
    %v9464 = vmax.f32 %v9218, 0.0
    %v9465 = vmax.f32 %v9223, 0.0
    %v9466 = vmax.f32 %v9228, 0.0
    %v9467 = vmax.f32 %v9233, 0.0
    %v9468 = vmax.f32 %v9238, 0.0
    %v9469 = vmax.f32 %v9243, 0.0
    %v9470 = vmax.f32 %v9248, 0.0
    %v9471 = vmax.f32 %v9253, 0.0
    %v9472 = vmax.f32 %v9258, 0.0
    %v9473 = vmax.f32 %v9263, 0.0
    %v9474 = vmax.f32 %v9268, 0.0
    %v9475 = vmax.f32 %v9273, 0.0
    %v9476 = vmax.f32 %v9278, 0.0
    %v9477 = vmax.f32 %v9283, 0.0
    %v9478 = vmax.f32 %v9288, 0.0
    %v9479 = vmax.f32 %v9293, 0.0
    %v9480 = vmax.f32 %v9298, 0.0
    %v9481 = vmax.f32 %v9303, 0.0
    %v9482 = vmax.f32 %v9308, 0.0
    %v9483 = vmax.f32 %v9313, 0.0
    %v9484 = vmax.f32 %v9318, 0.0
    %v9485 = vmax.f32 %v9323, 0.0
    %v9486 = vmax.f32 %v9328, 0.0
    %v9487 = vmax.f32 %v9333, 0.0
    %v9488 = vmax.f32 %v9338, 0.0
    %v9489 = vmax.f32 %v9343, 0.0
    %v9490 = vmax.f32 %v9348, 0.0
    %v9491 = vmax.f32 %v9353, 0.0
    %v9492 = vmax.f32 %v9358, 0.0
    %v9493 = vmax.f32 %v9363, 0.0
    %v9494 = vmax.f32 %v9368, 0.0
    %v9495 = vmax.f32 %v9373, 0.0
    %v9496 = vmax.f32 %v9378, 0.0
    %v9497 = vmax.f32 %v9383, 0.0
    %v9498 = vmax.f32 %v9388, 0.0
    %v9499 = vmax.f32 %v9393, 0.0
    %v9500 = vmax.f32 %v9398, 0.0
    %v9501 = vmax.f32 %v9403, 0.0
    %v9502 = vmax.f32 %v9408, 0.0
    %v9503 = vmax.f32 %v9413, 0.0
    %v9504 = vmax.f32 %v9418, 0.0
    %v9505 = vmax.f32 %v9423, 0.0
    %v9506 = vmax.f32 %v9428, 0.0
    %v9507 = vmax.f32 %v9433, 0.0
    %v9508 = vmax.f32 %v9438, 0.0
    %v9509 = vmax.f32 %v9443, 0.0
    %9510 = vst [vmem:[#allocation10] sm:$0xff] %v9446
    %9511 = vst [vmem:[#allocation10 + $0x8] sm:$0xff] %v9447
    %9512 = vst [vmem:[#allocation10 + $0x10] sm:$0xff] %v9448
    %9513 = vst [vmem:[#allocation10 + $0x18] sm:$0xff] %v9449
    %9514 = vst [vmem:[#allocation10 + $0x20] sm:$0xff] %v9450
    %9515 = vst [vmem:[#allocation10 + $0x28] sm:$0xff] %v9451
    %9516 = vst [vmem:[#allocation10 + $0x30] sm:$0xff] %v9452
    %9517 = vst [vmem:[#allocation10 + $0x38] sm:$0xff] %v9453
    %9518 = vst [vmem:[#allocation10 + $0x40] sm:$0xff] %v9454
    %9519 = vst [vmem:[#allocation10 + $0x48] sm:$0xff] %v9455
    %9520 = vst [vmem:[#allocation10 + $0x50] sm:$0xff] %v9456
    %9521 = vst [vmem:[#allocation10 + $0x58] sm:$0xff] %v9457
    %9522 = vst [vmem:[#allocation10 + $0x60] sm:$0xff] %v9458
    %9523 = vst [vmem:[#allocation10 + $0x68] sm:$0xff] %v9459
    %9524 = vst [vmem:[#allocation10 + $0x70] sm:$0xff] %v9460
    %9525 = vst [vmem:[#allocation10 + $0x78] sm:$0xff] %v9461
    %9526 = vst [vmem:[#allocation10 + $0x80] sm:$0xff] %v9462
    %9527 = vst [vmem:[#allocation10 + $0x88] sm:$0xff] %v9463
    %9528 = vst [vmem:[#allocation10 + $0x90] sm:$0xff] %v9464
    %9529 = vst [vmem:[#allocation10 + $0x98] sm:$0xff] %v9465
    %9530 = vst [vmem:[#allocation10 + $0xa0] sm:$0xff] %v9466
    %9531 = vst [vmem:[#allocation10 + $0xa8] sm:$0xff] %v9467
    %9532 = vst [vmem:[#allocation10 + $0xb0] sm:$0xff] %v9468
    %9533 = vst [vmem:[#allocation10 + $0xb8] sm:$0xff] %v9469
    %9534 = vst [vmem:[#allocation10 + $0xc0] sm:$0xff] %v9470
    %9535 = vst [vmem:[#allocation10 + $0xc8] sm:$0xff] %v9471
    %9536 = vst [vmem:[#allocation10 + $0xd0] sm:$0xff] %v9472
    %9537 = vst [vmem:[#allocation10 + $0xd8] sm:$0xff] %v9473
    %9538 = vst [vmem:[#allocation10 + $0xe0] sm:$0xff] %v9474
    %9539 = vst [vmem:[#allocation10 + $0xe8] sm:$0xff] %v9475
    %9540 = vst [vmem:[#allocation10 + $0xf0] sm:$0xff] %v9476
    %9541 = vst [vmem:[#allocation10 + $0xf8] sm:$0xff] %v9477
    %9542 = vst [vmem:[#allocation10 + $0x100] sm:$0xff] %v9478
    %9543 = vst [vmem:[#allocation10 + $0x108] sm:$0xff] %v9479
    %9544 = vst [vmem:[#allocation10 + $0x110] sm:$0xff] %v9480
    %9545 = vst [vmem:[#allocation10 + $0x118] sm:$0xff] %v9481
    %9546 = vst [vmem:[#allocation10 + $0x120] sm:$0xff] %v9482
    %9547 = vst [vmem:[#allocation10 + $0x128] sm:$0xff] %v9483
    %9548 = vst [vmem:[#allocation10 + $0x130] sm:$0xff] %v9484
    %9549 = vst [vmem:[#allocation10 + $0x138] sm:$0xff] %v9485
    %9550 = vst [vmem:[#allocation10 + $0x140] sm:$0xff] %v9486
    %9551 = vst [vmem:[#allocation10 + $0x148] sm:$0xff] %v9487
    %9552 = vst [vmem:[#allocation10 + $0x150] sm:$0xff] %v9488
    %9553 = vst [vmem:[#allocation10 + $0x158] sm:$0xff] %v9489
    %9554 = vst [vmem:[#allocation10 + $0x160] sm:$0xff] %v9490
    %9555 = vst [vmem:[#allocation10 + $0x168] sm:$0xff] %v9491
    %9556 = vst [vmem:[#allocation10 + $0x170] sm:$0xff] %v9492
    %9557 = vst [vmem:[#allocation10 + $0x178] sm:$0xff] %v9493
    %9558 = vst [vmem:[#allocation10 + $0x180] sm:$0xff] %v9494
    %9559 = vst [vmem:[#allocation10 + $0x188] sm:$0xff] %v9495
    %9560 = vst [vmem:[#allocation10 + $0x190] sm:$0xff] %v9496
    %9561 = vst [vmem:[#allocation10 + $0x198] sm:$0xff] %v9497
    %9562 = vst [vmem:[#allocation10 + $0x1a0] sm:$0xff] %v9498
    %9563 = vst [vmem:[#allocation10 + $0x1a8] sm:$0xff] %v9499
    %9564 = vst [vmem:[#allocation10 + $0x1b0] sm:$0xff] %v9500
    %9565 = vst [vmem:[#allocation10 + $0x1b8] sm:$0xff] %v9501
    %9566 = vst [vmem:[#allocation10 + $0x1c0] sm:$0xff] %v9502
    %9567 = vst [vmem:[#allocation10 + $0x1c8] sm:$0xff] %v9503
    %9568 = vst [vmem:[#allocation10 + $0x1d0] sm:$0xff] %v9504
    %9569 = vst [vmem:[#allocation10 + $0x1d8] sm:$0xff] %v9505
    %9570 = vst [vmem:[#allocation10 + $0x1e0] sm:$0xff] %v9506
    %9571 = vst [vmem:[#allocation10 + $0x1e8] sm:$0xff] %v9507
    %9572 = vst [vmem:[#allocation10 + $0x1f0] sm:$0xff] %v9508
    %9573 = vst [vmem:[#allocation10 + $0x1f8] sm:$0xff] %v9509
    // Predicated region
    $region54: #{tpu_custom_call.1} parent=1 // pred_check
      _
    $region55: #{tpu_custom_call.1} parent=1 // pred_check_branch
      %9575 = sbr.rel (0) target = $region57
    $region56: #{tpu_custom_call.1} parent=1 // pred_region
      %s9577 = ssub.s32 8192, 8192
      %9578 = vsyncadd [#allocation4], %s9577
      %s9579 = sshll.u32 [#allocation10], 4
      %s9580 = int_to_ptr.vmem [resolvable:$true] %s9579
      %9585 = dma.vmem_to_hbm [thread:$0]  %s9580, 8192, %s9, [#allocation4], 128, 128, 8
    $region57: #{tpu_custom_call.1} parent=1 // pred_fallthru
      _
    // Predicated region
    $region58: #{tpu_custom_call.1} parent=1 // pred_check
      _
    $region59: #{tpu_custom_call.1} parent=1 // pred_check_branch
      %9587 = sbr.rel (0) target = $region61
    $region60: #{tpu_custom_call.1} parent=1 // pred_region
      %9588 = dma.done [#allocation4], 8192
    $region61: #{tpu_custom_call.1} parent=1 // pred_fallthru
      _
    %9589 = vsyncpa [#allocation3], 1
    %9590 = vsyncpa [#allocation6], 1
    %9591 = vsyncpa [#allocation9], 1
    %9592 = vsyncpa [#allocation4], 1

</llo_original>
